<compile_context>
chip_gen: v7x
topology: tpu7x:2x2x1
jax: 0.10.0
libtpu: 0.0.40
codegen_flags: <defaults>
</compile_context>

<pallas_src>
import functools

import jax
import jax.numpy as jnp
from jax.experimental import pallas as pl
from jax.experimental.pallas import tpu as pltpu

ENC_DIMS = [28 * 28, 128, 64, 32, 16]
DEC_DIMS = [16, 32, 64, 128, 28 * 28]

D_IN = 28 * 28        # 784 = 6*128 + 16 (ragged trailing lane tile)
D_PAD = 7 * 128       # 896 lane-dense padded feature width used inside the kernel
TB = 512              # batch tile (fills 256-row MXU on v6e/v7x; fits VMEM on v5e)


def autoencoder_kernel(x_ref,
                       we0, be0, we1, be1, we2, be2,
                       wm, bm,                       # fused enc3(32->16) @ dec0(16->32)
                       wd1, bd1, wd2, bd2, wd3, bd3,
                       o_ref):
    def dense(h, w_ref, b_ref):
        # bf16 (or f32) operands on the MXU, f32 accumulate, f32 bias add.
        return jnp.dot(h.astype(w_ref.dtype), w_ref[...],
                       preferred_element_type=jnp.float32) + b_ref[...]

    h = x_ref[...]

    # ---- encoder: Linear+ReLU x3 ----
    h = jnp.maximum(dense(h, we0, be0), 0.0)
    h = jnp.maximum(dense(h, we1, be1), 0.0)
    h = jnp.maximum(dense(h, we2, be2), 0.0)

    # ---- fused bottleneck: (32->16 Linear) then (16->32 Linear), then ReLU ----
    h = jnp.maximum(dense(h, wm, bm), 0.0)

    # ---- decoder: Linear+ReLU x2, then Linear+Tanh ----
    h = jnp.maximum(dense(h, wd1, bd1), 0.0)
    h = jnp.maximum(dense(h, wd2, bd2), 0.0)
    # TODO(synk): if xprof shows the single EUP binding after the bf16 switch,
    # compute the tanh in bf16 on v6e/v7x (bf16 EUP) or use a VPU rational approx.
    h = jnp.tanh(dense(h, wd3, bd3))

    o_ref[...] = h.astype(o_ref.dtype)


def _resident_spec(arr):
    # Whole-array block with a constant index_map => DMA'd once, stays
    # VMEM-resident across all grid steps.
    # TODO(synk): pipeline_mode=pl.Buffered(1) would drop the duplicate pipeline
    # buffer for these constant blocks; skipped since VMEM is not tight here.
    return pl.BlockSpec(arr.shape, lambda i: (0,) * arr.ndim)


def autoencoder_forward(x, params, *, tb=TB, compute_dtype=jnp.bfloat16):
    """x: (B, 784). params: flat list [We0, be0, ..., Wd3, bd3] with W as (in, out).

    Returns (B, 784) in x.dtype.  compute_dtype=jnp.bfloat16 (default) runs the
    fast bf16-MXU / bf16-HBM-stream path; jnp.float32 keeps an f32-exact path.
    """
    B, d_in = x.shape
    assert d_in == D_IN

    (we0, be0, we1, be1, we2, be2, we3, be3,
     wd0, bd0, wd1, bd1, wd2, bd2, wd3, bd3) = params

    # Fold the bottleneck pair (no nonlinearity between them) into one 32->32
    # linear, in f32.
    wm = we3 @ wd0
    bm = be3 @ wd0 + bd0

    # Lane-pad the 784-wide first-layer K and last-layer N to 896 with zeros.
    we0p = jnp.pad(we0, ((0, D_PAD - D_IN), (0, 0)))
    wd3p = jnp.pad(wd3, ((0, 0), (0, D_PAD - D_IN)))
    bd3p = jnp.pad(bd3, ((0, 0), (0, D_PAD - D_IN)))

    weights = [we0p, we1, we2, wm, wd1, wd2, wd3p]
    biases = [be0, be1, be2, bm, bd1, bd2, bd3p]
    kparams = []
    for w, b in zip(weights, biases):
        kparams += [w.astype(compute_dtype), b.astype(jnp.float32)]

    # Pad the batch to a tile multiple, pad features 784->896, cast the HBM
    # stream to compute_dtype (pad + convert fuse into one XLA pass).
    num_tiles = pl.cdiv(B, tb)
    b_pad = num_tiles * tb
    x_k = jnp.pad(x, ((0, b_pad - B), (0, D_PAD - D_IN))).astype(compute_dtype)

    in_specs = [pl.BlockSpec((tb, D_PAD), lambda i: (i, 0))]
    in_specs += [_resident_spec(p) for p in kparams]
    out_spec = pl.BlockSpec((tb, D_PAD), lambda i: (i, 0))

    layer_dims = [(D_PAD, 128), (128, 64), (64, 32), (32, 32),
                  (32, 64), (64, 128), (128, D_PAD)]
    io_itemsize = jnp.dtype(compute_dtype).itemsize
    param_bytes = sum(int(p.size) * p.dtype.itemsize for p in kparams)
    cost = pl.CostEstimate(
        flops=2 * b_pad * sum(m * n for m, n in layer_dims),
        transcendentals=b_pad * D_PAD,                       # tanh on the output
        bytes_accessed=2 * b_pad * D_PAD * io_itemsize + param_bytes,
    )

    out = pl.pallas_call(
        autoencoder_kernel,
        out_shape=jax.ShapeDtypeStruct((b_pad, D_PAD), compute_dtype),
        grid=(num_tiles,),
        in_specs=in_specs,
        out_specs=out_spec,
        compiler_params=pltpu.CompilerParams(
            dimension_semantics=("parallel",),   # batch axis: megacore-shardable
            vmem_limit_bytes=32 * 1024 * 1024,   # headroom for f32 path on v5e
        ),
        cost_estimate=cost,
    )(x_k, *kparams)

    # Strip batch/feature padding (padded rows/cols hold tanh-of-bias garbage /
    # zeros and are discarded).  Slice + cast back fuse into one XLA pass.
    return out[:B, :D_IN].astype(x.dtype)


def init_params(key):
    """Deterministic param init (PyTorch Linear-style uniform fan-in bound)."""
    params = []
    dims = list(zip(ENC_DIMS[:-1], ENC_DIMS[1:])) + list(zip(DEC_DIMS[:-1], DEC_DIMS[1:]))
    for (fan_in, fan_out) in dims:
        key, kw, kb = jax.random.split(key, 3)
        bound = 1.0 / (fan_in ** 0.5)
        w = jax.random.uniform(kw, (fan_in, fan_out), jnp.float32, -bound, bound)  # = W_pt.T
        b = jax.random.uniform(kb, (1, fan_out), jnp.float32, -bound, bound)
        params += [w, b]
    return params


def reference_forward(x, params):
    """Plain-JAX f32 reference (full unfused 8-layer chain)."""
    h = x
    n_layers = len(params) // 2
    for i in range(n_layers):
        w, b = params[2 * i], params[2 * i + 1]
        h = h @ w + b
        if i < 3 or (3 < i < 7):   # ReLU after every layer except enc out (3) and dec out (7)
            h = jnp.maximum(h, 0.0)
    return jnp.tanh(h)


if __name__ == "__main__":
    key = jax.random.PRNGKey(0)
    kx, kp = jax.random.split(key)

    B = 600  # -> 2 batch tiles of 512 (even tile count for v7x), exercises padding
    x = jax.random.normal(kx, (B, 28 * 28), jnp.float32)
    params = init_params(kp)

    ref = reference_forward(x, params)

    # f32-exact path: tight check of the structure (fold, lane padding, tiling).
    fwd_f32 = jax.jit(functools.partial(autoencoder_forward, compute_dtype=jnp.float32))
    out_f32 = jax.block_until_ready(fwd_f32(x, params))
    assert out_f32.shape == (B, 28 * 28)
    assert jnp.allclose(out_f32, ref, atol=1e-4, rtol=1e-4), "f32 path mismatch vs reference"

    # bf16 fast path (default): bf16 MXU operands + bf16 HBM streams, f32 accum.
    fwd = jax.jit(autoencoder_forward)
    out = jax.block_until_ready(fwd(x, params))
    assert out.shape == (B, 28 * 28)
    max_err = float(jnp.max(jnp.abs(out - ref)))
    assert max_err < 5e-2, f"bf16 path mismatch vs reference: max abs err {max_err}"

    print("KERNEL_OK")
</pallas_src>

<mosaic_0001>
module attributes {stable_mosaic.version = 11 : i64} {
  func.func @autoencoder_kernel(%arg0: i32, %arg1: memref<512x896xf32, #tpu.memory_space<vmem>>, %arg2: memref<896x128xf32, #tpu.memory_space<vmem>>, %arg3: memref<1x128xf32, #tpu.memory_space<vmem>>, %arg4: memref<128x64xf32, #tpu.memory_space<vmem>>, %arg5: memref<1x64xf32, #tpu.memory_space<vmem>>, %arg6: memref<64x32xf32, #tpu.memory_space<vmem>>, %arg7: memref<1x32xf32, #tpu.memory_space<vmem>>, %arg8: memref<32x32xf32, #tpu.memory_space<vmem>>, %arg9: memref<1x32xf32, #tpu.memory_space<vmem>>, %arg10: memref<32x64xf32, #tpu.memory_space<vmem>>, %arg11: memref<1x64xf32, #tpu.memory_space<vmem>>, %arg12: memref<64x128xf32, #tpu.memory_space<vmem>>, %arg13: memref<1x128xf32, #tpu.memory_space<vmem>>, %arg14: memref<128x896xf32, #tpu.memory_space<vmem>>, %arg15: memref<1x896xf32, #tpu.memory_space<vmem>>, %arg16: memref<512x896xf32, #tpu.memory_space<vmem>>) attributes {dimension_semantics = [#tpu.dimension_semantics<parallel>], iteration_bounds = array<i64: 2>, scalar_prefetch = 0 : i64, scratch_operands = 0 : i64, tpu.core_type = #tpu.core_type<tc>, window_params = [{transform_indices = @transform_0, window_bounds = array<i64: 512, 896>}, {pipeline_mode = #tpu.pipeline_mode<synchronous>, transform_indices = @transform_1, window_bounds = array<i64: 896, 128>}, {pipeline_mode = #tpu.pipeline_mode<synchronous>, transform_indices = @transform_2, window_bounds = array<i64: 1, 128>}, {pipeline_mode = #tpu.pipeline_mode<synchronous>, transform_indices = @transform_3, window_bounds = array<i64: 128, 64>}, {pipeline_mode = #tpu.pipeline_mode<synchronous>, transform_indices = @transform_4, window_bounds = array<i64: 1, 64>}, {pipeline_mode = #tpu.pipeline_mode<synchronous>, transform_indices = @transform_5, window_bounds = array<i64: 64, 32>}, {pipeline_mode = #tpu.pipeline_mode<synchronous>, transform_indices = @transform_6, window_bounds = array<i64: 1, 32>}, {pipeline_mode = #tpu.pipeline_mode<synchronous>, transform_indices = @transform_7, window_bounds = array<i64: 32, 32>}, {pipeline_mode = #tpu.pipeline_mode<synchronous>, transform_indices = @transform_8, window_bounds = array<i64: 1, 32>}, {pipeline_mode = #tpu.pipeline_mode<synchronous>, transform_indices = @transform_9, window_bounds = array<i64: 32, 64>}, {pipeline_mode = #tpu.pipeline_mode<synchronous>, transform_indices = @transform_10, window_bounds = array<i64: 1, 64>}, {pipeline_mode = #tpu.pipeline_mode<synchronous>, transform_indices = @transform_11, window_bounds = array<i64: 64, 128>}, {pipeline_mode = #tpu.pipeline_mode<synchronous>, transform_indices = @transform_12, window_bounds = array<i64: 1, 128>}, {pipeline_mode = #tpu.pipeline_mode<synchronous>, transform_indices = @transform_13, window_bounds = array<i64: 128, 896>}, {pipeline_mode = #tpu.pipeline_mode<synchronous>, transform_indices = @transform_14, window_bounds = array<i64: 1, 896>}, {transform_indices = @transform_15, window_bounds = array<i64: 512, 896>}]} {
    %c0 = arith.constant 0 : index
    %c0_0 = arith.constant 0 : index
    %0 = vector.load %arg1[%c0, %c0_0] : memref<512x896xf32, #tpu.memory_space<vmem>>, vector<512x896xf32>
    %c0_1 = arith.constant 0 : index
    %c0_2 = arith.constant 0 : index
    %1 = vector.load %arg2[%c0_1, %c0_2] : memref<896x128xf32, #tpu.memory_space<vmem>>, vector<896x128xf32>
    %cst = arith.constant dense<0.000000e+00> : vector<512x128xf32>
    %2 = tpu.matmul %0, %1, %cst {dimension_numbers = #tpu.dot_dimension_numbers<[1], [0], [0], [1], [0, 0, 1, 1], [], []>} : vector<512x896xf32>, vector<896x128xf32>, vector<512x128xf32> -> vector<512x128xf32>
    %c0_3 = arith.constant 0 : index
    %c0_4 = arith.constant 0 : index
    %3 = vector.load %arg3[%c0_3, %c0_4] : memref<1x128xf32, #tpu.memory_space<vmem>>, vector<1x128xf32>
    %4 = vector.broadcast %3 : vector<1x128xf32> to vector<512x128xf32>
    %5 = arith.addf %2, %4 : vector<512x128xf32>
    %cst_5 = arith.constant 0.000000e+00 : f32
    %6 = vector.broadcast %cst_5 : f32 to vector<512x128xf32>
    %7 = arith.maximumf %5, %6 : vector<512x128xf32>
    %c0_6 = arith.constant 0 : index
    %c0_7 = arith.constant 0 : index
    %8 = vector.load %arg4[%c0_6, %c0_7] : memref<128x64xf32, #tpu.memory_space<vmem>>, vector<128x64xf32>
    %cst_8 = arith.constant dense<0.000000e+00> : vector<512x64xf32>
    %9 = tpu.matmul %7, %8, %cst_8 {dimension_numbers = #tpu.dot_dimension_numbers<[1], [0], [0], [1], [0, 0, 1, 1], [], []>} : vector<512x128xf32>, vector<128x64xf32>, vector<512x64xf32> -> vector<512x64xf32>
    %c0_9 = arith.constant 0 : index
    %c0_10 = arith.constant 0 : index
    %10 = vector.load %arg5[%c0_9, %c0_10] : memref<1x64xf32, #tpu.memory_space<vmem>>, vector<1x64xf32>
    %11 = vector.broadcast %10 : vector<1x64xf32> to vector<512x64xf32>
    %12 = arith.addf %9, %11 : vector<512x64xf32>
    %cst_11 = arith.constant 0.000000e+00 : f32
    %13 = vector.broadcast %cst_11 : f32 to vector<512x64xf32>
    %14 = arith.maximumf %12, %13 : vector<512x64xf32>
    %c0_12 = arith.constant 0 : index
    %c0_13 = arith.constant 0 : index
    %15 = vector.load %arg6[%c0_12, %c0_13] : memref<64x32xf32, #tpu.memory_space<vmem>>, vector<64x32xf32>
    %cst_14 = arith.constant dense<0.000000e+00> : vector<512x32xf32>
    %16 = tpu.matmul %14, %15, %cst_14 {dimension_numbers = #tpu.dot_dimension_numbers<[1], [0], [0], [1], [0, 0, 1, 1], [], []>} : vector<512x64xf32>, vector<64x32xf32>, vector<512x32xf32> -> vector<512x32xf32>
    %c0_15 = arith.constant 0 : index
    %c0_16 = arith.constant 0 : index
    %17 = vector.load %arg7[%c0_15, %c0_16] : memref<1x32xf32, #tpu.memory_space<vmem>>, vector<1x32xf32>
    %18 = vector.broadcast %17 : vector<1x32xf32> to vector<512x32xf32>
    %19 = arith.addf %16, %18 : vector<512x32xf32>
    %cst_17 = arith.constant 0.000000e+00 : f32
    %20 = vector.broadcast %cst_17 : f32 to vector<512x32xf32>
    %21 = arith.maximumf %19, %20 : vector<512x32xf32>
    %c0_18 = arith.constant 0 : index
    %c0_19 = arith.constant 0 : index
    %22 = vector.load %arg8[%c0_18, %c0_19] : memref<32x32xf32, #tpu.memory_space<vmem>>, vector<32x32xf32>
    %cst_20 = arith.constant dense<0.000000e+00> : vector<512x32xf32>
    %23 = tpu.matmul %21, %22, %cst_20 {dimension_numbers = #tpu.dot_dimension_numbers<[1], [0], [0], [1], [0, 0, 1, 1], [], []>} : vector<512x32xf32>, vector<32x32xf32>, vector<512x32xf32> -> vector<512x32xf32>
    %c0_21 = arith.constant 0 : index
    %c0_22 = arith.constant 0 : index
    %24 = vector.load %arg9[%c0_21, %c0_22] : memref<1x32xf32, #tpu.memory_space<vmem>>, vector<1x32xf32>
    %25 = vector.broadcast %24 : vector<1x32xf32> to vector<512x32xf32>
    %26 = arith.addf %23, %25 : vector<512x32xf32>
    %cst_23 = arith.constant 0.000000e+00 : f32
    %27 = vector.broadcast %cst_23 : f32 to vector<512x32xf32>
    %28 = arith.maximumf %26, %27 : vector<512x32xf32>
    %c0_24 = arith.constant 0 : index
    %c0_25 = arith.constant 0 : index
    %29 = vector.load %arg10[%c0_24, %c0_25] : memref<32x64xf32, #tpu.memory_space<vmem>>, vector<32x64xf32>
    %cst_26 = arith.constant dense<0.000000e+00> : vector<512x64xf32>
    %30 = tpu.matmul %28, %29, %cst_26 {dimension_numbers = #tpu.dot_dimension_numbers<[1], [0], [0], [1], [0, 0, 1, 1], [], []>} : vector<512x32xf32>, vector<32x64xf32>, vector<512x64xf32> -> vector<512x64xf32>
    %c0_27 = arith.constant 0 : index
    %c0_28 = arith.constant 0 : index
    %31 = vector.load %arg11[%c0_27, %c0_28] : memref<1x64xf32, #tpu.memory_space<vmem>>, vector<1x64xf32>
    %32 = vector.broadcast %31 : vector<1x64xf32> to vector<512x64xf32>
    %33 = arith.addf %30, %32 : vector<512x64xf32>
    %cst_29 = arith.constant 0.000000e+00 : f32
    %34 = vector.broadcast %cst_29 : f32 to vector<512x64xf32>
    %35 = arith.maximumf %33, %34 : vector<512x64xf32>
    %c0_30 = arith.constant 0 : index
    %c0_31 = arith.constant 0 : index
    %36 = vector.load %arg12[%c0_30, %c0_31] : memref<64x128xf32, #tpu.memory_space<vmem>>, vector<64x128xf32>
    %cst_32 = arith.constant dense<0.000000e+00> : vector<512x128xf32>
    %37 = tpu.matmul %35, %36, %cst_32 {dimension_numbers = #tpu.dot_dimension_numbers<[1], [0], [0], [1], [0, 0, 1, 1], [], []>} : vector<512x64xf32>, vector<64x128xf32>, vector<512x128xf32> -> vector<512x128xf32>
    %c0_33 = arith.constant 0 : index
    %c0_34 = arith.constant 0 : index
    %38 = vector.load %arg13[%c0_33, %c0_34] : memref<1x128xf32, #tpu.memory_space<vmem>>, vector<1x128xf32>
    %39 = vector.broadcast %38 : vector<1x128xf32> to vector<512x128xf32>
    %40 = arith.addf %37, %39 : vector<512x128xf32>
    %cst_35 = arith.constant 0.000000e+00 : f32
    %41 = vector.broadcast %cst_35 : f32 to vector<512x128xf32>
    %42 = arith.maximumf %40, %41 : vector<512x128xf32>
    %c0_36 = arith.constant 0 : index
    %c0_37 = arith.constant 0 : index
    %43 = vector.load %arg14[%c0_36, %c0_37] : memref<128x896xf32, #tpu.memory_space<vmem>>, vector<128x896xf32>
    %cst_38 = arith.constant dense<0.000000e+00> : vector<512x896xf32>
    %44 = tpu.matmul %42, %43, %cst_38 {dimension_numbers = #tpu.dot_dimension_numbers<[1], [0], [0], [1], [0, 0, 1, 1], [], []>} : vector<512x128xf32>, vector<128x896xf32>, vector<512x896xf32> -> vector<512x896xf32>
    %c0_39 = arith.constant 0 : index
    %c0_40 = arith.constant 0 : index
    %45 = vector.load %arg15[%c0_39, %c0_40] : memref<1x896xf32, #tpu.memory_space<vmem>>, vector<1x896xf32>
    %46 = vector.broadcast %45 : vector<1x896xf32> to vector<512x896xf32>
    %47 = arith.addf %44, %46 : vector<512x896xf32>
    %48 = math.tanh %47 : vector<512x896xf32>
    %c0_41 = arith.constant 0 : index
    %c0_42 = arith.constant 0 : index
    %49 = vector.load %arg16[%c0_41, %c0_42] : memref<512x896xf32, #tpu.memory_space<vmem>>, vector<512x896xf32>
    tpu.vector_store %arg16[%c0_41, %c0_42], %48 {strides = array<i32>} : memref<512x896xf32, #tpu.memory_space<vmem>>, vector<512x896xf32>,
    return
  }
  func.func @transform_0(%arg0: i32) -> (i32, i32) {
    %c0_i32 = arith.constant 0 : i32
    %c0_i32_0 = arith.constant 0 : i32
    return %arg0, %c0_i32 : i32, i32
  }
  func.func @transform_1(%arg0: i32) -> (i32, i32) {
    %c0_i32 = arith.constant 0 : i32
    %c0_i32_0 = arith.constant 0 : i32
    %c0_i32_1 = arith.constant 0 : i32
    return %c0_i32, %c0_i32_0 : i32, i32
  }
  func.func @transform_2(%arg0: i32) -> (i32, i32) {
    %c0_i32 = arith.constant 0 : i32
    %c0_i32_0 = arith.constant 0 : i32
    %c0_i32_1 = arith.constant 0 : i32
    return %c0_i32, %c0_i32_0 : i32, i32
  }
  func.func @transform_3(%arg0: i32) -> (i32, i32) {
    %c0_i32 = arith.constant 0 : i32
    %c0_i32_0 = arith.constant 0 : i32
    %c0_i32_1 = arith.constant 0 : i32
    return %c0_i32, %c0_i32_0 : i32, i32
  }
  func.func @transform_4(%arg0: i32) -> (i32, i32) {
    %c0_i32 = arith.constant 0 : i32
    %c0_i32_0 = arith.constant 0 : i32
    %c0_i32_1 = arith.constant 0 : i32
    return %c0_i32, %c0_i32_0 : i32, i32
  }
  func.func @transform_5(%arg0: i32) -> (i32, i32) {
    %c0_i32 = arith.constant 0 : i32
    %c0_i32_0 = arith.constant 0 : i32
    %c0_i32_1 = arith.constant 0 : i32
    return %c0_i32, %c0_i32_0 : i32, i32
  }
  func.func @transform_6(%arg0: i32) -> (i32, i32) {
    %c0_i32 = arith.constant 0 : i32
    %c0_i32_0 = arith.constant 0 : i32
    %c0_i32_1 = arith.constant 0 : i32
    return %c0_i32, %c0_i32_0 : i32, i32
  }
  func.func @transform_7(%arg0: i32) -> (i32, i32) {
    %c0_i32 = arith.constant 0 : i32
    %c0_i32_0 = arith.constant 0 : i32
    %c0_i32_1 = arith.constant 0 : i32
    return %c0_i32, %c0_i32_0 : i32, i32
  }
  func.func @transform_8(%arg0: i32) -> (i32, i32) {
    %c0_i32 = arith.constant 0 : i32
    %c0_i32_0 = arith.constant 0 : i32
    %c0_i32_1 = arith.constant 0 : i32
    return %c0_i32, %c0_i32_0 : i32, i32
  }
  func.func @transform_9(%arg0: i32) -> (i32, i32) {
    %c0_i32 = arith.constant 0 : i32
    %c0_i32_0 = arith.constant 0 : i32
    %c0_i32_1 = arith.constant 0 : i32
    return %c0_i32, %c0_i32_0 : i32, i32
  }
  func.func @transform_10(%arg0: i32) -> (i32, i32) {
    %c0_i32 = arith.constant 0 : i32
    %c0_i32_0 = arith.constant 0 : i32
    %c0_i32_1 = arith.constant 0 : i32
    return %c0_i32, %c0_i32_0 : i32, i32
  }
  func.func @transform_11(%arg0: i32) -> (i32, i32) {
    %c0_i32 = arith.constant 0 : i32
    %c0_i32_0 = arith.constant 0 : i32
    %c0_i32_1 = arith.constant 0 : i32
    return %c0_i32, %c0_i32_0 : i32, i32
  }
  func.func @transform_12(%arg0: i32) -> (i32, i32) {
    %c0_i32 = arith.constant 0 : i32
    %c0_i32_0 = arith.constant 0 : i32
    %c0_i32_1 = arith.constant 0 : i32
    return %c0_i32, %c0_i32_0 : i32, i32
  }
  func.func @transform_13(%arg0: i32) -> (i32, i32) {
    %c0_i32 = arith.constant 0 : i32
    %c0_i32_0 = arith.constant 0 : i32
    %c0_i32_1 = arith.constant 0 : i32
    return %c0_i32, %c0_i32_0 : i32, i32
  }
  func.func @transform_14(%arg0: i32) -> (i32, i32) {
    %c0_i32 = arith.constant 0 : i32
    %c0_i32_0 = arith.constant 0 : i32
    %c0_i32_1 = arith.constant 0 : i32
    return %c0_i32, %c0_i32_0 : i32, i32
  }
  func.func @transform_15(%arg0: i32) -> (i32, i32) {
    %c0_i32 = arith.constant 0 : i32
    %c0_i32_0 = arith.constant 0 : i32
    return %arg0, %c0_i32 : i32, i32
  }
}

</mosaic_0001>

<llo_original>
// kernel: autoencoder_forward.1
$region0: #{autoencoder_forward.1}
  #allocation0 [shape = 'u32[]', space=smem, size = 0x4, offset = 0x4, fixed_abs, tag = 'smem constant byte address 0x4 - core index']
  #allocation1 [shape = 'u32[144,128]{1,0:T(1,128)}', space=vmem, size = 0x12000, scoped, tag = 'internal scratch']
  %s0 = inlined_call_operand.vmem [shape: f32[1024,896], index: 0, kind: input, shape index: {}]
  %s1 = inlined_call_operand.vmem [shape: f32[896,128], index: 1, kind: input, shape index: {}]
  %s2 = inlined_call_operand.vmem [shape: f32[1,128], index: 2, kind: input, shape index: {}]
  %s3 = inlined_call_operand.vmem [shape: f32[128,64], index: 3, kind: input, shape index: {}]
  %s4 = inlined_call_operand.vmem [shape: f32[1,64], index: 4, kind: input, shape index: {}]
  %s5 = inlined_call_operand.vmem [shape: f32[64,32], index: 5, kind: input, shape index: {}]
  %s6 = inlined_call_operand.vmem [shape: f32[1,32], index: 6, kind: input, shape index: {}]
  %s7 = inlined_call_operand.vmem [shape: f32[32,32], index: 7, kind: input, shape index: {}]
  %s8 = inlined_call_operand.vmem [shape: f32[1,32], index: 8, kind: input, shape index: {}]
  %s9 = inlined_call_operand.vmem [shape: f32[32,64], index: 9, kind: input, shape index: {}]
  %s10 = inlined_call_operand.vmem [shape: f32[1,64], index: 10, kind: input, shape index: {}]
  %s11 = inlined_call_operand.vmem [shape: f32[64,128], index: 11, kind: input, shape index: {}]
  %s12 = inlined_call_operand.vmem [shape: f32[1,128], index: 12, kind: input, shape index: {}]
  %s13 = inlined_call_operand.vmem [shape: f32[128,896], index: 13, kind: input, shape index: {}]
  %s14 = inlined_call_operand.vmem [shape: f32[1,896], index: 14, kind: input, shape index: {}]
  %s15 = inlined_call_operand.vmem [shape: f32[1024,896], index: 15, kind: output, shape index: {}]
  %s16 = sld [smem:[#allocation0]]
  $region93: #{autoencoder_forward.1} parent=0
    _
  %s18 = ssub.s32 1, %s16
  %s19 = scalar_select 0, %s18, %s16
  loop: start=0, step=1, limit=4
  $region2: #{autoencoder_forward.1} parent=0 // loop_pre_header
    _
  $region3: #{autoencoder_forward.1} parent=0 // loop_header
    %s21 = sphi 0, %s25
    %p22 = scmp.ge.s32.totalorder %s21, 4
    %s31 = sphi 0, %s33
    %s34 = sphi 0, %s31
    %s35 = sphi 0, %s34
    %s51 = sphi 0, %s35
    %s55 = sphi 0, %s55
    %s57 = sphi 0, %s55
    %s58 = sphi 0, %s57
    %s72 = sphi 0, %s58
    %s76 = sphi 0, %s76
    %s78 = sphi 0, %s76
    %s79 = sphi 0, %s78
    %s93 = sphi 0, %s79
    %s97 = sphi 0, %s97
    %s99 = sphi 0, %s97
    %s100 = sphi 0, %s99
    %s114 = sphi 0, %s100
    %s118 = sphi 0, %s118
    %s120 = sphi 0, %s118
    %s121 = sphi 0, %s120
    %s135 = sphi 0, %s121
    %s139 = sphi 0, %s139
    %s141 = sphi 0, %s139
    %s142 = sphi 0, %s141
    %s156 = sphi 0, %s142
    %s160 = sphi 0, %s160
    %s162 = sphi 0, %s160
    %s163 = sphi 0, %s162
    %s177 = sphi 0, %s163
    %s181 = sphi 0, %s181
    %s183 = sphi 0, %s181
    %s184 = sphi 0, %s183
    %s198 = sphi 0, %s184
    %s202 = sphi 0, %s202
    %s204 = sphi 0, %s202
    %s205 = sphi 0, %s204
    %s219 = sphi 0, %s205
    %s223 = sphi 0, %s223
    %s225 = sphi 0, %s223
    %s226 = sphi 0, %s225
    %s240 = sphi 0, %s226
    %s244 = sphi 0, %s244
    %s246 = sphi 0, %s244
    %s247 = sphi 0, %s246
    %s261 = sphi 0, %s247
    %s265 = sphi 0, %s265
    %s267 = sphi 0, %s265
    %s268 = sphi 0, %s267
    %s282 = sphi 0, %s268
    %s286 = sphi 0, %s286
    %s288 = sphi 0, %s286
    %s289 = sphi 0, %s288
    %s303 = sphi 0, %s289
    %s307 = sphi 0, %s307
    %s309 = sphi 0, %s307
    %s310 = sphi 0, %s309
    %s324 = sphi 0, %s310
    %s328 = sphi 0, %s328
    %s330 = sphi 0, %s328
    %s331 = sphi 0, %s330
    %s345 = sphi 0, %s331
    %s351 = sphi 0, %s353
    %s354 = sphi 0, %s351
    %s355 = sphi 0, %s354
    %s371 = sphi 0, %s355
  $region4: #{autoencoder_forward.1} parent=0 // loop_header_branch
    %24 = sbr.rel (%p22) target = $region8
  $region5: #{autoencoder_forward.1} parent=0 // loop_body
    %s26 = ssub.s32 %s21, 1
    %s27 = ssub.s32 %s21, 2
    %s28 = sadd.s32 %s21, 1
    %s29 = ssub.s32 %s21, %s28
    %p30 = scmp.eq.s32.totalorder %s29, 0
    %s32 = sadd.s32 %s31, 1
    %s33 = scalar_select %p30, %s31, %s32
    %p36 = pneg %p30
    %p37 = scmp.eq.s32.totalorder %s21, 1
    %p38 = por %p36, %p37
    %p39 = scmp.ne.s32.totalorder %s31, %s34
    %p40 = scmp.eq.s32.totalorder %s21, 0
    %p41 = por %p39, %p40
    %p42 = scmp.ne.s32.totalorder %s31, %s34
    %p43 = scmp.eq.s32.totalorder %s26, 1
    %p44 = por %p42, %p43
    %p45 = scmp.ne.s32.totalorder %s34, %s35
    %p46 = scmp.eq.s32.totalorder %s26, 0
    %p47 = por %p45, %p46
    %p48 = scmp.ne.s32.totalorder %s34, %s35
    %p49 = scmp.eq.s32.totalorder %s27, 1
    %p50 = por %p48, %p49
    %p52 = scmp.ne.s32.totalorder %s35, %s51
    %p53 = scmp.eq.s32.totalorder %s27, 0
    %p54 = por %p52, %p53
    %s56 = sadd.s32 %s55, 1
    %p59 = scmp.eq.s32.totalorder %s21, 1
    %p60 = scmp.ne.s32.totalorder %s55, %s57
    %p61 = scmp.eq.s32.totalorder %s21, 0
    %p62 = por %p60, %p61
    %p63 = scmp.ne.s32.totalorder %s55, %s57
    %p64 = scmp.eq.s32.totalorder %s26, 1
    %p65 = por %p63, %p64
    %p66 = scmp.ne.s32.totalorder %s57, %s58
    %p67 = scmp.eq.s32.totalorder %s26, 0
    %p68 = por %p66, %p67
    %p69 = scmp.ne.s32.totalorder %s57, %s58
    %p70 = scmp.eq.s32.totalorder %s27, 1
    %p71 = por %p69, %p70
    %p73 = scmp.ne.s32.totalorder %s58, %s72
    %p74 = scmp.eq.s32.totalorder %s27, 0
    %p75 = por %p73, %p74
    %s77 = sadd.s32 %s76, 1
    %p80 = scmp.eq.s32.totalorder %s21, 1
    %p81 = scmp.ne.s32.totalorder %s76, %s78
    %p82 = scmp.eq.s32.totalorder %s21, 0
    %p83 = por %p81, %p82
    %p84 = scmp.ne.s32.totalorder %s76, %s78
    %p85 = scmp.eq.s32.totalorder %s26, 1
    %p86 = por %p84, %p85
    %p87 = scmp.ne.s32.totalorder %s78, %s79
    %p88 = scmp.eq.s32.totalorder %s26, 0
    %p89 = por %p87, %p88
    %p90 = scmp.ne.s32.totalorder %s78, %s79
    %p91 = scmp.eq.s32.totalorder %s27, 1
    %p92 = por %p90, %p91
    %p94 = scmp.ne.s32.totalorder %s79, %s93
    %p95 = scmp.eq.s32.totalorder %s27, 0
    %p96 = por %p94, %p95
    %s98 = sadd.s32 %s97, 1
    %p101 = scmp.eq.s32.totalorder %s21, 1
    %p102 = scmp.ne.s32.totalorder %s97, %s99
    %p103 = scmp.eq.s32.totalorder %s21, 0
    %p104 = por %p102, %p103
    %p105 = scmp.ne.s32.totalorder %s97, %s99
    %p106 = scmp.eq.s32.totalorder %s26, 1
    %p107 = por %p105, %p106
    %p108 = scmp.ne.s32.totalorder %s99, %s100
    %p109 = scmp.eq.s32.totalorder %s26, 0
    %p110 = por %p108, %p109
    %p111 = scmp.ne.s32.totalorder %s99, %s100
    %p112 = scmp.eq.s32.totalorder %s27, 1
    %p113 = por %p111, %p112
    %p115 = scmp.ne.s32.totalorder %s100, %s114
    %p116 = scmp.eq.s32.totalorder %s27, 0
    %p117 = por %p115, %p116
    %s119 = sadd.s32 %s118, 1
    %p122 = scmp.eq.s32.totalorder %s21, 1
    %p123 = scmp.ne.s32.totalorder %s118, %s120
    %p124 = scmp.eq.s32.totalorder %s21, 0
    %p125 = por %p123, %p124
    %p126 = scmp.ne.s32.totalorder %s118, %s120
    %p127 = scmp.eq.s32.totalorder %s26, 1
    %p128 = por %p126, %p127
    %p129 = scmp.ne.s32.totalorder %s120, %s121
    %p130 = scmp.eq.s32.totalorder %s26, 0
    %p131 = por %p129, %p130
    %p132 = scmp.ne.s32.totalorder %s120, %s121
    %p133 = scmp.eq.s32.totalorder %s27, 1
    %p134 = por %p132, %p133
    %p136 = scmp.ne.s32.totalorder %s121, %s135
    %p137 = scmp.eq.s32.totalorder %s27, 0
    %p138 = por %p136, %p137
    %s140 = sadd.s32 %s139, 1
    %p143 = scmp.eq.s32.totalorder %s21, 1
    %p144 = scmp.ne.s32.totalorder %s139, %s141
    %p145 = scmp.eq.s32.totalorder %s21, 0
    %p146 = por %p144, %p145
    %p147 = scmp.ne.s32.totalorder %s139, %s141
    %p148 = scmp.eq.s32.totalorder %s26, 1
    %p149 = por %p147, %p148
    %p150 = scmp.ne.s32.totalorder %s141, %s142
    %p151 = scmp.eq.s32.totalorder %s26, 0
    %p152 = por %p150, %p151
    %p153 = scmp.ne.s32.totalorder %s141, %s142
    %p154 = scmp.eq.s32.totalorder %s27, 1
    %p155 = por %p153, %p154
    %p157 = scmp.ne.s32.totalorder %s142, %s156
    %p158 = scmp.eq.s32.totalorder %s27, 0
    %p159 = por %p157, %p158
    %s161 = sadd.s32 %s160, 1
    %p164 = scmp.eq.s32.totalorder %s21, 1
    %p165 = scmp.ne.s32.totalorder %s160, %s162
    %p166 = scmp.eq.s32.totalorder %s21, 0
    %p167 = por %p165, %p166
    %p168 = scmp.ne.s32.totalorder %s160, %s162
    %p169 = scmp.eq.s32.totalorder %s26, 1
    %p170 = por %p168, %p169
    %p171 = scmp.ne.s32.totalorder %s162, %s163
    %p172 = scmp.eq.s32.totalorder %s26, 0
    %p173 = por %p171, %p172
    %p174 = scmp.ne.s32.totalorder %s162, %s163
    %p175 = scmp.eq.s32.totalorder %s27, 1
    %p176 = por %p174, %p175
    %p178 = scmp.ne.s32.totalorder %s163, %s177
    %p179 = scmp.eq.s32.totalorder %s27, 0
    %p180 = por %p178, %p179
    %s182 = sadd.s32 %s181, 1
    %p185 = scmp.eq.s32.totalorder %s21, 1
    %p186 = scmp.ne.s32.totalorder %s181, %s183
    %p187 = scmp.eq.s32.totalorder %s21, 0
    %p188 = por %p186, %p187
    %p189 = scmp.ne.s32.totalorder %s181, %s183
    %p190 = scmp.eq.s32.totalorder %s26, 1
    %p191 = por %p189, %p190
    %p192 = scmp.ne.s32.totalorder %s183, %s184
    %p193 = scmp.eq.s32.totalorder %s26, 0
    %p194 = por %p192, %p193
    %p195 = scmp.ne.s32.totalorder %s183, %s184
    %p196 = scmp.eq.s32.totalorder %s27, 1
    %p197 = por %p195, %p196
    %p199 = scmp.ne.s32.totalorder %s184, %s198
    %p200 = scmp.eq.s32.totalorder %s27, 0
    %p201 = por %p199, %p200
    %s203 = sadd.s32 %s202, 1
    %p206 = scmp.eq.s32.totalorder %s21, 1
    %p207 = scmp.ne.s32.totalorder %s202, %s204
    %p208 = scmp.eq.s32.totalorder %s21, 0
    %p209 = por %p207, %p208
    %p210 = scmp.ne.s32.totalorder %s202, %s204
    %p211 = scmp.eq.s32.totalorder %s26, 1
    %p212 = por %p210, %p211
    %p213 = scmp.ne.s32.totalorder %s204, %s205
    %p214 = scmp.eq.s32.totalorder %s26, 0
    %p215 = por %p213, %p214
    %p216 = scmp.ne.s32.totalorder %s204, %s205
    %p217 = scmp.eq.s32.totalorder %s27, 1
    %p218 = por %p216, %p217
    %p220 = scmp.ne.s32.totalorder %s205, %s219
    %p221 = scmp.eq.s32.totalorder %s27, 0
    %p222 = por %p220, %p221
    %s224 = sadd.s32 %s223, 1
    %p227 = scmp.eq.s32.totalorder %s21, 1
    %p228 = scmp.ne.s32.totalorder %s223, %s225
    %p229 = scmp.eq.s32.totalorder %s21, 0
    %p230 = por %p228, %p229
    %p231 = scmp.ne.s32.totalorder %s223, %s225
    %p232 = scmp.eq.s32.totalorder %s26, 1
    %p233 = por %p231, %p232
    %p234 = scmp.ne.s32.totalorder %s225, %s226
    %p235 = scmp.eq.s32.totalorder %s26, 0
    %p236 = por %p234, %p235
    %p237 = scmp.ne.s32.totalorder %s225, %s226
    %p238 = scmp.eq.s32.totalorder %s27, 1
    %p239 = por %p237, %p238
    %p241 = scmp.ne.s32.totalorder %s226, %s240
    %p242 = scmp.eq.s32.totalorder %s27, 0
    %p243 = por %p241, %p242
    %s245 = sadd.s32 %s244, 1
    %p248 = scmp.eq.s32.totalorder %s21, 1
    %p249 = scmp.ne.s32.totalorder %s244, %s246
    %p250 = scmp.eq.s32.totalorder %s21, 0
    %p251 = por %p249, %p250
    %p252 = scmp.ne.s32.totalorder %s244, %s246
    %p253 = scmp.eq.s32.totalorder %s26, 1
    %p254 = por %p252, %p253
    %p255 = scmp.ne.s32.totalorder %s246, %s247
    %p256 = scmp.eq.s32.totalorder %s26, 0
    %p257 = por %p255, %p256
    %p258 = scmp.ne.s32.totalorder %s246, %s247
    %p259 = scmp.eq.s32.totalorder %s27, 1
    %p260 = por %p258, %p259
    %p262 = scmp.ne.s32.totalorder %s247, %s261
    %p263 = scmp.eq.s32.totalorder %s27, 0
    %p264 = por %p262, %p263
    %s266 = sadd.s32 %s265, 1
    %p269 = scmp.eq.s32.totalorder %s21, 1
    %p270 = scmp.ne.s32.totalorder %s265, %s267
    %p271 = scmp.eq.s32.totalorder %s21, 0
    %p272 = por %p270, %p271
    %p273 = scmp.ne.s32.totalorder %s265, %s267
    %p274 = scmp.eq.s32.totalorder %s26, 1
    %p275 = por %p273, %p274
    %p276 = scmp.ne.s32.totalorder %s267, %s268
    %p277 = scmp.eq.s32.totalorder %s26, 0
    %p278 = por %p276, %p277
    %p279 = scmp.ne.s32.totalorder %s267, %s268
    %p280 = scmp.eq.s32.totalorder %s27, 1
    %p281 = por %p279, %p280
    %p283 = scmp.ne.s32.totalorder %s268, %s282
    %p284 = scmp.eq.s32.totalorder %s27, 0
    %p285 = por %p283, %p284
    %s287 = sadd.s32 %s286, 1
    %p290 = scmp.eq.s32.totalorder %s21, 1
    %p291 = scmp.ne.s32.totalorder %s286, %s288
    %p292 = scmp.eq.s32.totalorder %s21, 0
    %p293 = por %p291, %p292
    %p294 = scmp.ne.s32.totalorder %s286, %s288
    %p295 = scmp.eq.s32.totalorder %s26, 1
    %p296 = por %p294, %p295
    %p297 = scmp.ne.s32.totalorder %s288, %s289
    %p298 = scmp.eq.s32.totalorder %s26, 0
    %p299 = por %p297, %p298
    %p300 = scmp.ne.s32.totalorder %s288, %s289
    %p301 = scmp.eq.s32.totalorder %s27, 1
    %p302 = por %p300, %p301
    %p304 = scmp.ne.s32.totalorder %s289, %s303
    %p305 = scmp.eq.s32.totalorder %s27, 0
    %p306 = por %p304, %p305
    %s308 = sadd.s32 %s307, 1
    %p311 = scmp.eq.s32.totalorder %s21, 1
    %p312 = scmp.ne.s32.totalorder %s307, %s309
    %p313 = scmp.eq.s32.totalorder %s21, 0
    %p314 = por %p312, %p313
    %p315 = scmp.ne.s32.totalorder %s307, %s309
    %p316 = scmp.eq.s32.totalorder %s26, 1
    %p317 = por %p315, %p316
    %p318 = scmp.ne.s32.totalorder %s309, %s310
    %p319 = scmp.eq.s32.totalorder %s26, 0
    %p320 = por %p318, %p319
    %p321 = scmp.ne.s32.totalorder %s309, %s310
    %p322 = scmp.eq.s32.totalorder %s27, 1
    %p323 = por %p321, %p322
    %p325 = scmp.ne.s32.totalorder %s310, %s324
    %p326 = scmp.eq.s32.totalorder %s27, 0
    %p327 = por %p325, %p326
    %s329 = sadd.s32 %s328, 1
    %p332 = scmp.eq.s32.totalorder %s21, 1
    %p333 = scmp.ne.s32.totalorder %s328, %s330
    %p334 = scmp.eq.s32.totalorder %s21, 0
    %p335 = por %p333, %p334
    %p336 = scmp.ne.s32.totalorder %s328, %s330
    %p337 = scmp.eq.s32.totalorder %s26, 1
    %p338 = por %p336, %p337
    %p339 = scmp.ne.s32.totalorder %s330, %s331
    %p340 = scmp.eq.s32.totalorder %s26, 0
    %p341 = por %p339, %p340
    %p342 = scmp.ne.s32.totalorder %s330, %s331
    %p343 = scmp.eq.s32.totalorder %s27, 1
    %p344 = por %p342, %p343
    %p346 = scmp.ne.s32.totalorder %s331, %s345
    %p347 = scmp.eq.s32.totalorder %s27, 0
    %p348 = por %p346, %p347
    %s349 = ssub.s32 %s21, %s28
    %p350 = scmp.eq.s32.totalorder %s349, 0
    %s352 = sadd.s32 %s351, 1
    %s353 = scalar_select %p350, %s351, %s352
    %p356 = pneg %p350
    %p357 = scmp.eq.s32.totalorder %s21, 1
    %p358 = por %p356, %p357
    %p359 = scmp.ne.s32.totalorder %s351, %s354
    %p360 = scmp.eq.s32.totalorder %s21, 0
    %p361 = por %p359, %p360
    %p362 = scmp.ne.s32.totalorder %s351, %s354
    %p363 = scmp.eq.s32.totalorder %s26, 1
    %p364 = por %p362, %p363
    %p365 = scmp.ne.s32.totalorder %s354, %s355
    %p366 = scmp.eq.s32.totalorder %s26, 0
    %p367 = por %p365, %p366
    %p368 = scmp.ne.s32.totalorder %s354, %s355
    %p369 = scmp.eq.s32.totalorder %s27, 1
    %p370 = por %p368, %p369
    %p372 = scmp.ne.s32.totalorder %s355, %s371
    %p373 = scmp.eq.s32.totalorder %s27, 0
    %p374 = por %p372, %p373
    %p375 = scmp.le.s32.totalorder 1, %s21
    %p376 = scmp.lt.s32.totalorder %s21, 3
    %p377 = pnand %p375, %p376
    %p378 = pneg %p377
    // Predicated region
    $region9: #{autoencoder_forward.1} parent=5 // pred_check
      _
    $region10: #{autoencoder_forward.1} parent=5 // pred_check_branch
      %380 = sbr.rel (%p377) target = $region12
    $region11: #{autoencoder_forward.1} parent=5 // pred_region
      %s381 = ssub.s32 %s21, 1
      // Predicated region
      $region13: #{autoencoder_forward.1} parent=11 // pred_check
        %p382 = pneg %p68
      $region14: #{autoencoder_forward.1} parent=11 // pred_check_branch
        %384 = sbr.rel (%p382) target = $region16
      $region15: #{autoencoder_forward.1} parent=11 // pred_region
        _
      $region16: #{autoencoder_forward.1} parent=11 // pred_fallthru
        _
      // Predicated region
      $region17: #{autoencoder_forward.1} parent=11 // pred_check
        %p385 = pneg %p89
      $region18: #{autoencoder_forward.1} parent=11 // pred_check_branch
        %387 = sbr.rel (%p385) target = $region20
      $region19: #{autoencoder_forward.1} parent=11 // pred_region
        _
      $region20: #{autoencoder_forward.1} parent=11 // pred_fallthru
        _
      // Predicated region
      $region21: #{autoencoder_forward.1} parent=11 // pred_check
        %p388 = pneg %p110
      $region22: #{autoencoder_forward.1} parent=11 // pred_check_branch
        %390 = sbr.rel (%p388) target = $region24
      $region23: #{autoencoder_forward.1} parent=11 // pred_region
        _
      $region24: #{autoencoder_forward.1} parent=11 // pred_fallthru
        _
      // Predicated region
      $region25: #{autoencoder_forward.1} parent=11 // pred_check
        %p391 = pneg %p131
      $region26: #{autoencoder_forward.1} parent=11 // pred_check_branch
        %393 = sbr.rel (%p391) target = $region28
      $region27: #{autoencoder_forward.1} parent=11 // pred_region
        _
      $region28: #{autoencoder_forward.1} parent=11 // pred_fallthru
        _
      // Predicated region
      $region29: #{autoencoder_forward.1} parent=11 // pred_check
        %p394 = pneg %p152
      $region30: #{autoencoder_forward.1} parent=11 // pred_check_branch
        %396 = sbr.rel (%p394) target = $region32
      $region31: #{autoencoder_forward.1} parent=11 // pred_region
        _
      $region32: #{autoencoder_forward.1} parent=11 // pred_fallthru
        _
      // Predicated region
      $region33: #{autoencoder_forward.1} parent=11 // pred_check
        %p397 = pneg %p173
      $region34: #{autoencoder_forward.1} parent=11 // pred_check_branch
        %399 = sbr.rel (%p397) target = $region36
      $region35: #{autoencoder_forward.1} parent=11 // pred_region
        _
      $region36: #{autoencoder_forward.1} parent=11 // pred_fallthru
        _
      // Predicated region
      $region37: #{autoencoder_forward.1} parent=11 // pred_check
        %p400 = pneg %p194
      $region38: #{autoencoder_forward.1} parent=11 // pred_check_branch
        %402 = sbr.rel (%p400) target = $region40
      $region39: #{autoencoder_forward.1} parent=11 // pred_region
        _
      $region40: #{autoencoder_forward.1} parent=11 // pred_fallthru
        _
      // Predicated region
      $region41: #{autoencoder_forward.1} parent=11 // pred_check
        %p403 = pneg %p215
      $region42: #{autoencoder_forward.1} parent=11 // pred_check_branch
        %405 = sbr.rel (%p403) target = $region44
      $region43: #{autoencoder_forward.1} parent=11 // pred_region
        _
      $region44: #{autoencoder_forward.1} parent=11 // pred_fallthru
        _
      // Predicated region
      $region45: #{autoencoder_forward.1} parent=11 // pred_check
        %p406 = pneg %p236
      $region46: #{autoencoder_forward.1} parent=11 // pred_check_branch
        %408 = sbr.rel (%p406) target = $region48
      $region47: #{autoencoder_forward.1} parent=11 // pred_region
        _
      $region48: #{autoencoder_forward.1} parent=11 // pred_fallthru
        _
      // Predicated region
      $region49: #{autoencoder_forward.1} parent=11 // pred_check
        %p409 = pneg %p257
      $region50: #{autoencoder_forward.1} parent=11 // pred_check_branch
        %411 = sbr.rel (%p409) target = $region52
      $region51: #{autoencoder_forward.1} parent=11 // pred_region
        _
      $region52: #{autoencoder_forward.1} parent=11 // pred_fallthru
        _
      // Predicated region
      $region53: #{autoencoder_forward.1} parent=11 // pred_check
        %p412 = pneg %p278
      $region54: #{autoencoder_forward.1} parent=11 // pred_check_branch
        %414 = sbr.rel (%p412) target = $region56
      $region55: #{autoencoder_forward.1} parent=11 // pred_region
        _
      $region56: #{autoencoder_forward.1} parent=11 // pred_fallthru
        _
      // Predicated region
      $region57: #{autoencoder_forward.1} parent=11 // pred_check
        %p415 = pneg %p299
      $region58: #{autoencoder_forward.1} parent=11 // pred_check_branch
        %417 = sbr.rel (%p415) target = $region60
      $region59: #{autoencoder_forward.1} parent=11 // pred_region
        _
      $region60: #{autoencoder_forward.1} parent=11 // pred_fallthru
        _
      // Predicated region
      $region61: #{autoencoder_forward.1} parent=11 // pred_check
        %p418 = pneg %p320
      $region62: #{autoencoder_forward.1} parent=11 // pred_check_branch
        %420 = sbr.rel (%p418) target = $region64
      $region63: #{autoencoder_forward.1} parent=11 // pred_region
        _
      $region64: #{autoencoder_forward.1} parent=11 // pred_fallthru
        _
      // Predicated region
      $region65: #{autoencoder_forward.1} parent=11 // pred_check
        %p421 = pneg %p341
      $region66: #{autoencoder_forward.1} parent=11 // pred_check_branch
        %423 = sbr.rel (%p421) target = $region68
      $region67: #{autoencoder_forward.1} parent=11 // pred_region
        _
      $region68: #{autoencoder_forward.1} parent=11 // pred_fallthru
        _
    $region12: #{autoencoder_forward.1} parent=5 // pred_fallthru
      _
    %p424 = scmp.lt.s32.totalorder %s21, 2
    // Predicated region
    $region69: #{autoencoder_forward.1} parent=5 // pred_check
      %p425 = pneg %p424
    $region70: #{autoencoder_forward.1} parent=5 // pred_check_branch
      %427 = sbr.rel (%p425) target = $region72
    $region71: #{autoencoder_forward.1} parent=5 // pred_region
      // Predicated region
      $region73: #{autoencoder_forward.1} parent=71 // pred_check
        %p428 = pneg %p41
      $region74: #{autoencoder_forward.1} parent=71 // pred_check_branch
        %430 = sbr.rel (%p428) target = $region76
      $region75: #{autoencoder_forward.1} parent=71 // pred_region
        %s431 = smul.u32 64, %s21
        %p432 = scmp.lt.s32.totalorder %s431, 127
        %s433 = scalar_select %p432, %s431, 127
        %s434 = smul.addr %s433, 7
        %s435 = smul.addr %s434, 8
        %s436 = scalar_lea.vmem %s0, %s435
        %s437 = smul.u32 64, %s21
      $region76: #{autoencoder_forward.1} parent=71 // pred_fallthru
        _
    $region72: #{autoencoder_forward.1} parent=5 // pred_fallthru
      _
    %p438 = scmp.le.s32.totalorder 1, %s21
    %p439 = scmp.lt.s32.totalorder %s21, 3
    %p440 = pnand %p438, %p439
    %p441 = pneg %p440
    // Predicated region
    $region77: #{autoencoder_forward.1} parent=5 // pred_check
      _
    $region78: #{autoencoder_forward.1} parent=5 // pred_check_branch
      %443 = sbr.rel (%p440) target = $region80
    $region79: #{autoencoder_forward.1} parent=5 // pred_region
      %s444 = ssub.s32 %s21, 1
      %s445 = smul.u32 64, %s26
      %p446 = scmp.lt.s32.totalorder %s445, 127
      %s447 = scalar_select %p446, %s445, 127
      %s448 = smul.addr %s447, 7
      %s449 = smul.addr %s448, 8
      %s450 = scalar_lea.vmem %s0, %s449
      %p451 = pneg %p47
      %p452 = pneg %p44
      %p453 = pneg %p68
      %p454 = pneg %p65
      %p455 = pneg %p89
      %p456 = pneg %p86
      %p457 = pneg %p110
      %p458 = pneg %p107
      %p459 = pneg %p131
      %p460 = pneg %p128
      %p461 = pneg %p152
      %p462 = pneg %p149
      %p463 = pneg %p173
      %p464 = pneg %p170
      %p465 = pneg %p194
      %p466 = pneg %p191
      %p467 = pneg %p215
      %p468 = pneg %p212
      %p469 = pneg %p236
      %p470 = pneg %p233
      %p471 = pneg %p257
      %p472 = pneg %p254
      %p473 = pneg %p278
      %p474 = pneg %p275
      %p475 = pneg %p299
      %p476 = pneg %p296
      %p477 = pneg %p320
      %p478 = pneg %p317
      %p479 = pneg %p341
      %p480 = pneg %p338
      %p481 = pneg %p367
      %p482 = pneg %p364
      %s483 = smul.u32 64, %s26
      %p484 = scmp.lt.s32.totalorder %s483, 127
      %s485 = scalar_select %p484, %s483, 127
      %s486 = smul.addr %s485, 7
      %s487 = smul.addr %s486, 8
      %s488 = scalar_lea.vmem %s15, %s487
      %s489 = smul.u32 64, %s26
      %p490 = scmp.lt.s32.totalorder %s489, 127
      %s491 = scalar_select %p490, %s489, 127
      %s492 = smul.addr %s491, 7
      %s493 = smul.addr %s492, 8
      %s494 = scalar_lea.vmem %s0, %s493
      %s495 = smul.u32 64, %s26
      %s496 = smul.u32 64, %s26
      %p497 = scmp.lt.s32.totalorder %s496, 127
      %s498 = scalar_select %p497, %s496, 127
      %s499 = smul.addr %s498, 7
      %s500 = smul.addr %s499, 8
      %s501 = scalar_lea.vmem %s15, %s500
      %s502 = smul.u32 64, %s26
      %v503 = vld [vmem:[%s494] sm:$0xff]
      %v504 = vld [vmem:[%s494 + $0x8] sm:$0xff]
      %v505 = vld [vmem:[%s494 + $0x10] sm:$0xff]
      %v506 = vld [vmem:[%s494 + $0x18] sm:$0xff]
      %v507 = vld [vmem:[%s494 + $0x20] sm:$0xff]
      %v508 = vld [vmem:[%s494 + $0x28] sm:$0xff]
      %v509 = vld [vmem:[%s494 + $0x30] sm:$0xff]
      %v510 = vld [vmem:[%s494 + $0x38] sm:$0xff]
      %v511 = vld [vmem:[%s494 + $0x40] sm:$0xff]
      %v512 = vld [vmem:[%s494 + $0x48] sm:$0xff]
      %v513 = vld [vmem:[%s494 + $0x50] sm:$0xff]
      %v514 = vld [vmem:[%s494 + $0x58] sm:$0xff]
      %v515 = vld [vmem:[%s494 + $0x60] sm:$0xff]
      %v516 = vld [vmem:[%s494 + $0x68] sm:$0xff]
      %v517 = vld [vmem:[%s494 + $0x70] sm:$0xff]
      %v518 = vld [vmem:[%s494 + $0x78] sm:$0xff]
      %v519 = vld [vmem:[%s494 + $0x80] sm:$0xff]
      %v520 = vld [vmem:[%s494 + $0x88] sm:$0xff]
      %v521 = vld [vmem:[%s494 + $0x90] sm:$0xff]
      %v522 = vld [vmem:[%s494 + $0x98] sm:$0xff]
      %v523 = vld [vmem:[%s494 + $0xa0] sm:$0xff]
      %v524 = vld [vmem:[%s494 + $0xa8] sm:$0xff]
      %v525 = vld [vmem:[%s494 + $0xb0] sm:$0xff]
      %v526 = vld [vmem:[%s494 + $0xb8] sm:$0xff]
      %v527 = vld [vmem:[%s494 + $0xc0] sm:$0xff]
      %v528 = vld [vmem:[%s494 + $0xc8] sm:$0xff]
      %v529 = vld [vmem:[%s494 + $0xd0] sm:$0xff]
      %v530 = vld [vmem:[%s494 + $0xd8] sm:$0xff]
      %v531 = vld [vmem:[%s494 + $0xe0] sm:$0xff]
      %v532 = vld [vmem:[%s494 + $0xe8] sm:$0xff]
      %v533 = vld [vmem:[%s494 + $0xf0] sm:$0xff]
      %v534 = vld [vmem:[%s494 + $0xf8] sm:$0xff]
      %v535 = vld [vmem:[%s494 + $0x100] sm:$0xff]
      %v536 = vld [vmem:[%s494 + $0x108] sm:$0xff]
      %v537 = vld [vmem:[%s494 + $0x110] sm:$0xff]
      %v538 = vld [vmem:[%s494 + $0x118] sm:$0xff]
      %v539 = vld [vmem:[%s494 + $0x120] sm:$0xff]
      %v540 = vld [vmem:[%s494 + $0x128] sm:$0xff]
      %v541 = vld [vmem:[%s494 + $0x130] sm:$0xff]
      %v542 = vld [vmem:[%s494 + $0x138] sm:$0xff]
      %v543 = vld [vmem:[%s494 + $0x140] sm:$0xff]
      %v544 = vld [vmem:[%s494 + $0x148] sm:$0xff]
      %v545 = vld [vmem:[%s494 + $0x150] sm:$0xff]
      %v546 = vld [vmem:[%s494 + $0x158] sm:$0xff]
      %v547 = vld [vmem:[%s494 + $0x160] sm:$0xff]
      %v548 = vld [vmem:[%s494 + $0x168] sm:$0xff]
      %v549 = vld [vmem:[%s494 + $0x170] sm:$0xff]
      %v550 = vld [vmem:[%s494 + $0x178] sm:$0xff]
      %v551 = vld [vmem:[%s494 + $0x180] sm:$0xff]
      %v552 = vld [vmem:[%s494 + $0x188] sm:$0xff]
      %v553 = vld [vmem:[%s494 + $0x190] sm:$0xff]
      %v554 = vld [vmem:[%s494 + $0x198] sm:$0xff]
      %v555 = vld [vmem:[%s494 + $0x1a0] sm:$0xff]
      %v556 = vld [vmem:[%s494 + $0x1a8] sm:$0xff]
      %v557 = vld [vmem:[%s494 + $0x1b0] sm:$0xff]
      %v558 = vld [vmem:[%s494 + $0x1b8] sm:$0xff]
      %v559 = vld [vmem:[%s494 + $0x1c0] sm:$0xff]
      %v560 = vld [vmem:[%s494 + $0x1c8] sm:$0xff]
      %v561 = vld [vmem:[%s494 + $0x1d0] sm:$0xff]
      %v562 = vld [vmem:[%s494 + $0x1d8] sm:$0xff]
      %v563 = vld [vmem:[%s494 + $0x1e0] sm:$0xff]
      %v564 = vld [vmem:[%s494 + $0x1e8] sm:$0xff]
      %v565 = vld [vmem:[%s494 + $0x1f0] sm:$0xff]
      %v566 = vld [vmem:[%s494 + $0x1f8] sm:$0xff]
      %v567 = vld [vmem:[%s494 + $0x200] sm:$0xff]
      %v568 = vld [vmem:[%s494 + $0x208] sm:$0xff]
      %v569 = vld [vmem:[%s494 + $0x210] sm:$0xff]
      %v570 = vld [vmem:[%s494 + $0x218] sm:$0xff]
      %v571 = vld [vmem:[%s494 + $0x220] sm:$0xff]
      %v572 = vld [vmem:[%s494 + $0x228] sm:$0xff]
      %v573 = vld [vmem:[%s494 + $0x230] sm:$0xff]
      %v574 = vld [vmem:[%s494 + $0x238] sm:$0xff]
      %v575 = vld [vmem:[%s494 + $0x240] sm:$0xff]
      %v576 = vld [vmem:[%s494 + $0x248] sm:$0xff]
      %v577 = vld [vmem:[%s494 + $0x250] sm:$0xff]
      %v578 = vld [vmem:[%s494 + $0x258] sm:$0xff]
      %v579 = vld [vmem:[%s494 + $0x260] sm:$0xff]
      %v580 = vld [vmem:[%s494 + $0x268] sm:$0xff]
      %v581 = vld [vmem:[%s494 + $0x270] sm:$0xff]
      %v582 = vld [vmem:[%s494 + $0x278] sm:$0xff]
      %v583 = vld [vmem:[%s494 + $0x280] sm:$0xff]
      %v584 = vld [vmem:[%s494 + $0x288] sm:$0xff]
      %v585 = vld [vmem:[%s494 + $0x290] sm:$0xff]
      %v586 = vld [vmem:[%s494 + $0x298] sm:$0xff]
      %v587 = vld [vmem:[%s494 + $0x2a0] sm:$0xff]
      %v588 = vld [vmem:[%s494 + $0x2a8] sm:$0xff]
      %v589 = vld [vmem:[%s494 + $0x2b0] sm:$0xff]
      %v590 = vld [vmem:[%s494 + $0x2b8] sm:$0xff]
      %v591 = vld [vmem:[%s494 + $0x2c0] sm:$0xff]
      %v592 = vld [vmem:[%s494 + $0x2c8] sm:$0xff]
      %v593 = vld [vmem:[%s494 + $0x2d0] sm:$0xff]
      %v594 = vld [vmem:[%s494 + $0x2d8] sm:$0xff]
      %v595 = vld [vmem:[%s494 + $0x2e0] sm:$0xff]
      %v596 = vld [vmem:[%s494 + $0x2e8] sm:$0xff]
      %v597 = vld [vmem:[%s494 + $0x2f0] sm:$0xff]
      %v598 = vld [vmem:[%s494 + $0x2f8] sm:$0xff]
      %v599 = vld [vmem:[%s494 + $0x300] sm:$0xff]
      %v600 = vld [vmem:[%s494 + $0x308] sm:$0xff]
      %v601 = vld [vmem:[%s494 + $0x310] sm:$0xff]
      %v602 = vld [vmem:[%s494 + $0x318] sm:$0xff]
      %v603 = vld [vmem:[%s494 + $0x320] sm:$0xff]
      %v604 = vld [vmem:[%s494 + $0x328] sm:$0xff]
      %v605 = vld [vmem:[%s494 + $0x330] sm:$0xff]
      %v606 = vld [vmem:[%s494 + $0x338] sm:$0xff]
      %v607 = vld [vmem:[%s494 + $0x340] sm:$0xff]
      %v608 = vld [vmem:[%s494 + $0x348] sm:$0xff]
      %v609 = vld [vmem:[%s494 + $0x350] sm:$0xff]
      %v610 = vld [vmem:[%s494 + $0x358] sm:$0xff]
      %v611 = vld [vmem:[%s494 + $0x360] sm:$0xff]
      %v612 = vld [vmem:[%s494 + $0x368] sm:$0xff]
      %v613 = vld [vmem:[%s494 + $0x370] sm:$0xff]
      %v614 = vld [vmem:[%s494 + $0x378] sm:$0xff]
      %v615 = vld [vmem:[%s494 + $0x380] sm:$0xff]
      %v616 = vld [vmem:[%s494 + $0x388] sm:$0xff]
      %v617 = vld [vmem:[%s494 + $0x390] sm:$0xff]
      %v618 = vld [vmem:[%s494 + $0x398] sm:$0xff]
      %v619 = vld [vmem:[%s494 + $0x3a0] sm:$0xff]
      %v620 = vld [vmem:[%s494 + $0x3a8] sm:$0xff]
      %v621 = vld [vmem:[%s494 + $0x3b0] sm:$0xff]
      %v622 = vld [vmem:[%s494 + $0x3b8] sm:$0xff]
      %v623 = vld [vmem:[%s494 + $0x3c0] sm:$0xff]
      %v624 = vld [vmem:[%s494 + $0x3c8] sm:$0xff]
      %v625 = vld [vmem:[%s494 + $0x3d0] sm:$0xff]
      %v626 = vld [vmem:[%s494 + $0x3d8] sm:$0xff]
      %v627 = vld [vmem:[%s494 + $0x3e0] sm:$0xff]
      %v628 = vld [vmem:[%s494 + $0x3e8] sm:$0xff]
      %v629 = vld [vmem:[%s494 + $0x3f0] sm:$0xff]
      %v630 = vld [vmem:[%s494 + $0x3f8] sm:$0xff]
      %v631 = vld [vmem:[%s494 + $0x400] sm:$0xff]
      %v632 = vld [vmem:[%s494 + $0x408] sm:$0xff]
      %v633 = vld [vmem:[%s494 + $0x410] sm:$0xff]
      %v634 = vld [vmem:[%s494 + $0x418] sm:$0xff]
      %v635 = vld [vmem:[%s494 + $0x420] sm:$0xff]
      %v636 = vld [vmem:[%s494 + $0x428] sm:$0xff]
      %v637 = vld [vmem:[%s494 + $0x430] sm:$0xff]
      %v638 = vld [vmem:[%s494 + $0x438] sm:$0xff]
      %v639 = vld [vmem:[%s494 + $0x440] sm:$0xff]
      %v640 = vld [vmem:[%s494 + $0x448] sm:$0xff]
      %v641 = vld [vmem:[%s494 + $0x450] sm:$0xff]
      %v642 = vld [vmem:[%s494 + $0x458] sm:$0xff]
      %v643 = vld [vmem:[%s494 + $0x460] sm:$0xff]
      %v644 = vld [vmem:[%s494 + $0x468] sm:$0xff]
      %v645 = vld [vmem:[%s494 + $0x470] sm:$0xff]
      %v646 = vld [vmem:[%s494 + $0x478] sm:$0xff]
      %v647 = vld [vmem:[%s494 + $0x480] sm:$0xff]
      %v648 = vld [vmem:[%s494 + $0x488] sm:$0xff]
      %v649 = vld [vmem:[%s494 + $0x490] sm:$0xff]
      %v650 = vld [vmem:[%s494 + $0x498] sm:$0xff]
      %v651 = vld [vmem:[%s494 + $0x4a0] sm:$0xff]
      %v652 = vld [vmem:[%s494 + $0x4a8] sm:$0xff]
      %v653 = vld [vmem:[%s494 + $0x4b0] sm:$0xff]
      %v654 = vld [vmem:[%s494 + $0x4b8] sm:$0xff]
      %v655 = vld [vmem:[%s494 + $0x4c0] sm:$0xff]
      %v656 = vld [vmem:[%s494 + $0x4c8] sm:$0xff]
      %v657 = vld [vmem:[%s494 + $0x4d0] sm:$0xff]
      %v658 = vld [vmem:[%s494 + $0x4d8] sm:$0xff]
      %v659 = vld [vmem:[%s494 + $0x4e0] sm:$0xff]
      %v660 = vld [vmem:[%s494 + $0x4e8] sm:$0xff]
      %v661 = vld [vmem:[%s494 + $0x4f0] sm:$0xff]
      %v662 = vld [vmem:[%s494 + $0x4f8] sm:$0xff]
      %v663 = vld [vmem:[%s494 + $0x500] sm:$0xff]
      %v664 = vld [vmem:[%s494 + $0x508] sm:$0xff]
      %v665 = vld [vmem:[%s494 + $0x510] sm:$0xff]
      %v666 = vld [vmem:[%s494 + $0x518] sm:$0xff]
      %v667 = vld [vmem:[%s494 + $0x520] sm:$0xff]
      %v668 = vld [vmem:[%s494 + $0x528] sm:$0xff]
      %v669 = vld [vmem:[%s494 + $0x530] sm:$0xff]
      %v670 = vld [vmem:[%s494 + $0x538] sm:$0xff]
      %v671 = vld [vmem:[%s494 + $0x540] sm:$0xff]
      %v672 = vld [vmem:[%s494 + $0x548] sm:$0xff]
      %v673 = vld [vmem:[%s494 + $0x550] sm:$0xff]
      %v674 = vld [vmem:[%s494 + $0x558] sm:$0xff]
      %v675 = vld [vmem:[%s494 + $0x560] sm:$0xff]
      %v676 = vld [vmem:[%s494 + $0x568] sm:$0xff]
      %v677 = vld [vmem:[%s494 + $0x570] sm:$0xff]
      %v678 = vld [vmem:[%s494 + $0x578] sm:$0xff]
      %v679 = vld [vmem:[%s494 + $0x580] sm:$0xff]
      %v680 = vld [vmem:[%s494 + $0x588] sm:$0xff]
      %v681 = vld [vmem:[%s494 + $0x590] sm:$0xff]
      %v682 = vld [vmem:[%s494 + $0x598] sm:$0xff]
      %v683 = vld [vmem:[%s494 + $0x5a0] sm:$0xff]
      %v684 = vld [vmem:[%s494 + $0x5a8] sm:$0xff]
      %v685 = vld [vmem:[%s494 + $0x5b0] sm:$0xff]
      %v686 = vld [vmem:[%s494 + $0x5b8] sm:$0xff]
      %v687 = vld [vmem:[%s494 + $0x5c0] sm:$0xff]
      %v688 = vld [vmem:[%s494 + $0x5c8] sm:$0xff]
      %v689 = vld [vmem:[%s494 + $0x5d0] sm:$0xff]
      %v690 = vld [vmem:[%s494 + $0x5d8] sm:$0xff]
      %v691 = vld [vmem:[%s494 + $0x5e0] sm:$0xff]
      %v692 = vld [vmem:[%s494 + $0x5e8] sm:$0xff]
      %v693 = vld [vmem:[%s494 + $0x5f0] sm:$0xff]
      %v694 = vld [vmem:[%s494 + $0x5f8] sm:$0xff]
      %v695 = vld [vmem:[%s494 + $0x600] sm:$0xff]
      %v696 = vld [vmem:[%s494 + $0x608] sm:$0xff]
      %v697 = vld [vmem:[%s494 + $0x610] sm:$0xff]
      %v698 = vld [vmem:[%s494 + $0x618] sm:$0xff]
      %v699 = vld [vmem:[%s494 + $0x620] sm:$0xff]
      %v700 = vld [vmem:[%s494 + $0x628] sm:$0xff]
      %v701 = vld [vmem:[%s494 + $0x630] sm:$0xff]
      %v702 = vld [vmem:[%s494 + $0x638] sm:$0xff]
      %v703 = vld [vmem:[%s494 + $0x640] sm:$0xff]
      %v704 = vld [vmem:[%s494 + $0x648] sm:$0xff]
      %v705 = vld [vmem:[%s494 + $0x650] sm:$0xff]
      %v706 = vld [vmem:[%s494 + $0x658] sm:$0xff]
      %v707 = vld [vmem:[%s494 + $0x660] sm:$0xff]
      %v708 = vld [vmem:[%s494 + $0x668] sm:$0xff]
      %v709 = vld [vmem:[%s494 + $0x670] sm:$0xff]
      %v710 = vld [vmem:[%s494 + $0x678] sm:$0xff]
      %v711 = vld [vmem:[%s494 + $0x680] sm:$0xff]
      %v712 = vld [vmem:[%s494 + $0x688] sm:$0xff]
      %v713 = vld [vmem:[%s494 + $0x690] sm:$0xff]
      %v714 = vld [vmem:[%s494 + $0x698] sm:$0xff]
      %v715 = vld [vmem:[%s494 + $0x6a0] sm:$0xff]
      %v716 = vld [vmem:[%s494 + $0x6a8] sm:$0xff]
      %v717 = vld [vmem:[%s494 + $0x6b0] sm:$0xff]
      %v718 = vld [vmem:[%s494 + $0x6b8] sm:$0xff]
      %v719 = vld [vmem:[%s494 + $0x6c0] sm:$0xff]
      %v720 = vld [vmem:[%s494 + $0x6c8] sm:$0xff]
      %v721 = vld [vmem:[%s494 + $0x6d0] sm:$0xff]
      %v722 = vld [vmem:[%s494 + $0x6d8] sm:$0xff]
      %v723 = vld [vmem:[%s494 + $0x6e0] sm:$0xff]
      %v724 = vld [vmem:[%s494 + $0x6e8] sm:$0xff]
      %v725 = vld [vmem:[%s494 + $0x6f0] sm:$0xff]
      %v726 = vld [vmem:[%s494 + $0x6f8] sm:$0xff]
      %v727 = vld [vmem:[%s494 + $0x700] sm:$0xff]
      %v728 = vld [vmem:[%s494 + $0x708] sm:$0xff]
      %v729 = vld [vmem:[%s494 + $0x710] sm:$0xff]
      %v730 = vld [vmem:[%s494 + $0x718] sm:$0xff]
      %v731 = vld [vmem:[%s494 + $0x720] sm:$0xff]
      %v732 = vld [vmem:[%s494 + $0x728] sm:$0xff]
      %v733 = vld [vmem:[%s494 + $0x730] sm:$0xff]
      %v734 = vld [vmem:[%s494 + $0x738] sm:$0xff]
      %v735 = vld [vmem:[%s494 + $0x740] sm:$0xff]
      %v736 = vld [vmem:[%s494 + $0x748] sm:$0xff]
      %v737 = vld [vmem:[%s494 + $0x750] sm:$0xff]
      %v738 = vld [vmem:[%s494 + $0x758] sm:$0xff]
      %v739 = vld [vmem:[%s494 + $0x760] sm:$0xff]
      %v740 = vld [vmem:[%s494 + $0x768] sm:$0xff]
      %v741 = vld [vmem:[%s494 + $0x770] sm:$0xff]
      %v742 = vld [vmem:[%s494 + $0x778] sm:$0xff]
      %v743 = vld [vmem:[%s494 + $0x780] sm:$0xff]
      %v744 = vld [vmem:[%s494 + $0x788] sm:$0xff]
      %v745 = vld [vmem:[%s494 + $0x790] sm:$0xff]
      %v746 = vld [vmem:[%s494 + $0x798] sm:$0xff]
      %v747 = vld [vmem:[%s494 + $0x7a0] sm:$0xff]
      %v748 = vld [vmem:[%s494 + $0x7a8] sm:$0xff]
      %v749 = vld [vmem:[%s494 + $0x7b0] sm:$0xff]
      %v750 = vld [vmem:[%s494 + $0x7b8] sm:$0xff]
      %v751 = vld [vmem:[%s494 + $0x7c0] sm:$0xff]
      %v752 = vld [vmem:[%s494 + $0x7c8] sm:$0xff]
      %v753 = vld [vmem:[%s494 + $0x7d0] sm:$0xff]
      %v754 = vld [vmem:[%s494 + $0x7d8] sm:$0xff]
      %v755 = vld [vmem:[%s494 + $0x7e0] sm:$0xff]
      %v756 = vld [vmem:[%s494 + $0x7e8] sm:$0xff]
      %v757 = vld [vmem:[%s494 + $0x7f0] sm:$0xff]
      %v758 = vld [vmem:[%s494 + $0x7f8] sm:$0xff]
      %v759 = vld [vmem:[%s494 + $0x800] sm:$0xff]
      %v760 = vld [vmem:[%s494 + $0x808] sm:$0xff]
      %v761 = vld [vmem:[%s494 + $0x810] sm:$0xff]
      %v762 = vld [vmem:[%s494 + $0x818] sm:$0xff]
      %v763 = vld [vmem:[%s494 + $0x820] sm:$0xff]
      %v764 = vld [vmem:[%s494 + $0x828] sm:$0xff]
      %v765 = vld [vmem:[%s494 + $0x830] sm:$0xff]
      %v766 = vld [vmem:[%s494 + $0x838] sm:$0xff]
      %v767 = vld [vmem:[%s494 + $0x840] sm:$0xff]
      %v768 = vld [vmem:[%s494 + $0x848] sm:$0xff]
      %v769 = vld [vmem:[%s494 + $0x850] sm:$0xff]
      %v770 = vld [vmem:[%s494 + $0x858] sm:$0xff]
      %v771 = vld [vmem:[%s494 + $0x860] sm:$0xff]
      %v772 = vld [vmem:[%s494 + $0x868] sm:$0xff]
      %v773 = vld [vmem:[%s494 + $0x870] sm:$0xff]
      %v774 = vld [vmem:[%s494 + $0x878] sm:$0xff]
      %v775 = vld [vmem:[%s494 + $0x880] sm:$0xff]
      %v776 = vld [vmem:[%s494 + $0x888] sm:$0xff]
      %v777 = vld [vmem:[%s494 + $0x890] sm:$0xff]
      %v778 = vld [vmem:[%s494 + $0x898] sm:$0xff]
      %v779 = vld [vmem:[%s494 + $0x8a0] sm:$0xff]
      %v780 = vld [vmem:[%s494 + $0x8a8] sm:$0xff]
      %v781 = vld [vmem:[%s494 + $0x8b0] sm:$0xff]
      %v782 = vld [vmem:[%s494 + $0x8b8] sm:$0xff]
      %v783 = vld [vmem:[%s494 + $0x8c0] sm:$0xff]
      %v784 = vld [vmem:[%s494 + $0x8c8] sm:$0xff]
      %v785 = vld [vmem:[%s494 + $0x8d0] sm:$0xff]
      %v786 = vld [vmem:[%s494 + $0x8d8] sm:$0xff]
      %v787 = vld [vmem:[%s494 + $0x8e0] sm:$0xff]
      %v788 = vld [vmem:[%s494 + $0x8e8] sm:$0xff]
      %v789 = vld [vmem:[%s494 + $0x8f0] sm:$0xff]
      %v790 = vld [vmem:[%s494 + $0x8f8] sm:$0xff]
      %v791 = vld [vmem:[%s494 + $0x900] sm:$0xff]
      %v792 = vld [vmem:[%s494 + $0x908] sm:$0xff]
      %v793 = vld [vmem:[%s494 + $0x910] sm:$0xff]
      %v794 = vld [vmem:[%s494 + $0x918] sm:$0xff]
      %v795 = vld [vmem:[%s494 + $0x920] sm:$0xff]
      %v796 = vld [vmem:[%s494 + $0x928] sm:$0xff]
      %v797 = vld [vmem:[%s494 + $0x930] sm:$0xff]
      %v798 = vld [vmem:[%s494 + $0x938] sm:$0xff]
      %v799 = vld [vmem:[%s494 + $0x940] sm:$0xff]
      %v800 = vld [vmem:[%s494 + $0x948] sm:$0xff]
      %v801 = vld [vmem:[%s494 + $0x950] sm:$0xff]
      %v802 = vld [vmem:[%s494 + $0x958] sm:$0xff]
      %v803 = vld [vmem:[%s494 + $0x960] sm:$0xff]
      %v804 = vld [vmem:[%s494 + $0x968] sm:$0xff]
      %v805 = vld [vmem:[%s494 + $0x970] sm:$0xff]
      %v806 = vld [vmem:[%s494 + $0x978] sm:$0xff]
      %v807 = vld [vmem:[%s494 + $0x980] sm:$0xff]
      %v808 = vld [vmem:[%s494 + $0x988] sm:$0xff]
      %v809 = vld [vmem:[%s494 + $0x990] sm:$0xff]
      %v810 = vld [vmem:[%s494 + $0x998] sm:$0xff]
      %v811 = vld [vmem:[%s494 + $0x9a0] sm:$0xff]
      %v812 = vld [vmem:[%s494 + $0x9a8] sm:$0xff]
      %v813 = vld [vmem:[%s494 + $0x9b0] sm:$0xff]
      %v814 = vld [vmem:[%s494 + $0x9b8] sm:$0xff]
      %v815 = vld [vmem:[%s494 + $0x9c0] sm:$0xff]
      %v816 = vld [vmem:[%s494 + $0x9c8] sm:$0xff]
      %v817 = vld [vmem:[%s494 + $0x9d0] sm:$0xff]
      %v818 = vld [vmem:[%s494 + $0x9d8] sm:$0xff]
      %v819 = vld [vmem:[%s494 + $0x9e0] sm:$0xff]
      %v820 = vld [vmem:[%s494 + $0x9e8] sm:$0xff]
      %v821 = vld [vmem:[%s494 + $0x9f0] sm:$0xff]
      %v822 = vld [vmem:[%s494 + $0x9f8] sm:$0xff]
      %v823 = vld [vmem:[%s494 + $0xa00] sm:$0xff]
      %v824 = vld [vmem:[%s494 + $0xa08] sm:$0xff]
      %v825 = vld [vmem:[%s494 + $0xa10] sm:$0xff]
      %v826 = vld [vmem:[%s494 + $0xa18] sm:$0xff]
      %v827 = vld [vmem:[%s494 + $0xa20] sm:$0xff]
      %v828 = vld [vmem:[%s494 + $0xa28] sm:$0xff]
      %v829 = vld [vmem:[%s494 + $0xa30] sm:$0xff]
      %v830 = vld [vmem:[%s494 + $0xa38] sm:$0xff]
      %v831 = vld [vmem:[%s494 + $0xa40] sm:$0xff]
      %v832 = vld [vmem:[%s494 + $0xa48] sm:$0xff]
      %v833 = vld [vmem:[%s494 + $0xa50] sm:$0xff]
      %v834 = vld [vmem:[%s494 + $0xa58] sm:$0xff]
      %v835 = vld [vmem:[%s494 + $0xa60] sm:$0xff]
      %v836 = vld [vmem:[%s494 + $0xa68] sm:$0xff]
      %v837 = vld [vmem:[%s494 + $0xa70] sm:$0xff]
      %v838 = vld [vmem:[%s494 + $0xa78] sm:$0xff]
      %v839 = vld [vmem:[%s494 + $0xa80] sm:$0xff]
      %v840 = vld [vmem:[%s494 + $0xa88] sm:$0xff]
      %v841 = vld [vmem:[%s494 + $0xa90] sm:$0xff]
      %v842 = vld [vmem:[%s494 + $0xa98] sm:$0xff]
      %v843 = vld [vmem:[%s494 + $0xaa0] sm:$0xff]
      %v844 = vld [vmem:[%s494 + $0xaa8] sm:$0xff]
      %v845 = vld [vmem:[%s494 + $0xab0] sm:$0xff]
      %v846 = vld [vmem:[%s494 + $0xab8] sm:$0xff]
      %v847 = vld [vmem:[%s494 + $0xac0] sm:$0xff]
      %v848 = vld [vmem:[%s494 + $0xac8] sm:$0xff]
      %v849 = vld [vmem:[%s494 + $0xad0] sm:$0xff]
      %v850 = vld [vmem:[%s494 + $0xad8] sm:$0xff]
      %v851 = vld [vmem:[%s494 + $0xae0] sm:$0xff]
      %v852 = vld [vmem:[%s494 + $0xae8] sm:$0xff]
      %v853 = vld [vmem:[%s494 + $0xaf0] sm:$0xff]
      %v854 = vld [vmem:[%s494 + $0xaf8] sm:$0xff]
      %v855 = vld [vmem:[%s494 + $0xb00] sm:$0xff]
      %v856 = vld [vmem:[%s494 + $0xb08] sm:$0xff]
      %v857 = vld [vmem:[%s494 + $0xb10] sm:$0xff]
      %v858 = vld [vmem:[%s494 + $0xb18] sm:$0xff]
      %v859 = vld [vmem:[%s494 + $0xb20] sm:$0xff]
      %v860 = vld [vmem:[%s494 + $0xb28] sm:$0xff]
      %v861 = vld [vmem:[%s494 + $0xb30] sm:$0xff]
      %v862 = vld [vmem:[%s494 + $0xb38] sm:$0xff]
      %v863 = vld [vmem:[%s494 + $0xb40] sm:$0xff]
      %v864 = vld [vmem:[%s494 + $0xb48] sm:$0xff]
      %v865 = vld [vmem:[%s494 + $0xb50] sm:$0xff]
      %v866 = vld [vmem:[%s494 + $0xb58] sm:$0xff]
      %v867 = vld [vmem:[%s494 + $0xb60] sm:$0xff]
      %v868 = vld [vmem:[%s494 + $0xb68] sm:$0xff]
      %v869 = vld [vmem:[%s494 + $0xb70] sm:$0xff]
      %v870 = vld [vmem:[%s494 + $0xb78] sm:$0xff]
      %v871 = vld [vmem:[%s494 + $0xb80] sm:$0xff]
      %v872 = vld [vmem:[%s494 + $0xb88] sm:$0xff]
      %v873 = vld [vmem:[%s494 + $0xb90] sm:$0xff]
      %v874 = vld [vmem:[%s494 + $0xb98] sm:$0xff]
      %v875 = vld [vmem:[%s494 + $0xba0] sm:$0xff]
      %v876 = vld [vmem:[%s494 + $0xba8] sm:$0xff]
      %v877 = vld [vmem:[%s494 + $0xbb0] sm:$0xff]
      %v878 = vld [vmem:[%s494 + $0xbb8] sm:$0xff]
      %v879 = vld [vmem:[%s494 + $0xbc0] sm:$0xff]
      %v880 = vld [vmem:[%s494 + $0xbc8] sm:$0xff]
      %v881 = vld [vmem:[%s494 + $0xbd0] sm:$0xff]
      %v882 = vld [vmem:[%s494 + $0xbd8] sm:$0xff]
      %v883 = vld [vmem:[%s494 + $0xbe0] sm:$0xff]
      %v884 = vld [vmem:[%s494 + $0xbe8] sm:$0xff]
      %v885 = vld [vmem:[%s494 + $0xbf0] sm:$0xff]
      %v886 = vld [vmem:[%s494 + $0xbf8] sm:$0xff]
      %v887 = vld [vmem:[%s494 + $0xc00] sm:$0xff]
      %v888 = vld [vmem:[%s494 + $0xc08] sm:$0xff]
      %v889 = vld [vmem:[%s494 + $0xc10] sm:$0xff]
      %v890 = vld [vmem:[%s494 + $0xc18] sm:$0xff]
      %v891 = vld [vmem:[%s494 + $0xc20] sm:$0xff]
      %v892 = vld [vmem:[%s494 + $0xc28] sm:$0xff]
      %v893 = vld [vmem:[%s494 + $0xc30] sm:$0xff]
      %v894 = vld [vmem:[%s494 + $0xc38] sm:$0xff]
      %v895 = vld [vmem:[%s494 + $0xc40] sm:$0xff]
      %v896 = vld [vmem:[%s494 + $0xc48] sm:$0xff]
      %v897 = vld [vmem:[%s494 + $0xc50] sm:$0xff]
      %v898 = vld [vmem:[%s494 + $0xc58] sm:$0xff]
      %v899 = vld [vmem:[%s494 + $0xc60] sm:$0xff]
      %v900 = vld [vmem:[%s494 + $0xc68] sm:$0xff]
      %v901 = vld [vmem:[%s494 + $0xc70] sm:$0xff]
      %v902 = vld [vmem:[%s494 + $0xc78] sm:$0xff]
      %v903 = vld [vmem:[%s494 + $0xc80] sm:$0xff]
      %v904 = vld [vmem:[%s494 + $0xc88] sm:$0xff]
      %v905 = vld [vmem:[%s494 + $0xc90] sm:$0xff]
      %v906 = vld [vmem:[%s494 + $0xc98] sm:$0xff]
      %v907 = vld [vmem:[%s494 + $0xca0] sm:$0xff]
      %v908 = vld [vmem:[%s494 + $0xca8] sm:$0xff]
      %v909 = vld [vmem:[%s494 + $0xcb0] sm:$0xff]
      %v910 = vld [vmem:[%s494 + $0xcb8] sm:$0xff]
      %v911 = vld [vmem:[%s494 + $0xcc0] sm:$0xff]
      %v912 = vld [vmem:[%s494 + $0xcc8] sm:$0xff]
      %v913 = vld [vmem:[%s494 + $0xcd0] sm:$0xff]
      %v914 = vld [vmem:[%s494 + $0xcd8] sm:$0xff]
      %v915 = vld [vmem:[%s494 + $0xce0] sm:$0xff]
      %v916 = vld [vmem:[%s494 + $0xce8] sm:$0xff]
      %v917 = vld [vmem:[%s494 + $0xcf0] sm:$0xff]
      %v918 = vld [vmem:[%s494 + $0xcf8] sm:$0xff]
      %v919 = vld [vmem:[%s494 + $0xd00] sm:$0xff]
      %v920 = vld [vmem:[%s494 + $0xd08] sm:$0xff]
      %v921 = vld [vmem:[%s494 + $0xd10] sm:$0xff]
      %v922 = vld [vmem:[%s494 + $0xd18] sm:$0xff]
      %v923 = vld [vmem:[%s494 + $0xd20] sm:$0xff]
      %v924 = vld [vmem:[%s494 + $0xd28] sm:$0xff]
      %v925 = vld [vmem:[%s494 + $0xd30] sm:$0xff]
      %v926 = vld [vmem:[%s494 + $0xd38] sm:$0xff]
      %v927 = vld [vmem:[%s494 + $0xd40] sm:$0xff]
      %v928 = vld [vmem:[%s494 + $0xd48] sm:$0xff]
      %v929 = vld [vmem:[%s494 + $0xd50] sm:$0xff]
      %v930 = vld [vmem:[%s494 + $0xd58] sm:$0xff]
      %v931 = vld [vmem:[%s494 + $0xd60] sm:$0xff]
      %v932 = vld [vmem:[%s494 + $0xd68] sm:$0xff]
      %v933 = vld [vmem:[%s494 + $0xd70] sm:$0xff]
      %v934 = vld [vmem:[%s494 + $0xd78] sm:$0xff]
      %v935 = vld [vmem:[%s494 + $0xd80] sm:$0xff]
      %v936 = vld [vmem:[%s494 + $0xd88] sm:$0xff]
      %v937 = vld [vmem:[%s494 + $0xd90] sm:$0xff]
      %v938 = vld [vmem:[%s494 + $0xd98] sm:$0xff]
      %v939 = vld [vmem:[%s494 + $0xda0] sm:$0xff]
      %v940 = vld [vmem:[%s494 + $0xda8] sm:$0xff]
      %v941 = vld [vmem:[%s494 + $0xdb0] sm:$0xff]
      %v942 = vld [vmem:[%s494 + $0xdb8] sm:$0xff]
      %v943 = vld [vmem:[%s494 + $0xdc0] sm:$0xff]
      %v944 = vld [vmem:[%s494 + $0xdc8] sm:$0xff]
      %v945 = vld [vmem:[%s494 + $0xdd0] sm:$0xff]
      %v946 = vld [vmem:[%s494 + $0xdd8] sm:$0xff]
      %v947 = vld [vmem:[%s494 + $0xde0] sm:$0xff]
      %v948 = vld [vmem:[%s494 + $0xde8] sm:$0xff]
      %v949 = vld [vmem:[%s494 + $0xdf0] sm:$0xff]
      %v950 = vld [vmem:[%s494 + $0xdf8] sm:$0xff]
      %v951 = vld [vmem:[%s1] sm:$0xff]
      %v952 = vld [vmem:[%s1 + $0x8] sm:$0xff]
      %v953 = vld [vmem:[%s1 + $0x10] sm:$0xff]
      %v954 = vld [vmem:[%s1 + $0x18] sm:$0xff]
      %v955 = vld [vmem:[%s1 + $0x20] sm:$0xff]
      %v956 = vld [vmem:[%s1 + $0x28] sm:$0xff]
      %v957 = vld [vmem:[%s1 + $0x30] sm:$0xff]
      %v958 = vld [vmem:[%s1 + $0x38] sm:$0xff]
      %v959 = vld [vmem:[%s1 + $0x40] sm:$0xff]
      %v960 = vld [vmem:[%s1 + $0x48] sm:$0xff]
      %v961 = vld [vmem:[%s1 + $0x50] sm:$0xff]
      %v962 = vld [vmem:[%s1 + $0x58] sm:$0xff]
      %v963 = vld [vmem:[%s1 + $0x60] sm:$0xff]
      %v964 = vld [vmem:[%s1 + $0x68] sm:$0xff]
      %v965 = vld [vmem:[%s1 + $0x70] sm:$0xff]
      %v966 = vld [vmem:[%s1 + $0x78] sm:$0xff]
      %v967 = vld [vmem:[%s1 + $0x80] sm:$0xff]
      %v968 = vld [vmem:[%s1 + $0x88] sm:$0xff]
      %v969 = vld [vmem:[%s1 + $0x90] sm:$0xff]
      %v970 = vld [vmem:[%s1 + $0x98] sm:$0xff]
      %v971 = vld [vmem:[%s1 + $0xa0] sm:$0xff]
      %v972 = vld [vmem:[%s1 + $0xa8] sm:$0xff]
      %v973 = vld [vmem:[%s1 + $0xb0] sm:$0xff]
      %v974 = vld [vmem:[%s1 + $0xb8] sm:$0xff]
      %v975 = vld [vmem:[%s1 + $0xc0] sm:$0xff]
      %v976 = vld [vmem:[%s1 + $0xc8] sm:$0xff]
      %v977 = vld [vmem:[%s1 + $0xd0] sm:$0xff]
      %v978 = vld [vmem:[%s1 + $0xd8] sm:$0xff]
      %v979 = vld [vmem:[%s1 + $0xe0] sm:$0xff]
      %v980 = vld [vmem:[%s1 + $0xe8] sm:$0xff]
      %v981 = vld [vmem:[%s1 + $0xf0] sm:$0xff]
      %v982 = vld [vmem:[%s1 + $0xf8] sm:$0xff]
      %v983 = vld [vmem:[%s1 + $0x100] sm:$0xff]
      %v984 = vld [vmem:[%s1 + $0x108] sm:$0xff]
      %v985 = vld [vmem:[%s1 + $0x110] sm:$0xff]
      %v986 = vld [vmem:[%s1 + $0x118] sm:$0xff]
      %v987 = vld [vmem:[%s1 + $0x120] sm:$0xff]
      %v988 = vld [vmem:[%s1 + $0x128] sm:$0xff]
      %v989 = vld [vmem:[%s1 + $0x130] sm:$0xff]
      %v990 = vld [vmem:[%s1 + $0x138] sm:$0xff]
      %v991 = vld [vmem:[%s1 + $0x140] sm:$0xff]
      %v992 = vld [vmem:[%s1 + $0x148] sm:$0xff]
      %v993 = vld [vmem:[%s1 + $0x150] sm:$0xff]
      %v994 = vld [vmem:[%s1 + $0x158] sm:$0xff]
      %v995 = vld [vmem:[%s1 + $0x160] sm:$0xff]
      %v996 = vld [vmem:[%s1 + $0x168] sm:$0xff]
      %v997 = vld [vmem:[%s1 + $0x170] sm:$0xff]
      %v998 = vld [vmem:[%s1 + $0x178] sm:$0xff]
      %v999 = vld [vmem:[%s1 + $0x180] sm:$0xff]
      %v1000 = vld [vmem:[%s1 + $0x188] sm:$0xff]
      %v1001 = vld [vmem:[%s1 + $0x190] sm:$0xff]
      %v1002 = vld [vmem:[%s1 + $0x198] sm:$0xff]
      %v1003 = vld [vmem:[%s1 + $0x1a0] sm:$0xff]
      %v1004 = vld [vmem:[%s1 + $0x1a8] sm:$0xff]
      %v1005 = vld [vmem:[%s1 + $0x1b0] sm:$0xff]
      %v1006 = vld [vmem:[%s1 + $0x1b8] sm:$0xff]
      %v1007 = vld [vmem:[%s1 + $0x1c0] sm:$0xff]
      %v1008 = vld [vmem:[%s1 + $0x1c8] sm:$0xff]
      %v1009 = vld [vmem:[%s1 + $0x1d0] sm:$0xff]
      %v1010 = vld [vmem:[%s1 + $0x1d8] sm:$0xff]
      %v1011 = vld [vmem:[%s1 + $0x1e0] sm:$0xff]
      %v1012 = vld [vmem:[%s1 + $0x1e8] sm:$0xff]
      %v1013 = vld [vmem:[%s1 + $0x1f0] sm:$0xff]
      %v1014 = vld [vmem:[%s1 + $0x1f8] sm:$0xff]
      %v1015 = vld [vmem:[%s1 + $0x200] sm:$0xff]
      %v1016 = vld [vmem:[%s1 + $0x208] sm:$0xff]
      %v1017 = vld [vmem:[%s1 + $0x210] sm:$0xff]
      %v1018 = vld [vmem:[%s1 + $0x218] sm:$0xff]
      %v1019 = vld [vmem:[%s1 + $0x220] sm:$0xff]
      %v1020 = vld [vmem:[%s1 + $0x228] sm:$0xff]
      %v1021 = vld [vmem:[%s1 + $0x230] sm:$0xff]
      %v1022 = vld [vmem:[%s1 + $0x238] sm:$0xff]
      %v1023 = vld [vmem:[%s1 + $0x240] sm:$0xff]
      %v1024 = vld [vmem:[%s1 + $0x248] sm:$0xff]
      %v1025 = vld [vmem:[%s1 + $0x250] sm:$0xff]
      %v1026 = vld [vmem:[%s1 + $0x258] sm:$0xff]
      %v1027 = vld [vmem:[%s1 + $0x260] sm:$0xff]
      %v1028 = vld [vmem:[%s1 + $0x268] sm:$0xff]
      %v1029 = vld [vmem:[%s1 + $0x270] sm:$0xff]
      %v1030 = vld [vmem:[%s1 + $0x278] sm:$0xff]
      %v1031 = vld [vmem:[%s1 + $0x280] sm:$0xff]
      %v1032 = vld [vmem:[%s1 + $0x288] sm:$0xff]
      %v1033 = vld [vmem:[%s1 + $0x290] sm:$0xff]
      %v1034 = vld [vmem:[%s1 + $0x298] sm:$0xff]
      %v1035 = vld [vmem:[%s1 + $0x2a0] sm:$0xff]
      %v1036 = vld [vmem:[%s1 + $0x2a8] sm:$0xff]
      %v1037 = vld [vmem:[%s1 + $0x2b0] sm:$0xff]
      %v1038 = vld [vmem:[%s1 + $0x2b8] sm:$0xff]
      %v1039 = vld [vmem:[%s1 + $0x2c0] sm:$0xff]
      %v1040 = vld [vmem:[%s1 + $0x2c8] sm:$0xff]
      %v1041 = vld [vmem:[%s1 + $0x2d0] sm:$0xff]
      %v1042 = vld [vmem:[%s1 + $0x2d8] sm:$0xff]
      %v1043 = vld [vmem:[%s1 + $0x2e0] sm:$0xff]
      %v1044 = vld [vmem:[%s1 + $0x2e8] sm:$0xff]
      %v1045 = vld [vmem:[%s1 + $0x2f0] sm:$0xff]
      %v1046 = vld [vmem:[%s1 + $0x2f8] sm:$0xff]
      %v1047 = vld [vmem:[%s1 + $0x300] sm:$0xff]
      %v1048 = vld [vmem:[%s1 + $0x308] sm:$0xff]
      %v1049 = vld [vmem:[%s1 + $0x310] sm:$0xff]
      %v1050 = vld [vmem:[%s1 + $0x318] sm:$0xff]
      %v1051 = vld [vmem:[%s1 + $0x320] sm:$0xff]
      %v1052 = vld [vmem:[%s1 + $0x328] sm:$0xff]
      %v1053 = vld [vmem:[%s1 + $0x330] sm:$0xff]
      %v1054 = vld [vmem:[%s1 + $0x338] sm:$0xff]
      %v1055 = vld [vmem:[%s1 + $0x340] sm:$0xff]
      %v1056 = vld [vmem:[%s1 + $0x348] sm:$0xff]
      %v1057 = vld [vmem:[%s1 + $0x350] sm:$0xff]
      %v1058 = vld [vmem:[%s1 + $0x358] sm:$0xff]
      %v1059 = vld [vmem:[%s1 + $0x360] sm:$0xff]
      %v1060 = vld [vmem:[%s1 + $0x368] sm:$0xff]
      %v1061 = vld [vmem:[%s1 + $0x370] sm:$0xff]
      %v1062 = vld [vmem:[%s1 + $0x378] sm:$0xff]
      %v1063 = vld [vmem:[%s2] sm:$0x1]
      %v1065 = vlaneseq
      %v1066 = vshrl.u32 %v1065, 7
      %v1067 = vsub.s32 0, %v1066
      %v1068 = vrot.slane %v1063, %v1067
      %1070 = vmatprep.subr.mxu0 0.0
      %1071 = vmatpush1.msra.mxu0 %v951
      %1072 = vmatprep.subr.mxu0 0.0
      %1073 = vmatpush1.msra.mxu0 %v952
      %1074 = vmatprep.subr.mxu0 0.0
      %1075 = vmatpush1.msra.mxu0 %v953
      %1076 = vmatprep.subr.mxu0 0.0
      %1077 = vmatpush1.msra.mxu0 %v954
      %1078 = vmatprep.subr.mxu0 0.0
      %1079 = vmatpush1.msra.mxu0 %v955
      %1080 = vmatprep.subr.mxu0 0.0
      %1081 = vmatpush1.msra.mxu0 %v956
      %1082 = vmatprep.subr.mxu0 0.0
      %1083 = vmatpush1.msra.mxu0 %v957
      %1084 = vmatprep.subr.mxu0 0.0
      %1085 = vmatpush1.msra.mxu0 %v958
      %1086 = vmatprep.subr.mxu0 0.0
      %1087 = vmatpush1.msra.mxu0 %v959
      %1088 = vmatprep.subr.mxu0 0.0
      %1089 = vmatpush1.msra.mxu0 %v960
      %1090 = vmatprep.subr.mxu0 0.0
      %1091 = vmatpush1.msra.mxu0 %v961
      %1092 = vmatprep.subr.mxu0 0.0
      %1093 = vmatpush1.msra.mxu0 %v962
      %1094 = vmatprep.subr.mxu0 0.0
      %1095 = vmatpush1.msra.mxu0 %v963
      %1096 = vmatprep.subr.mxu0 0.0
      %1097 = vmatpush1.msra.mxu0 %v964
      %1098 = vmatprep.subr.mxu0 0.0
      %1099 = vmatpush1.msra.mxu0 %v965
      %1100 = vmatprep.subr.mxu0 0.0
      %1101 = vmatpush1.msra.mxu0 %v966
      %1102 = vmatprep.subr.mxu0 0.0
      %1103 = vmatpush1.msra.mxu0 %v967
      %1104 = vmatprep.subr.mxu0 0.0
      %1105 = vmatpush1.msra.mxu0 %v968
      %1106 = vmatprep.subr.mxu0 0.0
      %1107 = vmatpush1.msra.mxu0 %v969
      %1108 = vmatprep.subr.mxu0 0.0
      %1109 = vmatpush1.msra.mxu0 %v970
      %1110 = vmatprep.subr.mxu0 0.0
      %1111 = vmatpush1.msra.mxu0 %v971
      %1112 = vmatprep.subr.mxu0 0.0
      %1113 = vmatpush1.msra.mxu0 %v972
      %1114 = vmatprep.subr.mxu0 0.0
      %1115 = vmatpush1.msra.mxu0 %v973
      %1116 = vmatprep.subr.mxu0 0.0
      %1117 = vmatpush1.msra.mxu0 %v974
      %1118 = vmatprep.subr.mxu0 0.0
      %1119 = vmatpush1.msra.mxu0 %v975
      %1120 = vmatprep.subr.mxu0 0.0
      %1121 = vmatpush1.msra.mxu0 %v976
      %1122 = vmatprep.subr.mxu0 0.0
      %1123 = vmatpush1.msra.mxu0 %v977
      %1124 = vmatprep.subr.mxu0 0.0
      %1125 = vmatpush1.msra.mxu0 %v978
      %1126 = vmatprep.subr.mxu0 0.0
      %1127 = vmatpush1.msra.mxu0 %v979
      %1128 = vmatprep.subr.mxu0 0.0
      %1129 = vmatpush1.msra.mxu0 %v980
      %1130 = vmatprep.subr.mxu0 0.0
      %1131 = vmatpush1.msra.mxu0 %v981
      %1132 = vmatprep.subr.mxu0 0.0
      %1133 = vmatpush1.msra.mxu0 %v982
      %1134 = vmatprep.mubr.f32.mxu0 %v504
      %1135 = vmatmul.mubr.f32.gmra.mrb[0].mxu0 %v503
      %v1136 = vpop.f32.mrb[0].mxu0
      %v1137 = vadd.f32 %v1068, %v1136
      %v1138 = vpop.f32.mrb[0].mxu0
      %1139 = vmatprep.mubr.f32.mxu0 %v511
      %1140 = vmatmul.mubr.f32.gmra.mrb[0].mxu0 %v510
      %v1141 = vpop.f32.mrb[0].mxu0
      %v1142 = vadd.f32 %v1068, %v1141
      %v1143 = vpop.f32.mrb[0].mxu0
      %1144 = vmatprep.mubr.f32.mxu0 %v518
      %1145 = vmatmul.mubr.f32.gmra.mrb[0].mxu0 %v517
      %v1146 = vpop.f32.mrb[0].mxu0
      %v1147 = vadd.f32 %v1068, %v1146
      %v1148 = vpop.f32.mrb[0].mxu0
      %1149 = vmatprep.mubr.f32.mxu0 %v525
      %1150 = vmatmul.mubr.f32.gmra.mrb[0].mxu0 %v524
      %v1151 = vpop.f32.mrb[0].mxu0
      %v1152 = vadd.f32 %v1068, %v1151
      %v1153 = vpop.f32.mrb[0].mxu0
      %1154 = vmatprep.mubr.f32.mxu0 %v532
      %1155 = vmatmul.mubr.f32.gmra.mrb[0].mxu0 %v531
      %v1156 = vpop.f32.mrb[0].mxu0
      %v1157 = vadd.f32 %v1068, %v1156
      %v1158 = vpop.f32.mrb[0].mxu0
      %1159 = vmatprep.mubr.f32.mxu0 %v539
      %1160 = vmatmul.mubr.f32.gmra.mrb[0].mxu0 %v538
      %v1161 = vpop.f32.mrb[0].mxu0
      %v1162 = vadd.f32 %v1068, %v1161
      %v1163 = vpop.f32.mrb[0].mxu0
      %1164 = vmatprep.mubr.f32.mxu0 %v546
      %1165 = vmatmul.mubr.f32.gmra.mrb[0].mxu0 %v545
      %v1166 = vpop.f32.mrb[0].mxu0
      %v1167 = vadd.f32 %v1068, %v1166
      %v1168 = vpop.f32.mrb[0].mxu0
      %1169 = vmatprep.mubr.f32.mxu0 %v553
      %1170 = vmatmul.mubr.f32.gmra.mrb[0].mxu0 %v552
      %v1171 = vpop.f32.mrb[0].mxu0
      %v1172 = vadd.f32 %v1068, %v1171
      %v1173 = vpop.f32.mrb[0].mxu0
      %1174 = vmatprep.mubr.f32.mxu0 %v560
      %1175 = vmatmul.mubr.f32.gmra.mrb[0].mxu0 %v559
      %v1176 = vpop.f32.mrb[0].mxu0
      %v1177 = vadd.f32 %v1068, %v1176
      %v1178 = vpop.f32.mrb[0].mxu0
      %1179 = vmatprep.mubr.f32.mxu0 %v567
      %1180 = vmatmul.mubr.f32.gmra.mrb[0].mxu0 %v566
      %v1181 = vpop.f32.mrb[0].mxu0
      %v1182 = vadd.f32 %v1068, %v1181
      %v1183 = vpop.f32.mrb[0].mxu0
      %1184 = vmatprep.mubr.f32.mxu0 %v574
      %1185 = vmatmul.mubr.f32.gmra.mrb[0].mxu0 %v573
      %v1186 = vpop.f32.mrb[0].mxu0
      %v1187 = vadd.f32 %v1068, %v1186
      %v1188 = vpop.f32.mrb[0].mxu0
      %1189 = vmatprep.mubr.f32.mxu0 %v581
      %1190 = vmatmul.mubr.f32.gmra.mrb[0].mxu0 %v580
      %v1191 = vpop.f32.mrb[0].mxu0
      %v1192 = vadd.f32 %v1068, %v1191
      %v1193 = vpop.f32.mrb[0].mxu0
      %1194 = vmatprep.mubr.f32.mxu0 %v588
      %1195 = vmatmul.mubr.f32.gmra.mrb[0].mxu0 %v587
      %v1196 = vpop.f32.mrb[0].mxu0
      %v1197 = vadd.f32 %v1068, %v1196
      %v1198 = vpop.f32.mrb[0].mxu0
      %1199 = vmatprep.mubr.f32.mxu0 %v595
      %1200 = vmatmul.mubr.f32.gmra.mrb[0].mxu0 %v594
      %v1201 = vpop.f32.mrb[0].mxu0
      %v1202 = vadd.f32 %v1068, %v1201
      %v1203 = vpop.f32.mrb[0].mxu0
      %1204 = vmatprep.mubr.f32.mxu0 %v602
      %1205 = vmatmul.mubr.f32.gmra.mrb[0].mxu0 %v601
      %v1206 = vpop.f32.mrb[0].mxu0
      %v1207 = vadd.f32 %v1068, %v1206
      %v1208 = vpop.f32.mrb[0].mxu0
      %1209 = vmatprep.mubr.f32.mxu0 %v609
      %1210 = vmatmul.mubr.f32.gmra.mrb[0].mxu0 %v608
      %v1211 = vpop.f32.mrb[0].mxu0
      %v1212 = vadd.f32 %v1068, %v1211
      %v1213 = vpop.f32.mrb[0].mxu0
      %1214 = vmatprep.mubr.f32.mxu0 %v616
      %1215 = vmatmul.mubr.f32.gmra.mrb[0].mxu0 %v615
      %v1216 = vpop.f32.mrb[0].mxu0
      %v1217 = vadd.f32 %v1068, %v1216
      %v1218 = vpop.f32.mrb[0].mxu0
      %1219 = vmatprep.mubr.f32.mxu0 %v623
      %1220 = vmatmul.mubr.f32.gmra.mrb[0].mxu0 %v622
      %v1221 = vpop.f32.mrb[0].mxu0
      %v1222 = vadd.f32 %v1068, %v1221
      %v1223 = vpop.f32.mrb[0].mxu0
      %1224 = vmatprep.mubr.f32.mxu0 %v630
      %1225 = vmatmul.mubr.f32.gmra.mrb[0].mxu0 %v629
      %v1226 = vpop.f32.mrb[0].mxu0
      %v1227 = vadd.f32 %v1068, %v1226
      %v1228 = vpop.f32.mrb[0].mxu0
      %1229 = vmatprep.mubr.f32.mxu0 %v637
      %1230 = vmatmul.mubr.f32.gmra.mrb[0].mxu0 %v636
      %v1231 = vpop.f32.mrb[0].mxu0
      %v1232 = vadd.f32 %v1068, %v1231
      %v1233 = vpop.f32.mrb[0].mxu0
      %1234 = vmatprep.mubr.f32.mxu0 %v644
      %1235 = vmatmul.mubr.f32.gmra.mrb[0].mxu0 %v643
      %v1236 = vpop.f32.mrb[0].mxu0
      %v1237 = vadd.f32 %v1068, %v1236
      %v1238 = vpop.f32.mrb[0].mxu0
      %1239 = vmatprep.mubr.f32.mxu0 %v651
      %1240 = vmatmul.mubr.f32.gmra.mrb[0].mxu0 %v650
      %v1241 = vpop.f32.mrb[0].mxu0
      %v1242 = vadd.f32 %v1068, %v1241
      %v1243 = vpop.f32.mrb[0].mxu0
      %1244 = vmatprep.mubr.f32.mxu0 %v658
      %1245 = vmatmul.mubr.f32.gmra.mrb[0].mxu0 %v657
      %v1246 = vpop.f32.mrb[0].mxu0
      %v1247 = vadd.f32 %v1068, %v1246
      %v1248 = vpop.f32.mrb[0].mxu0
      %1249 = vmatprep.mubr.f32.mxu0 %v665
      %1250 = vmatmul.mubr.f32.gmra.mrb[0].mxu0 %v664
      %v1251 = vpop.f32.mrb[0].mxu0
      %v1252 = vadd.f32 %v1068, %v1251
      %v1253 = vpop.f32.mrb[0].mxu0
      %1254 = vmatprep.mubr.f32.mxu0 %v672
      %1255 = vmatmul.mubr.f32.gmra.mrb[0].mxu0 %v671
      %v1256 = vpop.f32.mrb[0].mxu0
      %v1257 = vadd.f32 %v1068, %v1256
      %v1258 = vpop.f32.mrb[0].mxu0
      %1259 = vmatprep.mubr.f32.mxu0 %v679
      %1260 = vmatmul.mubr.f32.gmra.mrb[0].mxu0 %v678
      %v1261 = vpop.f32.mrb[0].mxu0
      %v1262 = vadd.f32 %v1068, %v1261
      %v1263 = vpop.f32.mrb[0].mxu0
      %1264 = vmatprep.mubr.f32.mxu0 %v686
      %1265 = vmatmul.mubr.f32.gmra.mrb[0].mxu0 %v685
      %v1266 = vpop.f32.mrb[0].mxu0
      %v1267 = vadd.f32 %v1068, %v1266
      %v1268 = vpop.f32.mrb[0].mxu0
      %1269 = vmatprep.mubr.f32.mxu0 %v693
      %1270 = vmatmul.mubr.f32.gmra.mrb[0].mxu0 %v692
      %v1271 = vpop.f32.mrb[0].mxu0
      %v1272 = vadd.f32 %v1068, %v1271
      %v1273 = vpop.f32.mrb[0].mxu0
      %1274 = vmatprep.mubr.f32.mxu0 %v700
      %1275 = vmatmul.mubr.f32.gmra.mrb[0].mxu0 %v699
      %v1276 = vpop.f32.mrb[0].mxu0
      %v1277 = vadd.f32 %v1068, %v1276
      %v1278 = vpop.f32.mrb[0].mxu0
      %1279 = vmatprep.mubr.f32.mxu0 %v707
      %1280 = vmatmul.mubr.f32.gmra.mrb[0].mxu0 %v706
      %v1281 = vpop.f32.mrb[0].mxu0
      %v1282 = vadd.f32 %v1068, %v1281
      %v1283 = vpop.f32.mrb[0].mxu0
      %1284 = vmatprep.mubr.f32.mxu0 %v714
      %1285 = vmatmul.mubr.f32.gmra.mrb[0].mxu0 %v713
      %v1286 = vpop.f32.mrb[0].mxu0
      %v1287 = vadd.f32 %v1068, %v1286
      %v1288 = vpop.f32.mrb[0].mxu0
      %1289 = vmatprep.mubr.f32.mxu0 %v721
      %1290 = vmatmul.mubr.f32.gmra.mrb[0].mxu0 %v720
      %v1291 = vpop.f32.mrb[0].mxu0
      %v1292 = vadd.f32 %v1068, %v1291
      %v1293 = vpop.f32.mrb[0].mxu0
      %1294 = vmatprep.mubr.f32.mxu0 %v728
      %1295 = vmatmul.mubr.f32.gmra.mrb[0].mxu0 %v727
      %v1296 = vpop.f32.mrb[0].mxu0
      %v1297 = vadd.f32 %v1068, %v1296
      %v1298 = vpop.f32.mrb[0].mxu0
      %1299 = vmatprep.mubr.f32.mxu0 %v735
      %1300 = vmatmul.mubr.f32.gmra.mrb[0].mxu0 %v734
      %v1301 = vpop.f32.mrb[0].mxu0
      %v1302 = vadd.f32 %v1068, %v1301
      %v1303 = vpop.f32.mrb[0].mxu0
      %1304 = vmatprep.mubr.f32.mxu0 %v742
      %1305 = vmatmul.mubr.f32.gmra.mrb[0].mxu0 %v741
      %v1306 = vpop.f32.mrb[0].mxu0
      %v1307 = vadd.f32 %v1068, %v1306
      %v1308 = vpop.f32.mrb[0].mxu0
      %1309 = vmatprep.mubr.f32.mxu0 %v749
      %1310 = vmatmul.mubr.f32.gmra.mrb[0].mxu0 %v748
      %v1311 = vpop.f32.mrb[0].mxu0
      %v1312 = vadd.f32 %v1068, %v1311
      %v1313 = vpop.f32.mrb[0].mxu0
      %1314 = vmatprep.mubr.f32.mxu0 %v756
      %1315 = vmatmul.mubr.f32.gmra.mrb[0].mxu0 %v755
      %v1316 = vpop.f32.mrb[0].mxu0
      %v1317 = vadd.f32 %v1068, %v1316
      %v1318 = vpop.f32.mrb[0].mxu0
      %1319 = vmatprep.mubr.f32.mxu0 %v763
      %1320 = vmatmul.mubr.f32.gmra.mrb[0].mxu0 %v762
      %v1321 = vpop.f32.mrb[0].mxu0
      %v1322 = vadd.f32 %v1068, %v1321
      %v1323 = vpop.f32.mrb[0].mxu0
      %1324 = vmatprep.mubr.f32.mxu0 %v770
      %1325 = vmatmul.mubr.f32.gmra.mrb[0].mxu0 %v769
      %v1326 = vpop.f32.mrb[0].mxu0
      %v1327 = vadd.f32 %v1068, %v1326
      %v1328 = vpop.f32.mrb[0].mxu0
      %1329 = vmatprep.mubr.f32.mxu0 %v777
      %1330 = vmatmul.mubr.f32.gmra.mrb[0].mxu0 %v776
      %v1331 = vpop.f32.mrb[0].mxu0
      %v1332 = vadd.f32 %v1068, %v1331
      %v1333 = vpop.f32.mrb[0].mxu0
      %1334 = vmatprep.mubr.f32.mxu0 %v784
      %1335 = vmatmul.mubr.f32.gmra.mrb[0].mxu0 %v783
      %v1336 = vpop.f32.mrb[0].mxu0
      %v1337 = vadd.f32 %v1068, %v1336
      %v1338 = vpop.f32.mrb[0].mxu0
      %1339 = vmatprep.mubr.f32.mxu0 %v791
      %1340 = vmatmul.mubr.f32.gmra.mrb[0].mxu0 %v790
      %v1341 = vpop.f32.mrb[0].mxu0
      %v1342 = vadd.f32 %v1068, %v1341
      %v1343 = vpop.f32.mrb[0].mxu0
      %1344 = vmatprep.mubr.f32.mxu0 %v798
      %1345 = vmatmul.mubr.f32.gmra.mrb[0].mxu0 %v797
      %v1346 = vpop.f32.mrb[0].mxu0
      %v1347 = vadd.f32 %v1068, %v1346
      %v1348 = vpop.f32.mrb[0].mxu0
      %1349 = vmatprep.mubr.f32.mxu0 %v805
      %1350 = vmatmul.mubr.f32.gmra.mrb[0].mxu0 %v804
      %v1351 = vpop.f32.mrb[0].mxu0
      %v1352 = vadd.f32 %v1068, %v1351
      %v1353 = vpop.f32.mrb[0].mxu0
      %1354 = vmatprep.mubr.f32.mxu0 %v812
      %1355 = vmatmul.mubr.f32.gmra.mrb[0].mxu0 %v811
      %v1356 = vpop.f32.mrb[0].mxu0
      %v1357 = vadd.f32 %v1068, %v1356
      %v1358 = vpop.f32.mrb[0].mxu0
      %1359 = vmatprep.mubr.f32.mxu0 %v819
      %1360 = vmatmul.mubr.f32.gmra.mrb[0].mxu0 %v818
      %v1361 = vpop.f32.mrb[0].mxu0
      %v1362 = vadd.f32 %v1068, %v1361
      %v1363 = vpop.f32.mrb[0].mxu0
      %1364 = vmatprep.mubr.f32.mxu0 %v826
      %1365 = vmatmul.mubr.f32.gmra.mrb[0].mxu0 %v825
      %v1366 = vpop.f32.mrb[0].mxu0
      %v1367 = vadd.f32 %v1068, %v1366
      %v1368 = vpop.f32.mrb[0].mxu0
      %1369 = vmatprep.mubr.f32.mxu0 %v833
      %1370 = vmatmul.mubr.f32.gmra.mrb[0].mxu0 %v832
      %v1371 = vpop.f32.mrb[0].mxu0
      %v1372 = vadd.f32 %v1068, %v1371
      %v1373 = vpop.f32.mrb[0].mxu0
      %1374 = vmatprep.mubr.f32.mxu0 %v840
      %1375 = vmatmul.mubr.f32.gmra.mrb[0].mxu0 %v839
      %v1376 = vpop.f32.mrb[0].mxu0
      %v1377 = vadd.f32 %v1068, %v1376
      %v1378 = vpop.f32.mrb[0].mxu0
      %1379 = vmatprep.mubr.f32.mxu0 %v847
      %1380 = vmatmul.mubr.f32.gmra.mrb[0].mxu0 %v846
      %v1381 = vpop.f32.mrb[0].mxu0
      %v1382 = vadd.f32 %v1068, %v1381
      %v1383 = vpop.f32.mrb[0].mxu0
      %1384 = vmatprep.mubr.f32.mxu0 %v854
      %1385 = vmatmul.mubr.f32.gmra.mrb[0].mxu0 %v853
      %v1386 = vpop.f32.mrb[0].mxu0
      %v1387 = vadd.f32 %v1068, %v1386
      %v1388 = vpop.f32.mrb[0].mxu0
      %1389 = vmatprep.mubr.f32.mxu0 %v861
      %1390 = vmatmul.mubr.f32.gmra.mrb[0].mxu0 %v860
      %v1391 = vpop.f32.mrb[0].mxu0
      %v1392 = vadd.f32 %v1068, %v1391
      %v1393 = vpop.f32.mrb[0].mxu0
      %1394 = vmatprep.mubr.f32.mxu0 %v868
      %1395 = vmatmul.mubr.f32.gmra.mrb[0].mxu0 %v867
      %v1396 = vpop.f32.mrb[0].mxu0
      %v1397 = vadd.f32 %v1068, %v1396
      %v1398 = vpop.f32.mrb[0].mxu0
      %1399 = vmatprep.mubr.f32.mxu0 %v875
      %1400 = vmatmul.mubr.f32.gmra.mrb[0].mxu0 %v874
      %v1401 = vpop.f32.mrb[0].mxu0
      %v1402 = vadd.f32 %v1068, %v1401
      %v1403 = vpop.f32.mrb[0].mxu0
      %1404 = vmatprep.mubr.f32.mxu0 %v882
      %1405 = vmatmul.mubr.f32.gmra.mrb[0].mxu0 %v881
      %v1406 = vpop.f32.mrb[0].mxu0
      %v1407 = vadd.f32 %v1068, %v1406
      %v1408 = vpop.f32.mrb[0].mxu0
      %1409 = vmatprep.mubr.f32.mxu0 %v889
      %1410 = vmatmul.mubr.f32.gmra.mrb[0].mxu0 %v888
      %v1411 = vpop.f32.mrb[0].mxu0
      %v1412 = vadd.f32 %v1068, %v1411
      %v1413 = vpop.f32.mrb[0].mxu0
      %1414 = vmatprep.mubr.f32.mxu0 %v896
      %1415 = vmatmul.mubr.f32.gmra.mrb[0].mxu0 %v895
      %v1416 = vpop.f32.mrb[0].mxu0
      %v1417 = vadd.f32 %v1068, %v1416
      %v1418 = vpop.f32.mrb[0].mxu0
      %1419 = vmatprep.mubr.f32.mxu0 %v903
      %1420 = vmatmul.mubr.f32.gmra.mrb[0].mxu0 %v902
      %v1421 = vpop.f32.mrb[0].mxu0
      %v1422 = vadd.f32 %v1068, %v1421
      %v1423 = vpop.f32.mrb[0].mxu0
      %1424 = vmatprep.mubr.f32.mxu0 %v910
      %1425 = vmatmul.mubr.f32.gmra.mrb[0].mxu0 %v909
      %v1426 = vpop.f32.mrb[0].mxu0
      %v1427 = vadd.f32 %v1068, %v1426
      %v1428 = vpop.f32.mrb[0].mxu0
      %1429 = vmatprep.mubr.f32.mxu0 %v917
      %1430 = vmatmul.mubr.f32.gmra.mrb[0].mxu0 %v916
      %v1431 = vpop.f32.mrb[0].mxu0
      %v1432 = vadd.f32 %v1068, %v1431
      %v1433 = vpop.f32.mrb[0].mxu0
      %1434 = vmatprep.mubr.f32.mxu0 %v924
      %1435 = vmatmul.mubr.f32.gmra.mrb[0].mxu0 %v923
      %v1436 = vpop.f32.mrb[0].mxu0
      %v1437 = vadd.f32 %v1068, %v1436
      %v1438 = vpop.f32.mrb[0].mxu0
      %1439 = vmatprep.mubr.f32.mxu0 %v931
      %1440 = vmatmul.mubr.f32.gmra.mrb[0].mxu0 %v930
      %v1441 = vpop.f32.mrb[0].mxu0
      %v1442 = vadd.f32 %v1068, %v1441
      %v1443 = vpop.f32.mrb[0].mxu0
      %1444 = vmatprep.mubr.f32.mxu0 %v938
      %1445 = vmatmul.mubr.f32.gmra.mrb[0].mxu0 %v937
      %v1446 = vpop.f32.mrb[0].mxu0
      %v1447 = vadd.f32 %v1068, %v1446
      %v1448 = vpop.f32.mrb[0].mxu0
      %1449 = vmatprep.mubr.f32.mxu0 %v945
      %1450 = vmatmul.mubr.f32.gmra.mrb[0].mxu0 %v944
      %v1451 = vpop.f32.mrb[0].mxu0
      %v1452 = vadd.f32 %v1068, %v1451
      %v1453 = vpop.f32.mrb[0].mxu0
      %1454 = vdwg.mxu0
      %1455 = vmatprep.subr.mxu0 0.0
      %1456 = vmatpush1.msra.mxu0 %v983
      %1457 = vmatprep.subr.mxu0 0.0
      %1458 = vmatpush1.msra.mxu0 %v984
      %1459 = vmatprep.subr.mxu0 0.0
      %1460 = vmatpush1.msra.mxu0 %v985
      %1461 = vmatprep.subr.mxu0 0.0
      %1462 = vmatpush1.msra.mxu0 %v986
      %1463 = vmatprep.subr.mxu0 0.0
      %1464 = vmatpush1.msra.mxu0 %v987
      %1465 = vmatprep.subr.mxu0 0.0
      %1466 = vmatpush1.msra.mxu0 %v988
      %1467 = vmatprep.subr.mxu0 0.0
      %1468 = vmatpush1.msra.mxu0 %v989
      %1469 = vmatprep.subr.mxu0 0.0
      %1470 = vmatpush1.msra.mxu0 %v990
      %1471 = vmatprep.subr.mxu0 0.0
      %1472 = vmatpush1.msra.mxu0 %v991
      %1473 = vmatprep.subr.mxu0 0.0
      %1474 = vmatpush1.msra.mxu0 %v992
      %1475 = vmatprep.subr.mxu0 0.0
      %1476 = vmatpush1.msra.mxu0 %v993
      %1477 = vmatprep.subr.mxu0 0.0
      %1478 = vmatpush1.msra.mxu0 %v994
      %1479 = vmatprep.subr.mxu0 0.0
      %1480 = vmatpush1.msra.mxu0 %v995
      %1481 = vmatprep.subr.mxu0 0.0
      %1482 = vmatpush1.msra.mxu0 %v996
      %1483 = vmatprep.subr.mxu0 0.0
      %1484 = vmatpush1.msra.mxu0 %v997
      %1485 = vmatprep.subr.mxu0 0.0
      %1486 = vmatpush1.msra.mxu0 %v998
      %1487 = vmatprep.subr.mxu0 0.0
      %1488 = vmatpush1.msra.mxu0 %v999
      %1489 = vmatprep.subr.mxu0 0.0
      %1490 = vmatpush1.msra.mxu0 %v1000
      %1491 = vmatprep.subr.mxu0 0.0
      %1492 = vmatpush1.msra.mxu0 %v1001
      %1493 = vmatprep.subr.mxu0 0.0
      %1494 = vmatpush1.msra.mxu0 %v1002
      %1495 = vmatprep.subr.mxu0 0.0
      %1496 = vmatpush1.msra.mxu0 %v1003
      %1497 = vmatprep.subr.mxu0 0.0
      %1498 = vmatpush1.msra.mxu0 %v1004
      %1499 = vmatprep.subr.mxu0 0.0
      %1500 = vmatpush1.msra.mxu0 %v1005
      %1501 = vmatprep.subr.mxu0 0.0
      %1502 = vmatpush1.msra.mxu0 %v1006
      %1503 = vmatprep.subr.mxu0 0.0
      %1504 = vmatpush1.msra.mxu0 %v1007
      %1505 = vmatprep.subr.mxu0 0.0
      %1506 = vmatpush1.msra.mxu0 %v1008
      %1507 = vmatprep.subr.mxu0 0.0
      %1508 = vmatpush1.msra.mxu0 %v1009
      %1509 = vmatprep.subr.mxu0 0.0
      %1510 = vmatpush1.msra.mxu0 %v1010
      %1511 = vmatprep.subr.mxu0 0.0
      %1512 = vmatpush1.msra.mxu0 %v1011
      %1513 = vmatprep.subr.mxu0 0.0
      %1514 = vmatpush1.msra.mxu0 %v1012
      %1515 = vmatprep.subr.mxu0 0.0
      %1516 = vmatpush1.msra.mxu0 %v1013
      %1517 = vmatprep.subr.mxu0 0.0
      %1518 = vmatpush1.msra.mxu0 %v1014
      %1519 = vmatprep.mubr.f32.mxu0 %v506
      %1520 = vmatmul.mubr.f32.gmra.mrb[0].mxu0 %v505
      %v1521 = vpop.f32.mrb[0].mxu0
      %v1522 = vadd.f32 %v1137, %v1521
      %v1523 = vpop.f32.mrb[0].mxu0
      %1524 = vmatprep.mubr.f32.mxu0 %v513
      %1525 = vmatmul.mubr.f32.gmra.mrb[0].mxu0 %v512
      %v1526 = vpop.f32.mrb[0].mxu0
      %v1527 = vadd.f32 %v1142, %v1526
      %v1528 = vpop.f32.mrb[0].mxu0
      %1529 = vmatprep.mubr.f32.mxu0 %v520
      %1530 = vmatmul.mubr.f32.gmra.mrb[0].mxu0 %v519
      %v1531 = vpop.f32.mrb[0].mxu0
      %v1532 = vadd.f32 %v1147, %v1531
      %v1533 = vpop.f32.mrb[0].mxu0
      %1534 = vmatprep.mubr.f32.mxu0 %v527
      %1535 = vmatmul.mubr.f32.gmra.mrb[0].mxu0 %v526
      %v1536 = vpop.f32.mrb[0].mxu0
      %v1537 = vadd.f32 %v1152, %v1536
      %v1538 = vpop.f32.mrb[0].mxu0
      %1539 = vmatprep.mubr.f32.mxu0 %v534
      %1540 = vmatmul.mubr.f32.gmra.mrb[0].mxu0 %v533
      %v1541 = vpop.f32.mrb[0].mxu0
      %v1542 = vadd.f32 %v1157, %v1541
      %v1543 = vpop.f32.mrb[0].mxu0
      %1544 = vmatprep.mubr.f32.mxu0 %v541
      %1545 = vmatmul.mubr.f32.gmra.mrb[0].mxu0 %v540
      %v1546 = vpop.f32.mrb[0].mxu0
      %v1547 = vadd.f32 %v1162, %v1546
      %v1548 = vpop.f32.mrb[0].mxu0
      %1549 = vmatprep.mubr.f32.mxu0 %v548
      %1550 = vmatmul.mubr.f32.gmra.mrb[0].mxu0 %v547
      %v1551 = vpop.f32.mrb[0].mxu0
      %v1552 = vadd.f32 %v1167, %v1551
      %v1553 = vpop.f32.mrb[0].mxu0
      %1554 = vmatprep.mubr.f32.mxu0 %v555
      %1555 = vmatmul.mubr.f32.gmra.mrb[0].mxu0 %v554
      %v1556 = vpop.f32.mrb[0].mxu0
      %v1557 = vadd.f32 %v1172, %v1556
      %v1558 = vpop.f32.mrb[0].mxu0
      %1559 = vmatprep.mubr.f32.mxu0 %v562
      %1560 = vmatmul.mubr.f32.gmra.mrb[0].mxu0 %v561
      %v1561 = vpop.f32.mrb[0].mxu0
      %v1562 = vadd.f32 %v1177, %v1561
      %v1563 = vpop.f32.mrb[0].mxu0
      %1564 = vmatprep.mubr.f32.mxu0 %v569
      %1565 = vmatmul.mubr.f32.gmra.mrb[0].mxu0 %v568
      %v1566 = vpop.f32.mrb[0].mxu0
      %v1567 = vadd.f32 %v1182, %v1566
      %v1568 = vpop.f32.mrb[0].mxu0
      %1569 = vmatprep.mubr.f32.mxu0 %v576
      %1570 = vmatmul.mubr.f32.gmra.mrb[0].mxu0 %v575
      %v1571 = vpop.f32.mrb[0].mxu0
      %v1572 = vadd.f32 %v1187, %v1571
      %v1573 = vpop.f32.mrb[0].mxu0
      %1574 = vmatprep.mubr.f32.mxu0 %v583
      %1575 = vmatmul.mubr.f32.gmra.mrb[0].mxu0 %v582
      %v1576 = vpop.f32.mrb[0].mxu0
      %v1577 = vadd.f32 %v1192, %v1576
      %v1578 = vpop.f32.mrb[0].mxu0
      %1579 = vmatprep.mubr.f32.mxu0 %v590
      %1580 = vmatmul.mubr.f32.gmra.mrb[0].mxu0 %v589
      %v1581 = vpop.f32.mrb[0].mxu0
      %v1582 = vadd.f32 %v1197, %v1581
      %v1583 = vpop.f32.mrb[0].mxu0
      %1584 = vmatprep.mubr.f32.mxu0 %v597
      %1585 = vmatmul.mubr.f32.gmra.mrb[0].mxu0 %v596
      %v1586 = vpop.f32.mrb[0].mxu0
      %v1587 = vadd.f32 %v1202, %v1586
      %v1588 = vpop.f32.mrb[0].mxu0
      %1589 = vmatprep.mubr.f32.mxu0 %v604
      %1590 = vmatmul.mubr.f32.gmra.mrb[0].mxu0 %v603
      %v1591 = vpop.f32.mrb[0].mxu0
      %v1592 = vadd.f32 %v1207, %v1591
      %v1593 = vpop.f32.mrb[0].mxu0
      %1594 = vmatprep.mubr.f32.mxu0 %v611
      %1595 = vmatmul.mubr.f32.gmra.mrb[0].mxu0 %v610
      %v1596 = vpop.f32.mrb[0].mxu0
      %v1597 = vadd.f32 %v1212, %v1596
      %v1598 = vpop.f32.mrb[0].mxu0
      %1599 = vmatprep.mubr.f32.mxu0 %v618
      %1600 = vmatmul.mubr.f32.gmra.mrb[0].mxu0 %v617
      %v1601 = vpop.f32.mrb[0].mxu0
      %v1602 = vadd.f32 %v1217, %v1601
      %v1603 = vpop.f32.mrb[0].mxu0
      %1604 = vmatprep.mubr.f32.mxu0 %v625
      %1605 = vmatmul.mubr.f32.gmra.mrb[0].mxu0 %v624
      %v1606 = vpop.f32.mrb[0].mxu0
      %v1607 = vadd.f32 %v1222, %v1606
      %v1608 = vpop.f32.mrb[0].mxu0
      %1609 = vmatprep.mubr.f32.mxu0 %v632
      %1610 = vmatmul.mubr.f32.gmra.mrb[0].mxu0 %v631
      %v1611 = vpop.f32.mrb[0].mxu0
      %v1612 = vadd.f32 %v1227, %v1611
      %v1613 = vpop.f32.mrb[0].mxu0
      %1614 = vmatprep.mubr.f32.mxu0 %v639
      %1615 = vmatmul.mubr.f32.gmra.mrb[0].mxu0 %v638
      %v1616 = vpop.f32.mrb[0].mxu0
      %v1617 = vadd.f32 %v1232, %v1616
      %v1618 = vpop.f32.mrb[0].mxu0
      %1619 = vmatprep.mubr.f32.mxu0 %v646
      %1620 = vmatmul.mubr.f32.gmra.mrb[0].mxu0 %v645
      %v1621 = vpop.f32.mrb[0].mxu0
      %v1622 = vadd.f32 %v1237, %v1621
      %v1623 = vpop.f32.mrb[0].mxu0
      %1624 = vmatprep.mubr.f32.mxu0 %v653
      %1625 = vmatmul.mubr.f32.gmra.mrb[0].mxu0 %v652
      %v1626 = vpop.f32.mrb[0].mxu0
      %v1627 = vadd.f32 %v1242, %v1626
      %v1628 = vpop.f32.mrb[0].mxu0
      %1629 = vmatprep.mubr.f32.mxu0 %v660
      %1630 = vmatmul.mubr.f32.gmra.mrb[0].mxu0 %v659
      %v1631 = vpop.f32.mrb[0].mxu0
      %v1632 = vadd.f32 %v1247, %v1631
      %v1633 = vpop.f32.mrb[0].mxu0
      %1634 = vmatprep.mubr.f32.mxu0 %v667
      %1635 = vmatmul.mubr.f32.gmra.mrb[0].mxu0 %v666
      %v1636 = vpop.f32.mrb[0].mxu0
      %v1637 = vadd.f32 %v1252, %v1636
      %v1638 = vpop.f32.mrb[0].mxu0
      %1639 = vmatprep.mubr.f32.mxu0 %v674
      %1640 = vmatmul.mubr.f32.gmra.mrb[0].mxu0 %v673
      %v1641 = vpop.f32.mrb[0].mxu0
      %v1642 = vadd.f32 %v1257, %v1641
      %v1643 = vpop.f32.mrb[0].mxu0
      %1644 = vmatprep.mubr.f32.mxu0 %v681
      %1645 = vmatmul.mubr.f32.gmra.mrb[0].mxu0 %v680
      %v1646 = vpop.f32.mrb[0].mxu0
      %v1647 = vadd.f32 %v1262, %v1646
      %v1648 = vpop.f32.mrb[0].mxu0
      %1649 = vmatprep.mubr.f32.mxu0 %v688
      %1650 = vmatmul.mubr.f32.gmra.mrb[0].mxu0 %v687
      %v1651 = vpop.f32.mrb[0].mxu0
      %v1652 = vadd.f32 %v1267, %v1651
      %v1653 = vpop.f32.mrb[0].mxu0
      %1654 = vmatprep.mubr.f32.mxu0 %v695
      %1655 = vmatmul.mubr.f32.gmra.mrb[0].mxu0 %v694
      %v1656 = vpop.f32.mrb[0].mxu0
      %v1657 = vadd.f32 %v1272, %v1656
      %v1658 = vpop.f32.mrb[0].mxu0
      %1659 = vmatprep.mubr.f32.mxu0 %v702
      %1660 = vmatmul.mubr.f32.gmra.mrb[0].mxu0 %v701
      %v1661 = vpop.f32.mrb[0].mxu0
      %v1662 = vadd.f32 %v1277, %v1661
      %v1663 = vpop.f32.mrb[0].mxu0
      %1664 = vmatprep.mubr.f32.mxu0 %v709
      %1665 = vmatmul.mubr.f32.gmra.mrb[0].mxu0 %v708
      %v1666 = vpop.f32.mrb[0].mxu0
      %v1667 = vadd.f32 %v1282, %v1666
      %v1668 = vpop.f32.mrb[0].mxu0
      %1669 = vmatprep.mubr.f32.mxu0 %v716
      %1670 = vmatmul.mubr.f32.gmra.mrb[0].mxu0 %v715
      %v1671 = vpop.f32.mrb[0].mxu0
      %v1672 = vadd.f32 %v1287, %v1671
      %v1673 = vpop.f32.mrb[0].mxu0
      %1674 = vmatprep.mubr.f32.mxu0 %v723
      %1675 = vmatmul.mubr.f32.gmra.mrb[0].mxu0 %v722
      %v1676 = vpop.f32.mrb[0].mxu0
      %v1677 = vadd.f32 %v1292, %v1676
      %v1678 = vpop.f32.mrb[0].mxu0
      %1679 = vmatprep.mubr.f32.mxu0 %v730
      %1680 = vmatmul.mubr.f32.gmra.mrb[0].mxu0 %v729
      %v1681 = vpop.f32.mrb[0].mxu0
      %v1682 = vadd.f32 %v1297, %v1681
      %v1683 = vpop.f32.mrb[0].mxu0
      %1684 = vmatprep.mubr.f32.mxu0 %v737
      %1685 = vmatmul.mubr.f32.gmra.mrb[0].mxu0 %v736
      %v1686 = vpop.f32.mrb[0].mxu0
      %v1687 = vadd.f32 %v1302, %v1686
      %v1688 = vpop.f32.mrb[0].mxu0
      %1689 = vmatprep.mubr.f32.mxu0 %v744
      %1690 = vmatmul.mubr.f32.gmra.mrb[0].mxu0 %v743
      %v1691 = vpop.f32.mrb[0].mxu0
      %v1692 = vadd.f32 %v1307, %v1691
      %v1693 = vpop.f32.mrb[0].mxu0
      %1694 = vmatprep.mubr.f32.mxu0 %v751
      %1695 = vmatmul.mubr.f32.gmra.mrb[0].mxu0 %v750
      %v1696 = vpop.f32.mrb[0].mxu0
      %v1697 = vadd.f32 %v1312, %v1696
      %v1698 = vpop.f32.mrb[0].mxu0
      %1699 = vmatprep.mubr.f32.mxu0 %v758
      %1700 = vmatmul.mubr.f32.gmra.mrb[0].mxu0 %v757
      %v1701 = vpop.f32.mrb[0].mxu0
      %v1702 = vadd.f32 %v1317, %v1701
      %v1703 = vpop.f32.mrb[0].mxu0
      %1704 = vmatprep.mubr.f32.mxu0 %v765
      %1705 = vmatmul.mubr.f32.gmra.mrb[0].mxu0 %v764
      %v1706 = vpop.f32.mrb[0].mxu0
      %v1707 = vadd.f32 %v1322, %v1706
      %v1708 = vpop.f32.mrb[0].mxu0
      %1709 = vmatprep.mubr.f32.mxu0 %v772
      %1710 = vmatmul.mubr.f32.gmra.mrb[0].mxu0 %v771
      %v1711 = vpop.f32.mrb[0].mxu0
      %v1712 = vadd.f32 %v1327, %v1711
      %v1713 = vpop.f32.mrb[0].mxu0
      %1714 = vmatprep.mubr.f32.mxu0 %v779
      %1715 = vmatmul.mubr.f32.gmra.mrb[0].mxu0 %v778
      %v1716 = vpop.f32.mrb[0].mxu0
      %v1717 = vadd.f32 %v1332, %v1716
      %v1718 = vpop.f32.mrb[0].mxu0
      %1719 = vmatprep.mubr.f32.mxu0 %v786
      %1720 = vmatmul.mubr.f32.gmra.mrb[0].mxu0 %v785
      %v1721 = vpop.f32.mrb[0].mxu0
      %v1722 = vadd.f32 %v1337, %v1721
      %v1723 = vpop.f32.mrb[0].mxu0
      %1724 = vmatprep.mubr.f32.mxu0 %v793
      %1725 = vmatmul.mubr.f32.gmra.mrb[0].mxu0 %v792
      %v1726 = vpop.f32.mrb[0].mxu0
      %v1727 = vadd.f32 %v1342, %v1726
      %v1728 = vpop.f32.mrb[0].mxu0
      %1729 = vmatprep.mubr.f32.mxu0 %v800
      %1730 = vmatmul.mubr.f32.gmra.mrb[0].mxu0 %v799
      %v1731 = vpop.f32.mrb[0].mxu0
      %v1732 = vadd.f32 %v1347, %v1731
      %v1733 = vpop.f32.mrb[0].mxu0
      %1734 = vmatprep.mubr.f32.mxu0 %v807
      %1735 = vmatmul.mubr.f32.gmra.mrb[0].mxu0 %v806
      %v1736 = vpop.f32.mrb[0].mxu0
      %v1737 = vadd.f32 %v1352, %v1736
      %v1738 = vpop.f32.mrb[0].mxu0
      %1739 = vmatprep.mubr.f32.mxu0 %v814
      %1740 = vmatmul.mubr.f32.gmra.mrb[0].mxu0 %v813
      %v1741 = vpop.f32.mrb[0].mxu0
      %v1742 = vadd.f32 %v1357, %v1741
      %v1743 = vpop.f32.mrb[0].mxu0
      %1744 = vmatprep.mubr.f32.mxu0 %v821
      %1745 = vmatmul.mubr.f32.gmra.mrb[0].mxu0 %v820
      %v1746 = vpop.f32.mrb[0].mxu0
      %v1747 = vadd.f32 %v1362, %v1746
      %v1748 = vpop.f32.mrb[0].mxu0
      %1749 = vmatprep.mubr.f32.mxu0 %v828
      %1750 = vmatmul.mubr.f32.gmra.mrb[0].mxu0 %v827
      %v1751 = vpop.f32.mrb[0].mxu0
      %v1752 = vadd.f32 %v1367, %v1751
      %v1753 = vpop.f32.mrb[0].mxu0
      %1754 = vmatprep.mubr.f32.mxu0 %v835
      %1755 = vmatmul.mubr.f32.gmra.mrb[0].mxu0 %v834
      %v1756 = vpop.f32.mrb[0].mxu0
      %v1757 = vadd.f32 %v1372, %v1756
      %v1758 = vpop.f32.mrb[0].mxu0
      %1759 = vmatprep.mubr.f32.mxu0 %v842
      %1760 = vmatmul.mubr.f32.gmra.mrb[0].mxu0 %v841
      %v1761 = vpop.f32.mrb[0].mxu0
      %v1762 = vadd.f32 %v1377, %v1761
      %v1763 = vpop.f32.mrb[0].mxu0
      %1764 = vmatprep.mubr.f32.mxu0 %v849
      %1765 = vmatmul.mubr.f32.gmra.mrb[0].mxu0 %v848
      %v1766 = vpop.f32.mrb[0].mxu0
      %v1767 = vadd.f32 %v1382, %v1766
      %v1768 = vpop.f32.mrb[0].mxu0
      %1769 = vmatprep.mubr.f32.mxu0 %v856
      %1770 = vmatmul.mubr.f32.gmra.mrb[0].mxu0 %v855
      %v1771 = vpop.f32.mrb[0].mxu0
      %v1772 = vadd.f32 %v1387, %v1771
      %v1773 = vpop.f32.mrb[0].mxu0
      %1774 = vmatprep.mubr.f32.mxu0 %v863
      %1775 = vmatmul.mubr.f32.gmra.mrb[0].mxu0 %v862
      %v1776 = vpop.f32.mrb[0].mxu0
      %v1777 = vadd.f32 %v1392, %v1776
      %v1778 = vpop.f32.mrb[0].mxu0
      %1779 = vmatprep.mubr.f32.mxu0 %v870
      %1780 = vmatmul.mubr.f32.gmra.mrb[0].mxu0 %v869
      %v1781 = vpop.f32.mrb[0].mxu0
      %v1782 = vadd.f32 %v1397, %v1781
      %v1783 = vpop.f32.mrb[0].mxu0
      %1784 = vmatprep.mubr.f32.mxu0 %v877
      %1785 = vmatmul.mubr.f32.gmra.mrb[0].mxu0 %v876
      %v1786 = vpop.f32.mrb[0].mxu0
      %v1787 = vadd.f32 %v1402, %v1786
      %v1788 = vpop.f32.mrb[0].mxu0
      %1789 = vmatprep.mubr.f32.mxu0 %v884
      %1790 = vmatmul.mubr.f32.gmra.mrb[0].mxu0 %v883
      %v1791 = vpop.f32.mrb[0].mxu0
      %v1792 = vadd.f32 %v1407, %v1791
      %v1793 = vpop.f32.mrb[0].mxu0
      %1794 = vmatprep.mubr.f32.mxu0 %v891
      %1795 = vmatmul.mubr.f32.gmra.mrb[0].mxu0 %v890
      %v1796 = vpop.f32.mrb[0].mxu0
      %v1797 = vadd.f32 %v1412, %v1796
      %v1798 = vpop.f32.mrb[0].mxu0
      %1799 = vmatprep.mubr.f32.mxu0 %v898
      %1800 = vmatmul.mubr.f32.gmra.mrb[0].mxu0 %v897
      %v1801 = vpop.f32.mrb[0].mxu0
      %v1802 = vadd.f32 %v1417, %v1801
      %v1803 = vpop.f32.mrb[0].mxu0
      %1804 = vmatprep.mubr.f32.mxu0 %v905
      %1805 = vmatmul.mubr.f32.gmra.mrb[0].mxu0 %v904
      %v1806 = vpop.f32.mrb[0].mxu0
      %v1807 = vadd.f32 %v1422, %v1806
      %v1808 = vpop.f32.mrb[0].mxu0
      %1809 = vmatprep.mubr.f32.mxu0 %v912
      %1810 = vmatmul.mubr.f32.gmra.mrb[0].mxu0 %v911
      %v1811 = vpop.f32.mrb[0].mxu0
      %v1812 = vadd.f32 %v1427, %v1811
      %v1813 = vpop.f32.mrb[0].mxu0
      %1814 = vmatprep.mubr.f32.mxu0 %v919
      %1815 = vmatmul.mubr.f32.gmra.mrb[0].mxu0 %v918
      %v1816 = vpop.f32.mrb[0].mxu0
      %v1817 = vadd.f32 %v1432, %v1816
      %v1818 = vpop.f32.mrb[0].mxu0
      %1819 = vmatprep.mubr.f32.mxu0 %v926
      %1820 = vmatmul.mubr.f32.gmra.mrb[0].mxu0 %v925
      %v1821 = vpop.f32.mrb[0].mxu0
      %v1822 = vadd.f32 %v1437, %v1821
      %v1823 = vpop.f32.mrb[0].mxu0
      %1824 = vmatprep.mubr.f32.mxu0 %v933
      %1825 = vmatmul.mubr.f32.gmra.mrb[0].mxu0 %v932
      %v1826 = vpop.f32.mrb[0].mxu0
      %v1827 = vadd.f32 %v1442, %v1826
      %v1828 = vpop.f32.mrb[0].mxu0
      %1829 = vmatprep.mubr.f32.mxu0 %v940
      %1830 = vmatmul.mubr.f32.gmra.mrb[0].mxu0 %v939
      %v1831 = vpop.f32.mrb[0].mxu0
      %v1832 = vadd.f32 %v1447, %v1831
      %v1833 = vpop.f32.mrb[0].mxu0
      %1834 = vmatprep.mubr.f32.mxu0 %v947
      %1835 = vmatmul.mubr.f32.gmra.mrb[0].mxu0 %v946
      %v1836 = vpop.f32.mrb[0].mxu0
      %v1837 = vadd.f32 %v1452, %v1836
      %v1838 = vpop.f32.mrb[0].mxu0
      %1839 = vdwg.mxu0
      %1840 = vmatprep.subr.mxu0 0.0
      %1841 = vmatpush1.msra.mxu0 %v1015
      %1842 = vmatprep.subr.mxu0 0.0
      %1843 = vmatpush1.msra.mxu0 %v1016
      %1844 = vmatprep.subr.mxu0 0.0
      %1845 = vmatpush1.msra.mxu0 %v1017
      %1846 = vmatprep.subr.mxu0 0.0
      %1847 = vmatpush1.msra.mxu0 %v1018
      %1848 = vmatprep.subr.mxu0 0.0
      %1849 = vmatpush1.msra.mxu0 %v1019
      %1850 = vmatprep.subr.mxu0 0.0
      %1851 = vmatpush1.msra.mxu0 %v1020
      %1852 = vmatprep.subr.mxu0 0.0
      %1853 = vmatpush1.msra.mxu0 %v1021
      %1854 = vmatprep.subr.mxu0 0.0
      %1855 = vmatpush1.msra.mxu0 %v1022
      %1856 = vmatprep.subr.mxu0 0.0
      %1857 = vmatpush1.msra.mxu0 %v1023
      %1858 = vmatprep.subr.mxu0 0.0
      %1859 = vmatpush1.msra.mxu0 %v1024
      %1860 = vmatprep.subr.mxu0 0.0
      %1861 = vmatpush1.msra.mxu0 %v1025
      %1862 = vmatprep.subr.mxu0 0.0
      %1863 = vmatpush1.msra.mxu0 %v1026
      %1864 = vmatprep.subr.mxu0 0.0
      %1865 = vmatpush1.msra.mxu0 %v1027
      %1866 = vmatprep.subr.mxu0 0.0
      %1867 = vmatpush1.msra.mxu0 %v1028
      %1868 = vmatprep.subr.mxu0 0.0
      %1869 = vmatpush1.msra.mxu0 %v1029
      %1870 = vmatprep.subr.mxu0 0.0
      %1871 = vmatpush1.msra.mxu0 %v1030
      %1872 = vmatprep.subr.mxu0 0.0
      %1873 = vmatpush1.msra.mxu0 %v1031
      %1874 = vmatprep.subr.mxu0 0.0
      %1875 = vmatpush1.msra.mxu0 %v1032
      %1876 = vmatprep.subr.mxu0 0.0
      %1877 = vmatpush1.msra.mxu0 %v1033
      %1878 = vmatprep.subr.mxu0 0.0
      %1879 = vmatpush1.msra.mxu0 %v1034
      %1880 = vmatprep.subr.mxu0 0.0
      %1881 = vmatpush1.msra.mxu0 %v1035
      %1882 = vmatprep.subr.mxu0 0.0
      %1883 = vmatpush1.msra.mxu0 %v1036
      %1884 = vmatprep.subr.mxu0 0.0
      %1885 = vmatpush1.msra.mxu0 %v1037
      %1886 = vmatprep.subr.mxu0 0.0
      %1887 = vmatpush1.msra.mxu0 %v1038
      %1888 = vmatprep.subr.mxu0 0.0
      %1889 = vmatpush1.msra.mxu0 %v1039
      %1890 = vmatprep.subr.mxu0 0.0
      %1891 = vmatpush1.msra.mxu0 %v1040
      %1892 = vmatprep.subr.mxu0 0.0
      %1893 = vmatpush1.msra.mxu0 %v1041
      %1894 = vmatprep.subr.mxu0 0.0
      %1895 = vmatpush1.msra.mxu0 %v1042
      %1896 = vmatprep.subr.mxu0 0.0
      %1897 = vmatpush1.msra.mxu0 %v1043
      %1898 = vmatprep.subr.mxu0 0.0
      %1899 = vmatpush1.msra.mxu0 %v1044
      %1900 = vmatprep.subr.mxu0 0.0
      %1901 = vmatpush1.msra.mxu0 %v1045
      %1902 = vmatprep.subr.mxu0 0.0
      %1903 = vmatpush1.msra.mxu0 %v1046
      %1904 = vmatprep.mubr.f32.mxu0 %v508
      %1905 = vmatmul.mubr.f32.gmra.mrb[0].mxu0 %v507
      %v1906 = vpop.f32.mrb[0].mxu0
      %v1907 = vadd.f32 %v1522, %v1906
      %v1908 = vpop.f32.mrb[0].mxu0
      %1909 = vmatprep.mubr.f32.mxu0 %v515
      %1910 = vmatmul.mubr.f32.gmra.mrb[0].mxu0 %v514
      %v1911 = vpop.f32.mrb[0].mxu0
      %v1912 = vadd.f32 %v1527, %v1911
      %v1913 = vpop.f32.mrb[0].mxu0
      %1914 = vmatprep.mubr.f32.mxu0 %v522
      %1915 = vmatmul.mubr.f32.gmra.mrb[0].mxu0 %v521
      %v1916 = vpop.f32.mrb[0].mxu0
      %v1917 = vadd.f32 %v1532, %v1916
      %v1918 = vpop.f32.mrb[0].mxu0
      %1919 = vmatprep.mubr.f32.mxu0 %v529
      %1920 = vmatmul.mubr.f32.gmra.mrb[0].mxu0 %v528
      %v1921 = vpop.f32.mrb[0].mxu0
      %v1922 = vadd.f32 %v1537, %v1921
      %v1923 = vpop.f32.mrb[0].mxu0
      %1924 = vmatprep.mubr.f32.mxu0 %v536
      %1925 = vmatmul.mubr.f32.gmra.mrb[0].mxu0 %v535
      %v1926 = vpop.f32.mrb[0].mxu0
      %v1927 = vadd.f32 %v1542, %v1926
      %v1928 = vpop.f32.mrb[0].mxu0
      %1929 = vmatprep.mubr.f32.mxu0 %v543
      %1930 = vmatmul.mubr.f32.gmra.mrb[0].mxu0 %v542
      %v1931 = vpop.f32.mrb[0].mxu0
      %v1932 = vadd.f32 %v1547, %v1931
      %v1933 = vpop.f32.mrb[0].mxu0
      %1934 = vmatprep.mubr.f32.mxu0 %v550
      %1935 = vmatmul.mubr.f32.gmra.mrb[0].mxu0 %v549
      %v1936 = vpop.f32.mrb[0].mxu0
      %v1937 = vadd.f32 %v1552, %v1936
      %v1938 = vpop.f32.mrb[0].mxu0
      %1939 = vmatprep.mubr.f32.mxu0 %v557
      %1940 = vmatmul.mubr.f32.gmra.mrb[0].mxu0 %v556
      %v1941 = vpop.f32.mrb[0].mxu0
      %v1942 = vadd.f32 %v1557, %v1941
      %v1943 = vpop.f32.mrb[0].mxu0
      %1944 = vmatprep.mubr.f32.mxu0 %v564
      %1945 = vmatmul.mubr.f32.gmra.mrb[0].mxu0 %v563
      %v1946 = vpop.f32.mrb[0].mxu0
      %v1947 = vadd.f32 %v1562, %v1946
      %v1948 = vpop.f32.mrb[0].mxu0
      %1949 = vmatprep.mubr.f32.mxu0 %v571
      %1950 = vmatmul.mubr.f32.gmra.mrb[0].mxu0 %v570
      %v1951 = vpop.f32.mrb[0].mxu0
      %v1952 = vadd.f32 %v1567, %v1951
      %v1953 = vpop.f32.mrb[0].mxu0
      %1954 = vmatprep.mubr.f32.mxu0 %v578
      %1955 = vmatmul.mubr.f32.gmra.mrb[0].mxu0 %v577
      %v1956 = vpop.f32.mrb[0].mxu0
      %v1957 = vadd.f32 %v1572, %v1956
      %v1958 = vpop.f32.mrb[0].mxu0
      %1959 = vmatprep.mubr.f32.mxu0 %v585
      %1960 = vmatmul.mubr.f32.gmra.mrb[0].mxu0 %v584
      %v1961 = vpop.f32.mrb[0].mxu0
      %v1962 = vadd.f32 %v1577, %v1961
      %v1963 = vpop.f32.mrb[0].mxu0
      %1964 = vmatprep.mubr.f32.mxu0 %v592
      %1965 = vmatmul.mubr.f32.gmra.mrb[0].mxu0 %v591
      %v1966 = vpop.f32.mrb[0].mxu0
      %v1967 = vadd.f32 %v1582, %v1966
      %v1968 = vpop.f32.mrb[0].mxu0
      %1969 = vmatprep.mubr.f32.mxu0 %v599
      %1970 = vmatmul.mubr.f32.gmra.mrb[0].mxu0 %v598
      %v1971 = vpop.f32.mrb[0].mxu0
      %v1972 = vadd.f32 %v1587, %v1971
      %v1973 = vpop.f32.mrb[0].mxu0
      %1974 = vmatprep.mubr.f32.mxu0 %v606
      %1975 = vmatmul.mubr.f32.gmra.mrb[0].mxu0 %v605
      %v1976 = vpop.f32.mrb[0].mxu0
      %v1977 = vadd.f32 %v1592, %v1976
      %v1978 = vpop.f32.mrb[0].mxu0
      %1979 = vmatprep.mubr.f32.mxu0 %v613
      %1980 = vmatmul.mubr.f32.gmra.mrb[0].mxu0 %v612
      %v1981 = vpop.f32.mrb[0].mxu0
      %v1982 = vadd.f32 %v1597, %v1981
      %v1983 = vpop.f32.mrb[0].mxu0
      %1984 = vmatprep.mubr.f32.mxu0 %v620
      %1985 = vmatmul.mubr.f32.gmra.mrb[0].mxu0 %v619
      %v1986 = vpop.f32.mrb[0].mxu0
      %v1987 = vadd.f32 %v1602, %v1986
      %v1988 = vpop.f32.mrb[0].mxu0
      %1989 = vmatprep.mubr.f32.mxu0 %v627
      %1990 = vmatmul.mubr.f32.gmra.mrb[0].mxu0 %v626
      %v1991 = vpop.f32.mrb[0].mxu0
      %v1992 = vadd.f32 %v1607, %v1991
      %v1993 = vpop.f32.mrb[0].mxu0
      %1994 = vmatprep.mubr.f32.mxu0 %v634
      %1995 = vmatmul.mubr.f32.gmra.mrb[0].mxu0 %v633
      %v1996 = vpop.f32.mrb[0].mxu0
      %v1997 = vadd.f32 %v1612, %v1996
      %v1998 = vpop.f32.mrb[0].mxu0
      %1999 = vmatprep.mubr.f32.mxu0 %v641
      %2000 = vmatmul.mubr.f32.gmra.mrb[0].mxu0 %v640
      %v2001 = vpop.f32.mrb[0].mxu0
      %v2002 = vadd.f32 %v1617, %v2001
      %v2003 = vpop.f32.mrb[0].mxu0
      %2004 = vmatprep.mubr.f32.mxu0 %v648
      %2005 = vmatmul.mubr.f32.gmra.mrb[0].mxu0 %v647
      %v2006 = vpop.f32.mrb[0].mxu0
      %v2007 = vadd.f32 %v1622, %v2006
      %v2008 = vpop.f32.mrb[0].mxu0
      %2009 = vmatprep.mubr.f32.mxu0 %v655
      %2010 = vmatmul.mubr.f32.gmra.mrb[0].mxu0 %v654
      %v2011 = vpop.f32.mrb[0].mxu0
      %v2012 = vadd.f32 %v1627, %v2011
      %v2013 = vpop.f32.mrb[0].mxu0
      %2014 = vmatprep.mubr.f32.mxu0 %v662
      %2015 = vmatmul.mubr.f32.gmra.mrb[0].mxu0 %v661
      %v2016 = vpop.f32.mrb[0].mxu0
      %v2017 = vadd.f32 %v1632, %v2016
      %v2018 = vpop.f32.mrb[0].mxu0
      %2019 = vmatprep.mubr.f32.mxu0 %v669
      %2020 = vmatmul.mubr.f32.gmra.mrb[0].mxu0 %v668
      %v2021 = vpop.f32.mrb[0].mxu0
      %v2022 = vadd.f32 %v1637, %v2021
      %v2023 = vpop.f32.mrb[0].mxu0
      %2024 = vmatprep.mubr.f32.mxu0 %v676
      %2025 = vmatmul.mubr.f32.gmra.mrb[0].mxu0 %v675
      %v2026 = vpop.f32.mrb[0].mxu0
      %v2027 = vadd.f32 %v1642, %v2026
      %v2028 = vpop.f32.mrb[0].mxu0
      %2029 = vmatprep.mubr.f32.mxu0 %v683
      %2030 = vmatmul.mubr.f32.gmra.mrb[0].mxu0 %v682
      %v2031 = vpop.f32.mrb[0].mxu0
      %v2032 = vadd.f32 %v1647, %v2031
      %v2033 = vpop.f32.mrb[0].mxu0
      %2034 = vmatprep.mubr.f32.mxu0 %v690
      %2035 = vmatmul.mubr.f32.gmra.mrb[0].mxu0 %v689
      %v2036 = vpop.f32.mrb[0].mxu0
      %v2037 = vadd.f32 %v1652, %v2036
      %v2038 = vpop.f32.mrb[0].mxu0
      %2039 = vmatprep.mubr.f32.mxu0 %v697
      %2040 = vmatmul.mubr.f32.gmra.mrb[0].mxu0 %v696
      %v2041 = vpop.f32.mrb[0].mxu0
      %v2042 = vadd.f32 %v1657, %v2041
      %v2043 = vpop.f32.mrb[0].mxu0
      %2044 = vmatprep.mubr.f32.mxu0 %v704
      %2045 = vmatmul.mubr.f32.gmra.mrb[0].mxu0 %v703
      %v2046 = vpop.f32.mrb[0].mxu0
      %v2047 = vadd.f32 %v1662, %v2046
      %v2048 = vpop.f32.mrb[0].mxu0
      %2049 = vmatprep.mubr.f32.mxu0 %v711
      %2050 = vmatmul.mubr.f32.gmra.mrb[0].mxu0 %v710
      %v2051 = vpop.f32.mrb[0].mxu0
      %v2052 = vadd.f32 %v1667, %v2051
      %v2053 = vpop.f32.mrb[0].mxu0
      %2054 = vmatprep.mubr.f32.mxu0 %v718
      %2055 = vmatmul.mubr.f32.gmra.mrb[0].mxu0 %v717
      %v2056 = vpop.f32.mrb[0].mxu0
      %v2057 = vadd.f32 %v1672, %v2056
      %v2058 = vpop.f32.mrb[0].mxu0
      %2059 = vmatprep.mubr.f32.mxu0 %v725
      %2060 = vmatmul.mubr.f32.gmra.mrb[0].mxu0 %v724
      %v2061 = vpop.f32.mrb[0].mxu0
      %v2062 = vadd.f32 %v1677, %v2061
      %v2063 = vpop.f32.mrb[0].mxu0
      %2064 = vmatprep.mubr.f32.mxu0 %v732
      %2065 = vmatmul.mubr.f32.gmra.mrb[0].mxu0 %v731
      %v2066 = vpop.f32.mrb[0].mxu0
      %v2067 = vadd.f32 %v1682, %v2066
      %v2068 = vpop.f32.mrb[0].mxu0
      %2069 = vmatprep.mubr.f32.mxu0 %v739
      %2070 = vmatmul.mubr.f32.gmra.mrb[0].mxu0 %v738
      %v2071 = vpop.f32.mrb[0].mxu0
      %v2072 = vadd.f32 %v1687, %v2071
      %v2073 = vpop.f32.mrb[0].mxu0
      %2074 = vmatprep.mubr.f32.mxu0 %v746
      %2075 = vmatmul.mubr.f32.gmra.mrb[0].mxu0 %v745
      %v2076 = vpop.f32.mrb[0].mxu0
      %v2077 = vadd.f32 %v1692, %v2076
      %v2078 = vpop.f32.mrb[0].mxu0
      %2079 = vmatprep.mubr.f32.mxu0 %v753
      %2080 = vmatmul.mubr.f32.gmra.mrb[0].mxu0 %v752
      %v2081 = vpop.f32.mrb[0].mxu0
      %v2082 = vadd.f32 %v1697, %v2081
      %v2083 = vpop.f32.mrb[0].mxu0
      %2084 = vmatprep.mubr.f32.mxu0 %v760
      %2085 = vmatmul.mubr.f32.gmra.mrb[0].mxu0 %v759
      %v2086 = vpop.f32.mrb[0].mxu0
      %v2087 = vadd.f32 %v1702, %v2086
      %v2088 = vpop.f32.mrb[0].mxu0
      %2089 = vmatprep.mubr.f32.mxu0 %v767
      %2090 = vmatmul.mubr.f32.gmra.mrb[0].mxu0 %v766
      %v2091 = vpop.f32.mrb[0].mxu0
      %v2092 = vadd.f32 %v1707, %v2091
      %v2093 = vpop.f32.mrb[0].mxu0
      %2094 = vmatprep.mubr.f32.mxu0 %v774
      %2095 = vmatmul.mubr.f32.gmra.mrb[0].mxu0 %v773
      %v2096 = vpop.f32.mrb[0].mxu0
      %v2097 = vadd.f32 %v1712, %v2096
      %v2098 = vpop.f32.mrb[0].mxu0
      %2099 = vmatprep.mubr.f32.mxu0 %v781
      %2100 = vmatmul.mubr.f32.gmra.mrb[0].mxu0 %v780
      %v2101 = vpop.f32.mrb[0].mxu0
      %v2102 = vadd.f32 %v1717, %v2101
      %v2103 = vpop.f32.mrb[0].mxu0
      %2104 = vmatprep.mubr.f32.mxu0 %v788
      %2105 = vmatmul.mubr.f32.gmra.mrb[0].mxu0 %v787
      %v2106 = vpop.f32.mrb[0].mxu0
      %v2107 = vadd.f32 %v1722, %v2106
      %v2108 = vpop.f32.mrb[0].mxu0
      %2109 = vmatprep.mubr.f32.mxu0 %v795
      %2110 = vmatmul.mubr.f32.gmra.mrb[0].mxu0 %v794
      %v2111 = vpop.f32.mrb[0].mxu0
      %v2112 = vadd.f32 %v1727, %v2111
      %v2113 = vpop.f32.mrb[0].mxu0
      %2114 = vmatprep.mubr.f32.mxu0 %v802
      %2115 = vmatmul.mubr.f32.gmra.mrb[0].mxu0 %v801
      %v2116 = vpop.f32.mrb[0].mxu0
      %v2117 = vadd.f32 %v1732, %v2116
      %v2118 = vpop.f32.mrb[0].mxu0
      %2119 = vmatprep.mubr.f32.mxu0 %v809
      %2120 = vmatmul.mubr.f32.gmra.mrb[0].mxu0 %v808
      %v2121 = vpop.f32.mrb[0].mxu0
      %v2122 = vadd.f32 %v1737, %v2121
      %v2123 = vpop.f32.mrb[0].mxu0
      %2124 = vmatprep.mubr.f32.mxu0 %v816
      %2125 = vmatmul.mubr.f32.gmra.mrb[0].mxu0 %v815
      %v2126 = vpop.f32.mrb[0].mxu0
      %v2127 = vadd.f32 %v1742, %v2126
      %v2128 = vpop.f32.mrb[0].mxu0
      %2129 = vmatprep.mubr.f32.mxu0 %v823
      %2130 = vmatmul.mubr.f32.gmra.mrb[0].mxu0 %v822
      %v2131 = vpop.f32.mrb[0].mxu0
      %v2132 = vadd.f32 %v1747, %v2131
      %v2133 = vpop.f32.mrb[0].mxu0
      %2134 = vmatprep.mubr.f32.mxu0 %v830
      %2135 = vmatmul.mubr.f32.gmra.mrb[0].mxu0 %v829
      %v2136 = vpop.f32.mrb[0].mxu0
      %v2137 = vadd.f32 %v1752, %v2136
      %v2138 = vpop.f32.mrb[0].mxu0
      %2139 = vmatprep.mubr.f32.mxu0 %v837
      %2140 = vmatmul.mubr.f32.gmra.mrb[0].mxu0 %v836
      %v2141 = vpop.f32.mrb[0].mxu0
      %v2142 = vadd.f32 %v1757, %v2141
      %v2143 = vpop.f32.mrb[0].mxu0
      %2144 = vmatprep.mubr.f32.mxu0 %v844
      %2145 = vmatmul.mubr.f32.gmra.mrb[0].mxu0 %v843
      %v2146 = vpop.f32.mrb[0].mxu0
      %v2147 = vadd.f32 %v1762, %v2146
      %v2148 = vpop.f32.mrb[0].mxu0
      %2149 = vmatprep.mubr.f32.mxu0 %v851
      %2150 = vmatmul.mubr.f32.gmra.mrb[0].mxu0 %v850
      %v2151 = vpop.f32.mrb[0].mxu0
      %v2152 = vadd.f32 %v1767, %v2151
      %v2153 = vpop.f32.mrb[0].mxu0
      %2154 = vmatprep.mubr.f32.mxu0 %v858
      %2155 = vmatmul.mubr.f32.gmra.mrb[0].mxu0 %v857
      %v2156 = vpop.f32.mrb[0].mxu0
      %v2157 = vadd.f32 %v1772, %v2156
      %v2158 = vpop.f32.mrb[0].mxu0
      %2159 = vmatprep.mubr.f32.mxu0 %v865
      %2160 = vmatmul.mubr.f32.gmra.mrb[0].mxu0 %v864
      %v2161 = vpop.f32.mrb[0].mxu0
      %v2162 = vadd.f32 %v1777, %v2161
      %v2163 = vpop.f32.mrb[0].mxu0
      %2164 = vmatprep.mubr.f32.mxu0 %v872
      %2165 = vmatmul.mubr.f32.gmra.mrb[0].mxu0 %v871
      %v2166 = vpop.f32.mrb[0].mxu0
      %v2167 = vadd.f32 %v1782, %v2166
      %v2168 = vpop.f32.mrb[0].mxu0
      %2169 = vmatprep.mubr.f32.mxu0 %v879
      %2170 = vmatmul.mubr.f32.gmra.mrb[0].mxu0 %v878
      %v2171 = vpop.f32.mrb[0].mxu0
      %v2172 = vadd.f32 %v1787, %v2171
      %v2173 = vpop.f32.mrb[0].mxu0
      %2174 = vmatprep.mubr.f32.mxu0 %v886
      %2175 = vmatmul.mubr.f32.gmra.mrb[0].mxu0 %v885
      %v2176 = vpop.f32.mrb[0].mxu0
      %v2177 = vadd.f32 %v1792, %v2176
      %v2178 = vpop.f32.mrb[0].mxu0
      %2179 = vmatprep.mubr.f32.mxu0 %v893
      %2180 = vmatmul.mubr.f32.gmra.mrb[0].mxu0 %v892
      %v2181 = vpop.f32.mrb[0].mxu0
      %v2182 = vadd.f32 %v1797, %v2181
      %v2183 = vpop.f32.mrb[0].mxu0
      %2184 = vmatprep.mubr.f32.mxu0 %v900
      %2185 = vmatmul.mubr.f32.gmra.mrb[0].mxu0 %v899
      %v2186 = vpop.f32.mrb[0].mxu0
      %v2187 = vadd.f32 %v1802, %v2186
      %v2188 = vpop.f32.mrb[0].mxu0
      %2189 = vmatprep.mubr.f32.mxu0 %v907
      %2190 = vmatmul.mubr.f32.gmra.mrb[0].mxu0 %v906
      %v2191 = vpop.f32.mrb[0].mxu0
      %v2192 = vadd.f32 %v1807, %v2191
      %v2193 = vpop.f32.mrb[0].mxu0
      %2194 = vmatprep.mubr.f32.mxu0 %v914
      %2195 = vmatmul.mubr.f32.gmra.mrb[0].mxu0 %v913
      %v2196 = vpop.f32.mrb[0].mxu0
      %v2197 = vadd.f32 %v1812, %v2196
      %v2198 = vpop.f32.mrb[0].mxu0
      %2199 = vmatprep.mubr.f32.mxu0 %v921
      %2200 = vmatmul.mubr.f32.gmra.mrb[0].mxu0 %v920
      %v2201 = vpop.f32.mrb[0].mxu0
      %v2202 = vadd.f32 %v1817, %v2201
      %v2203 = vpop.f32.mrb[0].mxu0
      %2204 = vmatprep.mubr.f32.mxu0 %v928
      %2205 = vmatmul.mubr.f32.gmra.mrb[0].mxu0 %v927
      %v2206 = vpop.f32.mrb[0].mxu0
      %v2207 = vadd.f32 %v1822, %v2206
      %v2208 = vpop.f32.mrb[0].mxu0
      %2209 = vmatprep.mubr.f32.mxu0 %v935
      %2210 = vmatmul.mubr.f32.gmra.mrb[0].mxu0 %v934
      %v2211 = vpop.f32.mrb[0].mxu0
      %v2212 = vadd.f32 %v1827, %v2211
      %v2213 = vpop.f32.mrb[0].mxu0
      %2214 = vmatprep.mubr.f32.mxu0 %v942
      %2215 = vmatmul.mubr.f32.gmra.mrb[0].mxu0 %v941
      %v2216 = vpop.f32.mrb[0].mxu0
      %v2217 = vadd.f32 %v1832, %v2216
      %v2218 = vpop.f32.mrb[0].mxu0
      %2219 = vmatprep.mubr.f32.mxu0 %v949
      %2220 = vmatmul.mubr.f32.gmra.mrb[0].mxu0 %v948
      %v2221 = vpop.f32.mrb[0].mxu0
      %v2222 = vadd.f32 %v1837, %v2221
      %v2223 = vpop.f32.mrb[0].mxu0
      %2224 = vdwg.mxu0
      %2225 = vmatprep.subr.mxu0 0.0
      %2226 = vmatpush1.msra.mxu0 %v1047
      %2227 = vmatprep.subr.mxu0 0.0
      %2228 = vmatpush1.msra.mxu0 %v1048
      %2229 = vmatprep.subr.mxu0 0.0
      %2230 = vmatpush1.msra.mxu0 %v1049
      %2231 = vmatprep.subr.mxu0 0.0
      %2232 = vmatpush1.msra.mxu0 %v1050
      %2233 = vmatprep.subr.mxu0 0.0
      %2234 = vmatpush1.msra.mxu0 %v1051
      %2235 = vmatprep.subr.mxu0 0.0
      %2236 = vmatpush1.msra.mxu0 %v1052
      %2237 = vmatprep.subr.mxu0 0.0
      %2238 = vmatpush1.msra.mxu0 %v1053
      %2239 = vmatprep.subr.mxu0 0.0
      %2240 = vmatpush1.msra.mxu0 %v1054
      %2241 = vmatprep.subr.mxu0 0.0
      %2242 = vmatpush1.msra.mxu0 %v1055
      %2243 = vmatprep.subr.mxu0 0.0
      %2244 = vmatpush1.msra.mxu0 %v1056
      %2245 = vmatprep.subr.mxu0 0.0
      %2246 = vmatpush1.msra.mxu0 %v1057
      %2247 = vmatprep.subr.mxu0 0.0
      %2248 = vmatpush1.msra.mxu0 %v1058
      %2249 = vmatprep.subr.mxu0 0.0
      %2250 = vmatpush1.msra.mxu0 %v1059
      %2251 = vmatprep.subr.mxu0 0.0
      %2252 = vmatpush1.msra.mxu0 %v1060
      %2253 = vmatprep.subr.mxu0 0.0
      %2254 = vmatpush1.msra.mxu0 %v1061
      %2255 = vmatprep.subr.mxu0 0.0
      %2256 = vmatpush1.msra.mxu0 %v1062
      %2257 = vmatprep.subr.mxu0 0.0
      %2258 = vmatpush1.msra.mxu0 0.0
      %2259 = vmatprep.subr.mxu0 0.0
      %2260 = vmatpush1.msra.mxu0 0.0
      %2261 = vmatprep.subr.mxu0 0.0
      %2262 = vmatpush1.msra.mxu0 0.0
      %2263 = vmatprep.subr.mxu0 0.0
      %2264 = vmatpush1.msra.mxu0 0.0
      %2265 = vmatprep.subr.mxu0 0.0
      %2266 = vmatpush1.msra.mxu0 0.0
      %2267 = vmatprep.subr.mxu0 0.0
      %2268 = vmatpush1.msra.mxu0 0.0
      %2269 = vmatprep.subr.mxu0 0.0
      %2270 = vmatpush1.msra.mxu0 0.0
      %2271 = vmatprep.subr.mxu0 0.0
      %2272 = vmatpush1.msra.mxu0 0.0
      %2273 = vmatprep.subr.mxu0 0.0
      %2274 = vmatpush1.msra.mxu0 0.0
      %2275 = vmatprep.subr.mxu0 0.0
      %2276 = vmatpush1.msra.mxu0 0.0
      %2277 = vmatprep.subr.mxu0 0.0
      %2278 = vmatpush1.msra.mxu0 0.0
      %2279 = vmatprep.subr.mxu0 0.0
      %2280 = vmatpush1.msra.mxu0 0.0
      %2281 = vmatprep.subr.mxu0 0.0
      %2282 = vmatpush1.msra.mxu0 0.0
      %2283 = vmatprep.subr.mxu0 0.0
      %2284 = vmatpush1.msra.mxu0 0.0
      %2285 = vmatprep.subr.mxu0 0.0
      %2286 = vmatpush1.msra.mxu0 0.0
      %2287 = vmatprep.subr.mxu0 0.0
      %2288 = vmatpush1.msra.mxu0 0.0
      %2289 = vmatprep.mubr.f32.mxu0 0.0
      %2290 = vmatmul.mubr.f32.gmra.mrb[0].mxu0 %v509
      %v2291 = vpop.f32.mrb[0].mxu0
      %v2292 = vadd.f32 %v1907, %v2291
      %v2293 = vpop.f32.mrb[0].mxu0
      %2294 = vmatprep.mubr.f32.mxu0 0.0
      %2295 = vmatmul.mubr.f32.gmra.mrb[0].mxu0 %v516
      %v2296 = vpop.f32.mrb[0].mxu0
      %v2297 = vadd.f32 %v1912, %v2296
      %v2298 = vpop.f32.mrb[0].mxu0
      %2299 = vmatprep.mubr.f32.mxu0 0.0
      %2300 = vmatmul.mubr.f32.gmra.mrb[0].mxu0 %v523
      %v2301 = vpop.f32.mrb[0].mxu0
      %v2302 = vadd.f32 %v1917, %v2301
      %v2303 = vpop.f32.mrb[0].mxu0
      %2304 = vmatprep.mubr.f32.mxu0 0.0
      %2305 = vmatmul.mubr.f32.gmra.mrb[0].mxu0 %v530
      %v2306 = vpop.f32.mrb[0].mxu0
      %v2307 = vadd.f32 %v1922, %v2306
      %v2308 = vpop.f32.mrb[0].mxu0
      %2309 = vmatprep.mubr.f32.mxu0 0.0
      %2310 = vmatmul.mubr.f32.gmra.mrb[0].mxu0 %v537
      %v2311 = vpop.f32.mrb[0].mxu0
      %v2312 = vadd.f32 %v1927, %v2311
      %v2313 = vpop.f32.mrb[0].mxu0
      %2314 = vmatprep.mubr.f32.mxu0 0.0
      %2315 = vmatmul.mubr.f32.gmra.mrb[0].mxu0 %v544
      %v2316 = vpop.f32.mrb[0].mxu0
      %v2317 = vadd.f32 %v1932, %v2316
      %v2318 = vpop.f32.mrb[0].mxu0
      %2319 = vmatprep.mubr.f32.mxu0 0.0
      %2320 = vmatmul.mubr.f32.gmra.mrb[0].mxu0 %v551
      %v2321 = vpop.f32.mrb[0].mxu0
      %v2322 = vadd.f32 %v1937, %v2321
      %v2323 = vpop.f32.mrb[0].mxu0
      %2324 = vmatprep.mubr.f32.mxu0 0.0
      %2325 = vmatmul.mubr.f32.gmra.mrb[0].mxu0 %v558
      %v2326 = vpop.f32.mrb[0].mxu0
      %v2327 = vadd.f32 %v1942, %v2326
      %v2328 = vpop.f32.mrb[0].mxu0
      %2329 = vmatprep.mubr.f32.mxu0 0.0
      %2330 = vmatmul.mubr.f32.gmra.mrb[0].mxu0 %v565
      %v2331 = vpop.f32.mrb[0].mxu0
      %v2332 = vadd.f32 %v1947, %v2331
      %v2333 = vpop.f32.mrb[0].mxu0
      %2334 = vmatprep.mubr.f32.mxu0 0.0
      %2335 = vmatmul.mubr.f32.gmra.mrb[0].mxu0 %v572
      %v2336 = vpop.f32.mrb[0].mxu0
      %v2337 = vadd.f32 %v1952, %v2336
      %v2338 = vpop.f32.mrb[0].mxu0
      %2339 = vmatprep.mubr.f32.mxu0 0.0
      %2340 = vmatmul.mubr.f32.gmra.mrb[0].mxu0 %v579
      %v2341 = vpop.f32.mrb[0].mxu0
      %v2342 = vadd.f32 %v1957, %v2341
      %v2343 = vpop.f32.mrb[0].mxu0
      %2344 = vmatprep.mubr.f32.mxu0 0.0
      %2345 = vmatmul.mubr.f32.gmra.mrb[0].mxu0 %v586
      %v2346 = vpop.f32.mrb[0].mxu0
      %v2347 = vadd.f32 %v1962, %v2346
      %v2348 = vpop.f32.mrb[0].mxu0
      %2349 = vmatprep.mubr.f32.mxu0 0.0
      %2350 = vmatmul.mubr.f32.gmra.mrb[0].mxu0 %v593
      %v2351 = vpop.f32.mrb[0].mxu0
      %v2352 = vadd.f32 %v1967, %v2351
      %v2353 = vpop.f32.mrb[0].mxu0
      %2354 = vmatprep.mubr.f32.mxu0 0.0
      %2355 = vmatmul.mubr.f32.gmra.mrb[0].mxu0 %v600
      %v2356 = vpop.f32.mrb[0].mxu0
      %v2357 = vadd.f32 %v1972, %v2356
      %v2358 = vpop.f32.mrb[0].mxu0
      %2359 = vmatprep.mubr.f32.mxu0 0.0
      %2360 = vmatmul.mubr.f32.gmra.mrb[0].mxu0 %v607
      %v2361 = vpop.f32.mrb[0].mxu0
      %v2362 = vadd.f32 %v1977, %v2361
      %v2363 = vpop.f32.mrb[0].mxu0
      %2364 = vmatprep.mubr.f32.mxu0 0.0
      %2365 = vmatmul.mubr.f32.gmra.mrb[0].mxu0 %v614
      %v2366 = vpop.f32.mrb[0].mxu0
      %v2367 = vadd.f32 %v1982, %v2366
      %v2368 = vpop.f32.mrb[0].mxu0
      %2369 = vmatprep.mubr.f32.mxu0 0.0
      %2370 = vmatmul.mubr.f32.gmra.mrb[0].mxu0 %v621
      %v2371 = vpop.f32.mrb[0].mxu0
      %v2372 = vadd.f32 %v1987, %v2371
      %v2373 = vpop.f32.mrb[0].mxu0
      %2374 = vmatprep.mubr.f32.mxu0 0.0
      %2375 = vmatmul.mubr.f32.gmra.mrb[0].mxu0 %v628
      %v2376 = vpop.f32.mrb[0].mxu0
      %v2377 = vadd.f32 %v1992, %v2376
      %v2378 = vpop.f32.mrb[0].mxu0
      %2379 = vmatprep.mubr.f32.mxu0 0.0
      %2380 = vmatmul.mubr.f32.gmra.mrb[0].mxu0 %v635
      %v2381 = vpop.f32.mrb[0].mxu0
      %v2382 = vadd.f32 %v1997, %v2381
      %v2383 = vpop.f32.mrb[0].mxu0
      %2384 = vmatprep.mubr.f32.mxu0 0.0
      %2385 = vmatmul.mubr.f32.gmra.mrb[0].mxu0 %v642
      %v2386 = vpop.f32.mrb[0].mxu0
      %v2387 = vadd.f32 %v2002, %v2386
      %v2388 = vpop.f32.mrb[0].mxu0
      %2389 = vmatprep.mubr.f32.mxu0 0.0
      %2390 = vmatmul.mubr.f32.gmra.mrb[0].mxu0 %v649
      %v2391 = vpop.f32.mrb[0].mxu0
      %v2392 = vadd.f32 %v2007, %v2391
      %v2393 = vpop.f32.mrb[0].mxu0
      %2394 = vmatprep.mubr.f32.mxu0 0.0
      %2395 = vmatmul.mubr.f32.gmra.mrb[0].mxu0 %v656
      %v2396 = vpop.f32.mrb[0].mxu0
      %v2397 = vadd.f32 %v2012, %v2396
      %v2398 = vpop.f32.mrb[0].mxu0
      %2399 = vmatprep.mubr.f32.mxu0 0.0
      %2400 = vmatmul.mubr.f32.gmra.mrb[0].mxu0 %v663
      %v2401 = vpop.f32.mrb[0].mxu0
      %v2402 = vadd.f32 %v2017, %v2401
      %v2403 = vpop.f32.mrb[0].mxu0
      %2404 = vmatprep.mubr.f32.mxu0 0.0
      %2405 = vmatmul.mubr.f32.gmra.mrb[0].mxu0 %v670
      %v2406 = vpop.f32.mrb[0].mxu0
      %v2407 = vadd.f32 %v2022, %v2406
      %v2408 = vpop.f32.mrb[0].mxu0
      %2409 = vmatprep.mubr.f32.mxu0 0.0
      %2410 = vmatmul.mubr.f32.gmra.mrb[0].mxu0 %v677
      %v2411 = vpop.f32.mrb[0].mxu0
      %v2412 = vadd.f32 %v2027, %v2411
      %v2413 = vpop.f32.mrb[0].mxu0
      %2414 = vmatprep.mubr.f32.mxu0 0.0
      %2415 = vmatmul.mubr.f32.gmra.mrb[0].mxu0 %v684
      %v2416 = vpop.f32.mrb[0].mxu0
      %v2417 = vadd.f32 %v2032, %v2416
      %v2418 = vpop.f32.mrb[0].mxu0
      %2419 = vmatprep.mubr.f32.mxu0 0.0
      %2420 = vmatmul.mubr.f32.gmra.mrb[0].mxu0 %v691
      %v2421 = vpop.f32.mrb[0].mxu0
      %v2422 = vadd.f32 %v2037, %v2421
      %v2423 = vpop.f32.mrb[0].mxu0
      %2424 = vmatprep.mubr.f32.mxu0 0.0
      %2425 = vmatmul.mubr.f32.gmra.mrb[0].mxu0 %v698
      %v2426 = vpop.f32.mrb[0].mxu0
      %v2427 = vadd.f32 %v2042, %v2426
      %v2428 = vpop.f32.mrb[0].mxu0
      %2429 = vmatprep.mubr.f32.mxu0 0.0
      %2430 = vmatmul.mubr.f32.gmra.mrb[0].mxu0 %v705
      %v2431 = vpop.f32.mrb[0].mxu0
      %v2432 = vadd.f32 %v2047, %v2431
      %v2433 = vpop.f32.mrb[0].mxu0
      %2434 = vmatprep.mubr.f32.mxu0 0.0
      %2435 = vmatmul.mubr.f32.gmra.mrb[0].mxu0 %v712
      %v2436 = vpop.f32.mrb[0].mxu0
      %v2437 = vadd.f32 %v2052, %v2436
      %v2438 = vpop.f32.mrb[0].mxu0
      %2439 = vmatprep.mubr.f32.mxu0 0.0
      %2440 = vmatmul.mubr.f32.gmra.mrb[0].mxu0 %v719
      %v2441 = vpop.f32.mrb[0].mxu0
      %v2442 = vadd.f32 %v2057, %v2441
      %v2443 = vpop.f32.mrb[0].mxu0
      %2444 = vmatprep.mubr.f32.mxu0 0.0
      %2445 = vmatmul.mubr.f32.gmra.mrb[0].mxu0 %v726
      %v2446 = vpop.f32.mrb[0].mxu0
      %v2447 = vadd.f32 %v2062, %v2446
      %v2448 = vpop.f32.mrb[0].mxu0
      %2449 = vmatprep.mubr.f32.mxu0 0.0
      %2450 = vmatmul.mubr.f32.gmra.mrb[0].mxu0 %v733
      %v2451 = vpop.f32.mrb[0].mxu0
      %v2452 = vadd.f32 %v2067, %v2451
      %v2453 = vpop.f32.mrb[0].mxu0
      %2454 = vmatprep.mubr.f32.mxu0 0.0
      %2455 = vmatmul.mubr.f32.gmra.mrb[0].mxu0 %v740
      %v2456 = vpop.f32.mrb[0].mxu0
      %v2457 = vadd.f32 %v2072, %v2456
      %v2458 = vpop.f32.mrb[0].mxu0
      %2459 = vmatprep.mubr.f32.mxu0 0.0
      %2460 = vmatmul.mubr.f32.gmra.mrb[0].mxu0 %v747
      %v2461 = vpop.f32.mrb[0].mxu0
      %v2462 = vadd.f32 %v2077, %v2461
      %v2463 = vpop.f32.mrb[0].mxu0
      %2464 = vmatprep.mubr.f32.mxu0 0.0
      %2465 = vmatmul.mubr.f32.gmra.mrb[0].mxu0 %v754
      %v2466 = vpop.f32.mrb[0].mxu0
      %v2467 = vadd.f32 %v2082, %v2466
      %v2468 = vpop.f32.mrb[0].mxu0
      %2469 = vmatprep.mubr.f32.mxu0 0.0
      %2470 = vmatmul.mubr.f32.gmra.mrb[0].mxu0 %v761
      %v2471 = vpop.f32.mrb[0].mxu0
      %v2472 = vadd.f32 %v2087, %v2471
      %v2473 = vpop.f32.mrb[0].mxu0
      %2474 = vmatprep.mubr.f32.mxu0 0.0
      %2475 = vmatmul.mubr.f32.gmra.mrb[0].mxu0 %v768
      %v2476 = vpop.f32.mrb[0].mxu0
      %v2477 = vadd.f32 %v2092, %v2476
      %v2478 = vpop.f32.mrb[0].mxu0
      %2479 = vmatprep.mubr.f32.mxu0 0.0
      %2480 = vmatmul.mubr.f32.gmra.mrb[0].mxu0 %v775
      %v2481 = vpop.f32.mrb[0].mxu0
      %v2482 = vadd.f32 %v2097, %v2481
      %v2483 = vpop.f32.mrb[0].mxu0
      %2484 = vmatprep.mubr.f32.mxu0 0.0
      %2485 = vmatmul.mubr.f32.gmra.mrb[0].mxu0 %v782
      %v2486 = vpop.f32.mrb[0].mxu0
      %v2487 = vadd.f32 %v2102, %v2486
      %v2488 = vpop.f32.mrb[0].mxu0
      %2489 = vmatprep.mubr.f32.mxu0 0.0
      %2490 = vmatmul.mubr.f32.gmra.mrb[0].mxu0 %v789
      %v2491 = vpop.f32.mrb[0].mxu0
      %v2492 = vadd.f32 %v2107, %v2491
      %v2493 = vpop.f32.mrb[0].mxu0
      %2494 = vmatprep.mubr.f32.mxu0 0.0
      %2495 = vmatmul.mubr.f32.gmra.mrb[0].mxu0 %v796
      %v2496 = vpop.f32.mrb[0].mxu0
      %v2497 = vadd.f32 %v2112, %v2496
      %v2498 = vpop.f32.mrb[0].mxu0
      %2499 = vmatprep.mubr.f32.mxu0 0.0
      %2500 = vmatmul.mubr.f32.gmra.mrb[0].mxu0 %v803
      %v2501 = vpop.f32.mrb[0].mxu0
      %v2502 = vadd.f32 %v2117, %v2501
      %v2503 = vpop.f32.mrb[0].mxu0
      %2504 = vmatprep.mubr.f32.mxu0 0.0
      %2505 = vmatmul.mubr.f32.gmra.mrb[0].mxu0 %v810
      %v2506 = vpop.f32.mrb[0].mxu0
      %v2507 = vadd.f32 %v2122, %v2506
      %v2508 = vpop.f32.mrb[0].mxu0
      %2509 = vmatprep.mubr.f32.mxu0 0.0
      %2510 = vmatmul.mubr.f32.gmra.mrb[0].mxu0 %v817
      %v2511 = vpop.f32.mrb[0].mxu0
      %v2512 = vadd.f32 %v2127, %v2511
      %v2513 = vpop.f32.mrb[0].mxu0
      %2514 = vmatprep.mubr.f32.mxu0 0.0
      %2515 = vmatmul.mubr.f32.gmra.mrb[0].mxu0 %v824
      %v2516 = vpop.f32.mrb[0].mxu0
      %v2517 = vadd.f32 %v2132, %v2516
      %v2518 = vpop.f32.mrb[0].mxu0
      %2519 = vmatprep.mubr.f32.mxu0 0.0
      %2520 = vmatmul.mubr.f32.gmra.mrb[0].mxu0 %v831
      %v2521 = vpop.f32.mrb[0].mxu0
      %v2522 = vadd.f32 %v2137, %v2521
      %v2523 = vpop.f32.mrb[0].mxu0
      %2524 = vmatprep.mubr.f32.mxu0 0.0
      %2525 = vmatmul.mubr.f32.gmra.mrb[0].mxu0 %v838
      %v2526 = vpop.f32.mrb[0].mxu0
      %v2527 = vadd.f32 %v2142, %v2526
      %v2528 = vpop.f32.mrb[0].mxu0
      %2529 = vmatprep.mubr.f32.mxu0 0.0
      %2530 = vmatmul.mubr.f32.gmra.mrb[0].mxu0 %v845
      %v2531 = vpop.f32.mrb[0].mxu0
      %v2532 = vadd.f32 %v2147, %v2531
      %v2533 = vpop.f32.mrb[0].mxu0
      %2534 = vmatprep.mubr.f32.mxu0 0.0
      %2535 = vmatmul.mubr.f32.gmra.mrb[0].mxu0 %v852
      %v2536 = vpop.f32.mrb[0].mxu0
      %v2537 = vadd.f32 %v2152, %v2536
      %v2538 = vpop.f32.mrb[0].mxu0
      %2539 = vmatprep.mubr.f32.mxu0 0.0
      %2540 = vmatmul.mubr.f32.gmra.mrb[0].mxu0 %v859
      %v2541 = vpop.f32.mrb[0].mxu0
      %v2542 = vadd.f32 %v2157, %v2541
      %v2543 = vpop.f32.mrb[0].mxu0
      %2544 = vmatprep.mubr.f32.mxu0 0.0
      %2545 = vmatmul.mubr.f32.gmra.mrb[0].mxu0 %v866
      %v2546 = vpop.f32.mrb[0].mxu0
      %v2547 = vadd.f32 %v2162, %v2546
      %v2548 = vpop.f32.mrb[0].mxu0
      %2549 = vmatprep.mubr.f32.mxu0 0.0
      %2550 = vmatmul.mubr.f32.gmra.mrb[0].mxu0 %v873
      %v2551 = vpop.f32.mrb[0].mxu0
      %v2552 = vadd.f32 %v2167, %v2551
      %v2553 = vpop.f32.mrb[0].mxu0
      %2554 = vmatprep.mubr.f32.mxu0 0.0
      %2555 = vmatmul.mubr.f32.gmra.mrb[0].mxu0 %v880
      %v2556 = vpop.f32.mrb[0].mxu0
      %v2557 = vadd.f32 %v2172, %v2556
      %v2558 = vpop.f32.mrb[0].mxu0
      %2559 = vmatprep.mubr.f32.mxu0 0.0
      %2560 = vmatmul.mubr.f32.gmra.mrb[0].mxu0 %v887
      %v2561 = vpop.f32.mrb[0].mxu0
      %v2562 = vadd.f32 %v2177, %v2561
      %v2563 = vpop.f32.mrb[0].mxu0
      %2564 = vmatprep.mubr.f32.mxu0 0.0
      %2565 = vmatmul.mubr.f32.gmra.mrb[0].mxu0 %v894
      %v2566 = vpop.f32.mrb[0].mxu0
      %v2567 = vadd.f32 %v2182, %v2566
      %v2568 = vpop.f32.mrb[0].mxu0
      %2569 = vmatprep.mubr.f32.mxu0 0.0
      %2570 = vmatmul.mubr.f32.gmra.mrb[0].mxu0 %v901
      %v2571 = vpop.f32.mrb[0].mxu0
      %v2572 = vadd.f32 %v2187, %v2571
      %v2573 = vpop.f32.mrb[0].mxu0
      %2574 = vmatprep.mubr.f32.mxu0 0.0
      %2575 = vmatmul.mubr.f32.gmra.mrb[0].mxu0 %v908
      %v2576 = vpop.f32.mrb[0].mxu0
      %v2577 = vadd.f32 %v2192, %v2576
      %v2578 = vpop.f32.mrb[0].mxu0
      %2579 = vmatprep.mubr.f32.mxu0 0.0
      %2580 = vmatmul.mubr.f32.gmra.mrb[0].mxu0 %v915
      %v2581 = vpop.f32.mrb[0].mxu0
      %v2582 = vadd.f32 %v2197, %v2581
      %v2583 = vpop.f32.mrb[0].mxu0
      %2584 = vmatprep.mubr.f32.mxu0 0.0
      %2585 = vmatmul.mubr.f32.gmra.mrb[0].mxu0 %v922
      %v2586 = vpop.f32.mrb[0].mxu0
      %v2587 = vadd.f32 %v2202, %v2586
      %v2588 = vpop.f32.mrb[0].mxu0
      %2589 = vmatprep.mubr.f32.mxu0 0.0
      %2590 = vmatmul.mubr.f32.gmra.mrb[0].mxu0 %v929
      %v2591 = vpop.f32.mrb[0].mxu0
      %v2592 = vadd.f32 %v2207, %v2591
      %v2593 = vpop.f32.mrb[0].mxu0
      %2594 = vmatprep.mubr.f32.mxu0 0.0
      %2595 = vmatmul.mubr.f32.gmra.mrb[0].mxu0 %v936
      %v2596 = vpop.f32.mrb[0].mxu0
      %v2597 = vadd.f32 %v2212, %v2596
      %v2598 = vpop.f32.mrb[0].mxu0
      %2599 = vmatprep.mubr.f32.mxu0 0.0
      %2600 = vmatmul.mubr.f32.gmra.mrb[0].mxu0 %v943
      %v2601 = vpop.f32.mrb[0].mxu0
      %v2602 = vadd.f32 %v2217, %v2601
      %v2603 = vpop.f32.mrb[0].mxu0
      %2604 = vmatprep.mubr.f32.mxu0 0.0
      %2605 = vmatmul.mubr.f32.gmra.mrb[0].mxu0 %v950
      %v2606 = vpop.f32.mrb[0].mxu0
      %v2607 = vadd.f32 %v2222, %v2606
      %v2608 = vpop.f32.mrb[0].mxu0
      %2609 = vdwg.mxu0
      %v2610 = vmax.f32 %v2292, 0.0
      %v2611 = vmax.f32 %v2297, 0.0
      %v2612 = vmax.f32 %v2302, 0.0
      %v2613 = vmax.f32 %v2307, 0.0
      %v2614 = vmax.f32 %v2312, 0.0
      %v2615 = vmax.f32 %v2317, 0.0
      %v2616 = vmax.f32 %v2322, 0.0
      %v2617 = vmax.f32 %v2327, 0.0
      %v2618 = vmax.f32 %v2332, 0.0
      %v2619 = vmax.f32 %v2337, 0.0
      %v2620 = vmax.f32 %v2342, 0.0
      %v2621 = vmax.f32 %v2347, 0.0
      %v2622 = vmax.f32 %v2352, 0.0
      %v2623 = vmax.f32 %v2357, 0.0
      %v2624 = vmax.f32 %v2362, 0.0
      %v2625 = vmax.f32 %v2367, 0.0
      %v2626 = vmax.f32 %v2372, 0.0
      %v2627 = vmax.f32 %v2377, 0.0
      %v2628 = vmax.f32 %v2382, 0.0
      %v2629 = vmax.f32 %v2387, 0.0
      %v2630 = vmax.f32 %v2392, 0.0
      %v2631 = vmax.f32 %v2397, 0.0
      %v2632 = vmax.f32 %v2402, 0.0
      %v2633 = vmax.f32 %v2407, 0.0
      %v2634 = vmax.f32 %v2412, 0.0
      %v2635 = vmax.f32 %v2417, 0.0
      %v2636 = vmax.f32 %v2422, 0.0
      %v2637 = vmax.f32 %v2427, 0.0
      %v2638 = vmax.f32 %v2432, 0.0
      %v2639 = vmax.f32 %v2437, 0.0
      %v2640 = vmax.f32 %v2442, 0.0
      %v2641 = vmax.f32 %v2447, 0.0
      %v2642 = vmax.f32 %v2452, 0.0
      %v2643 = vmax.f32 %v2457, 0.0
      %v2644 = vmax.f32 %v2462, 0.0
      %v2645 = vmax.f32 %v2467, 0.0
      %v2646 = vmax.f32 %v2472, 0.0
      %v2647 = vmax.f32 %v2477, 0.0
      %v2648 = vmax.f32 %v2482, 0.0
      %v2649 = vmax.f32 %v2487, 0.0
      %v2650 = vmax.f32 %v2492, 0.0
      %v2651 = vmax.f32 %v2497, 0.0
      %v2652 = vmax.f32 %v2502, 0.0
      %v2653 = vmax.f32 %v2507, 0.0
      %v2654 = vmax.f32 %v2512, 0.0
      %v2655 = vmax.f32 %v2517, 0.0
      %v2656 = vmax.f32 %v2522, 0.0
      %v2657 = vmax.f32 %v2527, 0.0
      %v2658 = vmax.f32 %v2532, 0.0
      %v2659 = vmax.f32 %v2537, 0.0
      %v2660 = vmax.f32 %v2542, 0.0
      %v2661 = vmax.f32 %v2547, 0.0
      %v2662 = vmax.f32 %v2552, 0.0
      %v2663 = vmax.f32 %v2557, 0.0
      %v2664 = vmax.f32 %v2562, 0.0
      %v2665 = vmax.f32 %v2567, 0.0
      %v2666 = vmax.f32 %v2572, 0.0
      %v2667 = vmax.f32 %v2577, 0.0
      %v2668 = vmax.f32 %v2582, 0.0
      %v2669 = vmax.f32 %v2587, 0.0
      %v2670 = vmax.f32 %v2592, 0.0
      %v2671 = vmax.f32 %v2597, 0.0
      %v2672 = vmax.f32 %v2602, 0.0
      %v2673 = vmax.f32 %v2607, 0.0
      %v2674 = vld [vmem:[%s3] sm:$0xff]
      %v2675 = vld [vmem:[%s3 + $0x8] sm:$0xff]
      %v2676 = vld [vmem:[%s3 + $0x10] sm:$0xff]
      %v2677 = vld [vmem:[%s3 + $0x18] sm:$0xff]
      %v2678 = vld [vmem:[%s3 + $0x20] sm:$0xff]
      %v2679 = vld [vmem:[%s3 + $0x28] sm:$0xff]
      %v2680 = vld [vmem:[%s3 + $0x30] sm:$0xff]
      %v2681 = vld [vmem:[%s3 + $0x38] sm:$0xff]
      %v2682 = vld [vmem:[%s3 + $0x40] sm:$0xff]
      %v2683 = vld [vmem:[%s3 + $0x48] sm:$0xff]
      %v2684 = vld [vmem:[%s3 + $0x50] sm:$0xff]
      %v2685 = vld [vmem:[%s3 + $0x58] sm:$0xff]
      %v2686 = vld [vmem:[%s3 + $0x60] sm:$0xff]
      %v2687 = vld [vmem:[%s3 + $0x68] sm:$0xff]
      %v2688 = vld [vmem:[%s3 + $0x70] sm:$0xff]
      %v2689 = vld [vmem:[%s3 + $0x78] sm:$0xff]
      %v2690 = vld [vmem:[%s4] sm:$0x1]
      %v2692 = vlaneseq
      %v2693 = vshrl.u32 %v2692, 7
      %v2694 = vsub.s32 0, %v2693
      %v2695 = vrot.slane %v2690, %v2694
      %2697 = vmatprep.subr.mxu0 0.0
      %2698 = vmatpush1.msra.mxu0 %v2674
      %2699 = vmatprep.subr.mxu0 0.0
      %2700 = vmatpush1.msra.mxu0 %v2675
      %2701 = vmatprep.subr.mxu0 0.0
      %2702 = vmatpush1.msra.mxu0 %v2676
      %2703 = vmatprep.subr.mxu0 0.0
      %2704 = vmatpush1.msra.mxu0 %v2677
      %2705 = vmatprep.subr.mxu0 0.0
      %2706 = vmatpush1.msra.mxu0 %v2678
      %2707 = vmatprep.subr.mxu0 0.0
      %2708 = vmatpush1.msra.mxu0 %v2679
      %2709 = vmatprep.subr.mxu0 0.0
      %2710 = vmatpush1.msra.mxu0 %v2680
      %2711 = vmatprep.subr.mxu0 0.0
      %2712 = vmatpush1.msra.mxu0 %v2681
      %2713 = vmatprep.subr.mxu0 0.0
      %2714 = vmatpush1.msra.mxu0 %v2682
      %2715 = vmatprep.subr.mxu0 0.0
      %2716 = vmatpush1.msra.mxu0 %v2683
      %2717 = vmatprep.subr.mxu0 0.0
      %2718 = vmatpush1.msra.mxu0 %v2684
      %2719 = vmatprep.subr.mxu0 0.0
      %2720 = vmatpush1.msra.mxu0 %v2685
      %2721 = vmatprep.subr.mxu0 0.0
      %2722 = vmatpush1.msra.mxu0 %v2686
      %2723 = vmatprep.subr.mxu0 0.0
      %2724 = vmatpush1.msra.mxu0 %v2687
      %2725 = vmatprep.subr.mxu0 0.0
      %2726 = vmatpush1.msra.mxu0 %v2688
      %2727 = vmatprep.subr.mxu0 0.0
      %2728 = vmatpush1.msra.mxu0 %v2689
      %2729 = vmatprep.subr.mxu0 0.0
      %2730 = vmatpush1.msra.mxu0 0.0
      %2731 = vmatprep.subr.mxu0 0.0
      %2732 = vmatpush1.msra.mxu0 0.0
      %2733 = vmatprep.subr.mxu0 0.0
      %2734 = vmatpush1.msra.mxu0 0.0
      %2735 = vmatprep.subr.mxu0 0.0
      %2736 = vmatpush1.msra.mxu0 0.0
      %2737 = vmatprep.subr.mxu0 0.0
      %2738 = vmatpush1.msra.mxu0 0.0
      %2739 = vmatprep.subr.mxu0 0.0
      %2740 = vmatpush1.msra.mxu0 0.0
      %2741 = vmatprep.subr.mxu0 0.0
      %2742 = vmatpush1.msra.mxu0 0.0
      %2743 = vmatprep.subr.mxu0 0.0
      %2744 = vmatpush1.msra.mxu0 0.0
      %2745 = vmatprep.subr.mxu0 0.0
      %2746 = vmatpush1.msra.mxu0 0.0
      %2747 = vmatprep.subr.mxu0 0.0
      %2748 = vmatpush1.msra.mxu0 0.0
      %2749 = vmatprep.subr.mxu0 0.0
      %2750 = vmatpush1.msra.mxu0 0.0
      %2751 = vmatprep.subr.mxu0 0.0
      %2752 = vmatpush1.msra.mxu0 0.0
      %2753 = vmatprep.subr.mxu0 0.0
      %2754 = vmatpush1.msra.mxu0 0.0
      %2755 = vmatprep.subr.mxu0 0.0
      %2756 = vmatpush1.msra.mxu0 0.0
      %2757 = vmatprep.subr.mxu0 0.0
      %2758 = vmatpush1.msra.mxu0 0.0
      %2759 = vmatprep.subr.mxu0 0.0
      %2760 = vmatpush1.msra.mxu0 0.0
      %2761 = vmatprep.mubr.f32.mxu0 0.0
      %2762 = vmatmul.mubr.f32.gmra.mrb[0].mxu0 %v2610
      %v2763 = vpop.f32.mrb[0].mxu0
      %v2764 = vadd.f32 %v2695, %v2763
      %v2765 = vpop.f32.mrb[0].mxu0
      %2766 = vmatprep.mubr.f32.mxu0 0.0
      %2767 = vmatmul.mubr.f32.gmra.mrb[0].mxu0 %v2611
      %v2768 = vpop.f32.mrb[0].mxu0
      %v2769 = vadd.f32 %v2695, %v2768
      %v2770 = vpop.f32.mrb[0].mxu0
      %2771 = vmatprep.mubr.f32.mxu0 0.0
      %2772 = vmatmul.mubr.f32.gmra.mrb[0].mxu0 %v2612
      %v2773 = vpop.f32.mrb[0].mxu0
      %v2774 = vadd.f32 %v2695, %v2773
      %v2775 = vpop.f32.mrb[0].mxu0
      %2776 = vmatprep.mubr.f32.mxu0 0.0
      %2777 = vmatmul.mubr.f32.gmra.mrb[0].mxu0 %v2613
      %v2778 = vpop.f32.mrb[0].mxu0
      %v2779 = vadd.f32 %v2695, %v2778
      %v2780 = vpop.f32.mrb[0].mxu0
      %2781 = vmatprep.mubr.f32.mxu0 0.0
      %2782 = vmatmul.mubr.f32.gmra.mrb[0].mxu0 %v2614
      %v2783 = vpop.f32.mrb[0].mxu0
      %v2784 = vadd.f32 %v2695, %v2783
      %v2785 = vpop.f32.mrb[0].mxu0
      %2786 = vmatprep.mubr.f32.mxu0 0.0
      %2787 = vmatmul.mubr.f32.gmra.mrb[0].mxu0 %v2615
      %v2788 = vpop.f32.mrb[0].mxu0
      %v2789 = vadd.f32 %v2695, %v2788
      %v2790 = vpop.f32.mrb[0].mxu0
      %2791 = vmatprep.mubr.f32.mxu0 0.0
      %2792 = vmatmul.mubr.f32.gmra.mrb[0].mxu0 %v2616
      %v2793 = vpop.f32.mrb[0].mxu0
      %v2794 = vadd.f32 %v2695, %v2793
      %v2795 = vpop.f32.mrb[0].mxu0
      %2796 = vmatprep.mubr.f32.mxu0 0.0
      %2797 = vmatmul.mubr.f32.gmra.mrb[0].mxu0 %v2617
      %v2798 = vpop.f32.mrb[0].mxu0
      %v2799 = vadd.f32 %v2695, %v2798
      %v2800 = vpop.f32.mrb[0].mxu0
      %2801 = vmatprep.mubr.f32.mxu0 0.0
      %2802 = vmatmul.mubr.f32.gmra.mrb[0].mxu0 %v2618
      %v2803 = vpop.f32.mrb[0].mxu0
      %v2804 = vadd.f32 %v2695, %v2803
      %v2805 = vpop.f32.mrb[0].mxu0
      %2806 = vmatprep.mubr.f32.mxu0 0.0
      %2807 = vmatmul.mubr.f32.gmra.mrb[0].mxu0 %v2619
      %v2808 = vpop.f32.mrb[0].mxu0
      %v2809 = vadd.f32 %v2695, %v2808
      %v2810 = vpop.f32.mrb[0].mxu0
      %2811 = vmatprep.mubr.f32.mxu0 0.0
      %2812 = vmatmul.mubr.f32.gmra.mrb[0].mxu0 %v2620
      %v2813 = vpop.f32.mrb[0].mxu0
      %v2814 = vadd.f32 %v2695, %v2813
      %v2815 = vpop.f32.mrb[0].mxu0
      %2816 = vmatprep.mubr.f32.mxu0 0.0
      %2817 = vmatmul.mubr.f32.gmra.mrb[0].mxu0 %v2621
      %v2818 = vpop.f32.mrb[0].mxu0
      %v2819 = vadd.f32 %v2695, %v2818
      %v2820 = vpop.f32.mrb[0].mxu0
      %2821 = vmatprep.mubr.f32.mxu0 0.0
      %2822 = vmatmul.mubr.f32.gmra.mrb[0].mxu0 %v2622
      %v2823 = vpop.f32.mrb[0].mxu0
      %v2824 = vadd.f32 %v2695, %v2823
      %v2825 = vpop.f32.mrb[0].mxu0
      %2826 = vmatprep.mubr.f32.mxu0 0.0
      %2827 = vmatmul.mubr.f32.gmra.mrb[0].mxu0 %v2623
      %v2828 = vpop.f32.mrb[0].mxu0
      %v2829 = vadd.f32 %v2695, %v2828
      %v2830 = vpop.f32.mrb[0].mxu0
      %2831 = vmatprep.mubr.f32.mxu0 0.0
      %2832 = vmatmul.mubr.f32.gmra.mrb[0].mxu0 %v2624
      %v2833 = vpop.f32.mrb[0].mxu0
      %v2834 = vadd.f32 %v2695, %v2833
      %v2835 = vpop.f32.mrb[0].mxu0
      %2836 = vmatprep.mubr.f32.mxu0 0.0
      %2837 = vmatmul.mubr.f32.gmra.mrb[0].mxu0 %v2625
      %v2838 = vpop.f32.mrb[0].mxu0
      %v2839 = vadd.f32 %v2695, %v2838
      %v2840 = vpop.f32.mrb[0].mxu0
      %2841 = vmatprep.mubr.f32.mxu0 0.0
      %2842 = vmatmul.mubr.f32.gmra.mrb[0].mxu0 %v2626
      %v2843 = vpop.f32.mrb[0].mxu0
      %v2844 = vadd.f32 %v2695, %v2843
      %v2845 = vpop.f32.mrb[0].mxu0
      %2846 = vmatprep.mubr.f32.mxu0 0.0
      %2847 = vmatmul.mubr.f32.gmra.mrb[0].mxu0 %v2627
      %v2848 = vpop.f32.mrb[0].mxu0
      %v2849 = vadd.f32 %v2695, %v2848
      %v2850 = vpop.f32.mrb[0].mxu0
      %2851 = vmatprep.mubr.f32.mxu0 0.0
      %2852 = vmatmul.mubr.f32.gmra.mrb[0].mxu0 %v2628
      %v2853 = vpop.f32.mrb[0].mxu0
      %v2854 = vadd.f32 %v2695, %v2853
      %v2855 = vpop.f32.mrb[0].mxu0
      %2856 = vmatprep.mubr.f32.mxu0 0.0
      %2857 = vmatmul.mubr.f32.gmra.mrb[0].mxu0 %v2629
      %v2858 = vpop.f32.mrb[0].mxu0
      %v2859 = vadd.f32 %v2695, %v2858
      %v2860 = vpop.f32.mrb[0].mxu0
      %2861 = vmatprep.mubr.f32.mxu0 0.0
      %2862 = vmatmul.mubr.f32.gmra.mrb[0].mxu0 %v2630
      %v2863 = vpop.f32.mrb[0].mxu0
      %v2864 = vadd.f32 %v2695, %v2863
      %v2865 = vpop.f32.mrb[0].mxu0
      %2866 = vmatprep.mubr.f32.mxu0 0.0
      %2867 = vmatmul.mubr.f32.gmra.mrb[0].mxu0 %v2631
      %v2868 = vpop.f32.mrb[0].mxu0
      %v2869 = vadd.f32 %v2695, %v2868
      %v2870 = vpop.f32.mrb[0].mxu0
      %2871 = vmatprep.mubr.f32.mxu0 0.0
      %2872 = vmatmul.mubr.f32.gmra.mrb[0].mxu0 %v2632
      %v2873 = vpop.f32.mrb[0].mxu0
      %v2874 = vadd.f32 %v2695, %v2873
      %v2875 = vpop.f32.mrb[0].mxu0
      %2876 = vmatprep.mubr.f32.mxu0 0.0
      %2877 = vmatmul.mubr.f32.gmra.mrb[0].mxu0 %v2633
      %v2878 = vpop.f32.mrb[0].mxu0
      %v2879 = vadd.f32 %v2695, %v2878
      %v2880 = vpop.f32.mrb[0].mxu0
      %2881 = vmatprep.mubr.f32.mxu0 0.0
      %2882 = vmatmul.mubr.f32.gmra.mrb[0].mxu0 %v2634
      %v2883 = vpop.f32.mrb[0].mxu0
      %v2884 = vadd.f32 %v2695, %v2883
      %v2885 = vpop.f32.mrb[0].mxu0
      %2886 = vmatprep.mubr.f32.mxu0 0.0
      %2887 = vmatmul.mubr.f32.gmra.mrb[0].mxu0 %v2635
      %v2888 = vpop.f32.mrb[0].mxu0
      %v2889 = vadd.f32 %v2695, %v2888
      %v2890 = vpop.f32.mrb[0].mxu0
      %2891 = vmatprep.mubr.f32.mxu0 0.0
      %2892 = vmatmul.mubr.f32.gmra.mrb[0].mxu0 %v2636
      %v2893 = vpop.f32.mrb[0].mxu0
      %v2894 = vadd.f32 %v2695, %v2893
      %v2895 = vpop.f32.mrb[0].mxu0
      %2896 = vmatprep.mubr.f32.mxu0 0.0
      %2897 = vmatmul.mubr.f32.gmra.mrb[0].mxu0 %v2637
      %v2898 = vpop.f32.mrb[0].mxu0
      %v2899 = vadd.f32 %v2695, %v2898
      %v2900 = vpop.f32.mrb[0].mxu0
      %2901 = vmatprep.mubr.f32.mxu0 0.0
      %2902 = vmatmul.mubr.f32.gmra.mrb[0].mxu0 %v2638
      %v2903 = vpop.f32.mrb[0].mxu0
      %v2904 = vadd.f32 %v2695, %v2903
      %v2905 = vpop.f32.mrb[0].mxu0
      %2906 = vmatprep.mubr.f32.mxu0 0.0
      %2907 = vmatmul.mubr.f32.gmra.mrb[0].mxu0 %v2639
      %v2908 = vpop.f32.mrb[0].mxu0
      %v2909 = vadd.f32 %v2695, %v2908
      %v2910 = vpop.f32.mrb[0].mxu0
      %2911 = vmatprep.mubr.f32.mxu0 0.0
      %2912 = vmatmul.mubr.f32.gmra.mrb[0].mxu0 %v2640
      %v2913 = vpop.f32.mrb[0].mxu0
      %v2914 = vadd.f32 %v2695, %v2913
      %v2915 = vpop.f32.mrb[0].mxu0
      %2916 = vmatprep.mubr.f32.mxu0 0.0
      %2917 = vmatmul.mubr.f32.gmra.mrb[0].mxu0 %v2641
      %v2918 = vpop.f32.mrb[0].mxu0
      %v2919 = vadd.f32 %v2695, %v2918
      %v2920 = vpop.f32.mrb[0].mxu0
      %2921 = vmatprep.mubr.f32.mxu0 0.0
      %2922 = vmatmul.mubr.f32.gmra.mrb[0].mxu0 %v2642
      %v2923 = vpop.f32.mrb[0].mxu0
      %v2924 = vadd.f32 %v2695, %v2923
      %v2925 = vpop.f32.mrb[0].mxu0
      %2926 = vmatprep.mubr.f32.mxu0 0.0
      %2927 = vmatmul.mubr.f32.gmra.mrb[0].mxu0 %v2643
      %v2928 = vpop.f32.mrb[0].mxu0
      %v2929 = vadd.f32 %v2695, %v2928
      %v2930 = vpop.f32.mrb[0].mxu0
      %2931 = vmatprep.mubr.f32.mxu0 0.0
      %2932 = vmatmul.mubr.f32.gmra.mrb[0].mxu0 %v2644
      %v2933 = vpop.f32.mrb[0].mxu0
      %v2934 = vadd.f32 %v2695, %v2933
      %v2935 = vpop.f32.mrb[0].mxu0
      %2936 = vmatprep.mubr.f32.mxu0 0.0
      %2937 = vmatmul.mubr.f32.gmra.mrb[0].mxu0 %v2645
      %v2938 = vpop.f32.mrb[0].mxu0
      %v2939 = vadd.f32 %v2695, %v2938
      %v2940 = vpop.f32.mrb[0].mxu0
      %2941 = vmatprep.mubr.f32.mxu0 0.0
      %2942 = vmatmul.mubr.f32.gmra.mrb[0].mxu0 %v2646
      %v2943 = vpop.f32.mrb[0].mxu0
      %v2944 = vadd.f32 %v2695, %v2943
      %v2945 = vpop.f32.mrb[0].mxu0
      %2946 = vmatprep.mubr.f32.mxu0 0.0
      %2947 = vmatmul.mubr.f32.gmra.mrb[0].mxu0 %v2647
      %v2948 = vpop.f32.mrb[0].mxu0
      %v2949 = vadd.f32 %v2695, %v2948
      %v2950 = vpop.f32.mrb[0].mxu0
      %2951 = vmatprep.mubr.f32.mxu0 0.0
      %2952 = vmatmul.mubr.f32.gmra.mrb[0].mxu0 %v2648
      %v2953 = vpop.f32.mrb[0].mxu0
      %v2954 = vadd.f32 %v2695, %v2953
      %v2955 = vpop.f32.mrb[0].mxu0
      %2956 = vmatprep.mubr.f32.mxu0 0.0
      %2957 = vmatmul.mubr.f32.gmra.mrb[0].mxu0 %v2649
      %v2958 = vpop.f32.mrb[0].mxu0
      %v2959 = vadd.f32 %v2695, %v2958
      %v2960 = vpop.f32.mrb[0].mxu0
      %2961 = vmatprep.mubr.f32.mxu0 0.0
      %2962 = vmatmul.mubr.f32.gmra.mrb[0].mxu0 %v2650
      %v2963 = vpop.f32.mrb[0].mxu0
      %v2964 = vadd.f32 %v2695, %v2963
      %v2965 = vpop.f32.mrb[0].mxu0
      %2966 = vmatprep.mubr.f32.mxu0 0.0
      %2967 = vmatmul.mubr.f32.gmra.mrb[0].mxu0 %v2651
      %v2968 = vpop.f32.mrb[0].mxu0
      %v2969 = vadd.f32 %v2695, %v2968
      %v2970 = vpop.f32.mrb[0].mxu0
      %2971 = vmatprep.mubr.f32.mxu0 0.0
      %2972 = vmatmul.mubr.f32.gmra.mrb[0].mxu0 %v2652
      %v2973 = vpop.f32.mrb[0].mxu0
      %v2974 = vadd.f32 %v2695, %v2973
      %v2975 = vpop.f32.mrb[0].mxu0
      %2976 = vmatprep.mubr.f32.mxu0 0.0
      %2977 = vmatmul.mubr.f32.gmra.mrb[0].mxu0 %v2653
      %v2978 = vpop.f32.mrb[0].mxu0
      %v2979 = vadd.f32 %v2695, %v2978
      %v2980 = vpop.f32.mrb[0].mxu0
      %2981 = vmatprep.mubr.f32.mxu0 0.0
      %2982 = vmatmul.mubr.f32.gmra.mrb[0].mxu0 %v2654
      %v2983 = vpop.f32.mrb[0].mxu0
      %v2984 = vadd.f32 %v2695, %v2983
      %v2985 = vpop.f32.mrb[0].mxu0
      %2986 = vmatprep.mubr.f32.mxu0 0.0
      %2987 = vmatmul.mubr.f32.gmra.mrb[0].mxu0 %v2655
      %v2988 = vpop.f32.mrb[0].mxu0
      %v2989 = vadd.f32 %v2695, %v2988
      %v2990 = vpop.f32.mrb[0].mxu0
      %2991 = vmatprep.mubr.f32.mxu0 0.0
      %2992 = vmatmul.mubr.f32.gmra.mrb[0].mxu0 %v2656
      %v2993 = vpop.f32.mrb[0].mxu0
      %v2994 = vadd.f32 %v2695, %v2993
      %v2995 = vpop.f32.mrb[0].mxu0
      %2996 = vmatprep.mubr.f32.mxu0 0.0
      %2997 = vmatmul.mubr.f32.gmra.mrb[0].mxu0 %v2657
      %v2998 = vpop.f32.mrb[0].mxu0
      %v2999 = vadd.f32 %v2695, %v2998
      %v3000 = vpop.f32.mrb[0].mxu0
      %3001 = vmatprep.mubr.f32.mxu0 0.0
      %3002 = vmatmul.mubr.f32.gmra.mrb[0].mxu0 %v2658
      %v3003 = vpop.f32.mrb[0].mxu0
      %v3004 = vadd.f32 %v2695, %v3003
      %v3005 = vpop.f32.mrb[0].mxu0
      %3006 = vmatprep.mubr.f32.mxu0 0.0
      %3007 = vmatmul.mubr.f32.gmra.mrb[0].mxu0 %v2659
      %v3008 = vpop.f32.mrb[0].mxu0
      %v3009 = vadd.f32 %v2695, %v3008
      %v3010 = vpop.f32.mrb[0].mxu0
      %3011 = vmatprep.mubr.f32.mxu0 0.0
      %3012 = vmatmul.mubr.f32.gmra.mrb[0].mxu0 %v2660
      %v3013 = vpop.f32.mrb[0].mxu0
      %v3014 = vadd.f32 %v2695, %v3013
      %v3015 = vpop.f32.mrb[0].mxu0
      %3016 = vmatprep.mubr.f32.mxu0 0.0
      %3017 = vmatmul.mubr.f32.gmra.mrb[0].mxu0 %v2661
      %v3018 = vpop.f32.mrb[0].mxu0
      %v3019 = vadd.f32 %v2695, %v3018
      %v3020 = vpop.f32.mrb[0].mxu0
      %3021 = vmatprep.mubr.f32.mxu0 0.0
      %3022 = vmatmul.mubr.f32.gmra.mrb[0].mxu0 %v2662
      %v3023 = vpop.f32.mrb[0].mxu0
      %v3024 = vadd.f32 %v2695, %v3023
      %v3025 = vpop.f32.mrb[0].mxu0
      %3026 = vmatprep.mubr.f32.mxu0 0.0
      %3027 = vmatmul.mubr.f32.gmra.mrb[0].mxu0 %v2663
      %v3028 = vpop.f32.mrb[0].mxu0
      %v3029 = vadd.f32 %v2695, %v3028
      %v3030 = vpop.f32.mrb[0].mxu0
      %3031 = vmatprep.mubr.f32.mxu0 0.0
      %3032 = vmatmul.mubr.f32.gmra.mrb[0].mxu0 %v2664
      %v3033 = vpop.f32.mrb[0].mxu0
      %v3034 = vadd.f32 %v2695, %v3033
      %v3035 = vpop.f32.mrb[0].mxu0
      %3036 = vmatprep.mubr.f32.mxu0 0.0
      %3037 = vmatmul.mubr.f32.gmra.mrb[0].mxu0 %v2665
      %v3038 = vpop.f32.mrb[0].mxu0
      %v3039 = vadd.f32 %v2695, %v3038
      %v3040 = vpop.f32.mrb[0].mxu0
      %3041 = vmatprep.mubr.f32.mxu0 0.0
      %3042 = vmatmul.mubr.f32.gmra.mrb[0].mxu0 %v2666
      %v3043 = vpop.f32.mrb[0].mxu0
      %v3044 = vadd.f32 %v2695, %v3043
      %v3045 = vpop.f32.mrb[0].mxu0
      %3046 = vmatprep.mubr.f32.mxu0 0.0
      %3047 = vmatmul.mubr.f32.gmra.mrb[0].mxu0 %v2667
      %v3048 = vpop.f32.mrb[0].mxu0
      %v3049 = vadd.f32 %v2695, %v3048
      %v3050 = vpop.f32.mrb[0].mxu0
      %3051 = vmatprep.mubr.f32.mxu0 0.0
      %3052 = vmatmul.mubr.f32.gmra.mrb[0].mxu0 %v2668
      %v3053 = vpop.f32.mrb[0].mxu0
      %v3054 = vadd.f32 %v2695, %v3053
      %v3055 = vpop.f32.mrb[0].mxu0
      %3056 = vmatprep.mubr.f32.mxu0 0.0
      %3057 = vmatmul.mubr.f32.gmra.mrb[0].mxu0 %v2669
      %v3058 = vpop.f32.mrb[0].mxu0
      %v3059 = vadd.f32 %v2695, %v3058
      %v3060 = vpop.f32.mrb[0].mxu0
      %3061 = vmatprep.mubr.f32.mxu0 0.0
      %3062 = vmatmul.mubr.f32.gmra.mrb[0].mxu0 %v2670
      %v3063 = vpop.f32.mrb[0].mxu0
      %v3064 = vadd.f32 %v2695, %v3063
      %v3065 = vpop.f32.mrb[0].mxu0
      %3066 = vmatprep.mubr.f32.mxu0 0.0
      %3067 = vmatmul.mubr.f32.gmra.mrb[0].mxu0 %v2671
      %v3068 = vpop.f32.mrb[0].mxu0
      %v3069 = vadd.f32 %v2695, %v3068
      %v3070 = vpop.f32.mrb[0].mxu0
      %3071 = vmatprep.mubr.f32.mxu0 0.0
      %3072 = vmatmul.mubr.f32.gmra.mrb[0].mxu0 %v2672
      %v3073 = vpop.f32.mrb[0].mxu0
      %v3074 = vadd.f32 %v2695, %v3073
      %v3075 = vpop.f32.mrb[0].mxu0
      %3076 = vmatprep.mubr.f32.mxu0 0.0
      %3077 = vmatmul.mubr.f32.gmra.mrb[0].mxu0 %v2673
      %v3078 = vpop.f32.mrb[0].mxu0
      %v3079 = vadd.f32 %v2695, %v3078
      %v3080 = vpop.f32.mrb[0].mxu0
      %3081 = vdwg.mxu0
      %v3082 = vmax.f32 %v2764, 0.0
      %v3083 = vmax.f32 %v2769, 0.0
      %v3084 = vmax.f32 %v2774, 0.0
      %v3085 = vmax.f32 %v2779, 0.0
      %v3086 = vmax.f32 %v2784, 0.0
      %v3087 = vmax.f32 %v2789, 0.0
      %v3088 = vmax.f32 %v2794, 0.0
      %v3089 = vmax.f32 %v2799, 0.0
      %v3090 = vmax.f32 %v2804, 0.0
      %v3091 = vmax.f32 %v2809, 0.0
      %v3092 = vmax.f32 %v2814, 0.0
      %v3093 = vmax.f32 %v2819, 0.0
      %v3094 = vmax.f32 %v2824, 0.0
      %v3095 = vmax.f32 %v2829, 0.0
      %v3096 = vmax.f32 %v2834, 0.0
      %v3097 = vmax.f32 %v2839, 0.0
      %v3098 = vmax.f32 %v2844, 0.0
      %v3099 = vmax.f32 %v2849, 0.0
      %v3100 = vmax.f32 %v2854, 0.0
      %v3101 = vmax.f32 %v2859, 0.0
      %v3102 = vmax.f32 %v2864, 0.0
      %v3103 = vmax.f32 %v2869, 0.0
      %v3104 = vmax.f32 %v2874, 0.0
      %v3105 = vmax.f32 %v2879, 0.0
      %v3106 = vmax.f32 %v2884, 0.0
      %v3107 = vmax.f32 %v2889, 0.0
      %v3108 = vmax.f32 %v2894, 0.0
      %v3109 = vmax.f32 %v2899, 0.0
      %v3110 = vmax.f32 %v2904, 0.0
      %v3111 = vmax.f32 %v2909, 0.0
      %v3112 = vmax.f32 %v2914, 0.0
      %v3113 = vmax.f32 %v2919, 0.0
      %v3114 = vmax.f32 %v2924, 0.0
      %v3115 = vmax.f32 %v2929, 0.0
      %v3116 = vmax.f32 %v2934, 0.0
      %v3117 = vmax.f32 %v2939, 0.0
      %v3118 = vmax.f32 %v2944, 0.0
      %v3119 = vmax.f32 %v2949, 0.0
      %v3120 = vmax.f32 %v2954, 0.0
      %v3121 = vmax.f32 %v2959, 0.0
      %v3122 = vmax.f32 %v2964, 0.0
      %v3123 = vmax.f32 %v2969, 0.0
      %v3124 = vmax.f32 %v2974, 0.0
      %v3125 = vmax.f32 %v2979, 0.0
      %v3126 = vmax.f32 %v2984, 0.0
      %v3127 = vmax.f32 %v2989, 0.0
      %v3128 = vmax.f32 %v2994, 0.0
      %v3129 = vmax.f32 %v2999, 0.0
      %v3130 = vmax.f32 %v3004, 0.0
      %v3131 = vmax.f32 %v3009, 0.0
      %v3132 = vmax.f32 %v3014, 0.0
      %v3133 = vmax.f32 %v3019, 0.0
      %v3134 = vmax.f32 %v3024, 0.0
      %v3135 = vmax.f32 %v3029, 0.0
      %v3136 = vmax.f32 %v3034, 0.0
      %v3137 = vmax.f32 %v3039, 0.0
      %v3138 = vmax.f32 %v3044, 0.0
      %v3139 = vmax.f32 %v3049, 0.0
      %v3140 = vmax.f32 %v3054, 0.0
      %v3141 = vmax.f32 %v3059, 0.0
      %v3142 = vmax.f32 %v3064, 0.0
      %v3143 = vmax.f32 %v3069, 0.0
      %v3144 = vmax.f32 %v3074, 0.0
      %v3145 = vmax.f32 %v3079, 0.0
      %v3146 = vld [vmem:[%s5] sm:$0xff]
      %v3147 = vld [vmem:[%s5 + $0x8] sm:$0xff]
      %v3148 = vld [vmem:[%s5 + $0x10] sm:$0xff]
      %v3149 = vld [vmem:[%s5 + $0x18] sm:$0xff]
      %v3150 = vld [vmem:[%s5 + $0x20] sm:$0xff]
      %v3151 = vld [vmem:[%s5 + $0x28] sm:$0xff]
      %v3152 = vld [vmem:[%s5 + $0x30] sm:$0xff]
      %v3153 = vld [vmem:[%s5 + $0x38] sm:$0xff]
      %v3154 = vld [vmem:[%s6] sm:$0x1]
      %v3156 = vlaneseq
      %v3157 = vshrl.u32 %v3156, 7
      %v3158 = vsub.s32 0, %v3157
      %v3159 = vrot.slane %v3154, %v3158
      %vm3161 = vcmask 523264
      %v3163 = vsel %vm3161, %v3082, 0
      %v3166 = vsel %vm3161, %v3083, 0
      %v3169 = vsel %vm3161, %v3084, 0
      %v3172 = vsel %vm3161, %v3085, 0
      %v3175 = vsel %vm3161, %v3086, 0
      %v3178 = vsel %vm3161, %v3087, 0
      %v3181 = vsel %vm3161, %v3088, 0
      %v3184 = vsel %vm3161, %v3089, 0
      %v3187 = vsel %vm3161, %v3090, 0
      %v3190 = vsel %vm3161, %v3091, 0
      %v3193 = vsel %vm3161, %v3092, 0
      %v3196 = vsel %vm3161, %v3093, 0
      %v3199 = vsel %vm3161, %v3094, 0
      %v3202 = vsel %vm3161, %v3095, 0
      %v3205 = vsel %vm3161, %v3096, 0
      %v3208 = vsel %vm3161, %v3097, 0
      %v3211 = vsel %vm3161, %v3098, 0
      %v3214 = vsel %vm3161, %v3099, 0
      %v3217 = vsel %vm3161, %v3100, 0
      %v3220 = vsel %vm3161, %v3101, 0
      %v3223 = vsel %vm3161, %v3102, 0
      %v3226 = vsel %vm3161, %v3103, 0
      %v3229 = vsel %vm3161, %v3104, 0
      %v3232 = vsel %vm3161, %v3105, 0
      %v3235 = vsel %vm3161, %v3106, 0
      %v3238 = vsel %vm3161, %v3107, 0
      %v3241 = vsel %vm3161, %v3108, 0
      %v3244 = vsel %vm3161, %v3109, 0
      %v3247 = vsel %vm3161, %v3110, 0
      %v3250 = vsel %vm3161, %v3111, 0
      %v3253 = vsel %vm3161, %v3112, 0
      %v3256 = vsel %vm3161, %v3113, 0
      %v3259 = vsel %vm3161, %v3114, 0
      %v3262 = vsel %vm3161, %v3115, 0
      %v3265 = vsel %vm3161, %v3116, 0
      %v3268 = vsel %vm3161, %v3117, 0
      %v3271 = vsel %vm3161, %v3118, 0
      %v3274 = vsel %vm3161, %v3119, 0
      %v3277 = vsel %vm3161, %v3120, 0
      %v3280 = vsel %vm3161, %v3121, 0
      %v3283 = vsel %vm3161, %v3122, 0
      %v3286 = vsel %vm3161, %v3123, 0
      %v3289 = vsel %vm3161, %v3124, 0
      %v3292 = vsel %vm3161, %v3125, 0
      %v3295 = vsel %vm3161, %v3126, 0
      %v3298 = vsel %vm3161, %v3127, 0
      %v3301 = vsel %vm3161, %v3128, 0
      %v3304 = vsel %vm3161, %v3129, 0
      %v3307 = vsel %vm3161, %v3130, 0
      %v3310 = vsel %vm3161, %v3131, 0
      %v3313 = vsel %vm3161, %v3132, 0
      %v3316 = vsel %vm3161, %v3133, 0
      %v3319 = vsel %vm3161, %v3134, 0
      %v3322 = vsel %vm3161, %v3135, 0
      %v3325 = vsel %vm3161, %v3136, 0
      %v3328 = vsel %vm3161, %v3137, 0
      %v3331 = vsel %vm3161, %v3138, 0
      %v3334 = vsel %vm3161, %v3139, 0
      %v3337 = vsel %vm3161, %v3140, 0
      %v3340 = vsel %vm3161, %v3141, 0
      %v3343 = vsel %vm3161, %v3142, 0
      %v3346 = vsel %vm3161, %v3143, 0
      %v3349 = vsel %vm3161, %v3144, 0
      %v3352 = vsel %vm3161, %v3145, 0
      %3354 = vmatprep.subr.mxu0 0.0
      %3355 = vmatpush1.msra.mxu0 %v3146
      %3356 = vmatprep.subr.mxu0 0.0
      %3357 = vmatpush1.msra.mxu0 %v3147
      %3358 = vmatprep.subr.mxu0 0.0
      %3359 = vmatpush1.msra.mxu0 %v3148
      %3360 = vmatprep.subr.mxu0 0.0
      %3361 = vmatpush1.msra.mxu0 %v3149
      %3362 = vmatprep.subr.mxu0 0.0
      %3363 = vmatpush1.msra.mxu0 %v3150
      %3364 = vmatprep.subr.mxu0 0.0
      %3365 = vmatpush1.msra.mxu0 %v3151
      %3366 = vmatprep.subr.mxu0 0.0
      %3367 = vmatpush1.msra.mxu0 %v3152
      %3368 = vmatprep.subr.mxu0 0.0
      %3369 = vmatpush1.msra.mxu0 %v3153
      %3370 = vmatprep.subr.mxu0 0.0
      %3371 = vmatpush1.msra.mxu0 0.0
      %3372 = vmatprep.subr.mxu0 0.0
      %3373 = vmatpush1.msra.mxu0 0.0
      %3374 = vmatprep.subr.mxu0 0.0
      %3375 = vmatpush1.msra.mxu0 0.0
      %3376 = vmatprep.subr.mxu0 0.0
      %3377 = vmatpush1.msra.mxu0 0.0
      %3378 = vmatprep.subr.mxu0 0.0
      %3379 = vmatpush1.msra.mxu0 0.0
      %3380 = vmatprep.subr.mxu0 0.0
      %3381 = vmatpush1.msra.mxu0 0.0
      %3382 = vmatprep.subr.mxu0 0.0
      %3383 = vmatpush1.msra.mxu0 0.0
      %3384 = vmatprep.subr.mxu0 0.0
      %3385 = vmatpush1.msra.mxu0 0.0
      %3386 = vmatprep.subr.mxu0 0.0
      %3387 = vmatpush1.msra.mxu0 0.0
      %3388 = vmatprep.subr.mxu0 0.0
      %3389 = vmatpush1.msra.mxu0 0.0
      %3390 = vmatprep.subr.mxu0 0.0
      %3391 = vmatpush1.msra.mxu0 0.0
      %3392 = vmatprep.subr.mxu0 0.0
      %3393 = vmatpush1.msra.mxu0 0.0
      %3394 = vmatprep.subr.mxu0 0.0
      %3395 = vmatpush1.msra.mxu0 0.0
      %3396 = vmatprep.subr.mxu0 0.0
      %3397 = vmatpush1.msra.mxu0 0.0
      %3398 = vmatprep.subr.mxu0 0.0
      %3399 = vmatpush1.msra.mxu0 0.0
      %3400 = vmatprep.subr.mxu0 0.0
      %3401 = vmatpush1.msra.mxu0 0.0
      %3402 = vmatprep.subr.mxu0 0.0
      %3403 = vmatpush1.msra.mxu0 0.0
      %3404 = vmatprep.subr.mxu0 0.0
      %3405 = vmatpush1.msra.mxu0 0.0
      %3406 = vmatprep.subr.mxu0 0.0
      %3407 = vmatpush1.msra.mxu0 0.0
      %3408 = vmatprep.subr.mxu0 0.0
      %3409 = vmatpush1.msra.mxu0 0.0
      %3410 = vmatprep.subr.mxu0 0.0
      %3411 = vmatpush1.msra.mxu0 0.0
      %3412 = vmatprep.subr.mxu0 0.0
      %3413 = vmatpush1.msra.mxu0 0.0
      %3414 = vmatprep.subr.mxu0 0.0
      %3415 = vmatpush1.msra.mxu0 0.0
      %3416 = vmatprep.subr.mxu0 0.0
      %3417 = vmatpush1.msra.mxu0 0.0
      %3418 = vmatprep.mubr.f32.mxu0 0.0
      %3419 = vmatmul.mubr.f32.gmra.mrb[0].mxu0 %v3163
      %v3420 = vpop.f32.mrb[0].mxu0
      %v3421 = vadd.f32 %v3159, %v3420
      %v3422 = vpop.f32.mrb[0].mxu0
      %3423 = vmatprep.mubr.f32.mxu0 0.0
      %3424 = vmatmul.mubr.f32.gmra.mrb[0].mxu0 %v3166
      %v3425 = vpop.f32.mrb[0].mxu0
      %v3426 = vadd.f32 %v3159, %v3425
      %v3427 = vpop.f32.mrb[0].mxu0
      %3428 = vmatprep.mubr.f32.mxu0 0.0
      %3429 = vmatmul.mubr.f32.gmra.mrb[0].mxu0 %v3169
      %v3430 = vpop.f32.mrb[0].mxu0
      %v3431 = vadd.f32 %v3159, %v3430
      %v3432 = vpop.f32.mrb[0].mxu0
      %3433 = vmatprep.mubr.f32.mxu0 0.0
      %3434 = vmatmul.mubr.f32.gmra.mrb[0].mxu0 %v3172
      %v3435 = vpop.f32.mrb[0].mxu0
      %v3436 = vadd.f32 %v3159, %v3435
      %v3437 = vpop.f32.mrb[0].mxu0
      %3438 = vmatprep.mubr.f32.mxu0 0.0
      %3439 = vmatmul.mubr.f32.gmra.mrb[0].mxu0 %v3175
      %v3440 = vpop.f32.mrb[0].mxu0
      %v3441 = vadd.f32 %v3159, %v3440
      %v3442 = vpop.f32.mrb[0].mxu0
      %3443 = vmatprep.mubr.f32.mxu0 0.0
      %3444 = vmatmul.mubr.f32.gmra.mrb[0].mxu0 %v3178
      %v3445 = vpop.f32.mrb[0].mxu0
      %v3446 = vadd.f32 %v3159, %v3445
      %v3447 = vpop.f32.mrb[0].mxu0
      %3448 = vmatprep.mubr.f32.mxu0 0.0
      %3449 = vmatmul.mubr.f32.gmra.mrb[0].mxu0 %v3181
      %v3450 = vpop.f32.mrb[0].mxu0
      %v3451 = vadd.f32 %v3159, %v3450
      %v3452 = vpop.f32.mrb[0].mxu0
      %3453 = vmatprep.mubr.f32.mxu0 0.0
      %3454 = vmatmul.mubr.f32.gmra.mrb[0].mxu0 %v3184
      %v3455 = vpop.f32.mrb[0].mxu0
      %v3456 = vadd.f32 %v3159, %v3455
      %v3457 = vpop.f32.mrb[0].mxu0
      %3458 = vmatprep.mubr.f32.mxu0 0.0
      %3459 = vmatmul.mubr.f32.gmra.mrb[0].mxu0 %v3187
      %v3460 = vpop.f32.mrb[0].mxu0
      %v3461 = vadd.f32 %v3159, %v3460
      %v3462 = vpop.f32.mrb[0].mxu0
      %3463 = vmatprep.mubr.f32.mxu0 0.0
      %3464 = vmatmul.mubr.f32.gmra.mrb[0].mxu0 %v3190
      %v3465 = vpop.f32.mrb[0].mxu0
      %v3466 = vadd.f32 %v3159, %v3465
      %v3467 = vpop.f32.mrb[0].mxu0
      %3468 = vmatprep.mubr.f32.mxu0 0.0
      %3469 = vmatmul.mubr.f32.gmra.mrb[0].mxu0 %v3193
      %v3470 = vpop.f32.mrb[0].mxu0
      %v3471 = vadd.f32 %v3159, %v3470
      %v3472 = vpop.f32.mrb[0].mxu0
      %3473 = vmatprep.mubr.f32.mxu0 0.0
      %3474 = vmatmul.mubr.f32.gmra.mrb[0].mxu0 %v3196
      %v3475 = vpop.f32.mrb[0].mxu0
      %v3476 = vadd.f32 %v3159, %v3475
      %v3477 = vpop.f32.mrb[0].mxu0
      %3478 = vmatprep.mubr.f32.mxu0 0.0
      %3479 = vmatmul.mubr.f32.gmra.mrb[0].mxu0 %v3199
      %v3480 = vpop.f32.mrb[0].mxu0
      %v3481 = vadd.f32 %v3159, %v3480
      %v3482 = vpop.f32.mrb[0].mxu0
      %3483 = vmatprep.mubr.f32.mxu0 0.0
      %3484 = vmatmul.mubr.f32.gmra.mrb[0].mxu0 %v3202
      %v3485 = vpop.f32.mrb[0].mxu0
      %v3486 = vadd.f32 %v3159, %v3485
      %v3487 = vpop.f32.mrb[0].mxu0
      %3488 = vmatprep.mubr.f32.mxu0 0.0
      %3489 = vmatmul.mubr.f32.gmra.mrb[0].mxu0 %v3205
      %v3490 = vpop.f32.mrb[0].mxu0
      %v3491 = vadd.f32 %v3159, %v3490
      %v3492 = vpop.f32.mrb[0].mxu0
      %3493 = vmatprep.mubr.f32.mxu0 0.0
      %3494 = vmatmul.mubr.f32.gmra.mrb[0].mxu0 %v3208
      %v3495 = vpop.f32.mrb[0].mxu0
      %v3496 = vadd.f32 %v3159, %v3495
      %v3497 = vpop.f32.mrb[0].mxu0
      %3498 = vmatprep.mubr.f32.mxu0 0.0
      %3499 = vmatmul.mubr.f32.gmra.mrb[0].mxu0 %v3211
      %v3500 = vpop.f32.mrb[0].mxu0
      %v3501 = vadd.f32 %v3159, %v3500
      %v3502 = vpop.f32.mrb[0].mxu0
      %3503 = vmatprep.mubr.f32.mxu0 0.0
      %3504 = vmatmul.mubr.f32.gmra.mrb[0].mxu0 %v3214
      %v3505 = vpop.f32.mrb[0].mxu0
      %v3506 = vadd.f32 %v3159, %v3505
      %v3507 = vpop.f32.mrb[0].mxu0
      %3508 = vmatprep.mubr.f32.mxu0 0.0
      %3509 = vmatmul.mubr.f32.gmra.mrb[0].mxu0 %v3217
      %v3510 = vpop.f32.mrb[0].mxu0
      %v3511 = vadd.f32 %v3159, %v3510
      %v3512 = vpop.f32.mrb[0].mxu0
      %3513 = vmatprep.mubr.f32.mxu0 0.0
      %3514 = vmatmul.mubr.f32.gmra.mrb[0].mxu0 %v3220
      %v3515 = vpop.f32.mrb[0].mxu0
      %v3516 = vadd.f32 %v3159, %v3515
      %v3517 = vpop.f32.mrb[0].mxu0
      %3518 = vmatprep.mubr.f32.mxu0 0.0
      %3519 = vmatmul.mubr.f32.gmra.mrb[0].mxu0 %v3223
      %v3520 = vpop.f32.mrb[0].mxu0
      %v3521 = vadd.f32 %v3159, %v3520
      %v3522 = vpop.f32.mrb[0].mxu0
      %3523 = vmatprep.mubr.f32.mxu0 0.0
      %3524 = vmatmul.mubr.f32.gmra.mrb[0].mxu0 %v3226
      %v3525 = vpop.f32.mrb[0].mxu0
      %v3526 = vadd.f32 %v3159, %v3525
      %v3527 = vpop.f32.mrb[0].mxu0
      %3528 = vmatprep.mubr.f32.mxu0 0.0
      %3529 = vmatmul.mubr.f32.gmra.mrb[0].mxu0 %v3229
      %v3530 = vpop.f32.mrb[0].mxu0
      %v3531 = vadd.f32 %v3159, %v3530
      %v3532 = vpop.f32.mrb[0].mxu0
      %3533 = vmatprep.mubr.f32.mxu0 0.0
      %3534 = vmatmul.mubr.f32.gmra.mrb[0].mxu0 %v3232
      %v3535 = vpop.f32.mrb[0].mxu0
      %v3536 = vadd.f32 %v3159, %v3535
      %v3537 = vpop.f32.mrb[0].mxu0
      %3538 = vmatprep.mubr.f32.mxu0 0.0
      %3539 = vmatmul.mubr.f32.gmra.mrb[0].mxu0 %v3235
      %v3540 = vpop.f32.mrb[0].mxu0
      %v3541 = vadd.f32 %v3159, %v3540
      %v3542 = vpop.f32.mrb[0].mxu0
      %3543 = vmatprep.mubr.f32.mxu0 0.0
      %3544 = vmatmul.mubr.f32.gmra.mrb[0].mxu0 %v3238
      %v3545 = vpop.f32.mrb[0].mxu0
      %v3546 = vadd.f32 %v3159, %v3545
      %v3547 = vpop.f32.mrb[0].mxu0
      %3548 = vmatprep.mubr.f32.mxu0 0.0
      %3549 = vmatmul.mubr.f32.gmra.mrb[0].mxu0 %v3241
      %v3550 = vpop.f32.mrb[0].mxu0
      %v3551 = vadd.f32 %v3159, %v3550
      %v3552 = vpop.f32.mrb[0].mxu0
      %3553 = vmatprep.mubr.f32.mxu0 0.0
      %3554 = vmatmul.mubr.f32.gmra.mrb[0].mxu0 %v3244
      %v3555 = vpop.f32.mrb[0].mxu0
      %v3556 = vadd.f32 %v3159, %v3555
      %v3557 = vpop.f32.mrb[0].mxu0
      %3558 = vmatprep.mubr.f32.mxu0 0.0
      %3559 = vmatmul.mubr.f32.gmra.mrb[0].mxu0 %v3247
      %v3560 = vpop.f32.mrb[0].mxu0
      %v3561 = vadd.f32 %v3159, %v3560
      %v3562 = vpop.f32.mrb[0].mxu0
      %3563 = vmatprep.mubr.f32.mxu0 0.0
      %3564 = vmatmul.mubr.f32.gmra.mrb[0].mxu0 %v3250
      %v3565 = vpop.f32.mrb[0].mxu0
      %v3566 = vadd.f32 %v3159, %v3565
      %v3567 = vpop.f32.mrb[0].mxu0
      %3568 = vmatprep.mubr.f32.mxu0 0.0
      %3569 = vmatmul.mubr.f32.gmra.mrb[0].mxu0 %v3253
      %v3570 = vpop.f32.mrb[0].mxu0
      %v3571 = vadd.f32 %v3159, %v3570
      %v3572 = vpop.f32.mrb[0].mxu0
      %3573 = vmatprep.mubr.f32.mxu0 0.0
      %3574 = vmatmul.mubr.f32.gmra.mrb[0].mxu0 %v3256
      %v3575 = vpop.f32.mrb[0].mxu0
      %v3576 = vadd.f32 %v3159, %v3575
      %v3577 = vpop.f32.mrb[0].mxu0
      %3578 = vmatprep.mubr.f32.mxu0 0.0
      %3579 = vmatmul.mubr.f32.gmra.mrb[0].mxu0 %v3259
      %v3580 = vpop.f32.mrb[0].mxu0
      %v3581 = vadd.f32 %v3159, %v3580
      %v3582 = vpop.f32.mrb[0].mxu0
      %3583 = vmatprep.mubr.f32.mxu0 0.0
      %3584 = vmatmul.mubr.f32.gmra.mrb[0].mxu0 %v3262
      %v3585 = vpop.f32.mrb[0].mxu0
      %v3586 = vadd.f32 %v3159, %v3585
      %v3587 = vpop.f32.mrb[0].mxu0
      %3588 = vmatprep.mubr.f32.mxu0 0.0
      %3589 = vmatmul.mubr.f32.gmra.mrb[0].mxu0 %v3265
      %v3590 = vpop.f32.mrb[0].mxu0
      %v3591 = vadd.f32 %v3159, %v3590
      %v3592 = vpop.f32.mrb[0].mxu0
      %3593 = vmatprep.mubr.f32.mxu0 0.0
      %3594 = vmatmul.mubr.f32.gmra.mrb[0].mxu0 %v3268
      %v3595 = vpop.f32.mrb[0].mxu0
      %v3596 = vadd.f32 %v3159, %v3595
      %v3597 = vpop.f32.mrb[0].mxu0
      %3598 = vmatprep.mubr.f32.mxu0 0.0
      %3599 = vmatmul.mubr.f32.gmra.mrb[0].mxu0 %v3271
      %v3600 = vpop.f32.mrb[0].mxu0
      %v3601 = vadd.f32 %v3159, %v3600
      %v3602 = vpop.f32.mrb[0].mxu0
      %3603 = vmatprep.mubr.f32.mxu0 0.0
      %3604 = vmatmul.mubr.f32.gmra.mrb[0].mxu0 %v3274
      %v3605 = vpop.f32.mrb[0].mxu0
      %v3606 = vadd.f32 %v3159, %v3605
      %v3607 = vpop.f32.mrb[0].mxu0
      %3608 = vmatprep.mubr.f32.mxu0 0.0
      %3609 = vmatmul.mubr.f32.gmra.mrb[0].mxu0 %v3277
      %v3610 = vpop.f32.mrb[0].mxu0
      %v3611 = vadd.f32 %v3159, %v3610
      %v3612 = vpop.f32.mrb[0].mxu0
      %3613 = vmatprep.mubr.f32.mxu0 0.0
      %3614 = vmatmul.mubr.f32.gmra.mrb[0].mxu0 %v3280
      %v3615 = vpop.f32.mrb[0].mxu0
      %v3616 = vadd.f32 %v3159, %v3615
      %v3617 = vpop.f32.mrb[0].mxu0
      %3618 = vmatprep.mubr.f32.mxu0 0.0
      %3619 = vmatmul.mubr.f32.gmra.mrb[0].mxu0 %v3283
      %v3620 = vpop.f32.mrb[0].mxu0
      %v3621 = vadd.f32 %v3159, %v3620
      %v3622 = vpop.f32.mrb[0].mxu0
      %3623 = vmatprep.mubr.f32.mxu0 0.0
      %3624 = vmatmul.mubr.f32.gmra.mrb[0].mxu0 %v3286
      %v3625 = vpop.f32.mrb[0].mxu0
      %v3626 = vadd.f32 %v3159, %v3625
      %v3627 = vpop.f32.mrb[0].mxu0
      %3628 = vmatprep.mubr.f32.mxu0 0.0
      %3629 = vmatmul.mubr.f32.gmra.mrb[0].mxu0 %v3289
      %v3630 = vpop.f32.mrb[0].mxu0
      %v3631 = vadd.f32 %v3159, %v3630
      %v3632 = vpop.f32.mrb[0].mxu0
      %3633 = vmatprep.mubr.f32.mxu0 0.0
      %3634 = vmatmul.mubr.f32.gmra.mrb[0].mxu0 %v3292
      %v3635 = vpop.f32.mrb[0].mxu0
      %v3636 = vadd.f32 %v3159, %v3635
      %v3637 = vpop.f32.mrb[0].mxu0
      %3638 = vmatprep.mubr.f32.mxu0 0.0
      %3639 = vmatmul.mubr.f32.gmra.mrb[0].mxu0 %v3295
      %v3640 = vpop.f32.mrb[0].mxu0
      %v3641 = vadd.f32 %v3159, %v3640
      %v3642 = vpop.f32.mrb[0].mxu0
      %3643 = vmatprep.mubr.f32.mxu0 0.0
      %3644 = vmatmul.mubr.f32.gmra.mrb[0].mxu0 %v3298
      %v3645 = vpop.f32.mrb[0].mxu0
      %v3646 = vadd.f32 %v3159, %v3645
      %v3647 = vpop.f32.mrb[0].mxu0
      %3648 = vmatprep.mubr.f32.mxu0 0.0
      %3649 = vmatmul.mubr.f32.gmra.mrb[0].mxu0 %v3301
      %v3650 = vpop.f32.mrb[0].mxu0
      %v3651 = vadd.f32 %v3159, %v3650
      %v3652 = vpop.f32.mrb[0].mxu0
      %3653 = vmatprep.mubr.f32.mxu0 0.0
      %3654 = vmatmul.mubr.f32.gmra.mrb[0].mxu0 %v3304
      %v3655 = vpop.f32.mrb[0].mxu0
      %v3656 = vadd.f32 %v3159, %v3655
      %v3657 = vpop.f32.mrb[0].mxu0
      %3658 = vmatprep.mubr.f32.mxu0 0.0
      %3659 = vmatmul.mubr.f32.gmra.mrb[0].mxu0 %v3307
      %v3660 = vpop.f32.mrb[0].mxu0
      %v3661 = vadd.f32 %v3159, %v3660
      %v3662 = vpop.f32.mrb[0].mxu0
      %3663 = vmatprep.mubr.f32.mxu0 0.0
      %3664 = vmatmul.mubr.f32.gmra.mrb[0].mxu0 %v3310
      %v3665 = vpop.f32.mrb[0].mxu0
      %v3666 = vadd.f32 %v3159, %v3665
      %v3667 = vpop.f32.mrb[0].mxu0
      %3668 = vmatprep.mubr.f32.mxu0 0.0
      %3669 = vmatmul.mubr.f32.gmra.mrb[0].mxu0 %v3313
      %v3670 = vpop.f32.mrb[0].mxu0
      %v3671 = vadd.f32 %v3159, %v3670
      %v3672 = vpop.f32.mrb[0].mxu0
      %3673 = vmatprep.mubr.f32.mxu0 0.0
      %3674 = vmatmul.mubr.f32.gmra.mrb[0].mxu0 %v3316
      %v3675 = vpop.f32.mrb[0].mxu0
      %v3676 = vadd.f32 %v3159, %v3675
      %v3677 = vpop.f32.mrb[0].mxu0
      %3678 = vmatprep.mubr.f32.mxu0 0.0
      %3679 = vmatmul.mubr.f32.gmra.mrb[0].mxu0 %v3319
      %v3680 = vpop.f32.mrb[0].mxu0
      %v3681 = vadd.f32 %v3159, %v3680
      %v3682 = vpop.f32.mrb[0].mxu0
      %3683 = vmatprep.mubr.f32.mxu0 0.0
      %3684 = vmatmul.mubr.f32.gmra.mrb[0].mxu0 %v3322
      %v3685 = vpop.f32.mrb[0].mxu0
      %v3686 = vadd.f32 %v3159, %v3685
      %v3687 = vpop.f32.mrb[0].mxu0
      %3688 = vmatprep.mubr.f32.mxu0 0.0
      %3689 = vmatmul.mubr.f32.gmra.mrb[0].mxu0 %v3325
      %v3690 = vpop.f32.mrb[0].mxu0
      %v3691 = vadd.f32 %v3159, %v3690
      %v3692 = vpop.f32.mrb[0].mxu0
      %3693 = vmatprep.mubr.f32.mxu0 0.0
      %3694 = vmatmul.mubr.f32.gmra.mrb[0].mxu0 %v3328
      %v3695 = vpop.f32.mrb[0].mxu0
      %v3696 = vadd.f32 %v3159, %v3695
      %v3697 = vpop.f32.mrb[0].mxu0
      %3698 = vmatprep.mubr.f32.mxu0 0.0
      %3699 = vmatmul.mubr.f32.gmra.mrb[0].mxu0 %v3331
      %v3700 = vpop.f32.mrb[0].mxu0
      %v3701 = vadd.f32 %v3159, %v3700
      %v3702 = vpop.f32.mrb[0].mxu0
      %3703 = vmatprep.mubr.f32.mxu0 0.0
      %3704 = vmatmul.mubr.f32.gmra.mrb[0].mxu0 %v3334
      %v3705 = vpop.f32.mrb[0].mxu0
      %v3706 = vadd.f32 %v3159, %v3705
      %v3707 = vpop.f32.mrb[0].mxu0
      %3708 = vmatprep.mubr.f32.mxu0 0.0
      %3709 = vmatmul.mubr.f32.gmra.mrb[0].mxu0 %v3337
      %v3710 = vpop.f32.mrb[0].mxu0
      %v3711 = vadd.f32 %v3159, %v3710
      %v3712 = vpop.f32.mrb[0].mxu0
      %3713 = vmatprep.mubr.f32.mxu0 0.0
      %3714 = vmatmul.mubr.f32.gmra.mrb[0].mxu0 %v3340
      %v3715 = vpop.f32.mrb[0].mxu0
      %v3716 = vadd.f32 %v3159, %v3715
      %v3717 = vpop.f32.mrb[0].mxu0
      %3718 = vmatprep.mubr.f32.mxu0 0.0
      %3719 = vmatmul.mubr.f32.gmra.mrb[0].mxu0 %v3343
      %v3720 = vpop.f32.mrb[0].mxu0
      %v3721 = vadd.f32 %v3159, %v3720
      %v3722 = vpop.f32.mrb[0].mxu0
      %3723 = vmatprep.mubr.f32.mxu0 0.0
      %3724 = vmatmul.mubr.f32.gmra.mrb[0].mxu0 %v3346
      %v3725 = vpop.f32.mrb[0].mxu0
      %v3726 = vadd.f32 %v3159, %v3725
      %v3727 = vpop.f32.mrb[0].mxu0
      %3728 = vmatprep.mubr.f32.mxu0 0.0
      %3729 = vmatmul.mubr.f32.gmra.mrb[0].mxu0 %v3349
      %v3730 = vpop.f32.mrb[0].mxu0
      %v3731 = vadd.f32 %v3159, %v3730
      %v3732 = vpop.f32.mrb[0].mxu0
      %3733 = vmatprep.mubr.f32.mxu0 0.0
      %3734 = vmatmul.mubr.f32.gmra.mrb[0].mxu0 %v3352
      %v3735 = vpop.f32.mrb[0].mxu0
      %v3736 = vadd.f32 %v3159, %v3735
      %v3737 = vpop.f32.mrb[0].mxu0
      %3738 = vdwg.mxu0
      %v3739 = vmax.f32 %v3421, 0.0
      %v3740 = vmax.f32 %v3426, 0.0
      %v3741 = vmax.f32 %v3431, 0.0
      %v3742 = vmax.f32 %v3436, 0.0
      %v3743 = vmax.f32 %v3441, 0.0
      %v3744 = vmax.f32 %v3446, 0.0
      %v3745 = vmax.f32 %v3451, 0.0
      %v3746 = vmax.f32 %v3456, 0.0
      %v3747 = vmax.f32 %v3461, 0.0
      %v3748 = vmax.f32 %v3466, 0.0
      %v3749 = vmax.f32 %v3471, 0.0
      %v3750 = vmax.f32 %v3476, 0.0
      %v3751 = vmax.f32 %v3481, 0.0
      %v3752 = vmax.f32 %v3486, 0.0
      %v3753 = vmax.f32 %v3491, 0.0
      %v3754 = vmax.f32 %v3496, 0.0
      %v3755 = vmax.f32 %v3501, 0.0
      %v3756 = vmax.f32 %v3506, 0.0
      %v3757 = vmax.f32 %v3511, 0.0
      %v3758 = vmax.f32 %v3516, 0.0
      %v3759 = vmax.f32 %v3521, 0.0
      %v3760 = vmax.f32 %v3526, 0.0
      %v3761 = vmax.f32 %v3531, 0.0
      %v3762 = vmax.f32 %v3536, 0.0
      %v3763 = vmax.f32 %v3541, 0.0
      %v3764 = vmax.f32 %v3546, 0.0
      %v3765 = vmax.f32 %v3551, 0.0
      %v3766 = vmax.f32 %v3556, 0.0
      %v3767 = vmax.f32 %v3561, 0.0
      %v3768 = vmax.f32 %v3566, 0.0
      %v3769 = vmax.f32 %v3571, 0.0
      %v3770 = vmax.f32 %v3576, 0.0
      %v3771 = vmax.f32 %v3581, 0.0
      %v3772 = vmax.f32 %v3586, 0.0
      %v3773 = vmax.f32 %v3591, 0.0
      %v3774 = vmax.f32 %v3596, 0.0
      %v3775 = vmax.f32 %v3601, 0.0
      %v3776 = vmax.f32 %v3606, 0.0
      %v3777 = vmax.f32 %v3611, 0.0
      %v3778 = vmax.f32 %v3616, 0.0
      %v3779 = vmax.f32 %v3621, 0.0
      %v3780 = vmax.f32 %v3626, 0.0
      %v3781 = vmax.f32 %v3631, 0.0
      %v3782 = vmax.f32 %v3636, 0.0
      %v3783 = vmax.f32 %v3641, 0.0
      %v3784 = vmax.f32 %v3646, 0.0
      %v3785 = vmax.f32 %v3651, 0.0
      %v3786 = vmax.f32 %v3656, 0.0
      %v3787 = vmax.f32 %v3661, 0.0
      %v3788 = vmax.f32 %v3666, 0.0
      %v3789 = vmax.f32 %v3671, 0.0
      %v3790 = vmax.f32 %v3676, 0.0
      %v3791 = vmax.f32 %v3681, 0.0
      %v3792 = vmax.f32 %v3686, 0.0
      %v3793 = vmax.f32 %v3691, 0.0
      %v3794 = vmax.f32 %v3696, 0.0
      %v3795 = vmax.f32 %v3701, 0.0
      %v3796 = vmax.f32 %v3706, 0.0
      %v3797 = vmax.f32 %v3711, 0.0
      %v3798 = vmax.f32 %v3716, 0.0
      %v3799 = vmax.f32 %v3721, 0.0
      %v3800 = vmax.f32 %v3726, 0.0
      %v3801 = vmax.f32 %v3731, 0.0
      %v3802 = vmax.f32 %v3736, 0.0
      %v3803 = vld [vmem:[%s7] sm:$0xff]
      %v3804 = vld [vmem:[%s7 + $0x8] sm:$0xff]
      %v3805 = vld [vmem:[%s7 + $0x10] sm:$0xff]
      %v3806 = vld [vmem:[%s7 + $0x18] sm:$0xff]
      %v3807 = vld [vmem:[%s8] sm:$0x1]
      %v3809 = vlaneseq
      %v3810 = vshrl.u32 %v3809, 7
      %v3811 = vsub.s32 0, %v3810
      %v3812 = vrot.slane %v3807, %v3811
      %vm3814 = vcmask 261120
      %v3816 = vsel %vm3814, %v3739, 0
      %v3819 = vsel %vm3814, %v3740, 0
      %v3822 = vsel %vm3814, %v3741, 0
      %v3825 = vsel %vm3814, %v3742, 0
      %v3828 = vsel %vm3814, %v3743, 0
      %v3831 = vsel %vm3814, %v3744, 0
      %v3834 = vsel %vm3814, %v3745, 0
      %v3837 = vsel %vm3814, %v3746, 0
      %v3840 = vsel %vm3814, %v3747, 0
      %v3843 = vsel %vm3814, %v3748, 0
      %v3846 = vsel %vm3814, %v3749, 0
      %v3849 = vsel %vm3814, %v3750, 0
      %v3852 = vsel %vm3814, %v3751, 0
      %v3855 = vsel %vm3814, %v3752, 0
      %v3858 = vsel %vm3814, %v3753, 0
      %v3861 = vsel %vm3814, %v3754, 0
      %v3864 = vsel %vm3814, %v3755, 0
      %v3867 = vsel %vm3814, %v3756, 0
      %v3870 = vsel %vm3814, %v3757, 0
      %v3873 = vsel %vm3814, %v3758, 0
      %v3876 = vsel %vm3814, %v3759, 0
      %v3879 = vsel %vm3814, %v3760, 0
      %v3882 = vsel %vm3814, %v3761, 0
      %v3885 = vsel %vm3814, %v3762, 0
      %v3888 = vsel %vm3814, %v3763, 0
      %v3891 = vsel %vm3814, %v3764, 0
      %v3894 = vsel %vm3814, %v3765, 0
      %v3897 = vsel %vm3814, %v3766, 0
      %v3900 = vsel %vm3814, %v3767, 0
      %v3903 = vsel %vm3814, %v3768, 0
      %v3906 = vsel %vm3814, %v3769, 0
      %v3909 = vsel %vm3814, %v3770, 0
      %v3912 = vsel %vm3814, %v3771, 0
      %v3915 = vsel %vm3814, %v3772, 0
      %v3918 = vsel %vm3814, %v3773, 0
      %v3921 = vsel %vm3814, %v3774, 0
      %v3924 = vsel %vm3814, %v3775, 0
      %v3927 = vsel %vm3814, %v3776, 0
      %v3930 = vsel %vm3814, %v3777, 0
      %v3933 = vsel %vm3814, %v3778, 0
      %v3936 = vsel %vm3814, %v3779, 0
      %v3939 = vsel %vm3814, %v3780, 0
      %v3942 = vsel %vm3814, %v3781, 0
      %v3945 = vsel %vm3814, %v3782, 0
      %v3948 = vsel %vm3814, %v3783, 0
      %v3951 = vsel %vm3814, %v3784, 0
      %v3954 = vsel %vm3814, %v3785, 0
      %v3957 = vsel %vm3814, %v3786, 0
      %v3960 = vsel %vm3814, %v3787, 0
      %v3963 = vsel %vm3814, %v3788, 0
      %v3966 = vsel %vm3814, %v3789, 0
      %v3969 = vsel %vm3814, %v3790, 0
      %v3972 = vsel %vm3814, %v3791, 0
      %v3975 = vsel %vm3814, %v3792, 0
      %v3978 = vsel %vm3814, %v3793, 0
      %v3981 = vsel %vm3814, %v3794, 0
      %v3984 = vsel %vm3814, %v3795, 0
      %v3987 = vsel %vm3814, %v3796, 0
      %v3990 = vsel %vm3814, %v3797, 0
      %v3993 = vsel %vm3814, %v3798, 0
      %v3996 = vsel %vm3814, %v3799, 0
      %v3999 = vsel %vm3814, %v3800, 0
      %v4002 = vsel %vm3814, %v3801, 0
      %v4005 = vsel %vm3814, %v3802, 0
      %4007 = vmatprep.subr.mxu0 0.0
      %4008 = vmatpush1.msra.mxu0 %v3803
      %4009 = vmatprep.subr.mxu0 0.0
      %4010 = vmatpush1.msra.mxu0 %v3804
      %4011 = vmatprep.subr.mxu0 0.0
      %4012 = vmatpush1.msra.mxu0 %v3805
      %4013 = vmatprep.subr.mxu0 0.0
      %4014 = vmatpush1.msra.mxu0 %v3806
      %4015 = vmatprep.subr.mxu0 0.0
      %4016 = vmatpush1.msra.mxu0 0.0
      %4017 = vmatprep.subr.mxu0 0.0
      %4018 = vmatpush1.msra.mxu0 0.0
      %4019 = vmatprep.subr.mxu0 0.0
      %4020 = vmatpush1.msra.mxu0 0.0
      %4021 = vmatprep.subr.mxu0 0.0
      %4022 = vmatpush1.msra.mxu0 0.0
      %4023 = vmatprep.subr.mxu0 0.0
      %4024 = vmatpush1.msra.mxu0 0.0
      %4025 = vmatprep.subr.mxu0 0.0
      %4026 = vmatpush1.msra.mxu0 0.0
      %4027 = vmatprep.subr.mxu0 0.0
      %4028 = vmatpush1.msra.mxu0 0.0
      %4029 = vmatprep.subr.mxu0 0.0
      %4030 = vmatpush1.msra.mxu0 0.0
      %4031 = vmatprep.subr.mxu0 0.0
      %4032 = vmatpush1.msra.mxu0 0.0
      %4033 = vmatprep.subr.mxu0 0.0
      %4034 = vmatpush1.msra.mxu0 0.0
      %4035 = vmatprep.subr.mxu0 0.0
      %4036 = vmatpush1.msra.mxu0 0.0
      %4037 = vmatprep.subr.mxu0 0.0
      %4038 = vmatpush1.msra.mxu0 0.0
      %4039 = vmatprep.subr.mxu0 0.0
      %4040 = vmatpush1.msra.mxu0 0.0
      %4041 = vmatprep.subr.mxu0 0.0
      %4042 = vmatpush1.msra.mxu0 0.0
      %4043 = vmatprep.subr.mxu0 0.0
      %4044 = vmatpush1.msra.mxu0 0.0
      %4045 = vmatprep.subr.mxu0 0.0
      %4046 = vmatpush1.msra.mxu0 0.0
      %4047 = vmatprep.subr.mxu0 0.0
      %4048 = vmatpush1.msra.mxu0 0.0
      %4049 = vmatprep.subr.mxu0 0.0
      %4050 = vmatpush1.msra.mxu0 0.0
      %4051 = vmatprep.subr.mxu0 0.0
      %4052 = vmatpush1.msra.mxu0 0.0
      %4053 = vmatprep.subr.mxu0 0.0
      %4054 = vmatpush1.msra.mxu0 0.0
      %4055 = vmatprep.subr.mxu0 0.0
      %4056 = vmatpush1.msra.mxu0 0.0
      %4057 = vmatprep.subr.mxu0 0.0
      %4058 = vmatpush1.msra.mxu0 0.0
      %4059 = vmatprep.subr.mxu0 0.0
      %4060 = vmatpush1.msra.mxu0 0.0
      %4061 = vmatprep.subr.mxu0 0.0
      %4062 = vmatpush1.msra.mxu0 0.0
      %4063 = vmatprep.subr.mxu0 0.0
      %4064 = vmatpush1.msra.mxu0 0.0
      %4065 = vmatprep.subr.mxu0 0.0
      %4066 = vmatpush1.msra.mxu0 0.0
      %4067 = vmatprep.subr.mxu0 0.0
      %4068 = vmatpush1.msra.mxu0 0.0
      %4069 = vmatprep.subr.mxu0 0.0
      %4070 = vmatpush1.msra.mxu0 0.0
      %4071 = vmatprep.mubr.f32.mxu0 0.0
      %4072 = vmatmul.mubr.f32.gmra.mrb[0].mxu0 %v3816
      %v4073 = vpop.f32.mrb[0].mxu0
      %v4074 = vadd.f32 %v3812, %v4073
      %v4075 = vpop.f32.mrb[0].mxu0
      %4076 = vmatprep.mubr.f32.mxu0 0.0
      %4077 = vmatmul.mubr.f32.gmra.mrb[0].mxu0 %v3819
      %v4078 = vpop.f32.mrb[0].mxu0
      %v4079 = vadd.f32 %v3812, %v4078
      %v4080 = vpop.f32.mrb[0].mxu0
      %4081 = vmatprep.mubr.f32.mxu0 0.0
      %4082 = vmatmul.mubr.f32.gmra.mrb[0].mxu0 %v3822
      %v4083 = vpop.f32.mrb[0].mxu0
      %v4084 = vadd.f32 %v3812, %v4083
      %v4085 = vpop.f32.mrb[0].mxu0
      %4086 = vmatprep.mubr.f32.mxu0 0.0
      %4087 = vmatmul.mubr.f32.gmra.mrb[0].mxu0 %v3825
      %v4088 = vpop.f32.mrb[0].mxu0
      %v4089 = vadd.f32 %v3812, %v4088
      %v4090 = vpop.f32.mrb[0].mxu0
      %4091 = vmatprep.mubr.f32.mxu0 0.0
      %4092 = vmatmul.mubr.f32.gmra.mrb[0].mxu0 %v3828
      %v4093 = vpop.f32.mrb[0].mxu0
      %v4094 = vadd.f32 %v3812, %v4093
      %v4095 = vpop.f32.mrb[0].mxu0
      %4096 = vmatprep.mubr.f32.mxu0 0.0
      %4097 = vmatmul.mubr.f32.gmra.mrb[0].mxu0 %v3831
      %v4098 = vpop.f32.mrb[0].mxu0
      %v4099 = vadd.f32 %v3812, %v4098
      %v4100 = vpop.f32.mrb[0].mxu0
      %4101 = vmatprep.mubr.f32.mxu0 0.0
      %4102 = vmatmul.mubr.f32.gmra.mrb[0].mxu0 %v3834
      %v4103 = vpop.f32.mrb[0].mxu0
      %v4104 = vadd.f32 %v3812, %v4103
      %v4105 = vpop.f32.mrb[0].mxu0
      %4106 = vmatprep.mubr.f32.mxu0 0.0
      %4107 = vmatmul.mubr.f32.gmra.mrb[0].mxu0 %v3837
      %v4108 = vpop.f32.mrb[0].mxu0
      %v4109 = vadd.f32 %v3812, %v4108
      %v4110 = vpop.f32.mrb[0].mxu0
      %4111 = vmatprep.mubr.f32.mxu0 0.0
      %4112 = vmatmul.mubr.f32.gmra.mrb[0].mxu0 %v3840
      %v4113 = vpop.f32.mrb[0].mxu0
      %v4114 = vadd.f32 %v3812, %v4113
      %v4115 = vpop.f32.mrb[0].mxu0
      %4116 = vmatprep.mubr.f32.mxu0 0.0
      %4117 = vmatmul.mubr.f32.gmra.mrb[0].mxu0 %v3843
      %v4118 = vpop.f32.mrb[0].mxu0
      %v4119 = vadd.f32 %v3812, %v4118
      %v4120 = vpop.f32.mrb[0].mxu0
      %4121 = vmatprep.mubr.f32.mxu0 0.0
      %4122 = vmatmul.mubr.f32.gmra.mrb[0].mxu0 %v3846
      %v4123 = vpop.f32.mrb[0].mxu0
      %v4124 = vadd.f32 %v3812, %v4123
      %v4125 = vpop.f32.mrb[0].mxu0
      %4126 = vmatprep.mubr.f32.mxu0 0.0
      %4127 = vmatmul.mubr.f32.gmra.mrb[0].mxu0 %v3849
      %v4128 = vpop.f32.mrb[0].mxu0
      %v4129 = vadd.f32 %v3812, %v4128
      %v4130 = vpop.f32.mrb[0].mxu0
      %4131 = vmatprep.mubr.f32.mxu0 0.0
      %4132 = vmatmul.mubr.f32.gmra.mrb[0].mxu0 %v3852
      %v4133 = vpop.f32.mrb[0].mxu0
      %v4134 = vadd.f32 %v3812, %v4133
      %v4135 = vpop.f32.mrb[0].mxu0
      %4136 = vmatprep.mubr.f32.mxu0 0.0
      %4137 = vmatmul.mubr.f32.gmra.mrb[0].mxu0 %v3855
      %v4138 = vpop.f32.mrb[0].mxu0
      %v4139 = vadd.f32 %v3812, %v4138
      %v4140 = vpop.f32.mrb[0].mxu0
      %4141 = vmatprep.mubr.f32.mxu0 0.0
      %4142 = vmatmul.mubr.f32.gmra.mrb[0].mxu0 %v3858
      %v4143 = vpop.f32.mrb[0].mxu0
      %v4144 = vadd.f32 %v3812, %v4143
      %v4145 = vpop.f32.mrb[0].mxu0
      %4146 = vmatprep.mubr.f32.mxu0 0.0
      %4147 = vmatmul.mubr.f32.gmra.mrb[0].mxu0 %v3861
      %v4148 = vpop.f32.mrb[0].mxu0
      %v4149 = vadd.f32 %v3812, %v4148
      %v4150 = vpop.f32.mrb[0].mxu0
      %4151 = vmatprep.mubr.f32.mxu0 0.0
      %4152 = vmatmul.mubr.f32.gmra.mrb[0].mxu0 %v3864
      %v4153 = vpop.f32.mrb[0].mxu0
      %v4154 = vadd.f32 %v3812, %v4153
      %v4155 = vpop.f32.mrb[0].mxu0
      %4156 = vmatprep.mubr.f32.mxu0 0.0
      %4157 = vmatmul.mubr.f32.gmra.mrb[0].mxu0 %v3867
      %v4158 = vpop.f32.mrb[0].mxu0
      %v4159 = vadd.f32 %v3812, %v4158
      %v4160 = vpop.f32.mrb[0].mxu0
      %4161 = vmatprep.mubr.f32.mxu0 0.0
      %4162 = vmatmul.mubr.f32.gmra.mrb[0].mxu0 %v3870
      %v4163 = vpop.f32.mrb[0].mxu0
      %v4164 = vadd.f32 %v3812, %v4163
      %v4165 = vpop.f32.mrb[0].mxu0
      %4166 = vmatprep.mubr.f32.mxu0 0.0
      %4167 = vmatmul.mubr.f32.gmra.mrb[0].mxu0 %v3873
      %v4168 = vpop.f32.mrb[0].mxu0
      %v4169 = vadd.f32 %v3812, %v4168
      %v4170 = vpop.f32.mrb[0].mxu0
      %4171 = vmatprep.mubr.f32.mxu0 0.0
      %4172 = vmatmul.mubr.f32.gmra.mrb[0].mxu0 %v3876
      %v4173 = vpop.f32.mrb[0].mxu0
      %v4174 = vadd.f32 %v3812, %v4173
      %v4175 = vpop.f32.mrb[0].mxu0
      %4176 = vmatprep.mubr.f32.mxu0 0.0
      %4177 = vmatmul.mubr.f32.gmra.mrb[0].mxu0 %v3879
      %v4178 = vpop.f32.mrb[0].mxu0
      %v4179 = vadd.f32 %v3812, %v4178
      %v4180 = vpop.f32.mrb[0].mxu0
      %4181 = vmatprep.mubr.f32.mxu0 0.0
      %4182 = vmatmul.mubr.f32.gmra.mrb[0].mxu0 %v3882
      %v4183 = vpop.f32.mrb[0].mxu0
      %v4184 = vadd.f32 %v3812, %v4183
      %v4185 = vpop.f32.mrb[0].mxu0
      %4186 = vmatprep.mubr.f32.mxu0 0.0
      %4187 = vmatmul.mubr.f32.gmra.mrb[0].mxu0 %v3885
      %v4188 = vpop.f32.mrb[0].mxu0
      %v4189 = vadd.f32 %v3812, %v4188
      %v4190 = vpop.f32.mrb[0].mxu0
      %4191 = vmatprep.mubr.f32.mxu0 0.0
      %4192 = vmatmul.mubr.f32.gmra.mrb[0].mxu0 %v3888
      %v4193 = vpop.f32.mrb[0].mxu0
      %v4194 = vadd.f32 %v3812, %v4193
      %v4195 = vpop.f32.mrb[0].mxu0
      %4196 = vmatprep.mubr.f32.mxu0 0.0
      %4197 = vmatmul.mubr.f32.gmra.mrb[0].mxu0 %v3891
      %v4198 = vpop.f32.mrb[0].mxu0
      %v4199 = vadd.f32 %v3812, %v4198
      %v4200 = vpop.f32.mrb[0].mxu0
      %4201 = vmatprep.mubr.f32.mxu0 0.0
      %4202 = vmatmul.mubr.f32.gmra.mrb[0].mxu0 %v3894
      %v4203 = vpop.f32.mrb[0].mxu0
      %v4204 = vadd.f32 %v3812, %v4203
      %v4205 = vpop.f32.mrb[0].mxu0
      %4206 = vmatprep.mubr.f32.mxu0 0.0
      %4207 = vmatmul.mubr.f32.gmra.mrb[0].mxu0 %v3897
      %v4208 = vpop.f32.mrb[0].mxu0
      %v4209 = vadd.f32 %v3812, %v4208
      %v4210 = vpop.f32.mrb[0].mxu0
      %4211 = vmatprep.mubr.f32.mxu0 0.0
      %4212 = vmatmul.mubr.f32.gmra.mrb[0].mxu0 %v3900
      %v4213 = vpop.f32.mrb[0].mxu0
      %v4214 = vadd.f32 %v3812, %v4213
      %v4215 = vpop.f32.mrb[0].mxu0
      %4216 = vmatprep.mubr.f32.mxu0 0.0
      %4217 = vmatmul.mubr.f32.gmra.mrb[0].mxu0 %v3903
      %v4218 = vpop.f32.mrb[0].mxu0
      %v4219 = vadd.f32 %v3812, %v4218
      %v4220 = vpop.f32.mrb[0].mxu0
      %4221 = vmatprep.mubr.f32.mxu0 0.0
      %4222 = vmatmul.mubr.f32.gmra.mrb[0].mxu0 %v3906
      %v4223 = vpop.f32.mrb[0].mxu0
      %v4224 = vadd.f32 %v3812, %v4223
      %v4225 = vpop.f32.mrb[0].mxu0
      %4226 = vmatprep.mubr.f32.mxu0 0.0
      %4227 = vmatmul.mubr.f32.gmra.mrb[0].mxu0 %v3909
      %v4228 = vpop.f32.mrb[0].mxu0
      %v4229 = vadd.f32 %v3812, %v4228
      %v4230 = vpop.f32.mrb[0].mxu0
      %4231 = vmatprep.mubr.f32.mxu0 0.0
      %4232 = vmatmul.mubr.f32.gmra.mrb[0].mxu0 %v3912
      %v4233 = vpop.f32.mrb[0].mxu0
      %v4234 = vadd.f32 %v3812, %v4233
      %v4235 = vpop.f32.mrb[0].mxu0
      %4236 = vmatprep.mubr.f32.mxu0 0.0
      %4237 = vmatmul.mubr.f32.gmra.mrb[0].mxu0 %v3915
      %v4238 = vpop.f32.mrb[0].mxu0
      %v4239 = vadd.f32 %v3812, %v4238
      %v4240 = vpop.f32.mrb[0].mxu0
      %4241 = vmatprep.mubr.f32.mxu0 0.0
      %4242 = vmatmul.mubr.f32.gmra.mrb[0].mxu0 %v3918
      %v4243 = vpop.f32.mrb[0].mxu0
      %v4244 = vadd.f32 %v3812, %v4243
      %v4245 = vpop.f32.mrb[0].mxu0
      %4246 = vmatprep.mubr.f32.mxu0 0.0
      %4247 = vmatmul.mubr.f32.gmra.mrb[0].mxu0 %v3921
      %v4248 = vpop.f32.mrb[0].mxu0
      %v4249 = vadd.f32 %v3812, %v4248
      %v4250 = vpop.f32.mrb[0].mxu0
      %4251 = vmatprep.mubr.f32.mxu0 0.0
      %4252 = vmatmul.mubr.f32.gmra.mrb[0].mxu0 %v3924
      %v4253 = vpop.f32.mrb[0].mxu0
      %v4254 = vadd.f32 %v3812, %v4253
      %v4255 = vpop.f32.mrb[0].mxu0
      %4256 = vmatprep.mubr.f32.mxu0 0.0
      %4257 = vmatmul.mubr.f32.gmra.mrb[0].mxu0 %v3927
      %v4258 = vpop.f32.mrb[0].mxu0
      %v4259 = vadd.f32 %v3812, %v4258
      %v4260 = vpop.f32.mrb[0].mxu0
      %4261 = vmatprep.mubr.f32.mxu0 0.0
      %4262 = vmatmul.mubr.f32.gmra.mrb[0].mxu0 %v3930
      %v4263 = vpop.f32.mrb[0].mxu0
      %v4264 = vadd.f32 %v3812, %v4263
      %v4265 = vpop.f32.mrb[0].mxu0
      %4266 = vmatprep.mubr.f32.mxu0 0.0
      %4267 = vmatmul.mubr.f32.gmra.mrb[0].mxu0 %v3933
      %v4268 = vpop.f32.mrb[0].mxu0
      %v4269 = vadd.f32 %v3812, %v4268
      %v4270 = vpop.f32.mrb[0].mxu0
      %4271 = vmatprep.mubr.f32.mxu0 0.0
      %4272 = vmatmul.mubr.f32.gmra.mrb[0].mxu0 %v3936
      %v4273 = vpop.f32.mrb[0].mxu0
      %v4274 = vadd.f32 %v3812, %v4273
      %v4275 = vpop.f32.mrb[0].mxu0
      %4276 = vmatprep.mubr.f32.mxu0 0.0
      %4277 = vmatmul.mubr.f32.gmra.mrb[0].mxu0 %v3939
      %v4278 = vpop.f32.mrb[0].mxu0
      %v4279 = vadd.f32 %v3812, %v4278
      %v4280 = vpop.f32.mrb[0].mxu0
      %4281 = vmatprep.mubr.f32.mxu0 0.0
      %4282 = vmatmul.mubr.f32.gmra.mrb[0].mxu0 %v3942
      %v4283 = vpop.f32.mrb[0].mxu0
      %v4284 = vadd.f32 %v3812, %v4283
      %v4285 = vpop.f32.mrb[0].mxu0
      %4286 = vmatprep.mubr.f32.mxu0 0.0
      %4287 = vmatmul.mubr.f32.gmra.mrb[0].mxu0 %v3945
      %v4288 = vpop.f32.mrb[0].mxu0
      %v4289 = vadd.f32 %v3812, %v4288
      %v4290 = vpop.f32.mrb[0].mxu0
      %4291 = vmatprep.mubr.f32.mxu0 0.0
      %4292 = vmatmul.mubr.f32.gmra.mrb[0].mxu0 %v3948
      %v4293 = vpop.f32.mrb[0].mxu0
      %v4294 = vadd.f32 %v3812, %v4293
      %v4295 = vpop.f32.mrb[0].mxu0
      %4296 = vmatprep.mubr.f32.mxu0 0.0
      %4297 = vmatmul.mubr.f32.gmra.mrb[0].mxu0 %v3951
      %v4298 = vpop.f32.mrb[0].mxu0
      %v4299 = vadd.f32 %v3812, %v4298
      %v4300 = vpop.f32.mrb[0].mxu0
      %4301 = vmatprep.mubr.f32.mxu0 0.0
      %4302 = vmatmul.mubr.f32.gmra.mrb[0].mxu0 %v3954
      %v4303 = vpop.f32.mrb[0].mxu0
      %v4304 = vadd.f32 %v3812, %v4303
      %v4305 = vpop.f32.mrb[0].mxu0
      %4306 = vmatprep.mubr.f32.mxu0 0.0
      %4307 = vmatmul.mubr.f32.gmra.mrb[0].mxu0 %v3957
      %v4308 = vpop.f32.mrb[0].mxu0
      %v4309 = vadd.f32 %v3812, %v4308
      %v4310 = vpop.f32.mrb[0].mxu0
      %4311 = vmatprep.mubr.f32.mxu0 0.0
      %4312 = vmatmul.mubr.f32.gmra.mrb[0].mxu0 %v3960
      %v4313 = vpop.f32.mrb[0].mxu0
      %v4314 = vadd.f32 %v3812, %v4313
      %v4315 = vpop.f32.mrb[0].mxu0
      %4316 = vmatprep.mubr.f32.mxu0 0.0
      %4317 = vmatmul.mubr.f32.gmra.mrb[0].mxu0 %v3963
      %v4318 = vpop.f32.mrb[0].mxu0
      %v4319 = vadd.f32 %v3812, %v4318
      %v4320 = vpop.f32.mrb[0].mxu0
      %4321 = vmatprep.mubr.f32.mxu0 0.0
      %4322 = vmatmul.mubr.f32.gmra.mrb[0].mxu0 %v3966
      %v4323 = vpop.f32.mrb[0].mxu0
      %v4324 = vadd.f32 %v3812, %v4323
      %v4325 = vpop.f32.mrb[0].mxu0
      %4326 = vmatprep.mubr.f32.mxu0 0.0
      %4327 = vmatmul.mubr.f32.gmra.mrb[0].mxu0 %v3969
      %v4328 = vpop.f32.mrb[0].mxu0
      %v4329 = vadd.f32 %v3812, %v4328
      %v4330 = vpop.f32.mrb[0].mxu0
      %4331 = vmatprep.mubr.f32.mxu0 0.0
      %4332 = vmatmul.mubr.f32.gmra.mrb[0].mxu0 %v3972
      %v4333 = vpop.f32.mrb[0].mxu0
      %v4334 = vadd.f32 %v3812, %v4333
      %v4335 = vpop.f32.mrb[0].mxu0
      %4336 = vmatprep.mubr.f32.mxu0 0.0
      %4337 = vmatmul.mubr.f32.gmra.mrb[0].mxu0 %v3975
      %v4338 = vpop.f32.mrb[0].mxu0
      %v4339 = vadd.f32 %v3812, %v4338
      %v4340 = vpop.f32.mrb[0].mxu0
      %4341 = vmatprep.mubr.f32.mxu0 0.0
      %4342 = vmatmul.mubr.f32.gmra.mrb[0].mxu0 %v3978
      %v4343 = vpop.f32.mrb[0].mxu0
      %v4344 = vadd.f32 %v3812, %v4343
      %v4345 = vpop.f32.mrb[0].mxu0
      %4346 = vmatprep.mubr.f32.mxu0 0.0
      %4347 = vmatmul.mubr.f32.gmra.mrb[0].mxu0 %v3981
      %v4348 = vpop.f32.mrb[0].mxu0
      %v4349 = vadd.f32 %v3812, %v4348
      %v4350 = vpop.f32.mrb[0].mxu0
      %4351 = vmatprep.mubr.f32.mxu0 0.0
      %4352 = vmatmul.mubr.f32.gmra.mrb[0].mxu0 %v3984
      %v4353 = vpop.f32.mrb[0].mxu0
      %v4354 = vadd.f32 %v3812, %v4353
      %v4355 = vpop.f32.mrb[0].mxu0
      %4356 = vmatprep.mubr.f32.mxu0 0.0
      %4357 = vmatmul.mubr.f32.gmra.mrb[0].mxu0 %v3987
      %v4358 = vpop.f32.mrb[0].mxu0
      %v4359 = vadd.f32 %v3812, %v4358
      %v4360 = vpop.f32.mrb[0].mxu0
      %4361 = vmatprep.mubr.f32.mxu0 0.0
      %4362 = vmatmul.mubr.f32.gmra.mrb[0].mxu0 %v3990
      %v4363 = vpop.f32.mrb[0].mxu0
      %v4364 = vadd.f32 %v3812, %v4363
      %v4365 = vpop.f32.mrb[0].mxu0
      %4366 = vmatprep.mubr.f32.mxu0 0.0
      %4367 = vmatmul.mubr.f32.gmra.mrb[0].mxu0 %v3993
      %v4368 = vpop.f32.mrb[0].mxu0
      %v4369 = vadd.f32 %v3812, %v4368
      %v4370 = vpop.f32.mrb[0].mxu0
      %4371 = vmatprep.mubr.f32.mxu0 0.0
      %4372 = vmatmul.mubr.f32.gmra.mrb[0].mxu0 %v3996
      %v4373 = vpop.f32.mrb[0].mxu0
      %v4374 = vadd.f32 %v3812, %v4373
      %v4375 = vpop.f32.mrb[0].mxu0
      %4376 = vmatprep.mubr.f32.mxu0 0.0
      %4377 = vmatmul.mubr.f32.gmra.mrb[0].mxu0 %v3999
      %v4378 = vpop.f32.mrb[0].mxu0
      %v4379 = vadd.f32 %v3812, %v4378
      %v4380 = vpop.f32.mrb[0].mxu0
      %4381 = vmatprep.mubr.f32.mxu0 0.0
      %4382 = vmatmul.mubr.f32.gmra.mrb[0].mxu0 %v4002
      %v4383 = vpop.f32.mrb[0].mxu0
      %v4384 = vadd.f32 %v3812, %v4383
      %v4385 = vpop.f32.mrb[0].mxu0
      %4386 = vmatprep.mubr.f32.mxu0 0.0
      %4387 = vmatmul.mubr.f32.gmra.mrb[0].mxu0 %v4005
      %v4388 = vpop.f32.mrb[0].mxu0
      %v4389 = vadd.f32 %v3812, %v4388
      %v4390 = vpop.f32.mrb[0].mxu0
      %4391 = vdwg.mxu0
      %v4392 = vmax.f32 %v4074, 0.0
      %v4393 = vmax.f32 %v4079, 0.0
      %v4394 = vmax.f32 %v4084, 0.0
      %v4395 = vmax.f32 %v4089, 0.0
      %v4396 = vmax.f32 %v4094, 0.0
      %v4397 = vmax.f32 %v4099, 0.0
      %v4398 = vmax.f32 %v4104, 0.0
      %v4399 = vmax.f32 %v4109, 0.0
      %v4400 = vmax.f32 %v4114, 0.0
      %v4401 = vmax.f32 %v4119, 0.0
      %v4402 = vmax.f32 %v4124, 0.0
      %v4403 = vmax.f32 %v4129, 0.0
      %v4404 = vmax.f32 %v4134, 0.0
      %v4405 = vmax.f32 %v4139, 0.0
      %v4406 = vmax.f32 %v4144, 0.0
      %v4407 = vmax.f32 %v4149, 0.0
      %v4408 = vmax.f32 %v4154, 0.0
      %v4409 = vmax.f32 %v4159, 0.0
      %v4410 = vmax.f32 %v4164, 0.0
      %v4411 = vmax.f32 %v4169, 0.0
      %v4412 = vmax.f32 %v4174, 0.0
      %v4413 = vmax.f32 %v4179, 0.0
      %v4414 = vmax.f32 %v4184, 0.0
      %v4415 = vmax.f32 %v4189, 0.0
      %v4416 = vmax.f32 %v4194, 0.0
      %v4417 = vmax.f32 %v4199, 0.0
      %v4418 = vmax.f32 %v4204, 0.0
      %v4419 = vmax.f32 %v4209, 0.0
      %v4420 = vmax.f32 %v4214, 0.0
      %v4421 = vmax.f32 %v4219, 0.0
      %v4422 = vmax.f32 %v4224, 0.0
      %v4423 = vmax.f32 %v4229, 0.0
      %v4424 = vmax.f32 %v4234, 0.0
      %v4425 = vmax.f32 %v4239, 0.0
      %v4426 = vmax.f32 %v4244, 0.0
      %v4427 = vmax.f32 %v4249, 0.0
      %v4428 = vmax.f32 %v4254, 0.0
      %v4429 = vmax.f32 %v4259, 0.0
      %v4430 = vmax.f32 %v4264, 0.0
      %v4431 = vmax.f32 %v4269, 0.0
      %v4432 = vmax.f32 %v4274, 0.0
      %v4433 = vmax.f32 %v4279, 0.0
      %v4434 = vmax.f32 %v4284, 0.0
      %v4435 = vmax.f32 %v4289, 0.0
      %v4436 = vmax.f32 %v4294, 0.0
      %v4437 = vmax.f32 %v4299, 0.0
      %v4438 = vmax.f32 %v4304, 0.0
      %v4439 = vmax.f32 %v4309, 0.0
      %v4440 = vmax.f32 %v4314, 0.0
      %v4441 = vmax.f32 %v4319, 0.0
      %v4442 = vmax.f32 %v4324, 0.0
      %v4443 = vmax.f32 %v4329, 0.0
      %v4444 = vmax.f32 %v4334, 0.0
      %v4445 = vmax.f32 %v4339, 0.0
      %v4446 = vmax.f32 %v4344, 0.0
      %v4447 = vmax.f32 %v4349, 0.0
      %v4448 = vmax.f32 %v4354, 0.0
      %v4449 = vmax.f32 %v4359, 0.0
      %v4450 = vmax.f32 %v4364, 0.0
      %v4451 = vmax.f32 %v4369, 0.0
      %v4452 = vmax.f32 %v4374, 0.0
      %v4453 = vmax.f32 %v4379, 0.0
      %v4454 = vmax.f32 %v4384, 0.0
      %v4455 = vmax.f32 %v4389, 0.0
      %v4456 = vld [vmem:[%s9] sm:$0xff]
      %v4457 = vld [vmem:[%s9 + $0x8] sm:$0xff]
      %v4458 = vld [vmem:[%s9 + $0x10] sm:$0xff]
      %v4459 = vld [vmem:[%s9 + $0x18] sm:$0xff]
      %v4460 = vld [vmem:[%s10] sm:$0x1]
      %v4462 = vlaneseq
      %v4463 = vshrl.u32 %v4462, 7
      %v4464 = vsub.s32 0, %v4463
      %v4465 = vrot.slane %v4460, %v4464
      %v4468 = vsel %vm3814, %v4392, 0
      %v4471 = vsel %vm3814, %v4393, 0
      %v4474 = vsel %vm3814, %v4394, 0
      %v4477 = vsel %vm3814, %v4395, 0
      %v4480 = vsel %vm3814, %v4396, 0
      %v4483 = vsel %vm3814, %v4397, 0
      %v4486 = vsel %vm3814, %v4398, 0
      %v4489 = vsel %vm3814, %v4399, 0
      %v4492 = vsel %vm3814, %v4400, 0
      %v4495 = vsel %vm3814, %v4401, 0
      %v4498 = vsel %vm3814, %v4402, 0
      %v4501 = vsel %vm3814, %v4403, 0
      %v4504 = vsel %vm3814, %v4404, 0
      %v4507 = vsel %vm3814, %v4405, 0
      %v4510 = vsel %vm3814, %v4406, 0
      %v4513 = vsel %vm3814, %v4407, 0
      %v4516 = vsel %vm3814, %v4408, 0
      %v4519 = vsel %vm3814, %v4409, 0
      %v4522 = vsel %vm3814, %v4410, 0
      %v4525 = vsel %vm3814, %v4411, 0
      %v4528 = vsel %vm3814, %v4412, 0
      %v4531 = vsel %vm3814, %v4413, 0
      %v4534 = vsel %vm3814, %v4414, 0
      %v4537 = vsel %vm3814, %v4415, 0
      %v4540 = vsel %vm3814, %v4416, 0
      %v4543 = vsel %vm3814, %v4417, 0
      %v4546 = vsel %vm3814, %v4418, 0
      %v4549 = vsel %vm3814, %v4419, 0
      %v4552 = vsel %vm3814, %v4420, 0
      %v4555 = vsel %vm3814, %v4421, 0
      %v4558 = vsel %vm3814, %v4422, 0
      %v4561 = vsel %vm3814, %v4423, 0
      %v4564 = vsel %vm3814, %v4424, 0
      %v4567 = vsel %vm3814, %v4425, 0
      %v4570 = vsel %vm3814, %v4426, 0
      %v4573 = vsel %vm3814, %v4427, 0
      %v4576 = vsel %vm3814, %v4428, 0
      %v4579 = vsel %vm3814, %v4429, 0
      %v4582 = vsel %vm3814, %v4430, 0
      %v4585 = vsel %vm3814, %v4431, 0
      %v4588 = vsel %vm3814, %v4432, 0
      %v4591 = vsel %vm3814, %v4433, 0
      %v4594 = vsel %vm3814, %v4434, 0
      %v4597 = vsel %vm3814, %v4435, 0
      %v4600 = vsel %vm3814, %v4436, 0
      %v4603 = vsel %vm3814, %v4437, 0
      %v4606 = vsel %vm3814, %v4438, 0
      %v4609 = vsel %vm3814, %v4439, 0
      %v4612 = vsel %vm3814, %v4440, 0
      %v4615 = vsel %vm3814, %v4441, 0
      %v4618 = vsel %vm3814, %v4442, 0
      %v4621 = vsel %vm3814, %v4443, 0
      %v4624 = vsel %vm3814, %v4444, 0
      %v4627 = vsel %vm3814, %v4445, 0
      %v4630 = vsel %vm3814, %v4446, 0
      %v4633 = vsel %vm3814, %v4447, 0
      %v4636 = vsel %vm3814, %v4448, 0
      %v4639 = vsel %vm3814, %v4449, 0
      %v4642 = vsel %vm3814, %v4450, 0
      %v4645 = vsel %vm3814, %v4451, 0
      %v4648 = vsel %vm3814, %v4452, 0
      %v4651 = vsel %vm3814, %v4453, 0
      %v4654 = vsel %vm3814, %v4454, 0
      %v4657 = vsel %vm3814, %v4455, 0
      %4659 = vmatprep.subr.mxu0 0.0
      %4660 = vmatpush1.msra.mxu0 %v4456
      %4661 = vmatprep.subr.mxu0 0.0
      %4662 = vmatpush1.msra.mxu0 %v4457
      %4663 = vmatprep.subr.mxu0 0.0
      %4664 = vmatpush1.msra.mxu0 %v4458
      %4665 = vmatprep.subr.mxu0 0.0
      %4666 = vmatpush1.msra.mxu0 %v4459
      %4667 = vmatprep.subr.mxu0 0.0
      %4668 = vmatpush1.msra.mxu0 0.0
      %4669 = vmatprep.subr.mxu0 0.0
      %4670 = vmatpush1.msra.mxu0 0.0
      %4671 = vmatprep.subr.mxu0 0.0
      %4672 = vmatpush1.msra.mxu0 0.0
      %4673 = vmatprep.subr.mxu0 0.0
      %4674 = vmatpush1.msra.mxu0 0.0
      %4675 = vmatprep.subr.mxu0 0.0
      %4676 = vmatpush1.msra.mxu0 0.0
      %4677 = vmatprep.subr.mxu0 0.0
      %4678 = vmatpush1.msra.mxu0 0.0
      %4679 = vmatprep.subr.mxu0 0.0
      %4680 = vmatpush1.msra.mxu0 0.0
      %4681 = vmatprep.subr.mxu0 0.0
      %4682 = vmatpush1.msra.mxu0 0.0
      %4683 = vmatprep.subr.mxu0 0.0
      %4684 = vmatpush1.msra.mxu0 0.0
      %4685 = vmatprep.subr.mxu0 0.0
      %4686 = vmatpush1.msra.mxu0 0.0
      %4687 = vmatprep.subr.mxu0 0.0
      %4688 = vmatpush1.msra.mxu0 0.0
      %4689 = vmatprep.subr.mxu0 0.0
      %4690 = vmatpush1.msra.mxu0 0.0
      %4691 = vmatprep.subr.mxu0 0.0
      %4692 = vmatpush1.msra.mxu0 0.0
      %4693 = vmatprep.subr.mxu0 0.0
      %4694 = vmatpush1.msra.mxu0 0.0
      %4695 = vmatprep.subr.mxu0 0.0
      %4696 = vmatpush1.msra.mxu0 0.0
      %4697 = vmatprep.subr.mxu0 0.0
      %4698 = vmatpush1.msra.mxu0 0.0
      %4699 = vmatprep.subr.mxu0 0.0
      %4700 = vmatpush1.msra.mxu0 0.0
      %4701 = vmatprep.subr.mxu0 0.0
      %4702 = vmatpush1.msra.mxu0 0.0
      %4703 = vmatprep.subr.mxu0 0.0
      %4704 = vmatpush1.msra.mxu0 0.0
      %4705 = vmatprep.subr.mxu0 0.0
      %4706 = vmatpush1.msra.mxu0 0.0
      %4707 = vmatprep.subr.mxu0 0.0
      %4708 = vmatpush1.msra.mxu0 0.0
      %4709 = vmatprep.subr.mxu0 0.0
      %4710 = vmatpush1.msra.mxu0 0.0
      %4711 = vmatprep.subr.mxu0 0.0
      %4712 = vmatpush1.msra.mxu0 0.0
      %4713 = vmatprep.subr.mxu0 0.0
      %4714 = vmatpush1.msra.mxu0 0.0
      %4715 = vmatprep.subr.mxu0 0.0
      %4716 = vmatpush1.msra.mxu0 0.0
      %4717 = vmatprep.subr.mxu0 0.0
      %4718 = vmatpush1.msra.mxu0 0.0
      %4719 = vmatprep.subr.mxu0 0.0
      %4720 = vmatpush1.msra.mxu0 0.0
      %4721 = vmatprep.subr.mxu0 0.0
      %4722 = vmatpush1.msra.mxu0 0.0
      %4723 = vmatprep.mubr.f32.mxu0 0.0
      %4724 = vmatmul.mubr.f32.gmra.mrb[0].mxu0 %v4468
      %v4725 = vpop.f32.mrb[0].mxu0
      %v4726 = vadd.f32 %v4465, %v4725
      %v4727 = vpop.f32.mrb[0].mxu0
      %4728 = vmatprep.mubr.f32.mxu0 0.0
      %4729 = vmatmul.mubr.f32.gmra.mrb[0].mxu0 %v4471
      %v4730 = vpop.f32.mrb[0].mxu0
      %v4731 = vadd.f32 %v4465, %v4730
      %v4732 = vpop.f32.mrb[0].mxu0
      %4733 = vmatprep.mubr.f32.mxu0 0.0
      %4734 = vmatmul.mubr.f32.gmra.mrb[0].mxu0 %v4474
      %v4735 = vpop.f32.mrb[0].mxu0
      %v4736 = vadd.f32 %v4465, %v4735
      %v4737 = vpop.f32.mrb[0].mxu0
      %4738 = vmatprep.mubr.f32.mxu0 0.0
      %4739 = vmatmul.mubr.f32.gmra.mrb[0].mxu0 %v4477
      %v4740 = vpop.f32.mrb[0].mxu0
      %v4741 = vadd.f32 %v4465, %v4740
      %v4742 = vpop.f32.mrb[0].mxu0
      %4743 = vmatprep.mubr.f32.mxu0 0.0
      %4744 = vmatmul.mubr.f32.gmra.mrb[0].mxu0 %v4480
      %v4745 = vpop.f32.mrb[0].mxu0
      %v4746 = vadd.f32 %v4465, %v4745
      %v4747 = vpop.f32.mrb[0].mxu0
      %4748 = vmatprep.mubr.f32.mxu0 0.0
      %4749 = vmatmul.mubr.f32.gmra.mrb[0].mxu0 %v4483
      %v4750 = vpop.f32.mrb[0].mxu0
      %v4751 = vadd.f32 %v4465, %v4750
      %v4752 = vpop.f32.mrb[0].mxu0
      %4753 = vmatprep.mubr.f32.mxu0 0.0
      %4754 = vmatmul.mubr.f32.gmra.mrb[0].mxu0 %v4486
      %v4755 = vpop.f32.mrb[0].mxu0
      %v4756 = vadd.f32 %v4465, %v4755
      %v4757 = vpop.f32.mrb[0].mxu0
      %4758 = vmatprep.mubr.f32.mxu0 0.0
      %4759 = vmatmul.mubr.f32.gmra.mrb[0].mxu0 %v4489
      %v4760 = vpop.f32.mrb[0].mxu0
      %v4761 = vadd.f32 %v4465, %v4760
      %v4762 = vpop.f32.mrb[0].mxu0
      %4763 = vmatprep.mubr.f32.mxu0 0.0
      %4764 = vmatmul.mubr.f32.gmra.mrb[0].mxu0 %v4492
      %v4765 = vpop.f32.mrb[0].mxu0
      %v4766 = vadd.f32 %v4465, %v4765
      %v4767 = vpop.f32.mrb[0].mxu0
      %4768 = vmatprep.mubr.f32.mxu0 0.0
      %4769 = vmatmul.mubr.f32.gmra.mrb[0].mxu0 %v4495
      %v4770 = vpop.f32.mrb[0].mxu0
      %v4771 = vadd.f32 %v4465, %v4770
      %v4772 = vpop.f32.mrb[0].mxu0
      %4773 = vmatprep.mubr.f32.mxu0 0.0
      %4774 = vmatmul.mubr.f32.gmra.mrb[0].mxu0 %v4498
      %v4775 = vpop.f32.mrb[0].mxu0
      %v4776 = vadd.f32 %v4465, %v4775
      %v4777 = vpop.f32.mrb[0].mxu0
      %4778 = vmatprep.mubr.f32.mxu0 0.0
      %4779 = vmatmul.mubr.f32.gmra.mrb[0].mxu0 %v4501
      %v4780 = vpop.f32.mrb[0].mxu0
      %v4781 = vadd.f32 %v4465, %v4780
      %v4782 = vpop.f32.mrb[0].mxu0
      %4783 = vmatprep.mubr.f32.mxu0 0.0
      %4784 = vmatmul.mubr.f32.gmra.mrb[0].mxu0 %v4504
      %v4785 = vpop.f32.mrb[0].mxu0
      %v4786 = vadd.f32 %v4465, %v4785
      %v4787 = vpop.f32.mrb[0].mxu0
      %4788 = vmatprep.mubr.f32.mxu0 0.0
      %4789 = vmatmul.mubr.f32.gmra.mrb[0].mxu0 %v4507
      %v4790 = vpop.f32.mrb[0].mxu0
      %v4791 = vadd.f32 %v4465, %v4790
      %v4792 = vpop.f32.mrb[0].mxu0
      %4793 = vmatprep.mubr.f32.mxu0 0.0
      %4794 = vmatmul.mubr.f32.gmra.mrb[0].mxu0 %v4510
      %v4795 = vpop.f32.mrb[0].mxu0
      %v4796 = vadd.f32 %v4465, %v4795
      %v4797 = vpop.f32.mrb[0].mxu0
      %4798 = vmatprep.mubr.f32.mxu0 0.0
      %4799 = vmatmul.mubr.f32.gmra.mrb[0].mxu0 %v4513
      %v4800 = vpop.f32.mrb[0].mxu0
      %v4801 = vadd.f32 %v4465, %v4800
      %v4802 = vpop.f32.mrb[0].mxu0
      %4803 = vmatprep.mubr.f32.mxu0 0.0
      %4804 = vmatmul.mubr.f32.gmra.mrb[0].mxu0 %v4516
      %v4805 = vpop.f32.mrb[0].mxu0
      %v4806 = vadd.f32 %v4465, %v4805
      %v4807 = vpop.f32.mrb[0].mxu0
      %4808 = vmatprep.mubr.f32.mxu0 0.0
      %4809 = vmatmul.mubr.f32.gmra.mrb[0].mxu0 %v4519
      %v4810 = vpop.f32.mrb[0].mxu0
      %v4811 = vadd.f32 %v4465, %v4810
      %v4812 = vpop.f32.mrb[0].mxu0
      %4813 = vmatprep.mubr.f32.mxu0 0.0
      %4814 = vmatmul.mubr.f32.gmra.mrb[0].mxu0 %v4522
      %v4815 = vpop.f32.mrb[0].mxu0
      %v4816 = vadd.f32 %v4465, %v4815
      %v4817 = vpop.f32.mrb[0].mxu0
      %4818 = vmatprep.mubr.f32.mxu0 0.0
      %4819 = vmatmul.mubr.f32.gmra.mrb[0].mxu0 %v4525
      %v4820 = vpop.f32.mrb[0].mxu0
      %v4821 = vadd.f32 %v4465, %v4820
      %v4822 = vpop.f32.mrb[0].mxu0
      %4823 = vmatprep.mubr.f32.mxu0 0.0
      %4824 = vmatmul.mubr.f32.gmra.mrb[0].mxu0 %v4528
      %v4825 = vpop.f32.mrb[0].mxu0
      %v4826 = vadd.f32 %v4465, %v4825
      %v4827 = vpop.f32.mrb[0].mxu0
      %4828 = vmatprep.mubr.f32.mxu0 0.0
      %4829 = vmatmul.mubr.f32.gmra.mrb[0].mxu0 %v4531
      %v4830 = vpop.f32.mrb[0].mxu0
      %v4831 = vadd.f32 %v4465, %v4830
      %v4832 = vpop.f32.mrb[0].mxu0
      %4833 = vmatprep.mubr.f32.mxu0 0.0
      %4834 = vmatmul.mubr.f32.gmra.mrb[0].mxu0 %v4534
      %v4835 = vpop.f32.mrb[0].mxu0
      %v4836 = vadd.f32 %v4465, %v4835
      %v4837 = vpop.f32.mrb[0].mxu0
      %4838 = vmatprep.mubr.f32.mxu0 0.0
      %4839 = vmatmul.mubr.f32.gmra.mrb[0].mxu0 %v4537
      %v4840 = vpop.f32.mrb[0].mxu0
      %v4841 = vadd.f32 %v4465, %v4840
      %v4842 = vpop.f32.mrb[0].mxu0
      %4843 = vmatprep.mubr.f32.mxu0 0.0
      %4844 = vmatmul.mubr.f32.gmra.mrb[0].mxu0 %v4540
      %v4845 = vpop.f32.mrb[0].mxu0
      %v4846 = vadd.f32 %v4465, %v4845
      %v4847 = vpop.f32.mrb[0].mxu0
      %4848 = vmatprep.mubr.f32.mxu0 0.0
      %4849 = vmatmul.mubr.f32.gmra.mrb[0].mxu0 %v4543
      %v4850 = vpop.f32.mrb[0].mxu0
      %v4851 = vadd.f32 %v4465, %v4850
      %v4852 = vpop.f32.mrb[0].mxu0
      %4853 = vmatprep.mubr.f32.mxu0 0.0
      %4854 = vmatmul.mubr.f32.gmra.mrb[0].mxu0 %v4546
      %v4855 = vpop.f32.mrb[0].mxu0
      %v4856 = vadd.f32 %v4465, %v4855
      %v4857 = vpop.f32.mrb[0].mxu0
      %4858 = vmatprep.mubr.f32.mxu0 0.0
      %4859 = vmatmul.mubr.f32.gmra.mrb[0].mxu0 %v4549
      %v4860 = vpop.f32.mrb[0].mxu0
      %v4861 = vadd.f32 %v4465, %v4860
      %v4862 = vpop.f32.mrb[0].mxu0
      %4863 = vmatprep.mubr.f32.mxu0 0.0
      %4864 = vmatmul.mubr.f32.gmra.mrb[0].mxu0 %v4552
      %v4865 = vpop.f32.mrb[0].mxu0
      %v4866 = vadd.f32 %v4465, %v4865
      %v4867 = vpop.f32.mrb[0].mxu0
      %4868 = vmatprep.mubr.f32.mxu0 0.0
      %4869 = vmatmul.mubr.f32.gmra.mrb[0].mxu0 %v4555
      %v4870 = vpop.f32.mrb[0].mxu0
      %v4871 = vadd.f32 %v4465, %v4870
      %v4872 = vpop.f32.mrb[0].mxu0
      %4873 = vmatprep.mubr.f32.mxu0 0.0
      %4874 = vmatmul.mubr.f32.gmra.mrb[0].mxu0 %v4558
      %v4875 = vpop.f32.mrb[0].mxu0
      %v4876 = vadd.f32 %v4465, %v4875
      %v4877 = vpop.f32.mrb[0].mxu0
      %4878 = vmatprep.mubr.f32.mxu0 0.0
      %4879 = vmatmul.mubr.f32.gmra.mrb[0].mxu0 %v4561
      %v4880 = vpop.f32.mrb[0].mxu0
      %v4881 = vadd.f32 %v4465, %v4880
      %v4882 = vpop.f32.mrb[0].mxu0
      %4883 = vmatprep.mubr.f32.mxu0 0.0
      %4884 = vmatmul.mubr.f32.gmra.mrb[0].mxu0 %v4564
      %v4885 = vpop.f32.mrb[0].mxu0
      %v4886 = vadd.f32 %v4465, %v4885
      %v4887 = vpop.f32.mrb[0].mxu0
      %4888 = vmatprep.mubr.f32.mxu0 0.0
      %4889 = vmatmul.mubr.f32.gmra.mrb[0].mxu0 %v4567
      %v4890 = vpop.f32.mrb[0].mxu0
      %v4891 = vadd.f32 %v4465, %v4890
      %v4892 = vpop.f32.mrb[0].mxu0
      %4893 = vmatprep.mubr.f32.mxu0 0.0
      %4894 = vmatmul.mubr.f32.gmra.mrb[0].mxu0 %v4570
      %v4895 = vpop.f32.mrb[0].mxu0
      %v4896 = vadd.f32 %v4465, %v4895
      %v4897 = vpop.f32.mrb[0].mxu0
      %4898 = vmatprep.mubr.f32.mxu0 0.0
      %4899 = vmatmul.mubr.f32.gmra.mrb[0].mxu0 %v4573
      %v4900 = vpop.f32.mrb[0].mxu0
      %v4901 = vadd.f32 %v4465, %v4900
      %v4902 = vpop.f32.mrb[0].mxu0
      %4903 = vmatprep.mubr.f32.mxu0 0.0
      %4904 = vmatmul.mubr.f32.gmra.mrb[0].mxu0 %v4576
      %v4905 = vpop.f32.mrb[0].mxu0
      %v4906 = vadd.f32 %v4465, %v4905
      %v4907 = vpop.f32.mrb[0].mxu0
      %4908 = vmatprep.mubr.f32.mxu0 0.0
      %4909 = vmatmul.mubr.f32.gmra.mrb[0].mxu0 %v4579
      %v4910 = vpop.f32.mrb[0].mxu0
      %v4911 = vadd.f32 %v4465, %v4910
      %v4912 = vpop.f32.mrb[0].mxu0
      %4913 = vmatprep.mubr.f32.mxu0 0.0
      %4914 = vmatmul.mubr.f32.gmra.mrb[0].mxu0 %v4582
      %v4915 = vpop.f32.mrb[0].mxu0
      %v4916 = vadd.f32 %v4465, %v4915
      %v4917 = vpop.f32.mrb[0].mxu0
      %4918 = vmatprep.mubr.f32.mxu0 0.0
      %4919 = vmatmul.mubr.f32.gmra.mrb[0].mxu0 %v4585
      %v4920 = vpop.f32.mrb[0].mxu0
      %v4921 = vadd.f32 %v4465, %v4920
      %v4922 = vpop.f32.mrb[0].mxu0
      %4923 = vmatprep.mubr.f32.mxu0 0.0
      %4924 = vmatmul.mubr.f32.gmra.mrb[0].mxu0 %v4588
      %v4925 = vpop.f32.mrb[0].mxu0
      %v4926 = vadd.f32 %v4465, %v4925
      %v4927 = vpop.f32.mrb[0].mxu0
      %4928 = vmatprep.mubr.f32.mxu0 0.0
      %4929 = vmatmul.mubr.f32.gmra.mrb[0].mxu0 %v4591
      %v4930 = vpop.f32.mrb[0].mxu0
      %v4931 = vadd.f32 %v4465, %v4930
      %v4932 = vpop.f32.mrb[0].mxu0
      %4933 = vmatprep.mubr.f32.mxu0 0.0
      %4934 = vmatmul.mubr.f32.gmra.mrb[0].mxu0 %v4594
      %v4935 = vpop.f32.mrb[0].mxu0
      %v4936 = vadd.f32 %v4465, %v4935
      %v4937 = vpop.f32.mrb[0].mxu0
      %4938 = vmatprep.mubr.f32.mxu0 0.0
      %4939 = vmatmul.mubr.f32.gmra.mrb[0].mxu0 %v4597
      %v4940 = vpop.f32.mrb[0].mxu0
      %v4941 = vadd.f32 %v4465, %v4940
      %v4942 = vpop.f32.mrb[0].mxu0
      %4943 = vmatprep.mubr.f32.mxu0 0.0
      %4944 = vmatmul.mubr.f32.gmra.mrb[0].mxu0 %v4600
      %v4945 = vpop.f32.mrb[0].mxu0
      %v4946 = vadd.f32 %v4465, %v4945
      %v4947 = vpop.f32.mrb[0].mxu0
      %4948 = vmatprep.mubr.f32.mxu0 0.0
      %4949 = vmatmul.mubr.f32.gmra.mrb[0].mxu0 %v4603
      %v4950 = vpop.f32.mrb[0].mxu0
      %v4951 = vadd.f32 %v4465, %v4950
      %v4952 = vpop.f32.mrb[0].mxu0
      %4953 = vmatprep.mubr.f32.mxu0 0.0
      %4954 = vmatmul.mubr.f32.gmra.mrb[0].mxu0 %v4606
      %v4955 = vpop.f32.mrb[0].mxu0
      %v4956 = vadd.f32 %v4465, %v4955
      %v4957 = vpop.f32.mrb[0].mxu0
      %4958 = vmatprep.mubr.f32.mxu0 0.0
      %4959 = vmatmul.mubr.f32.gmra.mrb[0].mxu0 %v4609
      %v4960 = vpop.f32.mrb[0].mxu0
      %v4961 = vadd.f32 %v4465, %v4960
      %v4962 = vpop.f32.mrb[0].mxu0
      %4963 = vmatprep.mubr.f32.mxu0 0.0
      %4964 = vmatmul.mubr.f32.gmra.mrb[0].mxu0 %v4612
      %v4965 = vpop.f32.mrb[0].mxu0
      %v4966 = vadd.f32 %v4465, %v4965
      %v4967 = vpop.f32.mrb[0].mxu0
      %4968 = vmatprep.mubr.f32.mxu0 0.0
      %4969 = vmatmul.mubr.f32.gmra.mrb[0].mxu0 %v4615
      %v4970 = vpop.f32.mrb[0].mxu0
      %v4971 = vadd.f32 %v4465, %v4970
      %v4972 = vpop.f32.mrb[0].mxu0
      %4973 = vmatprep.mubr.f32.mxu0 0.0
      %4974 = vmatmul.mubr.f32.gmra.mrb[0].mxu0 %v4618
      %v4975 = vpop.f32.mrb[0].mxu0
      %v4976 = vadd.f32 %v4465, %v4975
      %v4977 = vpop.f32.mrb[0].mxu0
      %4978 = vmatprep.mubr.f32.mxu0 0.0
      %4979 = vmatmul.mubr.f32.gmra.mrb[0].mxu0 %v4621
      %v4980 = vpop.f32.mrb[0].mxu0
      %v4981 = vadd.f32 %v4465, %v4980
      %v4982 = vpop.f32.mrb[0].mxu0
      %4983 = vmatprep.mubr.f32.mxu0 0.0
      %4984 = vmatmul.mubr.f32.gmra.mrb[0].mxu0 %v4624
      %v4985 = vpop.f32.mrb[0].mxu0
      %v4986 = vadd.f32 %v4465, %v4985
      %v4987 = vpop.f32.mrb[0].mxu0
      %4988 = vmatprep.mubr.f32.mxu0 0.0
      %4989 = vmatmul.mubr.f32.gmra.mrb[0].mxu0 %v4627
      %v4990 = vpop.f32.mrb[0].mxu0
      %v4991 = vadd.f32 %v4465, %v4990
      %v4992 = vpop.f32.mrb[0].mxu0
      %4993 = vmatprep.mubr.f32.mxu0 0.0
      %4994 = vmatmul.mubr.f32.gmra.mrb[0].mxu0 %v4630
      %v4995 = vpop.f32.mrb[0].mxu0
      %v4996 = vadd.f32 %v4465, %v4995
      %v4997 = vpop.f32.mrb[0].mxu0
      %4998 = vmatprep.mubr.f32.mxu0 0.0
      %4999 = vmatmul.mubr.f32.gmra.mrb[0].mxu0 %v4633
      %v5000 = vpop.f32.mrb[0].mxu0
      %v5001 = vadd.f32 %v4465, %v5000
      %v5002 = vpop.f32.mrb[0].mxu0
      %5003 = vmatprep.mubr.f32.mxu0 0.0
      %5004 = vmatmul.mubr.f32.gmra.mrb[0].mxu0 %v4636
      %v5005 = vpop.f32.mrb[0].mxu0
      %v5006 = vadd.f32 %v4465, %v5005
      %v5007 = vpop.f32.mrb[0].mxu0
      %5008 = vmatprep.mubr.f32.mxu0 0.0
      %5009 = vmatmul.mubr.f32.gmra.mrb[0].mxu0 %v4639
      %v5010 = vpop.f32.mrb[0].mxu0
      %v5011 = vadd.f32 %v4465, %v5010
      %v5012 = vpop.f32.mrb[0].mxu0
      %5013 = vmatprep.mubr.f32.mxu0 0.0
      %5014 = vmatmul.mubr.f32.gmra.mrb[0].mxu0 %v4642
      %v5015 = vpop.f32.mrb[0].mxu0
      %v5016 = vadd.f32 %v4465, %v5015
      %v5017 = vpop.f32.mrb[0].mxu0
      %5018 = vmatprep.mubr.f32.mxu0 0.0
      %5019 = vmatmul.mubr.f32.gmra.mrb[0].mxu0 %v4645
      %v5020 = vpop.f32.mrb[0].mxu0
      %v5021 = vadd.f32 %v4465, %v5020
      %v5022 = vpop.f32.mrb[0].mxu0
      %5023 = vmatprep.mubr.f32.mxu0 0.0
      %5024 = vmatmul.mubr.f32.gmra.mrb[0].mxu0 %v4648
      %v5025 = vpop.f32.mrb[0].mxu0
      %v5026 = vadd.f32 %v4465, %v5025
      %v5027 = vpop.f32.mrb[0].mxu0
      %5028 = vmatprep.mubr.f32.mxu0 0.0
      %5029 = vmatmul.mubr.f32.gmra.mrb[0].mxu0 %v4651
      %v5030 = vpop.f32.mrb[0].mxu0
      %v5031 = vadd.f32 %v4465, %v5030
      %v5032 = vpop.f32.mrb[0].mxu0
      %5033 = vmatprep.mubr.f32.mxu0 0.0
      %5034 = vmatmul.mubr.f32.gmra.mrb[0].mxu0 %v4654
      %v5035 = vpop.f32.mrb[0].mxu0
      %v5036 = vadd.f32 %v4465, %v5035
      %v5037 = vpop.f32.mrb[0].mxu0
      %5038 = vmatprep.mubr.f32.mxu0 0.0
      %5039 = vmatmul.mubr.f32.gmra.mrb[0].mxu0 %v4657
      %v5040 = vpop.f32.mrb[0].mxu0
      %v5041 = vadd.f32 %v4465, %v5040
      %v5042 = vpop.f32.mrb[0].mxu0
      %5043 = vdwg.mxu0
      %v5044 = vmax.f32 %v4726, 0.0
      %v5045 = vmax.f32 %v4731, 0.0
      %v5046 = vmax.f32 %v4736, 0.0
      %v5047 = vmax.f32 %v4741, 0.0
      %v5048 = vmax.f32 %v4746, 0.0
      %v5049 = vmax.f32 %v4751, 0.0
      %v5050 = vmax.f32 %v4756, 0.0
      %v5051 = vmax.f32 %v4761, 0.0
      %v5052 = vmax.f32 %v4766, 0.0
      %v5053 = vmax.f32 %v4771, 0.0
      %v5054 = vmax.f32 %v4776, 0.0
      %v5055 = vmax.f32 %v4781, 0.0
      %v5056 = vmax.f32 %v4786, 0.0
      %v5057 = vmax.f32 %v4791, 0.0
      %v5058 = vmax.f32 %v4796, 0.0
      %v5059 = vmax.f32 %v4801, 0.0
      %v5060 = vmax.f32 %v4806, 0.0
      %v5061 = vmax.f32 %v4811, 0.0
      %v5062 = vmax.f32 %v4816, 0.0
      %v5063 = vmax.f32 %v4821, 0.0
      %v5064 = vmax.f32 %v4826, 0.0
      %v5065 = vmax.f32 %v4831, 0.0
      %v5066 = vmax.f32 %v4836, 0.0
      %v5067 = vmax.f32 %v4841, 0.0
      %v5068 = vmax.f32 %v4846, 0.0
      %v5069 = vmax.f32 %v4851, 0.0
      %v5070 = vmax.f32 %v4856, 0.0
      %v5071 = vmax.f32 %v4861, 0.0
      %v5072 = vmax.f32 %v4866, 0.0
      %v5073 = vmax.f32 %v4871, 0.0
      %v5074 = vmax.f32 %v4876, 0.0
      %v5075 = vmax.f32 %v4881, 0.0
      %v5076 = vmax.f32 %v4886, 0.0
      %v5077 = vmax.f32 %v4891, 0.0
      %v5078 = vmax.f32 %v4896, 0.0
      %v5079 = vmax.f32 %v4901, 0.0
      %v5080 = vmax.f32 %v4906, 0.0
      %v5081 = vmax.f32 %v4911, 0.0
      %v5082 = vmax.f32 %v4916, 0.0
      %v5083 = vmax.f32 %v4921, 0.0
      %v5084 = vmax.f32 %v4926, 0.0
      %v5085 = vmax.f32 %v4931, 0.0
      %v5086 = vmax.f32 %v4936, 0.0
      %v5087 = vmax.f32 %v4941, 0.0
      %v5088 = vmax.f32 %v4946, 0.0
      %v5089 = vmax.f32 %v4951, 0.0
      %v5090 = vmax.f32 %v4956, 0.0
      %v5091 = vmax.f32 %v4961, 0.0
      %v5092 = vmax.f32 %v4966, 0.0
      %v5093 = vmax.f32 %v4971, 0.0
      %v5094 = vmax.f32 %v4976, 0.0
      %v5095 = vmax.f32 %v4981, 0.0
      %v5096 = vmax.f32 %v4986, 0.0
      %v5097 = vmax.f32 %v4991, 0.0
      %v5098 = vmax.f32 %v4996, 0.0
      %v5099 = vmax.f32 %v5001, 0.0
      %v5100 = vmax.f32 %v5006, 0.0
      %v5101 = vmax.f32 %v5011, 0.0
      %v5102 = vmax.f32 %v5016, 0.0
      %v5103 = vmax.f32 %v5021, 0.0
      %v5104 = vmax.f32 %v5026, 0.0
      %v5105 = vmax.f32 %v5031, 0.0
      %v5106 = vmax.f32 %v5036, 0.0
      %v5107 = vmax.f32 %v5041, 0.0
      %v5108 = vld [vmem:[%s11] sm:$0xff]
      %v5109 = vld [vmem:[%s11 + $0x8] sm:$0xff]
      %v5110 = vld [vmem:[%s11 + $0x10] sm:$0xff]
      %v5111 = vld [vmem:[%s11 + $0x18] sm:$0xff]
      %v5112 = vld [vmem:[%s11 + $0x20] sm:$0xff]
      %v5113 = vld [vmem:[%s11 + $0x28] sm:$0xff]
      %v5114 = vld [vmem:[%s11 + $0x30] sm:$0xff]
      %v5115 = vld [vmem:[%s11 + $0x38] sm:$0xff]
      %v5116 = vld [vmem:[%s12] sm:$0x1]
      %v5118 = vlaneseq
      %v5119 = vshrl.u32 %v5118, 7
      %v5120 = vsub.s32 0, %v5119
      %v5121 = vrot.slane %v5116, %v5120
      %v5124 = vsel %vm3161, %v5044, 0
      %v5127 = vsel %vm3161, %v5045, 0
      %v5130 = vsel %vm3161, %v5046, 0
      %v5133 = vsel %vm3161, %v5047, 0
      %v5136 = vsel %vm3161, %v5048, 0
      %v5139 = vsel %vm3161, %v5049, 0
      %v5142 = vsel %vm3161, %v5050, 0
      %v5145 = vsel %vm3161, %v5051, 0
      %v5148 = vsel %vm3161, %v5052, 0
      %v5151 = vsel %vm3161, %v5053, 0
      %v5154 = vsel %vm3161, %v5054, 0
      %v5157 = vsel %vm3161, %v5055, 0
      %v5160 = vsel %vm3161, %v5056, 0
      %v5163 = vsel %vm3161, %v5057, 0
      %v5166 = vsel %vm3161, %v5058, 0
      %v5169 = vsel %vm3161, %v5059, 0
      %v5172 = vsel %vm3161, %v5060, 0
      %v5175 = vsel %vm3161, %v5061, 0
      %v5178 = vsel %vm3161, %v5062, 0
      %v5181 = vsel %vm3161, %v5063, 0
      %v5184 = vsel %vm3161, %v5064, 0
      %v5187 = vsel %vm3161, %v5065, 0
      %v5190 = vsel %vm3161, %v5066, 0
      %v5193 = vsel %vm3161, %v5067, 0
      %v5196 = vsel %vm3161, %v5068, 0
      %v5199 = vsel %vm3161, %v5069, 0
      %v5202 = vsel %vm3161, %v5070, 0
      %v5205 = vsel %vm3161, %v5071, 0
      %v5208 = vsel %vm3161, %v5072, 0
      %v5211 = vsel %vm3161, %v5073, 0
      %v5214 = vsel %vm3161, %v5074, 0
      %v5217 = vsel %vm3161, %v5075, 0
      %v5220 = vsel %vm3161, %v5076, 0
      %v5223 = vsel %vm3161, %v5077, 0
      %v5226 = vsel %vm3161, %v5078, 0
      %v5229 = vsel %vm3161, %v5079, 0
      %v5232 = vsel %vm3161, %v5080, 0
      %v5235 = vsel %vm3161, %v5081, 0
      %v5238 = vsel %vm3161, %v5082, 0
      %v5241 = vsel %vm3161, %v5083, 0
      %v5244 = vsel %vm3161, %v5084, 0
      %v5247 = vsel %vm3161, %v5085, 0
      %v5250 = vsel %vm3161, %v5086, 0
      %v5253 = vsel %vm3161, %v5087, 0
      %v5256 = vsel %vm3161, %v5088, 0
      %v5259 = vsel %vm3161, %v5089, 0
      %v5262 = vsel %vm3161, %v5090, 0
      %v5265 = vsel %vm3161, %v5091, 0
      %v5268 = vsel %vm3161, %v5092, 0
      %v5271 = vsel %vm3161, %v5093, 0
      %v5274 = vsel %vm3161, %v5094, 0
      %v5277 = vsel %vm3161, %v5095, 0
      %v5280 = vsel %vm3161, %v5096, 0
      %v5283 = vsel %vm3161, %v5097, 0
      %v5286 = vsel %vm3161, %v5098, 0
      %v5289 = vsel %vm3161, %v5099, 0
      %v5292 = vsel %vm3161, %v5100, 0
      %v5295 = vsel %vm3161, %v5101, 0
      %v5298 = vsel %vm3161, %v5102, 0
      %v5301 = vsel %vm3161, %v5103, 0
      %v5304 = vsel %vm3161, %v5104, 0
      %v5307 = vsel %vm3161, %v5105, 0
      %v5310 = vsel %vm3161, %v5106, 0
      %v5313 = vsel %vm3161, %v5107, 0
      %5315 = vmatprep.subr.mxu0 0.0
      %5316 = vmatpush1.msra.mxu0 %v5108
      %5317 = vmatprep.subr.mxu0 0.0
      %5318 = vmatpush1.msra.mxu0 %v5109
      %5319 = vmatprep.subr.mxu0 0.0
      %5320 = vmatpush1.msra.mxu0 %v5110
      %5321 = vmatprep.subr.mxu0 0.0
      %5322 = vmatpush1.msra.mxu0 %v5111
      %5323 = vmatprep.subr.mxu0 0.0
      %5324 = vmatpush1.msra.mxu0 %v5112
      %5325 = vmatprep.subr.mxu0 0.0
      %5326 = vmatpush1.msra.mxu0 %v5113
      %5327 = vmatprep.subr.mxu0 0.0
      %5328 = vmatpush1.msra.mxu0 %v5114
      %5329 = vmatprep.subr.mxu0 0.0
      %5330 = vmatpush1.msra.mxu0 %v5115
      %5331 = vmatprep.subr.mxu0 0.0
      %5332 = vmatpush1.msra.mxu0 0.0
      %5333 = vmatprep.subr.mxu0 0.0
      %5334 = vmatpush1.msra.mxu0 0.0
      %5335 = vmatprep.subr.mxu0 0.0
      %5336 = vmatpush1.msra.mxu0 0.0
      %5337 = vmatprep.subr.mxu0 0.0
      %5338 = vmatpush1.msra.mxu0 0.0
      %5339 = vmatprep.subr.mxu0 0.0
      %5340 = vmatpush1.msra.mxu0 0.0
      %5341 = vmatprep.subr.mxu0 0.0
      %5342 = vmatpush1.msra.mxu0 0.0
      %5343 = vmatprep.subr.mxu0 0.0
      %5344 = vmatpush1.msra.mxu0 0.0
      %5345 = vmatprep.subr.mxu0 0.0
      %5346 = vmatpush1.msra.mxu0 0.0
      %5347 = vmatprep.subr.mxu0 0.0
      %5348 = vmatpush1.msra.mxu0 0.0
      %5349 = vmatprep.subr.mxu0 0.0
      %5350 = vmatpush1.msra.mxu0 0.0
      %5351 = vmatprep.subr.mxu0 0.0
      %5352 = vmatpush1.msra.mxu0 0.0
      %5353 = vmatprep.subr.mxu0 0.0
      %5354 = vmatpush1.msra.mxu0 0.0
      %5355 = vmatprep.subr.mxu0 0.0
      %5356 = vmatpush1.msra.mxu0 0.0
      %5357 = vmatprep.subr.mxu0 0.0
      %5358 = vmatpush1.msra.mxu0 0.0
      %5359 = vmatprep.subr.mxu0 0.0
      %5360 = vmatpush1.msra.mxu0 0.0
      %5361 = vmatprep.subr.mxu0 0.0
      %5362 = vmatpush1.msra.mxu0 0.0
      %5363 = vmatprep.subr.mxu0 0.0
      %5364 = vmatpush1.msra.mxu0 0.0
      %5365 = vmatprep.subr.mxu0 0.0
      %5366 = vmatpush1.msra.mxu0 0.0
      %5367 = vmatprep.subr.mxu0 0.0
      %5368 = vmatpush1.msra.mxu0 0.0
      %5369 = vmatprep.subr.mxu0 0.0
      %5370 = vmatpush1.msra.mxu0 0.0
      %5371 = vmatprep.subr.mxu0 0.0
      %5372 = vmatpush1.msra.mxu0 0.0
      %5373 = vmatprep.subr.mxu0 0.0
      %5374 = vmatpush1.msra.mxu0 0.0
      %5375 = vmatprep.subr.mxu0 0.0
      %5376 = vmatpush1.msra.mxu0 0.0
      %5377 = vmatprep.subr.mxu0 0.0
      %5378 = vmatpush1.msra.mxu0 0.0
      %5379 = vmatprep.mubr.f32.mxu0 0.0
      %5380 = vmatmul.mubr.f32.gmra.mrb[0].mxu0 %v5124
      %v5381 = vpop.f32.mrb[0].mxu0
      %v5382 = vadd.f32 %v5121, %v5381
      %v5383 = vpop.f32.mrb[0].mxu0
      %5384 = vmatprep.mubr.f32.mxu0 0.0
      %5385 = vmatmul.mubr.f32.gmra.mrb[0].mxu0 %v5127
      %v5386 = vpop.f32.mrb[0].mxu0
      %v5387 = vadd.f32 %v5121, %v5386
      %v5388 = vpop.f32.mrb[0].mxu0
      %5389 = vmatprep.mubr.f32.mxu0 0.0
      %5390 = vmatmul.mubr.f32.gmra.mrb[0].mxu0 %v5130
      %v5391 = vpop.f32.mrb[0].mxu0
      %v5392 = vadd.f32 %v5121, %v5391
      %v5393 = vpop.f32.mrb[0].mxu0
      %5394 = vmatprep.mubr.f32.mxu0 0.0
      %5395 = vmatmul.mubr.f32.gmra.mrb[0].mxu0 %v5133
      %v5396 = vpop.f32.mrb[0].mxu0
      %v5397 = vadd.f32 %v5121, %v5396
      %v5398 = vpop.f32.mrb[0].mxu0
      %5399 = vmatprep.mubr.f32.mxu0 0.0
      %5400 = vmatmul.mubr.f32.gmra.mrb[0].mxu0 %v5136
      %v5401 = vpop.f32.mrb[0].mxu0
      %v5402 = vadd.f32 %v5121, %v5401
      %v5403 = vpop.f32.mrb[0].mxu0
      %5404 = vmatprep.mubr.f32.mxu0 0.0
      %5405 = vmatmul.mubr.f32.gmra.mrb[0].mxu0 %v5139
      %v5406 = vpop.f32.mrb[0].mxu0
      %v5407 = vadd.f32 %v5121, %v5406
      %v5408 = vpop.f32.mrb[0].mxu0
      %5409 = vmatprep.mubr.f32.mxu0 0.0
      %5410 = vmatmul.mubr.f32.gmra.mrb[0].mxu0 %v5142
      %v5411 = vpop.f32.mrb[0].mxu0
      %v5412 = vadd.f32 %v5121, %v5411
      %v5413 = vpop.f32.mrb[0].mxu0
      %5414 = vmatprep.mubr.f32.mxu0 0.0
      %5415 = vmatmul.mubr.f32.gmra.mrb[0].mxu0 %v5145
      %v5416 = vpop.f32.mrb[0].mxu0
      %v5417 = vadd.f32 %v5121, %v5416
      %v5418 = vpop.f32.mrb[0].mxu0
      %5419 = vmatprep.mubr.f32.mxu0 0.0
      %5420 = vmatmul.mubr.f32.gmra.mrb[0].mxu0 %v5148
      %v5421 = vpop.f32.mrb[0].mxu0
      %v5422 = vadd.f32 %v5121, %v5421
      %v5423 = vpop.f32.mrb[0].mxu0
      %5424 = vmatprep.mubr.f32.mxu0 0.0
      %5425 = vmatmul.mubr.f32.gmra.mrb[0].mxu0 %v5151
      %v5426 = vpop.f32.mrb[0].mxu0
      %v5427 = vadd.f32 %v5121, %v5426
      %v5428 = vpop.f32.mrb[0].mxu0
      %5429 = vmatprep.mubr.f32.mxu0 0.0
      %5430 = vmatmul.mubr.f32.gmra.mrb[0].mxu0 %v5154
      %v5431 = vpop.f32.mrb[0].mxu0
      %v5432 = vadd.f32 %v5121, %v5431
      %v5433 = vpop.f32.mrb[0].mxu0
      %5434 = vmatprep.mubr.f32.mxu0 0.0
      %5435 = vmatmul.mubr.f32.gmra.mrb[0].mxu0 %v5157
      %v5436 = vpop.f32.mrb[0].mxu0
      %v5437 = vadd.f32 %v5121, %v5436
      %v5438 = vpop.f32.mrb[0].mxu0
      %5439 = vmatprep.mubr.f32.mxu0 0.0
      %5440 = vmatmul.mubr.f32.gmra.mrb[0].mxu0 %v5160
      %v5441 = vpop.f32.mrb[0].mxu0
      %v5442 = vadd.f32 %v5121, %v5441
      %v5443 = vpop.f32.mrb[0].mxu0
      %5444 = vmatprep.mubr.f32.mxu0 0.0
      %5445 = vmatmul.mubr.f32.gmra.mrb[0].mxu0 %v5163
      %v5446 = vpop.f32.mrb[0].mxu0
      %v5447 = vadd.f32 %v5121, %v5446
      %v5448 = vpop.f32.mrb[0].mxu0
      %5449 = vmatprep.mubr.f32.mxu0 0.0
      %5450 = vmatmul.mubr.f32.gmra.mrb[0].mxu0 %v5166
      %v5451 = vpop.f32.mrb[0].mxu0
      %v5452 = vadd.f32 %v5121, %v5451
      %v5453 = vpop.f32.mrb[0].mxu0
      %5454 = vmatprep.mubr.f32.mxu0 0.0
      %5455 = vmatmul.mubr.f32.gmra.mrb[0].mxu0 %v5169
      %v5456 = vpop.f32.mrb[0].mxu0
      %v5457 = vadd.f32 %v5121, %v5456
      %v5458 = vpop.f32.mrb[0].mxu0
      %5459 = vmatprep.mubr.f32.mxu0 0.0
      %5460 = vmatmul.mubr.f32.gmra.mrb[0].mxu0 %v5172
      %v5461 = vpop.f32.mrb[0].mxu0
      %v5462 = vadd.f32 %v5121, %v5461
      %v5463 = vpop.f32.mrb[0].mxu0
      %5464 = vmatprep.mubr.f32.mxu0 0.0
      %5465 = vmatmul.mubr.f32.gmra.mrb[0].mxu0 %v5175
      %v5466 = vpop.f32.mrb[0].mxu0
      %v5467 = vadd.f32 %v5121, %v5466
      %v5468 = vpop.f32.mrb[0].mxu0
      %5469 = vmatprep.mubr.f32.mxu0 0.0
      %5470 = vmatmul.mubr.f32.gmra.mrb[0].mxu0 %v5178
      %v5471 = vpop.f32.mrb[0].mxu0
      %v5472 = vadd.f32 %v5121, %v5471
      %v5473 = vpop.f32.mrb[0].mxu0
      %5474 = vmatprep.mubr.f32.mxu0 0.0
      %5475 = vmatmul.mubr.f32.gmra.mrb[0].mxu0 %v5181
      %v5476 = vpop.f32.mrb[0].mxu0
      %v5477 = vadd.f32 %v5121, %v5476
      %v5478 = vpop.f32.mrb[0].mxu0
      %5479 = vmatprep.mubr.f32.mxu0 0.0
      %5480 = vmatmul.mubr.f32.gmra.mrb[0].mxu0 %v5184
      %v5481 = vpop.f32.mrb[0].mxu0
      %v5482 = vadd.f32 %v5121, %v5481
      %v5483 = vpop.f32.mrb[0].mxu0
      %5484 = vmatprep.mubr.f32.mxu0 0.0
      %5485 = vmatmul.mubr.f32.gmra.mrb[0].mxu0 %v5187
      %v5486 = vpop.f32.mrb[0].mxu0
      %v5487 = vadd.f32 %v5121, %v5486
      %v5488 = vpop.f32.mrb[0].mxu0
      %5489 = vmatprep.mubr.f32.mxu0 0.0
      %5490 = vmatmul.mubr.f32.gmra.mrb[0].mxu0 %v5190
      %v5491 = vpop.f32.mrb[0].mxu0
      %v5492 = vadd.f32 %v5121, %v5491
      %v5493 = vpop.f32.mrb[0].mxu0
      %5494 = vmatprep.mubr.f32.mxu0 0.0
      %5495 = vmatmul.mubr.f32.gmra.mrb[0].mxu0 %v5193
      %v5496 = vpop.f32.mrb[0].mxu0
      %v5497 = vadd.f32 %v5121, %v5496
      %v5498 = vpop.f32.mrb[0].mxu0
      %5499 = vmatprep.mubr.f32.mxu0 0.0
      %5500 = vmatmul.mubr.f32.gmra.mrb[0].mxu0 %v5196
      %v5501 = vpop.f32.mrb[0].mxu0
      %v5502 = vadd.f32 %v5121, %v5501
      %v5503 = vpop.f32.mrb[0].mxu0
      %5504 = vmatprep.mubr.f32.mxu0 0.0
      %5505 = vmatmul.mubr.f32.gmra.mrb[0].mxu0 %v5199
      %v5506 = vpop.f32.mrb[0].mxu0
      %v5507 = vadd.f32 %v5121, %v5506
      %v5508 = vpop.f32.mrb[0].mxu0
      %5509 = vmatprep.mubr.f32.mxu0 0.0
      %5510 = vmatmul.mubr.f32.gmra.mrb[0].mxu0 %v5202
      %v5511 = vpop.f32.mrb[0].mxu0
      %v5512 = vadd.f32 %v5121, %v5511
      %v5513 = vpop.f32.mrb[0].mxu0
      %5514 = vmatprep.mubr.f32.mxu0 0.0
      %5515 = vmatmul.mubr.f32.gmra.mrb[0].mxu0 %v5205
      %v5516 = vpop.f32.mrb[0].mxu0
      %v5517 = vadd.f32 %v5121, %v5516
      %v5518 = vpop.f32.mrb[0].mxu0
      %5519 = vmatprep.mubr.f32.mxu0 0.0
      %5520 = vmatmul.mubr.f32.gmra.mrb[0].mxu0 %v5208
      %v5521 = vpop.f32.mrb[0].mxu0
      %v5522 = vadd.f32 %v5121, %v5521
      %v5523 = vpop.f32.mrb[0].mxu0
      %5524 = vmatprep.mubr.f32.mxu0 0.0
      %5525 = vmatmul.mubr.f32.gmra.mrb[0].mxu0 %v5211
      %v5526 = vpop.f32.mrb[0].mxu0
      %v5527 = vadd.f32 %v5121, %v5526
      %v5528 = vpop.f32.mrb[0].mxu0
      %5529 = vmatprep.mubr.f32.mxu0 0.0
      %5530 = vmatmul.mubr.f32.gmra.mrb[0].mxu0 %v5214
      %v5531 = vpop.f32.mrb[0].mxu0
      %v5532 = vadd.f32 %v5121, %v5531
      %v5533 = vpop.f32.mrb[0].mxu0
      %5534 = vmatprep.mubr.f32.mxu0 0.0
      %5535 = vmatmul.mubr.f32.gmra.mrb[0].mxu0 %v5217
      %v5536 = vpop.f32.mrb[0].mxu0
      %v5537 = vadd.f32 %v5121, %v5536
      %v5538 = vpop.f32.mrb[0].mxu0
      %5539 = vmatprep.mubr.f32.mxu0 0.0
      %5540 = vmatmul.mubr.f32.gmra.mrb[0].mxu0 %v5220
      %v5541 = vpop.f32.mrb[0].mxu0
      %v5542 = vadd.f32 %v5121, %v5541
      %v5543 = vpop.f32.mrb[0].mxu0
      %5544 = vmatprep.mubr.f32.mxu0 0.0
      %5545 = vmatmul.mubr.f32.gmra.mrb[0].mxu0 %v5223
      %v5546 = vpop.f32.mrb[0].mxu0
      %v5547 = vadd.f32 %v5121, %v5546
      %v5548 = vpop.f32.mrb[0].mxu0
      %5549 = vmatprep.mubr.f32.mxu0 0.0
      %5550 = vmatmul.mubr.f32.gmra.mrb[0].mxu0 %v5226
      %v5551 = vpop.f32.mrb[0].mxu0
      %v5552 = vadd.f32 %v5121, %v5551
      %v5553 = vpop.f32.mrb[0].mxu0
      %5554 = vmatprep.mubr.f32.mxu0 0.0
      %5555 = vmatmul.mubr.f32.gmra.mrb[0].mxu0 %v5229
      %v5556 = vpop.f32.mrb[0].mxu0
      %v5557 = vadd.f32 %v5121, %v5556
      %v5558 = vpop.f32.mrb[0].mxu0
      %5559 = vmatprep.mubr.f32.mxu0 0.0
      %5560 = vmatmul.mubr.f32.gmra.mrb[0].mxu0 %v5232
      %v5561 = vpop.f32.mrb[0].mxu0
      %v5562 = vadd.f32 %v5121, %v5561
      %v5563 = vpop.f32.mrb[0].mxu0
      %5564 = vmatprep.mubr.f32.mxu0 0.0
      %5565 = vmatmul.mubr.f32.gmra.mrb[0].mxu0 %v5235
      %v5566 = vpop.f32.mrb[0].mxu0
      %v5567 = vadd.f32 %v5121, %v5566
      %v5568 = vpop.f32.mrb[0].mxu0
      %5569 = vmatprep.mubr.f32.mxu0 0.0
      %5570 = vmatmul.mubr.f32.gmra.mrb[0].mxu0 %v5238
      %v5571 = vpop.f32.mrb[0].mxu0
      %v5572 = vadd.f32 %v5121, %v5571
      %v5573 = vpop.f32.mrb[0].mxu0
      %5574 = vmatprep.mubr.f32.mxu0 0.0
      %5575 = vmatmul.mubr.f32.gmra.mrb[0].mxu0 %v5241
      %v5576 = vpop.f32.mrb[0].mxu0
      %v5577 = vadd.f32 %v5121, %v5576
      %v5578 = vpop.f32.mrb[0].mxu0
      %5579 = vmatprep.mubr.f32.mxu0 0.0
      %5580 = vmatmul.mubr.f32.gmra.mrb[0].mxu0 %v5244
      %v5581 = vpop.f32.mrb[0].mxu0
      %v5582 = vadd.f32 %v5121, %v5581
      %v5583 = vpop.f32.mrb[0].mxu0
      %5584 = vmatprep.mubr.f32.mxu0 0.0
      %5585 = vmatmul.mubr.f32.gmra.mrb[0].mxu0 %v5247
      %v5586 = vpop.f32.mrb[0].mxu0
      %v5587 = vadd.f32 %v5121, %v5586
      %v5588 = vpop.f32.mrb[0].mxu0
      %5589 = vmatprep.mubr.f32.mxu0 0.0
      %5590 = vmatmul.mubr.f32.gmra.mrb[0].mxu0 %v5250
      %v5591 = vpop.f32.mrb[0].mxu0
      %v5592 = vadd.f32 %v5121, %v5591
      %v5593 = vpop.f32.mrb[0].mxu0
      %5594 = vmatprep.mubr.f32.mxu0 0.0
      %5595 = vmatmul.mubr.f32.gmra.mrb[0].mxu0 %v5253
      %v5596 = vpop.f32.mrb[0].mxu0
      %v5597 = vadd.f32 %v5121, %v5596
      %v5598 = vpop.f32.mrb[0].mxu0
      %5599 = vmatprep.mubr.f32.mxu0 0.0
      %5600 = vmatmul.mubr.f32.gmra.mrb[0].mxu0 %v5256
      %v5601 = vpop.f32.mrb[0].mxu0
      %v5602 = vadd.f32 %v5121, %v5601
      %v5603 = vpop.f32.mrb[0].mxu0
      %5604 = vmatprep.mubr.f32.mxu0 0.0
      %5605 = vmatmul.mubr.f32.gmra.mrb[0].mxu0 %v5259
      %v5606 = vpop.f32.mrb[0].mxu0
      %v5607 = vadd.f32 %v5121, %v5606
      %v5608 = vpop.f32.mrb[0].mxu0
      %5609 = vmatprep.mubr.f32.mxu0 0.0
      %5610 = vmatmul.mubr.f32.gmra.mrb[0].mxu0 %v5262
      %v5611 = vpop.f32.mrb[0].mxu0
      %v5612 = vadd.f32 %v5121, %v5611
      %v5613 = vpop.f32.mrb[0].mxu0
      %5614 = vmatprep.mubr.f32.mxu0 0.0
      %5615 = vmatmul.mubr.f32.gmra.mrb[0].mxu0 %v5265
      %v5616 = vpop.f32.mrb[0].mxu0
      %v5617 = vadd.f32 %v5121, %v5616
      %v5618 = vpop.f32.mrb[0].mxu0
      %5619 = vmatprep.mubr.f32.mxu0 0.0
      %5620 = vmatmul.mubr.f32.gmra.mrb[0].mxu0 %v5268
      %v5621 = vpop.f32.mrb[0].mxu0
      %v5622 = vadd.f32 %v5121, %v5621
      %v5623 = vpop.f32.mrb[0].mxu0
      %5624 = vmatprep.mubr.f32.mxu0 0.0
      %5625 = vmatmul.mubr.f32.gmra.mrb[0].mxu0 %v5271
      %v5626 = vpop.f32.mrb[0].mxu0
      %v5627 = vadd.f32 %v5121, %v5626
      %v5628 = vpop.f32.mrb[0].mxu0
      %5629 = vmatprep.mubr.f32.mxu0 0.0
      %5630 = vmatmul.mubr.f32.gmra.mrb[0].mxu0 %v5274
      %v5631 = vpop.f32.mrb[0].mxu0
      %v5632 = vadd.f32 %v5121, %v5631
      %v5633 = vpop.f32.mrb[0].mxu0
      %5634 = vmatprep.mubr.f32.mxu0 0.0
      %5635 = vmatmul.mubr.f32.gmra.mrb[0].mxu0 %v5277
      %v5636 = vpop.f32.mrb[0].mxu0
      %v5637 = vadd.f32 %v5121, %v5636
      %v5638 = vpop.f32.mrb[0].mxu0
      %5639 = vmatprep.mubr.f32.mxu0 0.0
      %5640 = vmatmul.mubr.f32.gmra.mrb[0].mxu0 %v5280
      %v5641 = vpop.f32.mrb[0].mxu0
      %v5642 = vadd.f32 %v5121, %v5641
      %v5643 = vpop.f32.mrb[0].mxu0
      %5644 = vmatprep.mubr.f32.mxu0 0.0
      %5645 = vmatmul.mubr.f32.gmra.mrb[0].mxu0 %v5283
      %v5646 = vpop.f32.mrb[0].mxu0
      %v5647 = vadd.f32 %v5121, %v5646
      %v5648 = vpop.f32.mrb[0].mxu0
      %5649 = vmatprep.mubr.f32.mxu0 0.0
      %5650 = vmatmul.mubr.f32.gmra.mrb[0].mxu0 %v5286
      %v5651 = vpop.f32.mrb[0].mxu0
      %v5652 = vadd.f32 %v5121, %v5651
      %v5653 = vpop.f32.mrb[0].mxu0
      %5654 = vmatprep.mubr.f32.mxu0 0.0
      %5655 = vmatmul.mubr.f32.gmra.mrb[0].mxu0 %v5289
      %v5656 = vpop.f32.mrb[0].mxu0
      %v5657 = vadd.f32 %v5121, %v5656
      %v5658 = vpop.f32.mrb[0].mxu0
      %5659 = vmatprep.mubr.f32.mxu0 0.0
      %5660 = vmatmul.mubr.f32.gmra.mrb[0].mxu0 %v5292
      %v5661 = vpop.f32.mrb[0].mxu0
      %v5662 = vadd.f32 %v5121, %v5661
      %v5663 = vpop.f32.mrb[0].mxu0
      %5664 = vmatprep.mubr.f32.mxu0 0.0
      %5665 = vmatmul.mubr.f32.gmra.mrb[0].mxu0 %v5295
      %v5666 = vpop.f32.mrb[0].mxu0
      %v5667 = vadd.f32 %v5121, %v5666
      %v5668 = vpop.f32.mrb[0].mxu0
      %5669 = vmatprep.mubr.f32.mxu0 0.0
      %5670 = vmatmul.mubr.f32.gmra.mrb[0].mxu0 %v5298
      %v5671 = vpop.f32.mrb[0].mxu0
      %v5672 = vadd.f32 %v5121, %v5671
      %v5673 = vpop.f32.mrb[0].mxu0
      %5674 = vmatprep.mubr.f32.mxu0 0.0
      %5675 = vmatmul.mubr.f32.gmra.mrb[0].mxu0 %v5301
      %v5676 = vpop.f32.mrb[0].mxu0
      %v5677 = vadd.f32 %v5121, %v5676
      %v5678 = vpop.f32.mrb[0].mxu0
      %5679 = vmatprep.mubr.f32.mxu0 0.0
      %5680 = vmatmul.mubr.f32.gmra.mrb[0].mxu0 %v5304
      %v5681 = vpop.f32.mrb[0].mxu0
      %v5682 = vadd.f32 %v5121, %v5681
      %v5683 = vpop.f32.mrb[0].mxu0
      %5684 = vmatprep.mubr.f32.mxu0 0.0
      %5685 = vmatmul.mubr.f32.gmra.mrb[0].mxu0 %v5307
      %v5686 = vpop.f32.mrb[0].mxu0
      %v5687 = vadd.f32 %v5121, %v5686
      %v5688 = vpop.f32.mrb[0].mxu0
      %5689 = vmatprep.mubr.f32.mxu0 0.0
      %5690 = vmatmul.mubr.f32.gmra.mrb[0].mxu0 %v5310
      %v5691 = vpop.f32.mrb[0].mxu0
      %v5692 = vadd.f32 %v5121, %v5691
      %v5693 = vpop.f32.mrb[0].mxu0
      %5694 = vmatprep.mubr.f32.mxu0 0.0
      %5695 = vmatmul.mubr.f32.gmra.mrb[0].mxu0 %v5313
      %v5696 = vpop.f32.mrb[0].mxu0
      %v5697 = vadd.f32 %v5121, %v5696
      %v5698 = vpop.f32.mrb[0].mxu0
      %5699 = vdwg.mxu0
      %v5700 = vmax.f32 %v5382, 0.0
      %v5701 = vmax.f32 %v5387, 0.0
      %v5702 = vmax.f32 %v5392, 0.0
      %v5703 = vmax.f32 %v5397, 0.0
      %v5704 = vmax.f32 %v5402, 0.0
      %v5705 = vmax.f32 %v5407, 0.0
      %v5706 = vmax.f32 %v5412, 0.0
      %v5707 = vmax.f32 %v5417, 0.0
      %v5708 = vmax.f32 %v5422, 0.0
      %v5709 = vmax.f32 %v5427, 0.0
      %v5710 = vmax.f32 %v5432, 0.0
      %v5711 = vmax.f32 %v5437, 0.0
      %v5712 = vmax.f32 %v5442, 0.0
      %v5713 = vmax.f32 %v5447, 0.0
      %v5714 = vmax.f32 %v5452, 0.0
      %v5715 = vmax.f32 %v5457, 0.0
      %v5716 = vmax.f32 %v5462, 0.0
      %v5717 = vmax.f32 %v5467, 0.0
      %v5718 = vmax.f32 %v5472, 0.0
      %v5719 = vmax.f32 %v5477, 0.0
      %v5720 = vmax.f32 %v5482, 0.0
      %v5721 = vmax.f32 %v5487, 0.0
      %v5722 = vmax.f32 %v5492, 0.0
      %v5723 = vmax.f32 %v5497, 0.0
      %v5724 = vmax.f32 %v5502, 0.0
      %v5725 = vmax.f32 %v5507, 0.0
      %v5726 = vmax.f32 %v5512, 0.0
      %v5727 = vmax.f32 %v5517, 0.0
      %v5728 = vmax.f32 %v5522, 0.0
      %v5729 = vmax.f32 %v5527, 0.0
      %v5730 = vmax.f32 %v5532, 0.0
      %v5731 = vmax.f32 %v5537, 0.0
      %v5732 = vmax.f32 %v5542, 0.0
      %v5733 = vmax.f32 %v5547, 0.0
      %v5734 = vmax.f32 %v5552, 0.0
      %v5735 = vmax.f32 %v5557, 0.0
      %v5736 = vmax.f32 %v5562, 0.0
      %v5737 = vmax.f32 %v5567, 0.0
      %v5738 = vmax.f32 %v5572, 0.0
      %v5739 = vmax.f32 %v5577, 0.0
      %v5740 = vmax.f32 %v5582, 0.0
      %v5741 = vmax.f32 %v5587, 0.0
      %v5742 = vmax.f32 %v5592, 0.0
      %v5743 = vmax.f32 %v5597, 0.0
      %v5744 = vmax.f32 %v5602, 0.0
      %v5745 = vmax.f32 %v5607, 0.0
      %v5746 = vmax.f32 %v5612, 0.0
      %v5747 = vmax.f32 %v5617, 0.0
      %v5748 = vmax.f32 %v5622, 0.0
      %v5749 = vmax.f32 %v5627, 0.0
      %v5750 = vmax.f32 %v5632, 0.0
      %v5751 = vmax.f32 %v5637, 0.0
      %v5752 = vmax.f32 %v5642, 0.0
      %v5753 = vmax.f32 %v5647, 0.0
      %v5754 = vmax.f32 %v5652, 0.0
      %v5755 = vmax.f32 %v5657, 0.0
      %v5756 = vmax.f32 %v5662, 0.0
      %v5757 = vmax.f32 %v5667, 0.0
      %v5758 = vmax.f32 %v5672, 0.0
      %v5759 = vmax.f32 %v5677, 0.0
      %v5760 = vmax.f32 %v5682, 0.0
      %v5761 = vmax.f32 %v5687, 0.0
      %v5762 = vmax.f32 %v5692, 0.0
      %v5763 = vmax.f32 %v5697, 0.0
      %v5764 = vld [vmem:[%s13] sm:$0xff]
      %v5765 = vld [vmem:[%s13 + $0x8] sm:$0xff]
      %v5766 = vld [vmem:[%s13 + $0x10] sm:$0xff]
      %v5767 = vld [vmem:[%s13 + $0x18] sm:$0xff]
      %v5768 = vld [vmem:[%s13 + $0x20] sm:$0xff]
      %v5769 = vld [vmem:[%s13 + $0x28] sm:$0xff]
      %v5770 = vld [vmem:[%s13 + $0x30] sm:$0xff]
      %v5771 = vld [vmem:[%s13 + $0x38] sm:$0xff]
      %v5772 = vld [vmem:[%s13 + $0x40] sm:$0xff]
      %v5773 = vld [vmem:[%s13 + $0x48] sm:$0xff]
      %v5774 = vld [vmem:[%s13 + $0x50] sm:$0xff]
      %v5775 = vld [vmem:[%s13 + $0x58] sm:$0xff]
      %v5776 = vld [vmem:[%s13 + $0x60] sm:$0xff]
      %v5777 = vld [vmem:[%s13 + $0x68] sm:$0xff]
      %v5778 = vld [vmem:[%s13 + $0x70] sm:$0xff]
      %v5779 = vld [vmem:[%s13 + $0x78] sm:$0xff]
      %v5780 = vld [vmem:[%s13 + $0x80] sm:$0xff]
      %v5781 = vld [vmem:[%s13 + $0x88] sm:$0xff]
      %v5782 = vld [vmem:[%s13 + $0x90] sm:$0xff]
      %v5783 = vld [vmem:[%s13 + $0x98] sm:$0xff]
      %v5784 = vld [vmem:[%s13 + $0xa0] sm:$0xff]
      %v5785 = vld [vmem:[%s13 + $0xa8] sm:$0xff]
      %v5786 = vld [vmem:[%s13 + $0xb0] sm:$0xff]
      %v5787 = vld [vmem:[%s13 + $0xb8] sm:$0xff]
      %v5788 = vld [vmem:[%s13 + $0xc0] sm:$0xff]
      %v5789 = vld [vmem:[%s13 + $0xc8] sm:$0xff]
      %v5790 = vld [vmem:[%s13 + $0xd0] sm:$0xff]
      %v5791 = vld [vmem:[%s13 + $0xd8] sm:$0xff]
      %v5792 = vld [vmem:[%s13 + $0xe0] sm:$0xff]
      %v5793 = vld [vmem:[%s13 + $0xe8] sm:$0xff]
      %v5794 = vld [vmem:[%s13 + $0xf0] sm:$0xff]
      %v5795 = vld [vmem:[%s13 + $0xf8] sm:$0xff]
      %v5796 = vld [vmem:[%s13 + $0x100] sm:$0xff]
      %v5797 = vld [vmem:[%s13 + $0x108] sm:$0xff]
      %v5798 = vld [vmem:[%s13 + $0x110] sm:$0xff]
      %v5799 = vld [vmem:[%s13 + $0x118] sm:$0xff]
      %v5800 = vld [vmem:[%s13 + $0x120] sm:$0xff]
      %v5801 = vld [vmem:[%s13 + $0x128] sm:$0xff]
      %v5802 = vld [vmem:[%s13 + $0x130] sm:$0xff]
      %v5803 = vld [vmem:[%s13 + $0x138] sm:$0xff]
      %v5804 = vld [vmem:[%s13 + $0x140] sm:$0xff]
      %v5805 = vld [vmem:[%s13 + $0x148] sm:$0xff]
      %v5806 = vld [vmem:[%s13 + $0x150] sm:$0xff]
      %v5807 = vld [vmem:[%s13 + $0x158] sm:$0xff]
      %v5808 = vld [vmem:[%s13 + $0x160] sm:$0xff]
      %v5809 = vld [vmem:[%s13 + $0x168] sm:$0xff]
      %v5810 = vld [vmem:[%s13 + $0x170] sm:$0xff]
      %v5811 = vld [vmem:[%s13 + $0x178] sm:$0xff]
      %v5812 = vld [vmem:[%s13 + $0x180] sm:$0xff]
      %v5813 = vld [vmem:[%s13 + $0x188] sm:$0xff]
      %v5814 = vld [vmem:[%s13 + $0x190] sm:$0xff]
      %v5815 = vld [vmem:[%s13 + $0x198] sm:$0xff]
      %v5816 = vld [vmem:[%s13 + $0x1a0] sm:$0xff]
      %v5817 = vld [vmem:[%s13 + $0x1a8] sm:$0xff]
      %v5818 = vld [vmem:[%s13 + $0x1b0] sm:$0xff]
      %v5819 = vld [vmem:[%s13 + $0x1b8] sm:$0xff]
      %v5820 = vld [vmem:[%s13 + $0x1c0] sm:$0xff]
      %v5821 = vld [vmem:[%s13 + $0x1c8] sm:$0xff]
      %v5822 = vld [vmem:[%s13 + $0x1d0] sm:$0xff]
      %v5823 = vld [vmem:[%s13 + $0x1d8] sm:$0xff]
      %v5824 = vld [vmem:[%s13 + $0x1e0] sm:$0xff]
      %v5825 = vld [vmem:[%s13 + $0x1e8] sm:$0xff]
      %v5826 = vld [vmem:[%s13 + $0x1f0] sm:$0xff]
      %v5827 = vld [vmem:[%s13 + $0x1f8] sm:$0xff]
      %v5828 = vld [vmem:[%s13 + $0x200] sm:$0xff]
      %v5829 = vld [vmem:[%s13 + $0x208] sm:$0xff]
      %v5830 = vld [vmem:[%s13 + $0x210] sm:$0xff]
      %v5831 = vld [vmem:[%s13 + $0x218] sm:$0xff]
      %v5832 = vld [vmem:[%s13 + $0x220] sm:$0xff]
      %v5833 = vld [vmem:[%s13 + $0x228] sm:$0xff]
      %v5834 = vld [vmem:[%s13 + $0x230] sm:$0xff]
      %v5835 = vld [vmem:[%s13 + $0x238] sm:$0xff]
      %v5836 = vld [vmem:[%s13 + $0x240] sm:$0xff]
      %v5837 = vld [vmem:[%s13 + $0x248] sm:$0xff]
      %v5838 = vld [vmem:[%s13 + $0x250] sm:$0xff]
      %v5839 = vld [vmem:[%s13 + $0x258] sm:$0xff]
      %v5840 = vld [vmem:[%s13 + $0x260] sm:$0xff]
      %v5841 = vld [vmem:[%s13 + $0x268] sm:$0xff]
      %v5842 = vld [vmem:[%s13 + $0x270] sm:$0xff]
      %v5843 = vld [vmem:[%s13 + $0x278] sm:$0xff]
      %v5844 = vld [vmem:[%s13 + $0x280] sm:$0xff]
      %v5845 = vld [vmem:[%s13 + $0x288] sm:$0xff]
      %v5846 = vld [vmem:[%s13 + $0x290] sm:$0xff]
      %v5847 = vld [vmem:[%s13 + $0x298] sm:$0xff]
      %v5848 = vld [vmem:[%s13 + $0x2a0] sm:$0xff]
      %v5849 = vld [vmem:[%s13 + $0x2a8] sm:$0xff]
      %v5850 = vld [vmem:[%s13 + $0x2b0] sm:$0xff]
      %v5851 = vld [vmem:[%s13 + $0x2b8] sm:$0xff]
      %v5852 = vld [vmem:[%s13 + $0x2c0] sm:$0xff]
      %v5853 = vld [vmem:[%s13 + $0x2c8] sm:$0xff]
      %v5854 = vld [vmem:[%s13 + $0x2d0] sm:$0xff]
      %v5855 = vld [vmem:[%s13 + $0x2d8] sm:$0xff]
      %v5856 = vld [vmem:[%s13 + $0x2e0] sm:$0xff]
      %v5857 = vld [vmem:[%s13 + $0x2e8] sm:$0xff]
      %v5858 = vld [vmem:[%s13 + $0x2f0] sm:$0xff]
      %v5859 = vld [vmem:[%s13 + $0x2f8] sm:$0xff]
      %v5860 = vld [vmem:[%s13 + $0x300] sm:$0xff]
      %v5861 = vld [vmem:[%s13 + $0x308] sm:$0xff]
      %v5862 = vld [vmem:[%s13 + $0x310] sm:$0xff]
      %v5863 = vld [vmem:[%s13 + $0x318] sm:$0xff]
      %v5864 = vld [vmem:[%s13 + $0x320] sm:$0xff]
      %v5865 = vld [vmem:[%s13 + $0x328] sm:$0xff]
      %v5866 = vld [vmem:[%s13 + $0x330] sm:$0xff]
      %v5867 = vld [vmem:[%s13 + $0x338] sm:$0xff]
      %v5868 = vld [vmem:[%s13 + $0x340] sm:$0xff]
      %v5869 = vld [vmem:[%s13 + $0x348] sm:$0xff]
      %v5870 = vld [vmem:[%s13 + $0x350] sm:$0xff]
      %v5871 = vld [vmem:[%s13 + $0x358] sm:$0xff]
      %v5872 = vld [vmem:[%s13 + $0x360] sm:$0xff]
      %v5873 = vld [vmem:[%s13 + $0x368] sm:$0xff]
      %v5874 = vld [vmem:[%s13 + $0x370] sm:$0xff]
      %v5875 = vld [vmem:[%s13 + $0x378] sm:$0xff]
      %v5876 = vld [vmem:[%s14] sm:$0xff]
      %v5878 = vlaneseq
      %v5879 = vshrl.u32 %v5878, 7
      %v5880 = vsub.s32 0, %v5879
      %v5881 = vrot.slane %v5876, %v5880
      %v5882 = vlaneseq
      %v5883 = vshrl.u32 %v5882, 7
      %v5884 = vsub.s32 1, %v5883
      %v5885 = vrot.slane %v5876, %v5884
      %v5886 = vlaneseq
      %v5887 = vshrl.u32 %v5886, 7
      %v5888 = vsub.s32 2, %v5887
      %v5889 = vrot.slane %v5876, %v5888
      %v5890 = vlaneseq
      %v5891 = vshrl.u32 %v5890, 7
      %v5892 = vsub.s32 3, %v5891
      %v5893 = vrot.slane %v5876, %v5892
      %v5894 = vlaneseq
      %v5895 = vshrl.u32 %v5894, 7
      %v5896 = vsub.s32 4, %v5895
      %v5897 = vrot.slane %v5876, %v5896
      %v5898 = vlaneseq
      %v5899 = vshrl.u32 %v5898, 7
      %v5900 = vsub.s32 5, %v5899
      %v5901 = vrot.slane %v5876, %v5900
      %v5902 = vlaneseq
      %v5903 = vshrl.u32 %v5902, 7
      %v5904 = vsub.s32 6, %v5903
      %v5905 = vrot.slane %v5876, %v5904
      %5913 = vmatprep.subr.mxu0 %v5765
      %5914 = vmatpush1.msra.mxu0 %v5764
      %5915 = vmatprep.subr.mxu0 %v5772
      %5916 = vmatpush1.msra.mxu0 %v5771
      %5917 = vmatprep.subr.mxu0 %v5779
      %5918 = vmatpush1.msra.mxu0 %v5778
      %5919 = vmatprep.subr.mxu0 %v5786
      %5920 = vmatpush1.msra.mxu0 %v5785
      %5921 = vmatprep.subr.mxu0 %v5793
      %5922 = vmatpush1.msra.mxu0 %v5792
      %5923 = vmatprep.subr.mxu0 %v5800
      %5924 = vmatpush1.msra.mxu0 %v5799
      %5925 = vmatprep.subr.mxu0 %v5807
      %5926 = vmatpush1.msra.mxu0 %v5806
      %5927 = vmatprep.subr.mxu0 %v5814
      %5928 = vmatpush1.msra.mxu0 %v5813
      %5929 = vmatprep.subr.mxu0 %v5821
      %5930 = vmatpush1.msra.mxu0 %v5820
      %5931 = vmatprep.subr.mxu0 %v5828
      %5932 = vmatpush1.msra.mxu0 %v5827
      %5933 = vmatprep.subr.mxu0 %v5835
      %5934 = vmatpush1.msra.mxu0 %v5834
      %5935 = vmatprep.subr.mxu0 %v5842
      %5936 = vmatpush1.msra.mxu0 %v5841
      %5937 = vmatprep.subr.mxu0 %v5849
      %5938 = vmatpush1.msra.mxu0 %v5848
      %5939 = vmatprep.subr.mxu0 %v5856
      %5940 = vmatpush1.msra.mxu0 %v5855
      %5941 = vmatprep.subr.mxu0 %v5863
      %5942 = vmatpush1.msra.mxu0 %v5862
      %5943 = vmatprep.subr.mxu0 %v5870
      %5944 = vmatpush1.msra.mxu0 %v5869
      %5945 = vmatprep.subr.mxu0 0.0
      %5946 = vmatpush1.msra.mxu0 0.0
      %5947 = vmatprep.subr.mxu0 0.0
      %5948 = vmatpush1.msra.mxu0 0.0
      %5949 = vmatprep.subr.mxu0 0.0
      %5950 = vmatpush1.msra.mxu0 0.0
      %5951 = vmatprep.subr.mxu0 0.0
      %5952 = vmatpush1.msra.mxu0 0.0
      %5953 = vmatprep.subr.mxu0 0.0
      %5954 = vmatpush1.msra.mxu0 0.0
      %5955 = vmatprep.subr.mxu0 0.0
      %5956 = vmatpush1.msra.mxu0 0.0
      %5957 = vmatprep.subr.mxu0 0.0
      %5958 = vmatpush1.msra.mxu0 0.0
      %5959 = vmatprep.subr.mxu0 0.0
      %5960 = vmatpush1.msra.mxu0 0.0
      %5961 = vmatprep.subr.mxu0 0.0
      %5962 = vmatpush1.msra.mxu0 0.0
      %5963 = vmatprep.subr.mxu0 0.0
      %5964 = vmatpush1.msra.mxu0 0.0
      %5965 = vmatprep.subr.mxu0 0.0
      %5966 = vmatpush1.msra.mxu0 0.0
      %5967 = vmatprep.subr.mxu0 0.0
      %5968 = vmatpush1.msra.mxu0 0.0
      %5969 = vmatprep.subr.mxu0 0.0
      %5970 = vmatpush1.msra.mxu0 0.0
      %5971 = vmatprep.subr.mxu0 0.0
      %5972 = vmatpush1.msra.mxu0 0.0
      %5973 = vmatprep.subr.mxu0 0.0
      %5974 = vmatpush1.msra.mxu0 0.0
      %5975 = vmatprep.subr.mxu0 0.0
      %5976 = vmatpush1.msra.mxu0 0.0
      %5977 = vmatprep.mubr.f32.mxu0 0.0
      %5978 = vmatmul.mubr.f32.gmra.mrb[0].mxu0 %v5700
      %v5979 = vpop.f32.mrb[0].mxu0
      %v5980 = vadd.f32 %v5881, %v5979
      %v5981 = vpop.f32.mrb[0].mxu0
      %v5982 = vadd.f32 %v5885, %v5981
      %5983 = vmatprep.mubr.f32.mxu0 0.0
      %5984 = vmatmul.mubr.f32.gmra.mrb[0].mxu0 %v5701
      %v5985 = vpop.f32.mrb[0].mxu0
      %v5986 = vadd.f32 %v5881, %v5985
      %v5987 = vpop.f32.mrb[0].mxu0
      %v5988 = vadd.f32 %v5885, %v5987
      %5989 = vmatprep.mubr.f32.mxu0 0.0
      %5990 = vmatmul.mubr.f32.gmra.mrb[0].mxu0 %v5702
      %v5991 = vpop.f32.mrb[0].mxu0
      %v5992 = vadd.f32 %v5881, %v5991
      %v5993 = vpop.f32.mrb[0].mxu0
      %v5994 = vadd.f32 %v5885, %v5993
      %5995 = vmatprep.mubr.f32.mxu0 0.0
      %5996 = vmatmul.mubr.f32.gmra.mrb[0].mxu0 %v5703
      %v5997 = vpop.f32.mrb[0].mxu0
      %v5998 = vadd.f32 %v5881, %v5997
      %v5999 = vpop.f32.mrb[0].mxu0
      %v6000 = vadd.f32 %v5885, %v5999
      %6001 = vmatprep.mubr.f32.mxu0 0.0
      %6002 = vmatmul.mubr.f32.gmra.mrb[0].mxu0 %v5704
      %v6003 = vpop.f32.mrb[0].mxu0
      %v6004 = vadd.f32 %v5881, %v6003
      %v6005 = vpop.f32.mrb[0].mxu0
      %v6006 = vadd.f32 %v5885, %v6005
      %6007 = vmatprep.mubr.f32.mxu0 0.0
      %6008 = vmatmul.mubr.f32.gmra.mrb[0].mxu0 %v5705
      %v6009 = vpop.f32.mrb[0].mxu0
      %v6010 = vadd.f32 %v5881, %v6009
      %v6011 = vpop.f32.mrb[0].mxu0
      %v6012 = vadd.f32 %v5885, %v6011
      %6013 = vmatprep.mubr.f32.mxu0 0.0
      %6014 = vmatmul.mubr.f32.gmra.mrb[0].mxu0 %v5706
      %v6015 = vpop.f32.mrb[0].mxu0
      %v6016 = vadd.f32 %v5881, %v6015
      %v6017 = vpop.f32.mrb[0].mxu0
      %v6018 = vadd.f32 %v5885, %v6017
      %6019 = vmatprep.mubr.f32.mxu0 0.0
      %6020 = vmatmul.mubr.f32.gmra.mrb[0].mxu0 %v5707
      %v6021 = vpop.f32.mrb[0].mxu0
      %v6022 = vadd.f32 %v5881, %v6021
      %v6023 = vpop.f32.mrb[0].mxu0
      %v6024 = vadd.f32 %v5885, %v6023
      %6025 = vmatprep.mubr.f32.mxu0 0.0
      %6026 = vmatmul.mubr.f32.gmra.mrb[0].mxu0 %v5708
      %v6027 = vpop.f32.mrb[0].mxu0
      %v6028 = vadd.f32 %v5881, %v6027
      %v6029 = vpop.f32.mrb[0].mxu0
      %v6030 = vadd.f32 %v5885, %v6029
      %6031 = vmatprep.mubr.f32.mxu0 0.0
      %6032 = vmatmul.mubr.f32.gmra.mrb[0].mxu0 %v5709
      %v6033 = vpop.f32.mrb[0].mxu0
      %v6034 = vadd.f32 %v5881, %v6033
      %v6035 = vpop.f32.mrb[0].mxu0
      %v6036 = vadd.f32 %v5885, %v6035
      %6037 = vmatprep.mubr.f32.mxu0 0.0
      %6038 = vmatmul.mubr.f32.gmra.mrb[0].mxu0 %v5710
      %v6039 = vpop.f32.mrb[0].mxu0
      %v6040 = vadd.f32 %v5881, %v6039
      %v6041 = vpop.f32.mrb[0].mxu0
      %v6042 = vadd.f32 %v5885, %v6041
      %6043 = vmatprep.mubr.f32.mxu0 0.0
      %6044 = vmatmul.mubr.f32.gmra.mrb[0].mxu0 %v5711
      %v6045 = vpop.f32.mrb[0].mxu0
      %v6046 = vadd.f32 %v5881, %v6045
      %v6047 = vpop.f32.mrb[0].mxu0
      %v6048 = vadd.f32 %v5885, %v6047
      %6049 = vmatprep.mubr.f32.mxu0 0.0
      %6050 = vmatmul.mubr.f32.gmra.mrb[0].mxu0 %v5712
      %v6051 = vpop.f32.mrb[0].mxu0
      %v6052 = vadd.f32 %v5881, %v6051
      %v6053 = vpop.f32.mrb[0].mxu0
      %v6054 = vadd.f32 %v5885, %v6053
      %6055 = vmatprep.mubr.f32.mxu0 0.0
      %6056 = vmatmul.mubr.f32.gmra.mrb[0].mxu0 %v5713
      %v6057 = vpop.f32.mrb[0].mxu0
      %v6058 = vadd.f32 %v5881, %v6057
      %v6059 = vpop.f32.mrb[0].mxu0
      %v6060 = vadd.f32 %v5885, %v6059
      %6061 = vmatprep.mubr.f32.mxu0 0.0
      %6062 = vmatmul.mubr.f32.gmra.mrb[0].mxu0 %v5714
      %v6063 = vpop.f32.mrb[0].mxu0
      %v6064 = vadd.f32 %v5881, %v6063
      %v6065 = vpop.f32.mrb[0].mxu0
      %v6066 = vadd.f32 %v5885, %v6065
      %6067 = vmatprep.mubr.f32.mxu0 0.0
      %6068 = vmatmul.mubr.f32.gmra.mrb[0].mxu0 %v5715
      %v6069 = vpop.f32.mrb[0].mxu0
      %v6070 = vadd.f32 %v5881, %v6069
      %v6071 = vpop.f32.mrb[0].mxu0
      %v6072 = vadd.f32 %v5885, %v6071
      %6073 = vmatprep.mubr.f32.mxu0 0.0
      %6074 = vmatmul.mubr.f32.gmra.mrb[0].mxu0 %v5716
      %v6075 = vpop.f32.mrb[0].mxu0
      %v6076 = vadd.f32 %v5881, %v6075
      %v6077 = vpop.f32.mrb[0].mxu0
      %v6078 = vadd.f32 %v5885, %v6077
      %6079 = vmatprep.mubr.f32.mxu0 0.0
      %6080 = vmatmul.mubr.f32.gmra.mrb[0].mxu0 %v5717
      %v6081 = vpop.f32.mrb[0].mxu0
      %v6082 = vadd.f32 %v5881, %v6081
      %v6083 = vpop.f32.mrb[0].mxu0
      %v6084 = vadd.f32 %v5885, %v6083
      %6085 = vmatprep.mubr.f32.mxu0 0.0
      %6086 = vmatmul.mubr.f32.gmra.mrb[0].mxu0 %v5718
      %v6087 = vpop.f32.mrb[0].mxu0
      %v6088 = vadd.f32 %v5881, %v6087
      %v6089 = vpop.f32.mrb[0].mxu0
      %v6090 = vadd.f32 %v5885, %v6089
      %6091 = vmatprep.mubr.f32.mxu0 0.0
      %6092 = vmatmul.mubr.f32.gmra.mrb[0].mxu0 %v5719
      %v6093 = vpop.f32.mrb[0].mxu0
      %v6094 = vadd.f32 %v5881, %v6093
      %v6095 = vpop.f32.mrb[0].mxu0
      %v6096 = vadd.f32 %v5885, %v6095
      %6097 = vmatprep.mubr.f32.mxu0 0.0
      %6098 = vmatmul.mubr.f32.gmra.mrb[0].mxu0 %v5720
      %v6099 = vpop.f32.mrb[0].mxu0
      %v6100 = vadd.f32 %v5881, %v6099
      %v6101 = vpop.f32.mrb[0].mxu0
      %v6102 = vadd.f32 %v5885, %v6101
      %6103 = vmatprep.mubr.f32.mxu0 0.0
      %6104 = vmatmul.mubr.f32.gmra.mrb[0].mxu0 %v5721
      %v6105 = vpop.f32.mrb[0].mxu0
      %v6106 = vadd.f32 %v5881, %v6105
      %v6107 = vpop.f32.mrb[0].mxu0
      %v6108 = vadd.f32 %v5885, %v6107
      %6109 = vmatprep.mubr.f32.mxu0 0.0
      %6110 = vmatmul.mubr.f32.gmra.mrb[0].mxu0 %v5722
      %v6111 = vpop.f32.mrb[0].mxu0
      %v6112 = vadd.f32 %v5881, %v6111
      %v6113 = vpop.f32.mrb[0].mxu0
      %v6114 = vadd.f32 %v5885, %v6113
      %6115 = vmatprep.mubr.f32.mxu0 0.0
      %6116 = vmatmul.mubr.f32.gmra.mrb[0].mxu0 %v5723
      %v6117 = vpop.f32.mrb[0].mxu0
      %v6118 = vadd.f32 %v5881, %v6117
      %v6119 = vpop.f32.mrb[0].mxu0
      %v6120 = vadd.f32 %v5885, %v6119
      %6121 = vmatprep.mubr.f32.mxu0 0.0
      %6122 = vmatmul.mubr.f32.gmra.mrb[0].mxu0 %v5724
      %v6123 = vpop.f32.mrb[0].mxu0
      %v6124 = vadd.f32 %v5881, %v6123
      %v6125 = vpop.f32.mrb[0].mxu0
      %v6126 = vadd.f32 %v5885, %v6125
      %6127 = vmatprep.mubr.f32.mxu0 0.0
      %6128 = vmatmul.mubr.f32.gmra.mrb[0].mxu0 %v5725
      %v6129 = vpop.f32.mrb[0].mxu0
      %v6130 = vadd.f32 %v5881, %v6129
      %v6131 = vpop.f32.mrb[0].mxu0
      %v6132 = vadd.f32 %v5885, %v6131
      %6133 = vmatprep.mubr.f32.mxu0 0.0
      %6134 = vmatmul.mubr.f32.gmra.mrb[0].mxu0 %v5726
      %v6135 = vpop.f32.mrb[0].mxu0
      %v6136 = vadd.f32 %v5881, %v6135
      %v6137 = vpop.f32.mrb[0].mxu0
      %v6138 = vadd.f32 %v5885, %v6137
      %6139 = vmatprep.mubr.f32.mxu0 0.0
      %6140 = vmatmul.mubr.f32.gmra.mrb[0].mxu0 %v5727
      %v6141 = vpop.f32.mrb[0].mxu0
      %v6142 = vadd.f32 %v5881, %v6141
      %v6143 = vpop.f32.mrb[0].mxu0
      %v6144 = vadd.f32 %v5885, %v6143
      %6145 = vmatprep.mubr.f32.mxu0 0.0
      %6146 = vmatmul.mubr.f32.gmra.mrb[0].mxu0 %v5728
      %v6147 = vpop.f32.mrb[0].mxu0
      %v6148 = vadd.f32 %v5881, %v6147
      %v6149 = vpop.f32.mrb[0].mxu0
      %v6150 = vadd.f32 %v5885, %v6149
      %6151 = vmatprep.mubr.f32.mxu0 0.0
      %6152 = vmatmul.mubr.f32.gmra.mrb[0].mxu0 %v5729
      %v6153 = vpop.f32.mrb[0].mxu0
      %v6154 = vadd.f32 %v5881, %v6153
      %v6155 = vpop.f32.mrb[0].mxu0
      %v6156 = vadd.f32 %v5885, %v6155
      %6157 = vmatprep.mubr.f32.mxu0 0.0
      %6158 = vmatmul.mubr.f32.gmra.mrb[0].mxu0 %v5730
      %v6159 = vpop.f32.mrb[0].mxu0
      %v6160 = vadd.f32 %v5881, %v6159
      %v6161 = vpop.f32.mrb[0].mxu0
      %v6162 = vadd.f32 %v5885, %v6161
      %6163 = vmatprep.mubr.f32.mxu0 0.0
      %6164 = vmatmul.mubr.f32.gmra.mrb[0].mxu0 %v5731
      %v6165 = vpop.f32.mrb[0].mxu0
      %v6166 = vadd.f32 %v5881, %v6165
      %v6167 = vpop.f32.mrb[0].mxu0
      %v6168 = vadd.f32 %v5885, %v6167
      %6169 = vmatprep.mubr.f32.mxu0 0.0
      %6170 = vmatmul.mubr.f32.gmra.mrb[0].mxu0 %v5732
      %v6171 = vpop.f32.mrb[0].mxu0
      %v6172 = vadd.f32 %v5881, %v6171
      %v6173 = vpop.f32.mrb[0].mxu0
      %v6174 = vadd.f32 %v5885, %v6173
      %6175 = vmatprep.mubr.f32.mxu0 0.0
      %6176 = vmatmul.mubr.f32.gmra.mrb[0].mxu0 %v5733
      %v6177 = vpop.f32.mrb[0].mxu0
      %v6178 = vadd.f32 %v5881, %v6177
      %v6179 = vpop.f32.mrb[0].mxu0
      %v6180 = vadd.f32 %v5885, %v6179
      %6181 = vmatprep.mubr.f32.mxu0 0.0
      %6182 = vmatmul.mubr.f32.gmra.mrb[0].mxu0 %v5734
      %v6183 = vpop.f32.mrb[0].mxu0
      %v6184 = vadd.f32 %v5881, %v6183
      %v6185 = vpop.f32.mrb[0].mxu0
      %v6186 = vadd.f32 %v5885, %v6185
      %6187 = vmatprep.mubr.f32.mxu0 0.0
      %6188 = vmatmul.mubr.f32.gmra.mrb[0].mxu0 %v5735
      %v6189 = vpop.f32.mrb[0].mxu0
      %v6190 = vadd.f32 %v5881, %v6189
      %v6191 = vpop.f32.mrb[0].mxu0
      %v6192 = vadd.f32 %v5885, %v6191
      %6193 = vmatprep.mubr.f32.mxu0 0.0
      %6194 = vmatmul.mubr.f32.gmra.mrb[0].mxu0 %v5736
      %v6195 = vpop.f32.mrb[0].mxu0
      %v6196 = vadd.f32 %v5881, %v6195
      %v6197 = vpop.f32.mrb[0].mxu0
      %v6198 = vadd.f32 %v5885, %v6197
      %6199 = vmatprep.mubr.f32.mxu0 0.0
      %6200 = vmatmul.mubr.f32.gmra.mrb[0].mxu0 %v5737
      %v6201 = vpop.f32.mrb[0].mxu0
      %v6202 = vadd.f32 %v5881, %v6201
      %v6203 = vpop.f32.mrb[0].mxu0
      %v6204 = vadd.f32 %v5885, %v6203
      %6205 = vmatprep.mubr.f32.mxu0 0.0
      %6206 = vmatmul.mubr.f32.gmra.mrb[0].mxu0 %v5738
      %v6207 = vpop.f32.mrb[0].mxu0
      %v6208 = vadd.f32 %v5881, %v6207
      %v6209 = vpop.f32.mrb[0].mxu0
      %v6210 = vadd.f32 %v5885, %v6209
      %6211 = vmatprep.mubr.f32.mxu0 0.0
      %6212 = vmatmul.mubr.f32.gmra.mrb[0].mxu0 %v5739
      %v6213 = vpop.f32.mrb[0].mxu0
      %v6214 = vadd.f32 %v5881, %v6213
      %v6215 = vpop.f32.mrb[0].mxu0
      %v6216 = vadd.f32 %v5885, %v6215
      %6217 = vmatprep.mubr.f32.mxu0 0.0
      %6218 = vmatmul.mubr.f32.gmra.mrb[0].mxu0 %v5740
      %v6219 = vpop.f32.mrb[0].mxu0
      %v6220 = vadd.f32 %v5881, %v6219
      %v6221 = vpop.f32.mrb[0].mxu0
      %v6222 = vadd.f32 %v5885, %v6221
      %6223 = vmatprep.mubr.f32.mxu0 0.0
      %6224 = vmatmul.mubr.f32.gmra.mrb[0].mxu0 %v5741
      %v6225 = vpop.f32.mrb[0].mxu0
      %v6226 = vadd.f32 %v5881, %v6225
      %v6227 = vpop.f32.mrb[0].mxu0
      %v6228 = vadd.f32 %v5885, %v6227
      %6229 = vmatprep.mubr.f32.mxu0 0.0
      %6230 = vmatmul.mubr.f32.gmra.mrb[0].mxu0 %v5742
      %v6231 = vpop.f32.mrb[0].mxu0
      %v6232 = vadd.f32 %v5881, %v6231
      %v6233 = vpop.f32.mrb[0].mxu0
      %v6234 = vadd.f32 %v5885, %v6233
      %6235 = vmatprep.mubr.f32.mxu0 0.0
      %6236 = vmatmul.mubr.f32.gmra.mrb[0].mxu0 %v5743
      %v6237 = vpop.f32.mrb[0].mxu0
      %v6238 = vadd.f32 %v5881, %v6237
      %v6239 = vpop.f32.mrb[0].mxu0
      %v6240 = vadd.f32 %v5885, %v6239
      %6241 = vmatprep.mubr.f32.mxu0 0.0
      %6242 = vmatmul.mubr.f32.gmra.mrb[0].mxu0 %v5744
      %v6243 = vpop.f32.mrb[0].mxu0
      %v6244 = vadd.f32 %v5881, %v6243
      %v6245 = vpop.f32.mrb[0].mxu0
      %v6246 = vadd.f32 %v5885, %v6245
      %6247 = vmatprep.mubr.f32.mxu0 0.0
      %6248 = vmatmul.mubr.f32.gmra.mrb[0].mxu0 %v5745
      %v6249 = vpop.f32.mrb[0].mxu0
      %v6250 = vadd.f32 %v5881, %v6249
      %v6251 = vpop.f32.mrb[0].mxu0
      %v6252 = vadd.f32 %v5885, %v6251
      %6253 = vmatprep.mubr.f32.mxu0 0.0
      %6254 = vmatmul.mubr.f32.gmra.mrb[0].mxu0 %v5746
      %v6255 = vpop.f32.mrb[0].mxu0
      %v6256 = vadd.f32 %v5881, %v6255
      %v6257 = vpop.f32.mrb[0].mxu0
      %v6258 = vadd.f32 %v5885, %v6257
      %6259 = vmatprep.mubr.f32.mxu0 0.0
      %6260 = vmatmul.mubr.f32.gmra.mrb[0].mxu0 %v5747
      %v6261 = vpop.f32.mrb[0].mxu0
      %v6262 = vadd.f32 %v5881, %v6261
      %v6263 = vpop.f32.mrb[0].mxu0
      %v6264 = vadd.f32 %v5885, %v6263
      %6265 = vmatprep.mubr.f32.mxu0 0.0
      %6266 = vmatmul.mubr.f32.gmra.mrb[0].mxu0 %v5748
      %v6267 = vpop.f32.mrb[0].mxu0
      %v6268 = vadd.f32 %v5881, %v6267
      %v6269 = vpop.f32.mrb[0].mxu0
      %v6270 = vadd.f32 %v5885, %v6269
      %6271 = vmatprep.mubr.f32.mxu0 0.0
      %6272 = vmatmul.mubr.f32.gmra.mrb[0].mxu0 %v5749
      %v6273 = vpop.f32.mrb[0].mxu0
      %v6274 = vadd.f32 %v5881, %v6273
      %v6275 = vpop.f32.mrb[0].mxu0
      %v6276 = vadd.f32 %v5885, %v6275
      %6277 = vmatprep.mubr.f32.mxu0 0.0
      %6278 = vmatmul.mubr.f32.gmra.mrb[0].mxu0 %v5750
      %v6279 = vpop.f32.mrb[0].mxu0
      %v6280 = vadd.f32 %v5881, %v6279
      %v6281 = vpop.f32.mrb[0].mxu0
      %v6282 = vadd.f32 %v5885, %v6281
      %6283 = vmatprep.mubr.f32.mxu0 0.0
      %6284 = vmatmul.mubr.f32.gmra.mrb[0].mxu0 %v5751
      %v6285 = vpop.f32.mrb[0].mxu0
      %v6286 = vadd.f32 %v5881, %v6285
      %v6287 = vpop.f32.mrb[0].mxu0
      %v6288 = vadd.f32 %v5885, %v6287
      %6289 = vmatprep.mubr.f32.mxu0 0.0
      %6290 = vmatmul.mubr.f32.gmra.mrb[0].mxu0 %v5752
      %v6291 = vpop.f32.mrb[0].mxu0
      %v6292 = vadd.f32 %v5881, %v6291
      %v6293 = vpop.f32.mrb[0].mxu0
      %v6294 = vadd.f32 %v5885, %v6293
      %6295 = vmatprep.mubr.f32.mxu0 0.0
      %6296 = vmatmul.mubr.f32.gmra.mrb[0].mxu0 %v5753
      %v6297 = vpop.f32.mrb[0].mxu0
      %v6298 = vadd.f32 %v5881, %v6297
      %v6299 = vpop.f32.mrb[0].mxu0
      %v6300 = vadd.f32 %v5885, %v6299
      %6301 = vmatprep.mubr.f32.mxu0 0.0
      %6302 = vmatmul.mubr.f32.gmra.mrb[0].mxu0 %v5754
      %v6303 = vpop.f32.mrb[0].mxu0
      %v6304 = vadd.f32 %v5881, %v6303
      %v6305 = vpop.f32.mrb[0].mxu0
      %v6306 = vadd.f32 %v5885, %v6305
      %6307 = vmatprep.mubr.f32.mxu0 0.0
      %6308 = vmatmul.mubr.f32.gmra.mrb[0].mxu0 %v5755
      %v6309 = vpop.f32.mrb[0].mxu0
      %v6310 = vadd.f32 %v5881, %v6309
      %v6311 = vpop.f32.mrb[0].mxu0
      %v6312 = vadd.f32 %v5885, %v6311
      %6313 = vmatprep.mubr.f32.mxu0 0.0
      %6314 = vmatmul.mubr.f32.gmra.mrb[0].mxu0 %v5756
      %v6315 = vpop.f32.mrb[0].mxu0
      %v6316 = vadd.f32 %v5881, %v6315
      %v6317 = vpop.f32.mrb[0].mxu0
      %v6318 = vadd.f32 %v5885, %v6317
      %6319 = vmatprep.mubr.f32.mxu0 0.0
      %6320 = vmatmul.mubr.f32.gmra.mrb[0].mxu0 %v5757
      %v6321 = vpop.f32.mrb[0].mxu0
      %v6322 = vadd.f32 %v5881, %v6321
      %v6323 = vpop.f32.mrb[0].mxu0
      %v6324 = vadd.f32 %v5885, %v6323
      %6325 = vmatprep.mubr.f32.mxu0 0.0
      %6326 = vmatmul.mubr.f32.gmra.mrb[0].mxu0 %v5758
      %v6327 = vpop.f32.mrb[0].mxu0
      %v6328 = vadd.f32 %v5881, %v6327
      %v6329 = vpop.f32.mrb[0].mxu0
      %v6330 = vadd.f32 %v5885, %v6329
      %6331 = vmatprep.mubr.f32.mxu0 0.0
      %6332 = vmatmul.mubr.f32.gmra.mrb[0].mxu0 %v5759
      %v6333 = vpop.f32.mrb[0].mxu0
      %v6334 = vadd.f32 %v5881, %v6333
      %v6335 = vpop.f32.mrb[0].mxu0
      %v6336 = vadd.f32 %v5885, %v6335
      %6337 = vmatprep.mubr.f32.mxu0 0.0
      %6338 = vmatmul.mubr.f32.gmra.mrb[0].mxu0 %v5760
      %v6339 = vpop.f32.mrb[0].mxu0
      %v6340 = vadd.f32 %v5881, %v6339
      %v6341 = vpop.f32.mrb[0].mxu0
      %v6342 = vadd.f32 %v5885, %v6341
      %6343 = vmatprep.mubr.f32.mxu0 0.0
      %6344 = vmatmul.mubr.f32.gmra.mrb[0].mxu0 %v5761
      %v6345 = vpop.f32.mrb[0].mxu0
      %v6346 = vadd.f32 %v5881, %v6345
      %v6347 = vpop.f32.mrb[0].mxu0
      %v6348 = vadd.f32 %v5885, %v6347
      %6349 = vmatprep.mubr.f32.mxu0 0.0
      %6350 = vmatmul.mubr.f32.gmra.mrb[0].mxu0 %v5762
      %v6351 = vpop.f32.mrb[0].mxu0
      %v6352 = vadd.f32 %v5881, %v6351
      %v6353 = vpop.f32.mrb[0].mxu0
      %v6354 = vadd.f32 %v5885, %v6353
      %6355 = vmatprep.mubr.f32.mxu0 0.0
      %6356 = vmatmul.mubr.f32.gmra.mrb[0].mxu0 %v5763
      %v6357 = vpop.f32.mrb[0].mxu0
      %v6358 = vadd.f32 %v5881, %v6357
      %v6359 = vpop.f32.mrb[0].mxu0
      %v6360 = vadd.f32 %v5885, %v6359
      %6361 = vdwg.mxu0
      %6362 = vmatprep.subr.mxu0 %v5767
      %6363 = vmatpush1.msra.mxu0 %v5766
      %6364 = vmatprep.subr.mxu0 %v5774
      %6365 = vmatpush1.msra.mxu0 %v5773
      %6366 = vmatprep.subr.mxu0 %v5781
      %6367 = vmatpush1.msra.mxu0 %v5780
      %6368 = vmatprep.subr.mxu0 %v5788
      %6369 = vmatpush1.msra.mxu0 %v5787
      %6370 = vmatprep.subr.mxu0 %v5795
      %6371 = vmatpush1.msra.mxu0 %v5794
      %6372 = vmatprep.subr.mxu0 %v5802
      %6373 = vmatpush1.msra.mxu0 %v5801
      %6374 = vmatprep.subr.mxu0 %v5809
      %6375 = vmatpush1.msra.mxu0 %v5808
      %6376 = vmatprep.subr.mxu0 %v5816
      %6377 = vmatpush1.msra.mxu0 %v5815
      %6378 = vmatprep.subr.mxu0 %v5823
      %6379 = vmatpush1.msra.mxu0 %v5822
      %6380 = vmatprep.subr.mxu0 %v5830
      %6381 = vmatpush1.msra.mxu0 %v5829
      %6382 = vmatprep.subr.mxu0 %v5837
      %6383 = vmatpush1.msra.mxu0 %v5836
      %6384 = vmatprep.subr.mxu0 %v5844
      %6385 = vmatpush1.msra.mxu0 %v5843
      %6386 = vmatprep.subr.mxu0 %v5851
      %6387 = vmatpush1.msra.mxu0 %v5850
      %6388 = vmatprep.subr.mxu0 %v5858
      %6389 = vmatpush1.msra.mxu0 %v5857
      %6390 = vmatprep.subr.mxu0 %v5865
      %6391 = vmatpush1.msra.mxu0 %v5864
      %6392 = vmatprep.subr.mxu0 %v5872
      %6393 = vmatpush1.msra.mxu0 %v5871
      %6394 = vmatprep.subr.mxu0 0.0
      %6395 = vmatpush1.msra.mxu0 0.0
      %6396 = vmatprep.subr.mxu0 0.0
      %6397 = vmatpush1.msra.mxu0 0.0
      %6398 = vmatprep.subr.mxu0 0.0
      %6399 = vmatpush1.msra.mxu0 0.0
      %6400 = vmatprep.subr.mxu0 0.0
      %6401 = vmatpush1.msra.mxu0 0.0
      %6402 = vmatprep.subr.mxu0 0.0
      %6403 = vmatpush1.msra.mxu0 0.0
      %6404 = vmatprep.subr.mxu0 0.0
      %6405 = vmatpush1.msra.mxu0 0.0
      %6406 = vmatprep.subr.mxu0 0.0
      %6407 = vmatpush1.msra.mxu0 0.0
      %6408 = vmatprep.subr.mxu0 0.0
      %6409 = vmatpush1.msra.mxu0 0.0
      %6410 = vmatprep.subr.mxu0 0.0
      %6411 = vmatpush1.msra.mxu0 0.0
      %6412 = vmatprep.subr.mxu0 0.0
      %6413 = vmatpush1.msra.mxu0 0.0
      %6414 = vmatprep.subr.mxu0 0.0
      %6415 = vmatpush1.msra.mxu0 0.0
      %6416 = vmatprep.subr.mxu0 0.0
      %6417 = vmatpush1.msra.mxu0 0.0
      %6418 = vmatprep.subr.mxu0 0.0
      %6419 = vmatpush1.msra.mxu0 0.0
      %6420 = vmatprep.subr.mxu0 0.0
      %6421 = vmatpush1.msra.mxu0 0.0
      %6422 = vmatprep.subr.mxu0 0.0
      %6423 = vmatpush1.msra.mxu0 0.0
      %6424 = vmatprep.subr.mxu0 0.0
      %6425 = vmatpush1.msra.mxu0 0.0
      %6426 = vmatprep.mubr.f32.mxu0 0.0
      %6427 = vmatmul.mubr.f32.gmra.mrb[0].mxu0 %v5700
      %v6428 = vpop.f32.mrb[0].mxu0
      %v6429 = vadd.f32 %v5889, %v6428
      %v6430 = vpop.f32.mrb[0].mxu0
      %v6431 = vadd.f32 %v5893, %v6430
      %6432 = vmatprep.mubr.f32.mxu0 0.0
      %6433 = vmatmul.mubr.f32.gmra.mrb[0].mxu0 %v5701
      %v6434 = vpop.f32.mrb[0].mxu0
      %v6435 = vadd.f32 %v5889, %v6434
      %v6436 = vpop.f32.mrb[0].mxu0
      %v6437 = vadd.f32 %v5893, %v6436
      %6438 = vmatprep.mubr.f32.mxu0 0.0
      %6439 = vmatmul.mubr.f32.gmra.mrb[0].mxu0 %v5702
      %v6440 = vpop.f32.mrb[0].mxu0
      %v6441 = vadd.f32 %v5889, %v6440
      %v6442 = vpop.f32.mrb[0].mxu0
      %v6443 = vadd.f32 %v5893, %v6442
      %6444 = vmatprep.mubr.f32.mxu0 0.0
      %6445 = vmatmul.mubr.f32.gmra.mrb[0].mxu0 %v5703
      %v6446 = vpop.f32.mrb[0].mxu0
      %v6447 = vadd.f32 %v5889, %v6446
      %v6448 = vpop.f32.mrb[0].mxu0
      %v6449 = vadd.f32 %v5893, %v6448
      %6450 = vmatprep.mubr.f32.mxu0 0.0
      %6451 = vmatmul.mubr.f32.gmra.mrb[0].mxu0 %v5704
      %v6452 = vpop.f32.mrb[0].mxu0
      %v6453 = vadd.f32 %v5889, %v6452
      %v6454 = vpop.f32.mrb[0].mxu0
      %v6455 = vadd.f32 %v5893, %v6454
      %6456 = vmatprep.mubr.f32.mxu0 0.0
      %6457 = vmatmul.mubr.f32.gmra.mrb[0].mxu0 %v5705
      %v6458 = vpop.f32.mrb[0].mxu0
      %v6459 = vadd.f32 %v5889, %v6458
      %v6460 = vpop.f32.mrb[0].mxu0
      %v6461 = vadd.f32 %v5893, %v6460
      %6462 = vmatprep.mubr.f32.mxu0 0.0
      %6463 = vmatmul.mubr.f32.gmra.mrb[0].mxu0 %v5706
      %v6464 = vpop.f32.mrb[0].mxu0
      %v6465 = vadd.f32 %v5889, %v6464
      %v6466 = vpop.f32.mrb[0].mxu0
      %v6467 = vadd.f32 %v5893, %v6466
      %6468 = vmatprep.mubr.f32.mxu0 0.0
      %6469 = vmatmul.mubr.f32.gmra.mrb[0].mxu0 %v5707
      %v6470 = vpop.f32.mrb[0].mxu0
      %v6471 = vadd.f32 %v5889, %v6470
      %v6472 = vpop.f32.mrb[0].mxu0
      %v6473 = vadd.f32 %v5893, %v6472
      %6474 = vmatprep.mubr.f32.mxu0 0.0
      %6475 = vmatmul.mubr.f32.gmra.mrb[0].mxu0 %v5708
      %v6476 = vpop.f32.mrb[0].mxu0
      %v6477 = vadd.f32 %v5889, %v6476
      %v6478 = vpop.f32.mrb[0].mxu0
      %v6479 = vadd.f32 %v5893, %v6478
      %6480 = vmatprep.mubr.f32.mxu0 0.0
      %6481 = vmatmul.mubr.f32.gmra.mrb[0].mxu0 %v5709
      %v6482 = vpop.f32.mrb[0].mxu0
      %v6483 = vadd.f32 %v5889, %v6482
      %v6484 = vpop.f32.mrb[0].mxu0
      %v6485 = vadd.f32 %v5893, %v6484
      %6486 = vmatprep.mubr.f32.mxu0 0.0
      %6487 = vmatmul.mubr.f32.gmra.mrb[0].mxu0 %v5710
      %v6488 = vpop.f32.mrb[0].mxu0
      %v6489 = vadd.f32 %v5889, %v6488
      %v6490 = vpop.f32.mrb[0].mxu0
      %v6491 = vadd.f32 %v5893, %v6490
      %6492 = vmatprep.mubr.f32.mxu0 0.0
      %6493 = vmatmul.mubr.f32.gmra.mrb[0].mxu0 %v5711
      %v6494 = vpop.f32.mrb[0].mxu0
      %v6495 = vadd.f32 %v5889, %v6494
      %v6496 = vpop.f32.mrb[0].mxu0
      %v6497 = vadd.f32 %v5893, %v6496
      %6498 = vmatprep.mubr.f32.mxu0 0.0
      %6499 = vmatmul.mubr.f32.gmra.mrb[0].mxu0 %v5712
      %v6500 = vpop.f32.mrb[0].mxu0
      %v6501 = vadd.f32 %v5889, %v6500
      %v6502 = vpop.f32.mrb[0].mxu0
      %v6503 = vadd.f32 %v5893, %v6502
      %6504 = vmatprep.mubr.f32.mxu0 0.0
      %6505 = vmatmul.mubr.f32.gmra.mrb[0].mxu0 %v5713
      %v6506 = vpop.f32.mrb[0].mxu0
      %v6507 = vadd.f32 %v5889, %v6506
      %v6508 = vpop.f32.mrb[0].mxu0
      %v6509 = vadd.f32 %v5893, %v6508
      %6510 = vmatprep.mubr.f32.mxu0 0.0
      %6511 = vmatmul.mubr.f32.gmra.mrb[0].mxu0 %v5714
      %v6512 = vpop.f32.mrb[0].mxu0
      %v6513 = vadd.f32 %v5889, %v6512
      %v6514 = vpop.f32.mrb[0].mxu0
      %v6515 = vadd.f32 %v5893, %v6514
      %6516 = vmatprep.mubr.f32.mxu0 0.0
      %6517 = vmatmul.mubr.f32.gmra.mrb[0].mxu0 %v5715
      %v6518 = vpop.f32.mrb[0].mxu0
      %v6519 = vadd.f32 %v5889, %v6518
      %v6520 = vpop.f32.mrb[0].mxu0
      %v6521 = vadd.f32 %v5893, %v6520
      %6522 = vmatprep.mubr.f32.mxu0 0.0
      %6523 = vmatmul.mubr.f32.gmra.mrb[0].mxu0 %v5716
      %v6524 = vpop.f32.mrb[0].mxu0
      %v6525 = vadd.f32 %v5889, %v6524
      %v6526 = vpop.f32.mrb[0].mxu0
      %v6527 = vadd.f32 %v5893, %v6526
      %6528 = vmatprep.mubr.f32.mxu0 0.0
      %6529 = vmatmul.mubr.f32.gmra.mrb[0].mxu0 %v5717
      %v6530 = vpop.f32.mrb[0].mxu0
      %v6531 = vadd.f32 %v5889, %v6530
      %v6532 = vpop.f32.mrb[0].mxu0
      %v6533 = vadd.f32 %v5893, %v6532
      %6534 = vmatprep.mubr.f32.mxu0 0.0
      %6535 = vmatmul.mubr.f32.gmra.mrb[0].mxu0 %v5718
      %v6536 = vpop.f32.mrb[0].mxu0
      %v6537 = vadd.f32 %v5889, %v6536
      %v6538 = vpop.f32.mrb[0].mxu0
      %v6539 = vadd.f32 %v5893, %v6538
      %6540 = vmatprep.mubr.f32.mxu0 0.0
      %6541 = vmatmul.mubr.f32.gmra.mrb[0].mxu0 %v5719
      %v6542 = vpop.f32.mrb[0].mxu0
      %v6543 = vadd.f32 %v5889, %v6542
      %v6544 = vpop.f32.mrb[0].mxu0
      %v6545 = vadd.f32 %v5893, %v6544
      %6546 = vmatprep.mubr.f32.mxu0 0.0
      %6547 = vmatmul.mubr.f32.gmra.mrb[0].mxu0 %v5720
      %v6548 = vpop.f32.mrb[0].mxu0
      %v6549 = vadd.f32 %v5889, %v6548
      %v6550 = vpop.f32.mrb[0].mxu0
      %v6551 = vadd.f32 %v5893, %v6550
      %6552 = vmatprep.mubr.f32.mxu0 0.0
      %6553 = vmatmul.mubr.f32.gmra.mrb[0].mxu0 %v5721
      %v6554 = vpop.f32.mrb[0].mxu0
      %v6555 = vadd.f32 %v5889, %v6554
      %v6556 = vpop.f32.mrb[0].mxu0
      %v6557 = vadd.f32 %v5893, %v6556
      %6558 = vmatprep.mubr.f32.mxu0 0.0
      %6559 = vmatmul.mubr.f32.gmra.mrb[0].mxu0 %v5722
      %v6560 = vpop.f32.mrb[0].mxu0
      %v6561 = vadd.f32 %v5889, %v6560
      %v6562 = vpop.f32.mrb[0].mxu0
      %v6563 = vadd.f32 %v5893, %v6562
      %6564 = vmatprep.mubr.f32.mxu0 0.0
      %6565 = vmatmul.mubr.f32.gmra.mrb[0].mxu0 %v5723
      %v6566 = vpop.f32.mrb[0].mxu0
      %v6567 = vadd.f32 %v5889, %v6566
      %v6568 = vpop.f32.mrb[0].mxu0
      %v6569 = vadd.f32 %v5893, %v6568
      %6570 = vmatprep.mubr.f32.mxu0 0.0
      %6571 = vmatmul.mubr.f32.gmra.mrb[0].mxu0 %v5724
      %v6572 = vpop.f32.mrb[0].mxu0
      %v6573 = vadd.f32 %v5889, %v6572
      %v6574 = vpop.f32.mrb[0].mxu0
      %v6575 = vadd.f32 %v5893, %v6574
      %6576 = vmatprep.mubr.f32.mxu0 0.0
      %6577 = vmatmul.mubr.f32.gmra.mrb[0].mxu0 %v5725
      %v6578 = vpop.f32.mrb[0].mxu0
      %v6579 = vadd.f32 %v5889, %v6578
      %v6580 = vpop.f32.mrb[0].mxu0
      %v6581 = vadd.f32 %v5893, %v6580
      %6582 = vmatprep.mubr.f32.mxu0 0.0
      %6583 = vmatmul.mubr.f32.gmra.mrb[0].mxu0 %v5726
      %v6584 = vpop.f32.mrb[0].mxu0
      %v6585 = vadd.f32 %v5889, %v6584
      %v6586 = vpop.f32.mrb[0].mxu0
      %v6587 = vadd.f32 %v5893, %v6586
      %6588 = vmatprep.mubr.f32.mxu0 0.0
      %6589 = vmatmul.mubr.f32.gmra.mrb[0].mxu0 %v5727
      %v6590 = vpop.f32.mrb[0].mxu0
      %v6591 = vadd.f32 %v5889, %v6590
      %v6592 = vpop.f32.mrb[0].mxu0
      %v6593 = vadd.f32 %v5893, %v6592
      %6594 = vmatprep.mubr.f32.mxu0 0.0
      %6595 = vmatmul.mubr.f32.gmra.mrb[0].mxu0 %v5728
      %v6596 = vpop.f32.mrb[0].mxu0
      %v6597 = vadd.f32 %v5889, %v6596
      %v6598 = vpop.f32.mrb[0].mxu0
      %v6599 = vadd.f32 %v5893, %v6598
      %6600 = vmatprep.mubr.f32.mxu0 0.0
      %6601 = vmatmul.mubr.f32.gmra.mrb[0].mxu0 %v5729
      %v6602 = vpop.f32.mrb[0].mxu0
      %v6603 = vadd.f32 %v5889, %v6602
      %v6604 = vpop.f32.mrb[0].mxu0
      %v6605 = vadd.f32 %v5893, %v6604
      %6606 = vmatprep.mubr.f32.mxu0 0.0
      %6607 = vmatmul.mubr.f32.gmra.mrb[0].mxu0 %v5730
      %v6608 = vpop.f32.mrb[0].mxu0
      %v6609 = vadd.f32 %v5889, %v6608
      %v6610 = vpop.f32.mrb[0].mxu0
      %v6611 = vadd.f32 %v5893, %v6610
      %6612 = vmatprep.mubr.f32.mxu0 0.0
      %6613 = vmatmul.mubr.f32.gmra.mrb[0].mxu0 %v5731
      %v6614 = vpop.f32.mrb[0].mxu0
      %v6615 = vadd.f32 %v5889, %v6614
      %v6616 = vpop.f32.mrb[0].mxu0
      %v6617 = vadd.f32 %v5893, %v6616
      %6618 = vmatprep.mubr.f32.mxu0 0.0
      %6619 = vmatmul.mubr.f32.gmra.mrb[0].mxu0 %v5732
      %v6620 = vpop.f32.mrb[0].mxu0
      %v6621 = vadd.f32 %v5889, %v6620
      %v6622 = vpop.f32.mrb[0].mxu0
      %v6623 = vadd.f32 %v5893, %v6622
      %6624 = vmatprep.mubr.f32.mxu0 0.0
      %6625 = vmatmul.mubr.f32.gmra.mrb[0].mxu0 %v5733
      %v6626 = vpop.f32.mrb[0].mxu0
      %v6627 = vadd.f32 %v5889, %v6626
      %v6628 = vpop.f32.mrb[0].mxu0
      %v6629 = vadd.f32 %v5893, %v6628
      %6630 = vmatprep.mubr.f32.mxu0 0.0
      %6631 = vmatmul.mubr.f32.gmra.mrb[0].mxu0 %v5734
      %v6632 = vpop.f32.mrb[0].mxu0
      %v6633 = vadd.f32 %v5889, %v6632
      %v6634 = vpop.f32.mrb[0].mxu0
      %v6635 = vadd.f32 %v5893, %v6634
      %6636 = vmatprep.mubr.f32.mxu0 0.0
      %6637 = vmatmul.mubr.f32.gmra.mrb[0].mxu0 %v5735
      %v6638 = vpop.f32.mrb[0].mxu0
      %v6639 = vadd.f32 %v5889, %v6638
      %v6640 = vpop.f32.mrb[0].mxu0
      %v6641 = vadd.f32 %v5893, %v6640
      %6642 = vmatprep.mubr.f32.mxu0 0.0
      %6643 = vmatmul.mubr.f32.gmra.mrb[0].mxu0 %v5736
      %v6644 = vpop.f32.mrb[0].mxu0
      %v6645 = vadd.f32 %v5889, %v6644
      %v6646 = vpop.f32.mrb[0].mxu0
      %v6647 = vadd.f32 %v5893, %v6646
      %6648 = vmatprep.mubr.f32.mxu0 0.0
      %6649 = vmatmul.mubr.f32.gmra.mrb[0].mxu0 %v5737
      %v6650 = vpop.f32.mrb[0].mxu0
      %v6651 = vadd.f32 %v5889, %v6650
      %v6652 = vpop.f32.mrb[0].mxu0
      %v6653 = vadd.f32 %v5893, %v6652
      %6654 = vmatprep.mubr.f32.mxu0 0.0
      %6655 = vmatmul.mubr.f32.gmra.mrb[0].mxu0 %v5738
      %v6656 = vpop.f32.mrb[0].mxu0
      %v6657 = vadd.f32 %v5889, %v6656
      %v6658 = vpop.f32.mrb[0].mxu0
      %v6659 = vadd.f32 %v5893, %v6658
      %6660 = vmatprep.mubr.f32.mxu0 0.0
      %6661 = vmatmul.mubr.f32.gmra.mrb[0].mxu0 %v5739
      %v6662 = vpop.f32.mrb[0].mxu0
      %v6663 = vadd.f32 %v5889, %v6662
      %v6664 = vpop.f32.mrb[0].mxu0
      %v6665 = vadd.f32 %v5893, %v6664
      %6666 = vmatprep.mubr.f32.mxu0 0.0
      %6667 = vmatmul.mubr.f32.gmra.mrb[0].mxu0 %v5740
      %v6668 = vpop.f32.mrb[0].mxu0
      %v6669 = vadd.f32 %v5889, %v6668
      %v6670 = vpop.f32.mrb[0].mxu0
      %v6671 = vadd.f32 %v5893, %v6670
      %6672 = vmatprep.mubr.f32.mxu0 0.0
      %6673 = vmatmul.mubr.f32.gmra.mrb[0].mxu0 %v5741
      %v6674 = vpop.f32.mrb[0].mxu0
      %v6675 = vadd.f32 %v5889, %v6674
      %v6676 = vpop.f32.mrb[0].mxu0
      %v6677 = vadd.f32 %v5893, %v6676
      %6678 = vmatprep.mubr.f32.mxu0 0.0
      %6679 = vmatmul.mubr.f32.gmra.mrb[0].mxu0 %v5742
      %v6680 = vpop.f32.mrb[0].mxu0
      %v6681 = vadd.f32 %v5889, %v6680
      %v6682 = vpop.f32.mrb[0].mxu0
      %v6683 = vadd.f32 %v5893, %v6682
      %6684 = vmatprep.mubr.f32.mxu0 0.0
      %6685 = vmatmul.mubr.f32.gmra.mrb[0].mxu0 %v5743
      %v6686 = vpop.f32.mrb[0].mxu0
      %v6687 = vadd.f32 %v5889, %v6686
      %v6688 = vpop.f32.mrb[0].mxu0
      %v6689 = vadd.f32 %v5893, %v6688
      %6690 = vmatprep.mubr.f32.mxu0 0.0
      %6691 = vmatmul.mubr.f32.gmra.mrb[0].mxu0 %v5744
      %v6692 = vpop.f32.mrb[0].mxu0
      %v6693 = vadd.f32 %v5889, %v6692
      %v6694 = vpop.f32.mrb[0].mxu0
      %v6695 = vadd.f32 %v5893, %v6694
      %6696 = vmatprep.mubr.f32.mxu0 0.0
      %6697 = vmatmul.mubr.f32.gmra.mrb[0].mxu0 %v5745
      %v6698 = vpop.f32.mrb[0].mxu0
      %v6699 = vadd.f32 %v5889, %v6698
      %v6700 = vpop.f32.mrb[0].mxu0
      %v6701 = vadd.f32 %v5893, %v6700
      %6702 = vmatprep.mubr.f32.mxu0 0.0
      %6703 = vmatmul.mubr.f32.gmra.mrb[0].mxu0 %v5746
      %v6704 = vpop.f32.mrb[0].mxu0
      %v6705 = vadd.f32 %v5889, %v6704
      %v6706 = vpop.f32.mrb[0].mxu0
      %v6707 = vadd.f32 %v5893, %v6706
      %6708 = vmatprep.mubr.f32.mxu0 0.0
      %6709 = vmatmul.mubr.f32.gmra.mrb[0].mxu0 %v5747
      %v6710 = vpop.f32.mrb[0].mxu0
      %v6711 = vadd.f32 %v5889, %v6710
      %v6712 = vpop.f32.mrb[0].mxu0
      %v6713 = vadd.f32 %v5893, %v6712
      %6714 = vmatprep.mubr.f32.mxu0 0.0
      %6715 = vmatmul.mubr.f32.gmra.mrb[0].mxu0 %v5748
      %v6716 = vpop.f32.mrb[0].mxu0
      %v6717 = vadd.f32 %v5889, %v6716
      %v6718 = vpop.f32.mrb[0].mxu0
      %v6719 = vadd.f32 %v5893, %v6718
      %6720 = vmatprep.mubr.f32.mxu0 0.0
      %6721 = vmatmul.mubr.f32.gmra.mrb[0].mxu0 %v5749
      %v6722 = vpop.f32.mrb[0].mxu0
      %v6723 = vadd.f32 %v5889, %v6722
      %v6724 = vpop.f32.mrb[0].mxu0
      %v6725 = vadd.f32 %v5893, %v6724
      %6726 = vmatprep.mubr.f32.mxu0 0.0
      %6727 = vmatmul.mubr.f32.gmra.mrb[0].mxu0 %v5750
      %v6728 = vpop.f32.mrb[0].mxu0
      %v6729 = vadd.f32 %v5889, %v6728
      %v6730 = vpop.f32.mrb[0].mxu0
      %v6731 = vadd.f32 %v5893, %v6730
      %6732 = vmatprep.mubr.f32.mxu0 0.0
      %6733 = vmatmul.mubr.f32.gmra.mrb[0].mxu0 %v5751
      %v6734 = vpop.f32.mrb[0].mxu0
      %v6735 = vadd.f32 %v5889, %v6734
      %v6736 = vpop.f32.mrb[0].mxu0
      %v6737 = vadd.f32 %v5893, %v6736
      %6738 = vmatprep.mubr.f32.mxu0 0.0
      %6739 = vmatmul.mubr.f32.gmra.mrb[0].mxu0 %v5752
      %v6740 = vpop.f32.mrb[0].mxu0
      %v6741 = vadd.f32 %v5889, %v6740
      %v6742 = vpop.f32.mrb[0].mxu0
      %v6743 = vadd.f32 %v5893, %v6742
      %6744 = vmatprep.mubr.f32.mxu0 0.0
      %6745 = vmatmul.mubr.f32.gmra.mrb[0].mxu0 %v5753
      %v6746 = vpop.f32.mrb[0].mxu0
      %v6747 = vadd.f32 %v5889, %v6746
      %v6748 = vpop.f32.mrb[0].mxu0
      %v6749 = vadd.f32 %v5893, %v6748
      %6750 = vmatprep.mubr.f32.mxu0 0.0
      %6751 = vmatmul.mubr.f32.gmra.mrb[0].mxu0 %v5754
      %v6752 = vpop.f32.mrb[0].mxu0
      %v6753 = vadd.f32 %v5889, %v6752
      %v6754 = vpop.f32.mrb[0].mxu0
      %v6755 = vadd.f32 %v5893, %v6754
      %6756 = vmatprep.mubr.f32.mxu0 0.0
      %6757 = vmatmul.mubr.f32.gmra.mrb[0].mxu0 %v5755
      %v6758 = vpop.f32.mrb[0].mxu0
      %v6759 = vadd.f32 %v5889, %v6758
      %v6760 = vpop.f32.mrb[0].mxu0
      %v6761 = vadd.f32 %v5893, %v6760
      %6762 = vmatprep.mubr.f32.mxu0 0.0
      %6763 = vmatmul.mubr.f32.gmra.mrb[0].mxu0 %v5756
      %v6764 = vpop.f32.mrb[0].mxu0
      %v6765 = vadd.f32 %v5889, %v6764
      %v6766 = vpop.f32.mrb[0].mxu0
      %v6767 = vadd.f32 %v5893, %v6766
      %6768 = vmatprep.mubr.f32.mxu0 0.0
      %6769 = vmatmul.mubr.f32.gmra.mrb[0].mxu0 %v5757
      %v6770 = vpop.f32.mrb[0].mxu0
      %v6771 = vadd.f32 %v5889, %v6770
      %v6772 = vpop.f32.mrb[0].mxu0
      %v6773 = vadd.f32 %v5893, %v6772
      %6774 = vmatprep.mubr.f32.mxu0 0.0
      %6775 = vmatmul.mubr.f32.gmra.mrb[0].mxu0 %v5758
      %v6776 = vpop.f32.mrb[0].mxu0
      %v6777 = vadd.f32 %v5889, %v6776
      %v6778 = vpop.f32.mrb[0].mxu0
      %v6779 = vadd.f32 %v5893, %v6778
      %6780 = vmatprep.mubr.f32.mxu0 0.0
      %6781 = vmatmul.mubr.f32.gmra.mrb[0].mxu0 %v5759
      %v6782 = vpop.f32.mrb[0].mxu0
      %v6783 = vadd.f32 %v5889, %v6782
      %v6784 = vpop.f32.mrb[0].mxu0
      %v6785 = vadd.f32 %v5893, %v6784
      %6786 = vmatprep.mubr.f32.mxu0 0.0
      %6787 = vmatmul.mubr.f32.gmra.mrb[0].mxu0 %v5760
      %v6788 = vpop.f32.mrb[0].mxu0
      %v6789 = vadd.f32 %v5889, %v6788
      %v6790 = vpop.f32.mrb[0].mxu0
      %v6791 = vadd.f32 %v5893, %v6790
      %6792 = vmatprep.mubr.f32.mxu0 0.0
      %6793 = vmatmul.mubr.f32.gmra.mrb[0].mxu0 %v5761
      %v6794 = vpop.f32.mrb[0].mxu0
      %v6795 = vadd.f32 %v5889, %v6794
      %v6796 = vpop.f32.mrb[0].mxu0
      %v6797 = vadd.f32 %v5893, %v6796
      %6798 = vmatprep.mubr.f32.mxu0 0.0
      %6799 = vmatmul.mubr.f32.gmra.mrb[0].mxu0 %v5762
      %v6800 = vpop.f32.mrb[0].mxu0
      %v6801 = vadd.f32 %v5889, %v6800
      %v6802 = vpop.f32.mrb[0].mxu0
      %v6803 = vadd.f32 %v5893, %v6802
      %6804 = vmatprep.mubr.f32.mxu0 0.0
      %6805 = vmatmul.mubr.f32.gmra.mrb[0].mxu0 %v5763
      %v6806 = vpop.f32.mrb[0].mxu0
      %v6807 = vadd.f32 %v5889, %v6806
      %v6808 = vpop.f32.mrb[0].mxu0
      %v6809 = vadd.f32 %v5893, %v6808
      %6810 = vdwg.mxu0
      %6811 = vmatprep.subr.mxu0 %v5769
      %6812 = vmatpush1.msra.mxu0 %v5768
      %6813 = vmatprep.subr.mxu0 %v5776
      %6814 = vmatpush1.msra.mxu0 %v5775
      %6815 = vmatprep.subr.mxu0 %v5783
      %6816 = vmatpush1.msra.mxu0 %v5782
      %6817 = vmatprep.subr.mxu0 %v5790
      %6818 = vmatpush1.msra.mxu0 %v5789
      %6819 = vmatprep.subr.mxu0 %v5797
      %6820 = vmatpush1.msra.mxu0 %v5796
      %6821 = vmatprep.subr.mxu0 %v5804
      %6822 = vmatpush1.msra.mxu0 %v5803
      %6823 = vmatprep.subr.mxu0 %v5811
      %6824 = vmatpush1.msra.mxu0 %v5810
      %6825 = vmatprep.subr.mxu0 %v5818
      %6826 = vmatpush1.msra.mxu0 %v5817
      %6827 = vmatprep.subr.mxu0 %v5825
      %6828 = vmatpush1.msra.mxu0 %v5824
      %6829 = vmatprep.subr.mxu0 %v5832
      %6830 = vmatpush1.msra.mxu0 %v5831
      %6831 = vmatprep.subr.mxu0 %v5839
      %6832 = vmatpush1.msra.mxu0 %v5838
      %6833 = vmatprep.subr.mxu0 %v5846
      %6834 = vmatpush1.msra.mxu0 %v5845
      %6835 = vmatprep.subr.mxu0 %v5853
      %6836 = vmatpush1.msra.mxu0 %v5852
      %6837 = vmatprep.subr.mxu0 %v5860
      %6838 = vmatpush1.msra.mxu0 %v5859
      %6839 = vmatprep.subr.mxu0 %v5867
      %6840 = vmatpush1.msra.mxu0 %v5866
      %6841 = vmatprep.subr.mxu0 %v5874
      %6842 = vmatpush1.msra.mxu0 %v5873
      %6843 = vmatprep.subr.mxu0 0.0
      %6844 = vmatpush1.msra.mxu0 0.0
      %6845 = vmatprep.subr.mxu0 0.0
      %6846 = vmatpush1.msra.mxu0 0.0
      %6847 = vmatprep.subr.mxu0 0.0
      %6848 = vmatpush1.msra.mxu0 0.0
      %6849 = vmatprep.subr.mxu0 0.0
      %6850 = vmatpush1.msra.mxu0 0.0
      %6851 = vmatprep.subr.mxu0 0.0
      %6852 = vmatpush1.msra.mxu0 0.0
      %6853 = vmatprep.subr.mxu0 0.0
      %6854 = vmatpush1.msra.mxu0 0.0
      %6855 = vmatprep.subr.mxu0 0.0
      %6856 = vmatpush1.msra.mxu0 0.0
      %6857 = vmatprep.subr.mxu0 0.0
      %6858 = vmatpush1.msra.mxu0 0.0
      %6859 = vmatprep.subr.mxu0 0.0
      %6860 = vmatpush1.msra.mxu0 0.0
      %6861 = vmatprep.subr.mxu0 0.0
      %6862 = vmatpush1.msra.mxu0 0.0
      %6863 = vmatprep.subr.mxu0 0.0
      %6864 = vmatpush1.msra.mxu0 0.0
      %6865 = vmatprep.subr.mxu0 0.0
      %6866 = vmatpush1.msra.mxu0 0.0
      %6867 = vmatprep.subr.mxu0 0.0
      %6868 = vmatpush1.msra.mxu0 0.0
      %6869 = vmatprep.subr.mxu0 0.0
      %6870 = vmatpush1.msra.mxu0 0.0
      %6871 = vmatprep.subr.mxu0 0.0
      %6872 = vmatpush1.msra.mxu0 0.0
      %6873 = vmatprep.subr.mxu0 0.0
      %6874 = vmatpush1.msra.mxu0 0.0
      %6875 = vmatprep.mubr.f32.mxu0 0.0
      %6876 = vmatmul.mubr.f32.gmra.mrb[0].mxu0 %v5700
      %v6877 = vpop.f32.mrb[0].mxu0
      %v6878 = vadd.f32 %v5897, %v6877
      %v6879 = vpop.f32.mrb[0].mxu0
      %v6880 = vadd.f32 %v5901, %v6879
      %6881 = vmatprep.mubr.f32.mxu0 0.0
      %6882 = vmatmul.mubr.f32.gmra.mrb[0].mxu0 %v5701
      %v6883 = vpop.f32.mrb[0].mxu0
      %v6884 = vadd.f32 %v5897, %v6883
      %v6885 = vpop.f32.mrb[0].mxu0
      %v6886 = vadd.f32 %v5901, %v6885
      %6887 = vmatprep.mubr.f32.mxu0 0.0
      %6888 = vmatmul.mubr.f32.gmra.mrb[0].mxu0 %v5702
      %v6889 = vpop.f32.mrb[0].mxu0
      %v6890 = vadd.f32 %v5897, %v6889
      %v6891 = vpop.f32.mrb[0].mxu0
      %v6892 = vadd.f32 %v5901, %v6891
      %6893 = vmatprep.mubr.f32.mxu0 0.0
      %6894 = vmatmul.mubr.f32.gmra.mrb[0].mxu0 %v5703
      %v6895 = vpop.f32.mrb[0].mxu0
      %v6896 = vadd.f32 %v5897, %v6895
      %v6897 = vpop.f32.mrb[0].mxu0
      %v6898 = vadd.f32 %v5901, %v6897
      %6899 = vmatprep.mubr.f32.mxu0 0.0
      %6900 = vmatmul.mubr.f32.gmra.mrb[0].mxu0 %v5704
      %v6901 = vpop.f32.mrb[0].mxu0
      %v6902 = vadd.f32 %v5897, %v6901
      %v6903 = vpop.f32.mrb[0].mxu0
      %v6904 = vadd.f32 %v5901, %v6903
      %6905 = vmatprep.mubr.f32.mxu0 0.0
      %6906 = vmatmul.mubr.f32.gmra.mrb[0].mxu0 %v5705
      %v6907 = vpop.f32.mrb[0].mxu0
      %v6908 = vadd.f32 %v5897, %v6907
      %v6909 = vpop.f32.mrb[0].mxu0
      %v6910 = vadd.f32 %v5901, %v6909
      %6911 = vmatprep.mubr.f32.mxu0 0.0
      %6912 = vmatmul.mubr.f32.gmra.mrb[0].mxu0 %v5706
      %v6913 = vpop.f32.mrb[0].mxu0
      %v6914 = vadd.f32 %v5897, %v6913
      %v6915 = vpop.f32.mrb[0].mxu0
      %v6916 = vadd.f32 %v5901, %v6915
      %6917 = vmatprep.mubr.f32.mxu0 0.0
      %6918 = vmatmul.mubr.f32.gmra.mrb[0].mxu0 %v5707
      %v6919 = vpop.f32.mrb[0].mxu0
      %v6920 = vadd.f32 %v5897, %v6919
      %v6921 = vpop.f32.mrb[0].mxu0
      %v6922 = vadd.f32 %v5901, %v6921
      %6923 = vmatprep.mubr.f32.mxu0 0.0
      %6924 = vmatmul.mubr.f32.gmra.mrb[0].mxu0 %v5708
      %v6925 = vpop.f32.mrb[0].mxu0
      %v6926 = vadd.f32 %v5897, %v6925
      %v6927 = vpop.f32.mrb[0].mxu0
      %v6928 = vadd.f32 %v5901, %v6927
      %6929 = vmatprep.mubr.f32.mxu0 0.0
      %6930 = vmatmul.mubr.f32.gmra.mrb[0].mxu0 %v5709
      %v6931 = vpop.f32.mrb[0].mxu0
      %v6932 = vadd.f32 %v5897, %v6931
      %v6933 = vpop.f32.mrb[0].mxu0
      %v6934 = vadd.f32 %v5901, %v6933
      %6935 = vmatprep.mubr.f32.mxu0 0.0
      %6936 = vmatmul.mubr.f32.gmra.mrb[0].mxu0 %v5710
      %v6937 = vpop.f32.mrb[0].mxu0
      %v6938 = vadd.f32 %v5897, %v6937
      %v6939 = vpop.f32.mrb[0].mxu0
      %v6940 = vadd.f32 %v5901, %v6939
      %6941 = vmatprep.mubr.f32.mxu0 0.0
      %6942 = vmatmul.mubr.f32.gmra.mrb[0].mxu0 %v5711
      %v6943 = vpop.f32.mrb[0].mxu0
      %v6944 = vadd.f32 %v5897, %v6943
      %v6945 = vpop.f32.mrb[0].mxu0
      %v6946 = vadd.f32 %v5901, %v6945
      %6947 = vmatprep.mubr.f32.mxu0 0.0
      %6948 = vmatmul.mubr.f32.gmra.mrb[0].mxu0 %v5712
      %v6949 = vpop.f32.mrb[0].mxu0
      %v6950 = vadd.f32 %v5897, %v6949
      %v6951 = vpop.f32.mrb[0].mxu0
      %v6952 = vadd.f32 %v5901, %v6951
      %6953 = vmatprep.mubr.f32.mxu0 0.0
      %6954 = vmatmul.mubr.f32.gmra.mrb[0].mxu0 %v5713
      %v6955 = vpop.f32.mrb[0].mxu0
      %v6956 = vadd.f32 %v5897, %v6955
      %v6957 = vpop.f32.mrb[0].mxu0
      %v6958 = vadd.f32 %v5901, %v6957
      %6959 = vmatprep.mubr.f32.mxu0 0.0
      %6960 = vmatmul.mubr.f32.gmra.mrb[0].mxu0 %v5714
      %v6961 = vpop.f32.mrb[0].mxu0
      %v6962 = vadd.f32 %v5897, %v6961
      %v6963 = vpop.f32.mrb[0].mxu0
      %v6964 = vadd.f32 %v5901, %v6963
      %6965 = vmatprep.mubr.f32.mxu0 0.0
      %6966 = vmatmul.mubr.f32.gmra.mrb[0].mxu0 %v5715
      %v6967 = vpop.f32.mrb[0].mxu0
      %v6968 = vadd.f32 %v5897, %v6967
      %v6969 = vpop.f32.mrb[0].mxu0
      %v6970 = vadd.f32 %v5901, %v6969
      %6971 = vmatprep.mubr.f32.mxu0 0.0
      %6972 = vmatmul.mubr.f32.gmra.mrb[0].mxu0 %v5716
      %v6973 = vpop.f32.mrb[0].mxu0
      %v6974 = vadd.f32 %v5897, %v6973
      %v6975 = vpop.f32.mrb[0].mxu0
      %v6976 = vadd.f32 %v5901, %v6975
      %6977 = vmatprep.mubr.f32.mxu0 0.0
      %6978 = vmatmul.mubr.f32.gmra.mrb[0].mxu0 %v5717
      %v6979 = vpop.f32.mrb[0].mxu0
      %v6980 = vadd.f32 %v5897, %v6979
      %v6981 = vpop.f32.mrb[0].mxu0
      %v6982 = vadd.f32 %v5901, %v6981
      %6983 = vmatprep.mubr.f32.mxu0 0.0
      %6984 = vmatmul.mubr.f32.gmra.mrb[0].mxu0 %v5718
      %v6985 = vpop.f32.mrb[0].mxu0
      %v6986 = vadd.f32 %v5897, %v6985
      %v6987 = vpop.f32.mrb[0].mxu0
      %v6988 = vadd.f32 %v5901, %v6987
      %6989 = vmatprep.mubr.f32.mxu0 0.0
      %6990 = vmatmul.mubr.f32.gmra.mrb[0].mxu0 %v5719
      %v6991 = vpop.f32.mrb[0].mxu0
      %v6992 = vadd.f32 %v5897, %v6991
      %v6993 = vpop.f32.mrb[0].mxu0
      %v6994 = vadd.f32 %v5901, %v6993
      %6995 = vmatprep.mubr.f32.mxu0 0.0
      %6996 = vmatmul.mubr.f32.gmra.mrb[0].mxu0 %v5720
      %v6997 = vpop.f32.mrb[0].mxu0
      %v6998 = vadd.f32 %v5897, %v6997
      %v6999 = vpop.f32.mrb[0].mxu0
      %v7000 = vadd.f32 %v5901, %v6999
      %7001 = vmatprep.mubr.f32.mxu0 0.0
      %7002 = vmatmul.mubr.f32.gmra.mrb[0].mxu0 %v5721
      %v7003 = vpop.f32.mrb[0].mxu0
      %v7004 = vadd.f32 %v5897, %v7003
      %v7005 = vpop.f32.mrb[0].mxu0
      %v7006 = vadd.f32 %v5901, %v7005
      %7007 = vmatprep.mubr.f32.mxu0 0.0
      %7008 = vmatmul.mubr.f32.gmra.mrb[0].mxu0 %v5722
      %v7009 = vpop.f32.mrb[0].mxu0
      %v7010 = vadd.f32 %v5897, %v7009
      %v7011 = vpop.f32.mrb[0].mxu0
      %v7012 = vadd.f32 %v5901, %v7011
      %7013 = vmatprep.mubr.f32.mxu0 0.0
      %7014 = vmatmul.mubr.f32.gmra.mrb[0].mxu0 %v5723
      %v7015 = vpop.f32.mrb[0].mxu0
      %v7016 = vadd.f32 %v5897, %v7015
      %v7017 = vpop.f32.mrb[0].mxu0
      %v7018 = vadd.f32 %v5901, %v7017
      %7019 = vmatprep.mubr.f32.mxu0 0.0
      %7020 = vmatmul.mubr.f32.gmra.mrb[0].mxu0 %v5724
      %v7021 = vpop.f32.mrb[0].mxu0
      %v7022 = vadd.f32 %v5897, %v7021
      %v7023 = vpop.f32.mrb[0].mxu0
      %v7024 = vadd.f32 %v5901, %v7023
      %7025 = vmatprep.mubr.f32.mxu0 0.0
      %7026 = vmatmul.mubr.f32.gmra.mrb[0].mxu0 %v5725
      %v7027 = vpop.f32.mrb[0].mxu0
      %v7028 = vadd.f32 %v5897, %v7027
      %v7029 = vpop.f32.mrb[0].mxu0
      %v7030 = vadd.f32 %v5901, %v7029
      %7031 = vmatprep.mubr.f32.mxu0 0.0
      %7032 = vmatmul.mubr.f32.gmra.mrb[0].mxu0 %v5726
      %v7033 = vpop.f32.mrb[0].mxu0
      %v7034 = vadd.f32 %v5897, %v7033
      %v7035 = vpop.f32.mrb[0].mxu0
      %v7036 = vadd.f32 %v5901, %v7035
      %7037 = vmatprep.mubr.f32.mxu0 0.0
      %7038 = vmatmul.mubr.f32.gmra.mrb[0].mxu0 %v5727
      %v7039 = vpop.f32.mrb[0].mxu0
      %v7040 = vadd.f32 %v5897, %v7039
      %v7041 = vpop.f32.mrb[0].mxu0
      %v7042 = vadd.f32 %v5901, %v7041
      %7043 = vmatprep.mubr.f32.mxu0 0.0
      %7044 = vmatmul.mubr.f32.gmra.mrb[0].mxu0 %v5728
      %v7045 = vpop.f32.mrb[0].mxu0
      %v7046 = vadd.f32 %v5897, %v7045
      %v7047 = vpop.f32.mrb[0].mxu0
      %v7048 = vadd.f32 %v5901, %v7047
      %7049 = vmatprep.mubr.f32.mxu0 0.0
      %7050 = vmatmul.mubr.f32.gmra.mrb[0].mxu0 %v5729
      %v7051 = vpop.f32.mrb[0].mxu0
      %v7052 = vadd.f32 %v5897, %v7051
      %v7053 = vpop.f32.mrb[0].mxu0
      %v7054 = vadd.f32 %v5901, %v7053
      %7055 = vmatprep.mubr.f32.mxu0 0.0
      %7056 = vmatmul.mubr.f32.gmra.mrb[0].mxu0 %v5730
      %v7057 = vpop.f32.mrb[0].mxu0
      %v7058 = vadd.f32 %v5897, %v7057
      %v7059 = vpop.f32.mrb[0].mxu0
      %v7060 = vadd.f32 %v5901, %v7059
      %7061 = vmatprep.mubr.f32.mxu0 0.0
      %7062 = vmatmul.mubr.f32.gmra.mrb[0].mxu0 %v5731
      %v7063 = vpop.f32.mrb[0].mxu0
      %v7064 = vadd.f32 %v5897, %v7063
      %v7065 = vpop.f32.mrb[0].mxu0
      %v7066 = vadd.f32 %v5901, %v7065
      %7067 = vmatprep.mubr.f32.mxu0 0.0
      %7068 = vmatmul.mubr.f32.gmra.mrb[0].mxu0 %v5732
      %v7069 = vpop.f32.mrb[0].mxu0
      %v7070 = vadd.f32 %v5897, %v7069
      %v7071 = vpop.f32.mrb[0].mxu0
      %v7072 = vadd.f32 %v5901, %v7071
      %7073 = vmatprep.mubr.f32.mxu0 0.0
      %7074 = vmatmul.mubr.f32.gmra.mrb[0].mxu0 %v5733
      %v7075 = vpop.f32.mrb[0].mxu0
      %v7076 = vadd.f32 %v5897, %v7075
      %v7077 = vpop.f32.mrb[0].mxu0
      %v7078 = vadd.f32 %v5901, %v7077
      %7079 = vmatprep.mubr.f32.mxu0 0.0
      %7080 = vmatmul.mubr.f32.gmra.mrb[0].mxu0 %v5734
      %v7081 = vpop.f32.mrb[0].mxu0
      %v7082 = vadd.f32 %v5897, %v7081
      %v7083 = vpop.f32.mrb[0].mxu0
      %v7084 = vadd.f32 %v5901, %v7083
      %7085 = vmatprep.mubr.f32.mxu0 0.0
      %7086 = vmatmul.mubr.f32.gmra.mrb[0].mxu0 %v5735
      %v7087 = vpop.f32.mrb[0].mxu0
      %v7088 = vadd.f32 %v5897, %v7087
      %v7089 = vpop.f32.mrb[0].mxu0
      %v7090 = vadd.f32 %v5901, %v7089
      %7091 = vmatprep.mubr.f32.mxu0 0.0
      %7092 = vmatmul.mubr.f32.gmra.mrb[0].mxu0 %v5736
      %v7093 = vpop.f32.mrb[0].mxu0
      %v7094 = vadd.f32 %v5897, %v7093
      %v7095 = vpop.f32.mrb[0].mxu0
      %v7096 = vadd.f32 %v5901, %v7095
      %7097 = vmatprep.mubr.f32.mxu0 0.0
      %7098 = vmatmul.mubr.f32.gmra.mrb[0].mxu0 %v5737
      %v7099 = vpop.f32.mrb[0].mxu0
      %v7100 = vadd.f32 %v5897, %v7099
      %v7101 = vpop.f32.mrb[0].mxu0
      %v7102 = vadd.f32 %v5901, %v7101
      %7103 = vmatprep.mubr.f32.mxu0 0.0
      %7104 = vmatmul.mubr.f32.gmra.mrb[0].mxu0 %v5738
      %v7105 = vpop.f32.mrb[0].mxu0
      %v7106 = vadd.f32 %v5897, %v7105
      %v7107 = vpop.f32.mrb[0].mxu0
      %v7108 = vadd.f32 %v5901, %v7107
      %7109 = vmatprep.mubr.f32.mxu0 0.0
      %7110 = vmatmul.mubr.f32.gmra.mrb[0].mxu0 %v5739
      %v7111 = vpop.f32.mrb[0].mxu0
      %v7112 = vadd.f32 %v5897, %v7111
      %v7113 = vpop.f32.mrb[0].mxu0
      %v7114 = vadd.f32 %v5901, %v7113
      %7115 = vmatprep.mubr.f32.mxu0 0.0
      %7116 = vmatmul.mubr.f32.gmra.mrb[0].mxu0 %v5740
      %v7117 = vpop.f32.mrb[0].mxu0
      %v7118 = vadd.f32 %v5897, %v7117
      %v7119 = vpop.f32.mrb[0].mxu0
      %v7120 = vadd.f32 %v5901, %v7119
      %7121 = vmatprep.mubr.f32.mxu0 0.0
      %7122 = vmatmul.mubr.f32.gmra.mrb[0].mxu0 %v5741
      %v7123 = vpop.f32.mrb[0].mxu0
      %v7124 = vadd.f32 %v5897, %v7123
      %v7125 = vpop.f32.mrb[0].mxu0
      %v7126 = vadd.f32 %v5901, %v7125
      %7127 = vmatprep.mubr.f32.mxu0 0.0
      %7128 = vmatmul.mubr.f32.gmra.mrb[0].mxu0 %v5742
      %v7129 = vpop.f32.mrb[0].mxu0
      %v7130 = vadd.f32 %v5897, %v7129
      %v7131 = vpop.f32.mrb[0].mxu0
      %v7132 = vadd.f32 %v5901, %v7131
      %7133 = vmatprep.mubr.f32.mxu0 0.0
      %7134 = vmatmul.mubr.f32.gmra.mrb[0].mxu0 %v5743
      %v7135 = vpop.f32.mrb[0].mxu0
      %v7136 = vadd.f32 %v5897, %v7135
      %v7137 = vpop.f32.mrb[0].mxu0
      %v7138 = vadd.f32 %v5901, %v7137
      %7139 = vmatprep.mubr.f32.mxu0 0.0
      %7140 = vmatmul.mubr.f32.gmra.mrb[0].mxu0 %v5744
      %v7141 = vpop.f32.mrb[0].mxu0
      %v7142 = vadd.f32 %v5897, %v7141
      %v7143 = vpop.f32.mrb[0].mxu0
      %v7144 = vadd.f32 %v5901, %v7143
      %7145 = vmatprep.mubr.f32.mxu0 0.0
      %7146 = vmatmul.mubr.f32.gmra.mrb[0].mxu0 %v5745
      %v7147 = vpop.f32.mrb[0].mxu0
      %v7148 = vadd.f32 %v5897, %v7147
      %v7149 = vpop.f32.mrb[0].mxu0
      %v7150 = vadd.f32 %v5901, %v7149
      %7151 = vmatprep.mubr.f32.mxu0 0.0
      %7152 = vmatmul.mubr.f32.gmra.mrb[0].mxu0 %v5746
      %v7153 = vpop.f32.mrb[0].mxu0
      %v7154 = vadd.f32 %v5897, %v7153
      %v7155 = vpop.f32.mrb[0].mxu0
      %v7156 = vadd.f32 %v5901, %v7155
      %7157 = vmatprep.mubr.f32.mxu0 0.0
      %7158 = vmatmul.mubr.f32.gmra.mrb[0].mxu0 %v5747
      %v7159 = vpop.f32.mrb[0].mxu0
      %v7160 = vadd.f32 %v5897, %v7159
      %v7161 = vpop.f32.mrb[0].mxu0
      %v7162 = vadd.f32 %v5901, %v7161
      %7163 = vmatprep.mubr.f32.mxu0 0.0
      %7164 = vmatmul.mubr.f32.gmra.mrb[0].mxu0 %v5748
      %v7165 = vpop.f32.mrb[0].mxu0
      %v7166 = vadd.f32 %v5897, %v7165
      %v7167 = vpop.f32.mrb[0].mxu0
      %v7168 = vadd.f32 %v5901, %v7167
      %7169 = vmatprep.mubr.f32.mxu0 0.0
      %7170 = vmatmul.mubr.f32.gmra.mrb[0].mxu0 %v5749
      %v7171 = vpop.f32.mrb[0].mxu0
      %v7172 = vadd.f32 %v5897, %v7171
      %v7173 = vpop.f32.mrb[0].mxu0
      %v7174 = vadd.f32 %v5901, %v7173
      %7175 = vmatprep.mubr.f32.mxu0 0.0
      %7176 = vmatmul.mubr.f32.gmra.mrb[0].mxu0 %v5750
      %v7177 = vpop.f32.mrb[0].mxu0
      %v7178 = vadd.f32 %v5897, %v7177
      %v7179 = vpop.f32.mrb[0].mxu0
      %v7180 = vadd.f32 %v5901, %v7179
      %7181 = vmatprep.mubr.f32.mxu0 0.0
      %7182 = vmatmul.mubr.f32.gmra.mrb[0].mxu0 %v5751
      %v7183 = vpop.f32.mrb[0].mxu0
      %v7184 = vadd.f32 %v5897, %v7183
      %v7185 = vpop.f32.mrb[0].mxu0
      %v7186 = vadd.f32 %v5901, %v7185
      %7187 = vmatprep.mubr.f32.mxu0 0.0
      %7188 = vmatmul.mubr.f32.gmra.mrb[0].mxu0 %v5752
      %v7189 = vpop.f32.mrb[0].mxu0
      %v7190 = vadd.f32 %v5897, %v7189
      %v7191 = vpop.f32.mrb[0].mxu0
      %v7192 = vadd.f32 %v5901, %v7191
      %7193 = vmatprep.mubr.f32.mxu0 0.0
      %7194 = vmatmul.mubr.f32.gmra.mrb[0].mxu0 %v5753
      %v7195 = vpop.f32.mrb[0].mxu0
      %v7196 = vadd.f32 %v5897, %v7195
      %v7197 = vpop.f32.mrb[0].mxu0
      %v7198 = vadd.f32 %v5901, %v7197
      %7199 = vmatprep.mubr.f32.mxu0 0.0
      %7200 = vmatmul.mubr.f32.gmra.mrb[0].mxu0 %v5754
      %v7201 = vpop.f32.mrb[0].mxu0
      %v7202 = vadd.f32 %v5897, %v7201
      %v7203 = vpop.f32.mrb[0].mxu0
      %v7204 = vadd.f32 %v5901, %v7203
      %7205 = vmatprep.mubr.f32.mxu0 0.0
      %7206 = vmatmul.mubr.f32.gmra.mrb[0].mxu0 %v5755
      %v7207 = vpop.f32.mrb[0].mxu0
      %v7208 = vadd.f32 %v5897, %v7207
      %v7209 = vpop.f32.mrb[0].mxu0
      %v7210 = vadd.f32 %v5901, %v7209
      %7211 = vmatprep.mubr.f32.mxu0 0.0
      %7212 = vmatmul.mubr.f32.gmra.mrb[0].mxu0 %v5756
      %v7213 = vpop.f32.mrb[0].mxu0
      %v7214 = vadd.f32 %v5897, %v7213
      %v7215 = vpop.f32.mrb[0].mxu0
      %v7216 = vadd.f32 %v5901, %v7215
      %7217 = vmatprep.mubr.f32.mxu0 0.0
      %7218 = vmatmul.mubr.f32.gmra.mrb[0].mxu0 %v5757
      %v7219 = vpop.f32.mrb[0].mxu0
      %v7220 = vadd.f32 %v5897, %v7219
      %v7221 = vpop.f32.mrb[0].mxu0
      %v7222 = vadd.f32 %v5901, %v7221
      %7223 = vmatprep.mubr.f32.mxu0 0.0
      %7224 = vmatmul.mubr.f32.gmra.mrb[0].mxu0 %v5758
      %v7225 = vpop.f32.mrb[0].mxu0
      %v7226 = vadd.f32 %v5897, %v7225
      %v7227 = vpop.f32.mrb[0].mxu0
      %v7228 = vadd.f32 %v5901, %v7227
      %7229 = vmatprep.mubr.f32.mxu0 0.0
      %7230 = vmatmul.mubr.f32.gmra.mrb[0].mxu0 %v5759
      %v7231 = vpop.f32.mrb[0].mxu0
      %v7232 = vadd.f32 %v5897, %v7231
      %v7233 = vpop.f32.mrb[0].mxu0
      %v7234 = vadd.f32 %v5901, %v7233
      %7235 = vmatprep.mubr.f32.mxu0 0.0
      %7236 = vmatmul.mubr.f32.gmra.mrb[0].mxu0 %v5760
      %v7237 = vpop.f32.mrb[0].mxu0
      %v7238 = vadd.f32 %v5897, %v7237
      %v7239 = vpop.f32.mrb[0].mxu0
      %v7240 = vadd.f32 %v5901, %v7239
      %7241 = vmatprep.mubr.f32.mxu0 0.0
      %7242 = vmatmul.mubr.f32.gmra.mrb[0].mxu0 %v5761
      %v7243 = vpop.f32.mrb[0].mxu0
      %v7244 = vadd.f32 %v5897, %v7243
      %v7245 = vpop.f32.mrb[0].mxu0
      %v7246 = vadd.f32 %v5901, %v7245
      %7247 = vmatprep.mubr.f32.mxu0 0.0
      %7248 = vmatmul.mubr.f32.gmra.mrb[0].mxu0 %v5762
      %v7249 = vpop.f32.mrb[0].mxu0
      %v7250 = vadd.f32 %v5897, %v7249
      %v7251 = vpop.f32.mrb[0].mxu0
      %v7252 = vadd.f32 %v5901, %v7251
      %7253 = vmatprep.mubr.f32.mxu0 0.0
      %7254 = vmatmul.mubr.f32.gmra.mrb[0].mxu0 %v5763
      %v7255 = vpop.f32.mrb[0].mxu0
      %v7256 = vadd.f32 %v5897, %v7255
      %v7257 = vpop.f32.mrb[0].mxu0
      %v7258 = vadd.f32 %v5901, %v7257
      %7259 = vdwg.mxu0
      %7260 = vmatprep.subr.mxu0 0.0
      %7261 = vmatpush1.msra.mxu0 %v5770
      %7262 = vmatprep.subr.mxu0 0.0
      %7263 = vmatpush1.msra.mxu0 %v5777
      %7264 = vmatprep.subr.mxu0 0.0
      %7265 = vmatpush1.msra.mxu0 %v5784
      %7266 = vmatprep.subr.mxu0 0.0
      %7267 = vmatpush1.msra.mxu0 %v5791
      %7268 = vmatprep.subr.mxu0 0.0
      %7269 = vmatpush1.msra.mxu0 %v5798
      %7270 = vmatprep.subr.mxu0 0.0
      %7271 = vmatpush1.msra.mxu0 %v5805
      %7272 = vmatprep.subr.mxu0 0.0
      %7273 = vmatpush1.msra.mxu0 %v5812
      %7274 = vmatprep.subr.mxu0 0.0
      %7275 = vmatpush1.msra.mxu0 %v5819
      %7276 = vmatprep.subr.mxu0 0.0
      %7277 = vmatpush1.msra.mxu0 %v5826
      %7278 = vmatprep.subr.mxu0 0.0
      %7279 = vmatpush1.msra.mxu0 %v5833
      %7280 = vmatprep.subr.mxu0 0.0
      %7281 = vmatpush1.msra.mxu0 %v5840
      %7282 = vmatprep.subr.mxu0 0.0
      %7283 = vmatpush1.msra.mxu0 %v5847
      %7284 = vmatprep.subr.mxu0 0.0
      %7285 = vmatpush1.msra.mxu0 %v5854
      %7286 = vmatprep.subr.mxu0 0.0
      %7287 = vmatpush1.msra.mxu0 %v5861
      %7288 = vmatprep.subr.mxu0 0.0
      %7289 = vmatpush1.msra.mxu0 %v5868
      %7290 = vmatprep.subr.mxu0 0.0
      %7291 = vmatpush1.msra.mxu0 %v5875
      %7292 = vmatprep.subr.mxu0 0.0
      %7293 = vmatpush1.msra.mxu0 0.0
      %7294 = vmatprep.subr.mxu0 0.0
      %7295 = vmatpush1.msra.mxu0 0.0
      %7296 = vmatprep.subr.mxu0 0.0
      %7297 = vmatpush1.msra.mxu0 0.0
      %7298 = vmatprep.subr.mxu0 0.0
      %7299 = vmatpush1.msra.mxu0 0.0
      %7300 = vmatprep.subr.mxu0 0.0
      %7301 = vmatpush1.msra.mxu0 0.0
      %7302 = vmatprep.subr.mxu0 0.0
      %7303 = vmatpush1.msra.mxu0 0.0
      %7304 = vmatprep.subr.mxu0 0.0
      %7305 = vmatpush1.msra.mxu0 0.0
      %7306 = vmatprep.subr.mxu0 0.0
      %7307 = vmatpush1.msra.mxu0 0.0
      %7308 = vmatprep.subr.mxu0 0.0
      %7309 = vmatpush1.msra.mxu0 0.0
      %7310 = vmatprep.subr.mxu0 0.0
      %7311 = vmatpush1.msra.mxu0 0.0
      %7312 = vmatprep.subr.mxu0 0.0
      %7313 = vmatpush1.msra.mxu0 0.0
      %7314 = vmatprep.subr.mxu0 0.0
      %7315 = vmatpush1.msra.mxu0 0.0
      %7316 = vmatprep.subr.mxu0 0.0
      %7317 = vmatpush1.msra.mxu0 0.0
      %7318 = vmatprep.subr.mxu0 0.0
      %7319 = vmatpush1.msra.mxu0 0.0
      %7320 = vmatprep.subr.mxu0 0.0
      %7321 = vmatpush1.msra.mxu0 0.0
      %7322 = vmatprep.subr.mxu0 0.0
      %7323 = vmatpush1.msra.mxu0 0.0
      %7324 = vmatprep.mubr.f32.mxu0 0.0
      %7325 = vmatmul.mubr.f32.gmra.mrb[0].mxu0 %v5700
      %v7326 = vpop.f32.mrb[0].mxu0
      %v7327 = vadd.f32 %v5905, %v7326
      %v7328 = vpop.f32.mrb[0].mxu0
      %7329 = vmatprep.mubr.f32.mxu0 0.0
      %7330 = vmatmul.mubr.f32.gmra.mrb[0].mxu0 %v5701
      %v7331 = vpop.f32.mrb[0].mxu0
      %v7332 = vadd.f32 %v5905, %v7331
      %v7333 = vpop.f32.mrb[0].mxu0
      %7334 = vmatprep.mubr.f32.mxu0 0.0
      %7335 = vmatmul.mubr.f32.gmra.mrb[0].mxu0 %v5702
      %v7336 = vpop.f32.mrb[0].mxu0
      %v7337 = vadd.f32 %v5905, %v7336
      %v7338 = vpop.f32.mrb[0].mxu0
      %7339 = vmatprep.mubr.f32.mxu0 0.0
      %7340 = vmatmul.mubr.f32.gmra.mrb[0].mxu0 %v5703
      %v7341 = vpop.f32.mrb[0].mxu0
      %v7342 = vadd.f32 %v5905, %v7341
      %v7343 = vpop.f32.mrb[0].mxu0
      %7344 = vmatprep.mubr.f32.mxu0 0.0
      %7345 = vmatmul.mubr.f32.gmra.mrb[0].mxu0 %v5704
      %v7346 = vpop.f32.mrb[0].mxu0
      %v7347 = vadd.f32 %v5905, %v7346
      %v7348 = vpop.f32.mrb[0].mxu0
      %7349 = vmatprep.mubr.f32.mxu0 0.0
      %7350 = vmatmul.mubr.f32.gmra.mrb[0].mxu0 %v5705
      %v7351 = vpop.f32.mrb[0].mxu0
      %v7352 = vadd.f32 %v5905, %v7351
      %v7353 = vpop.f32.mrb[0].mxu0
      %7354 = vmatprep.mubr.f32.mxu0 0.0
      %7355 = vmatmul.mubr.f32.gmra.mrb[0].mxu0 %v5706
      %v7356 = vpop.f32.mrb[0].mxu0
      %v7357 = vadd.f32 %v5905, %v7356
      %v7358 = vpop.f32.mrb[0].mxu0
      %7359 = vmatprep.mubr.f32.mxu0 0.0
      %7360 = vmatmul.mubr.f32.gmra.mrb[0].mxu0 %v5707
      %v7361 = vpop.f32.mrb[0].mxu0
      %v7362 = vadd.f32 %v5905, %v7361
      %v7363 = vpop.f32.mrb[0].mxu0
      %7364 = vmatprep.mubr.f32.mxu0 0.0
      %7365 = vmatmul.mubr.f32.gmra.mrb[0].mxu0 %v5708
      %v7366 = vpop.f32.mrb[0].mxu0
      %v7367 = vadd.f32 %v5905, %v7366
      %v7368 = vpop.f32.mrb[0].mxu0
      %7369 = vmatprep.mubr.f32.mxu0 0.0
      %7370 = vmatmul.mubr.f32.gmra.mrb[0].mxu0 %v5709
      %v7371 = vpop.f32.mrb[0].mxu0
      %v7372 = vadd.f32 %v5905, %v7371
      %v7373 = vpop.f32.mrb[0].mxu0
      %7374 = vmatprep.mubr.f32.mxu0 0.0
      %7375 = vmatmul.mubr.f32.gmra.mrb[0].mxu0 %v5710
      %v7376 = vpop.f32.mrb[0].mxu0
      %v7377 = vadd.f32 %v5905, %v7376
      %v7378 = vpop.f32.mrb[0].mxu0
      %7379 = vmatprep.mubr.f32.mxu0 0.0
      %7380 = vmatmul.mubr.f32.gmra.mrb[0].mxu0 %v5711
      %v7381 = vpop.f32.mrb[0].mxu0
      %v7382 = vadd.f32 %v5905, %v7381
      %v7383 = vpop.f32.mrb[0].mxu0
      %7384 = vmatprep.mubr.f32.mxu0 0.0
      %7385 = vmatmul.mubr.f32.gmra.mrb[0].mxu0 %v5712
      %v7386 = vpop.f32.mrb[0].mxu0
      %v7387 = vadd.f32 %v5905, %v7386
      %v7388 = vpop.f32.mrb[0].mxu0
      %7389 = vmatprep.mubr.f32.mxu0 0.0
      %7390 = vmatmul.mubr.f32.gmra.mrb[0].mxu0 %v5713
      %v7391 = vpop.f32.mrb[0].mxu0
      %v7392 = vadd.f32 %v5905, %v7391
      %v7393 = vpop.f32.mrb[0].mxu0
      %7394 = vmatprep.mubr.f32.mxu0 0.0
      %7395 = vmatmul.mubr.f32.gmra.mrb[0].mxu0 %v5714
      %v7396 = vpop.f32.mrb[0].mxu0
      %v7397 = vadd.f32 %v5905, %v7396
      %v7398 = vpop.f32.mrb[0].mxu0
      %7399 = vmatprep.mubr.f32.mxu0 0.0
      %7400 = vmatmul.mubr.f32.gmra.mrb[0].mxu0 %v5715
      %v7401 = vpop.f32.mrb[0].mxu0
      %v7402 = vadd.f32 %v5905, %v7401
      %v7403 = vpop.f32.mrb[0].mxu0
      %7404 = vmatprep.mubr.f32.mxu0 0.0
      %7405 = vmatmul.mubr.f32.gmra.mrb[0].mxu0 %v5716
      %v7406 = vpop.f32.mrb[0].mxu0
      %v7407 = vadd.f32 %v5905, %v7406
      %v7408 = vpop.f32.mrb[0].mxu0
      %7409 = vmatprep.mubr.f32.mxu0 0.0
      %7410 = vmatmul.mubr.f32.gmra.mrb[0].mxu0 %v5717
      %v7411 = vpop.f32.mrb[0].mxu0
      %v7412 = vadd.f32 %v5905, %v7411
      %v7413 = vpop.f32.mrb[0].mxu0
      %7414 = vmatprep.mubr.f32.mxu0 0.0
      %7415 = vmatmul.mubr.f32.gmra.mrb[0].mxu0 %v5718
      %v7416 = vpop.f32.mrb[0].mxu0
      %v7417 = vadd.f32 %v5905, %v7416
      %v7418 = vpop.f32.mrb[0].mxu0
      %7419 = vmatprep.mubr.f32.mxu0 0.0
      %7420 = vmatmul.mubr.f32.gmra.mrb[0].mxu0 %v5719
      %v7421 = vpop.f32.mrb[0].mxu0
      %v7422 = vadd.f32 %v5905, %v7421
      %v7423 = vpop.f32.mrb[0].mxu0
      %7424 = vmatprep.mubr.f32.mxu0 0.0
      %7425 = vmatmul.mubr.f32.gmra.mrb[0].mxu0 %v5720
      %v7426 = vpop.f32.mrb[0].mxu0
      %v7427 = vadd.f32 %v5905, %v7426
      %v7428 = vpop.f32.mrb[0].mxu0
      %7429 = vmatprep.mubr.f32.mxu0 0.0
      %7430 = vmatmul.mubr.f32.gmra.mrb[0].mxu0 %v5721
      %v7431 = vpop.f32.mrb[0].mxu0
      %v7432 = vadd.f32 %v5905, %v7431
      %v7433 = vpop.f32.mrb[0].mxu0
      %7434 = vmatprep.mubr.f32.mxu0 0.0
      %7435 = vmatmul.mubr.f32.gmra.mrb[0].mxu0 %v5722
      %v7436 = vpop.f32.mrb[0].mxu0
      %v7437 = vadd.f32 %v5905, %v7436
      %v7438 = vpop.f32.mrb[0].mxu0
      %7439 = vmatprep.mubr.f32.mxu0 0.0
      %7440 = vmatmul.mubr.f32.gmra.mrb[0].mxu0 %v5723
      %v7441 = vpop.f32.mrb[0].mxu0
      %v7442 = vadd.f32 %v5905, %v7441
      %v7443 = vpop.f32.mrb[0].mxu0
      %7444 = vmatprep.mubr.f32.mxu0 0.0
      %7445 = vmatmul.mubr.f32.gmra.mrb[0].mxu0 %v5724
      %v7446 = vpop.f32.mrb[0].mxu0
      %v7447 = vadd.f32 %v5905, %v7446
      %v7448 = vpop.f32.mrb[0].mxu0
      %7449 = vmatprep.mubr.f32.mxu0 0.0
      %7450 = vmatmul.mubr.f32.gmra.mrb[0].mxu0 %v5725
      %v7451 = vpop.f32.mrb[0].mxu0
      %v7452 = vadd.f32 %v5905, %v7451
      %v7453 = vpop.f32.mrb[0].mxu0
      %7454 = vmatprep.mubr.f32.mxu0 0.0
      %7455 = vmatmul.mubr.f32.gmra.mrb[0].mxu0 %v5726
      %v7456 = vpop.f32.mrb[0].mxu0
      %v7457 = vadd.f32 %v5905, %v7456
      %v7458 = vpop.f32.mrb[0].mxu0
      %7459 = vmatprep.mubr.f32.mxu0 0.0
      %7460 = vmatmul.mubr.f32.gmra.mrb[0].mxu0 %v5727
      %v7461 = vpop.f32.mrb[0].mxu0
      %v7462 = vadd.f32 %v5905, %v7461
      %v7463 = vpop.f32.mrb[0].mxu0
      %7464 = vmatprep.mubr.f32.mxu0 0.0
      %7465 = vmatmul.mubr.f32.gmra.mrb[0].mxu0 %v5728
      %v7466 = vpop.f32.mrb[0].mxu0
      %v7467 = vadd.f32 %v5905, %v7466
      %v7468 = vpop.f32.mrb[0].mxu0
      %7469 = vmatprep.mubr.f32.mxu0 0.0
      %7470 = vmatmul.mubr.f32.gmra.mrb[0].mxu0 %v5729
      %v7471 = vpop.f32.mrb[0].mxu0
      %v7472 = vadd.f32 %v5905, %v7471
      %v7473 = vpop.f32.mrb[0].mxu0
      %7474 = vmatprep.mubr.f32.mxu0 0.0
      %7475 = vmatmul.mubr.f32.gmra.mrb[0].mxu0 %v5730
      %v7476 = vpop.f32.mrb[0].mxu0
      %v7477 = vadd.f32 %v5905, %v7476
      %v7478 = vpop.f32.mrb[0].mxu0
      %7479 = vmatprep.mubr.f32.mxu0 0.0
      %7480 = vmatmul.mubr.f32.gmra.mrb[0].mxu0 %v5731
      %v7481 = vpop.f32.mrb[0].mxu0
      %v7482 = vadd.f32 %v5905, %v7481
      %v7483 = vpop.f32.mrb[0].mxu0
      %7484 = vmatprep.mubr.f32.mxu0 0.0
      %7485 = vmatmul.mubr.f32.gmra.mrb[0].mxu0 %v5732
      %v7486 = vpop.f32.mrb[0].mxu0
      %v7487 = vadd.f32 %v5905, %v7486
      %v7488 = vpop.f32.mrb[0].mxu0
      %7489 = vmatprep.mubr.f32.mxu0 0.0
      %7490 = vmatmul.mubr.f32.gmra.mrb[0].mxu0 %v5733
      %v7491 = vpop.f32.mrb[0].mxu0
      %v7492 = vadd.f32 %v5905, %v7491
      %v7493 = vpop.f32.mrb[0].mxu0
      %7494 = vmatprep.mubr.f32.mxu0 0.0
      %7495 = vmatmul.mubr.f32.gmra.mrb[0].mxu0 %v5734
      %v7496 = vpop.f32.mrb[0].mxu0
      %v7497 = vadd.f32 %v5905, %v7496
      %v7498 = vpop.f32.mrb[0].mxu0
      %7499 = vmatprep.mubr.f32.mxu0 0.0
      %7500 = vmatmul.mubr.f32.gmra.mrb[0].mxu0 %v5735
      %v7501 = vpop.f32.mrb[0].mxu0
      %v7502 = vadd.f32 %v5905, %v7501
      %v7503 = vpop.f32.mrb[0].mxu0
      %7504 = vmatprep.mubr.f32.mxu0 0.0
      %7505 = vmatmul.mubr.f32.gmra.mrb[0].mxu0 %v5736
      %v7506 = vpop.f32.mrb[0].mxu0
      %v7507 = vadd.f32 %v5905, %v7506
      %v7508 = vpop.f32.mrb[0].mxu0
      %7509 = vmatprep.mubr.f32.mxu0 0.0
      %7510 = vmatmul.mubr.f32.gmra.mrb[0].mxu0 %v5737
      %v7511 = vpop.f32.mrb[0].mxu0
      %v7512 = vadd.f32 %v5905, %v7511
      %v7513 = vpop.f32.mrb[0].mxu0
      %7514 = vmatprep.mubr.f32.mxu0 0.0
      %7515 = vmatmul.mubr.f32.gmra.mrb[0].mxu0 %v5738
      %v7516 = vpop.f32.mrb[0].mxu0
      %v7517 = vadd.f32 %v5905, %v7516
      %v7518 = vpop.f32.mrb[0].mxu0
      %7519 = vmatprep.mubr.f32.mxu0 0.0
      %7520 = vmatmul.mubr.f32.gmra.mrb[0].mxu0 %v5739
      %v7521 = vpop.f32.mrb[0].mxu0
      %v7522 = vadd.f32 %v5905, %v7521
      %v7523 = vpop.f32.mrb[0].mxu0
      %7524 = vmatprep.mubr.f32.mxu0 0.0
      %7525 = vmatmul.mubr.f32.gmra.mrb[0].mxu0 %v5740
      %v7526 = vpop.f32.mrb[0].mxu0
      %v7527 = vadd.f32 %v5905, %v7526
      %v7528 = vpop.f32.mrb[0].mxu0
      %7529 = vmatprep.mubr.f32.mxu0 0.0
      %7530 = vmatmul.mubr.f32.gmra.mrb[0].mxu0 %v5741
      %v7531 = vpop.f32.mrb[0].mxu0
      %v7532 = vadd.f32 %v5905, %v7531
      %v7533 = vpop.f32.mrb[0].mxu0
      %7534 = vmatprep.mubr.f32.mxu0 0.0
      %7535 = vmatmul.mubr.f32.gmra.mrb[0].mxu0 %v5742
      %v7536 = vpop.f32.mrb[0].mxu0
      %v7537 = vadd.f32 %v5905, %v7536
      %v7538 = vpop.f32.mrb[0].mxu0
      %7539 = vmatprep.mubr.f32.mxu0 0.0
      %7540 = vmatmul.mubr.f32.gmra.mrb[0].mxu0 %v5743
      %v7541 = vpop.f32.mrb[0].mxu0
      %v7542 = vadd.f32 %v5905, %v7541
      %v7543 = vpop.f32.mrb[0].mxu0
      %7544 = vmatprep.mubr.f32.mxu0 0.0
      %7545 = vmatmul.mubr.f32.gmra.mrb[0].mxu0 %v5744
      %v7546 = vpop.f32.mrb[0].mxu0
      %v7547 = vadd.f32 %v5905, %v7546
      %v7548 = vpop.f32.mrb[0].mxu0
      %7549 = vmatprep.mubr.f32.mxu0 0.0
      %7550 = vmatmul.mubr.f32.gmra.mrb[0].mxu0 %v5745
      %v7551 = vpop.f32.mrb[0].mxu0
      %v7552 = vadd.f32 %v5905, %v7551
      %v7553 = vpop.f32.mrb[0].mxu0
      %7554 = vmatprep.mubr.f32.mxu0 0.0
      %7555 = vmatmul.mubr.f32.gmra.mrb[0].mxu0 %v5746
      %v7556 = vpop.f32.mrb[0].mxu0
      %v7557 = vadd.f32 %v5905, %v7556
      %v7558 = vpop.f32.mrb[0].mxu0
      %7559 = vmatprep.mubr.f32.mxu0 0.0
      %7560 = vmatmul.mubr.f32.gmra.mrb[0].mxu0 %v5747
      %v7561 = vpop.f32.mrb[0].mxu0
      %v7562 = vadd.f32 %v5905, %v7561
      %v7563 = vpop.f32.mrb[0].mxu0
      %7564 = vmatprep.mubr.f32.mxu0 0.0
      %7565 = vmatmul.mubr.f32.gmra.mrb[0].mxu0 %v5748
      %v7566 = vpop.f32.mrb[0].mxu0
      %v7567 = vadd.f32 %v5905, %v7566
      %v7568 = vpop.f32.mrb[0].mxu0
      %7569 = vmatprep.mubr.f32.mxu0 0.0
      %7570 = vmatmul.mubr.f32.gmra.mrb[0].mxu0 %v5749
      %v7571 = vpop.f32.mrb[0].mxu0
      %v7572 = vadd.f32 %v5905, %v7571
      %v7573 = vpop.f32.mrb[0].mxu0
      %7574 = vmatprep.mubr.f32.mxu0 0.0
      %7575 = vmatmul.mubr.f32.gmra.mrb[0].mxu0 %v5750
      %v7576 = vpop.f32.mrb[0].mxu0
      %v7577 = vadd.f32 %v5905, %v7576
      %v7578 = vpop.f32.mrb[0].mxu0
      %7579 = vmatprep.mubr.f32.mxu0 0.0
      %7580 = vmatmul.mubr.f32.gmra.mrb[0].mxu0 %v5751
      %v7581 = vpop.f32.mrb[0].mxu0
      %v7582 = vadd.f32 %v5905, %v7581
      %v7583 = vpop.f32.mrb[0].mxu0
      %7584 = vmatprep.mubr.f32.mxu0 0.0
      %7585 = vmatmul.mubr.f32.gmra.mrb[0].mxu0 %v5752
      %v7586 = vpop.f32.mrb[0].mxu0
      %v7587 = vadd.f32 %v5905, %v7586
      %v7588 = vpop.f32.mrb[0].mxu0
      %7589 = vmatprep.mubr.f32.mxu0 0.0
      %7590 = vmatmul.mubr.f32.gmra.mrb[0].mxu0 %v5753
      %v7591 = vpop.f32.mrb[0].mxu0
      %v7592 = vadd.f32 %v5905, %v7591
      %v7593 = vpop.f32.mrb[0].mxu0
      %7594 = vmatprep.mubr.f32.mxu0 0.0
      %7595 = vmatmul.mubr.f32.gmra.mrb[0].mxu0 %v5754
      %v7596 = vpop.f32.mrb[0].mxu0
      %v7597 = vadd.f32 %v5905, %v7596
      %v7598 = vpop.f32.mrb[0].mxu0
      %7599 = vmatprep.mubr.f32.mxu0 0.0
      %7600 = vmatmul.mubr.f32.gmra.mrb[0].mxu0 %v5755
      %v7601 = vpop.f32.mrb[0].mxu0
      %v7602 = vadd.f32 %v5905, %v7601
      %v7603 = vpop.f32.mrb[0].mxu0
      %7604 = vmatprep.mubr.f32.mxu0 0.0
      %7605 = vmatmul.mubr.f32.gmra.mrb[0].mxu0 %v5756
      %v7606 = vpop.f32.mrb[0].mxu0
      %v7607 = vadd.f32 %v5905, %v7606
      %v7608 = vpop.f32.mrb[0].mxu0
      %7609 = vmatprep.mubr.f32.mxu0 0.0
      %7610 = vmatmul.mubr.f32.gmra.mrb[0].mxu0 %v5757
      %v7611 = vpop.f32.mrb[0].mxu0
      %v7612 = vadd.f32 %v5905, %v7611
      %v7613 = vpop.f32.mrb[0].mxu0
      %7614 = vmatprep.mubr.f32.mxu0 0.0
      %7615 = vmatmul.mubr.f32.gmra.mrb[0].mxu0 %v5758
      %v7616 = vpop.f32.mrb[0].mxu0
      %v7617 = vadd.f32 %v5905, %v7616
      %v7618 = vpop.f32.mrb[0].mxu0
      %7619 = vmatprep.mubr.f32.mxu0 0.0
      %7620 = vmatmul.mubr.f32.gmra.mrb[0].mxu0 %v5759
      %v7621 = vpop.f32.mrb[0].mxu0
      %v7622 = vadd.f32 %v5905, %v7621
      %v7623 = vpop.f32.mrb[0].mxu0
      %7624 = vmatprep.mubr.f32.mxu0 0.0
      %7625 = vmatmul.mubr.f32.gmra.mrb[0].mxu0 %v5760
      %v7626 = vpop.f32.mrb[0].mxu0
      %v7627 = vadd.f32 %v5905, %v7626
      %v7628 = vpop.f32.mrb[0].mxu0
      %7629 = vmatprep.mubr.f32.mxu0 0.0
      %7630 = vmatmul.mubr.f32.gmra.mrb[0].mxu0 %v5761
      %v7631 = vpop.f32.mrb[0].mxu0
      %v7632 = vadd.f32 %v5905, %v7631
      %v7633 = vpop.f32.mrb[0].mxu0
      %7634 = vmatprep.mubr.f32.mxu0 0.0
      %7635 = vmatmul.mubr.f32.gmra.mrb[0].mxu0 %v5762
      %v7636 = vpop.f32.mrb[0].mxu0
      %v7637 = vadd.f32 %v5905, %v7636
      %v7638 = vpop.f32.mrb[0].mxu0
      %7639 = vmatprep.mubr.f32.mxu0 0.0
      %7640 = vmatmul.mubr.f32.gmra.mrb[0].mxu0 %v5763
      %v7641 = vpop.f32.mrb[0].mxu0
      %v7642 = vadd.f32 %v5905, %v7641
      %v7643 = vpop.f32.mrb[0].mxu0
      %7644 = vdwg.mxu0
      %v7645 = vtanh.pop %v5980
      %v7646 = vtanh.pop %v5982
      %v7647 = vtanh.pop %v6429
      %v7648 = vtanh.pop %v6431
      %v7649 = vtanh.pop %v6878
      %v7650 = vtanh.pop %v6880
      %v7651 = vtanh.pop %v7327
      %v7652 = vtanh.pop %v5986
      %v7653 = vtanh.pop %v5988
      %v7654 = vtanh.pop %v6435
      %v7655 = vtanh.pop %v6437
      %v7656 = vtanh.pop %v6884
      %v7657 = vtanh.pop %v6886
      %v7658 = vtanh.pop %v7332
      %v7659 = vtanh.pop %v5992
      %v7660 = vtanh.pop %v5994
      %v7661 = vtanh.pop %v6441
      %v7662 = vtanh.pop %v6443
      %v7663 = vtanh.pop %v6890
      %v7664 = vtanh.pop %v6892
      %v7665 = vtanh.pop %v7337
      %v7666 = vtanh.pop %v5998
      %v7667 = vtanh.pop %v6000
      %v7668 = vtanh.pop %v6447
      %v7669 = vtanh.pop %v6449
      %v7670 = vtanh.pop %v6896
      %v7671 = vtanh.pop %v6898
      %v7672 = vtanh.pop %v7342
      %v7673 = vtanh.pop %v6004
      %v7674 = vtanh.pop %v6006
      %v7675 = vtanh.pop %v6453
      %v7676 = vtanh.pop %v6455
      %v7677 = vtanh.pop %v6902
      %v7678 = vtanh.pop %v6904
      %v7679 = vtanh.pop %v7347
      %v7680 = vtanh.pop %v6010
      %v7681 = vtanh.pop %v6012
      %v7682 = vtanh.pop %v6459
      %v7683 = vtanh.pop %v6461
      %v7684 = vtanh.pop %v6908
      %v7685 = vtanh.pop %v6910
      %v7686 = vtanh.pop %v7352
      %v7687 = vtanh.pop %v6016
      %v7688 = vtanh.pop %v6018
      %v7689 = vtanh.pop %v6465
      %v7690 = vtanh.pop %v6467
      %v7691 = vtanh.pop %v6914
      %v7692 = vtanh.pop %v6916
      %v7693 = vtanh.pop %v7357
      %v7694 = vtanh.pop %v6022
      %v7695 = vtanh.pop %v6024
      %v7696 = vtanh.pop %v6471
      %v7697 = vtanh.pop %v6473
      %v7698 = vtanh.pop %v6920
      %v7699 = vtanh.pop %v6922
      %v7700 = vtanh.pop %v7362
      %v7701 = vtanh.pop %v6028
      %v7702 = vtanh.pop %v6030
      %v7703 = vtanh.pop %v6477
      %v7704 = vtanh.pop %v6479
      %v7705 = vtanh.pop %v6926
      %v7706 = vtanh.pop %v6928
      %v7707 = vtanh.pop %v7367
      %v7708 = vtanh.pop %v6034
      %v7709 = vtanh.pop %v6036
      %v7710 = vtanh.pop %v6483
      %v7711 = vtanh.pop %v6485
      %v7712 = vtanh.pop %v6932
      %v7713 = vtanh.pop %v6934
      %v7714 = vtanh.pop %v7372
      %v7715 = vtanh.pop %v6040
      %v7716 = vtanh.pop %v6042
      %v7717 = vtanh.pop %v6489
      %v7718 = vtanh.pop %v6491
      %v7719 = vtanh.pop %v6938
      %v7720 = vtanh.pop %v6940
      %v7721 = vtanh.pop %v7377
      %v7722 = vtanh.pop %v6046
      %v7723 = vtanh.pop %v6048
      %v7724 = vtanh.pop %v6495
      %v7725 = vtanh.pop %v6497
      %v7726 = vtanh.pop %v6944
      %v7727 = vtanh.pop %v6946
      %v7728 = vtanh.pop %v7382
      %v7729 = vtanh.pop %v6052
      %v7730 = vtanh.pop %v6054
      %v7731 = vtanh.pop %v6501
      %v7732 = vtanh.pop %v6503
      %v7733 = vtanh.pop %v6950
      %v7734 = vtanh.pop %v6952
      %v7735 = vtanh.pop %v7387
      %v7736 = vtanh.pop %v6058
      %v7737 = vtanh.pop %v6060
      %v7738 = vtanh.pop %v6507
      %v7739 = vtanh.pop %v6509
      %v7740 = vtanh.pop %v6956
      %v7741 = vtanh.pop %v6958
      %v7742 = vtanh.pop %v7392
      %v7743 = vtanh.pop %v6064
      %v7744 = vtanh.pop %v6066
      %v7745 = vtanh.pop %v6513
      %v7746 = vtanh.pop %v6515
      %v7747 = vtanh.pop %v6962
      %v7748 = vtanh.pop %v6964
      %v7749 = vtanh.pop %v7397
      %v7750 = vtanh.pop %v6070
      %v7751 = vtanh.pop %v6072
      %v7752 = vtanh.pop %v6519
      %v7753 = vtanh.pop %v6521
      %v7754 = vtanh.pop %v6968
      %v7755 = vtanh.pop %v6970
      %v7756 = vtanh.pop %v7402
      %v7757 = vtanh.pop %v6076
      %v7758 = vtanh.pop %v6078
      %v7759 = vtanh.pop %v6525
      %v7760 = vtanh.pop %v6527
      %v7761 = vtanh.pop %v6974
      %v7762 = vtanh.pop %v6976
      %v7763 = vtanh.pop %v7407
      %v7764 = vtanh.pop %v6082
      %v7765 = vtanh.pop %v6084
      %v7766 = vtanh.pop %v6531
      %v7767 = vtanh.pop %v6533
      %v7768 = vtanh.pop %v6980
      %v7769 = vtanh.pop %v6982
      %v7770 = vtanh.pop %v7412
      %v7771 = vtanh.pop %v6088
      %v7772 = vtanh.pop %v6090
      %v7773 = vtanh.pop %v6537
      %v7774 = vtanh.pop %v6539
      %v7775 = vtanh.pop %v6986
      %v7776 = vtanh.pop %v6988
      %v7777 = vtanh.pop %v7417
      %v7778 = vtanh.pop %v6094
      %v7779 = vtanh.pop %v6096
      %v7780 = vtanh.pop %v6543
      %v7781 = vtanh.pop %v6545
      %v7782 = vtanh.pop %v6992
      %v7783 = vtanh.pop %v6994
      %v7784 = vtanh.pop %v7422
      %v7785 = vtanh.pop %v6100
      %v7786 = vtanh.pop %v6102
      %v7787 = vtanh.pop %v6549
      %v7788 = vtanh.pop %v6551
      %v7789 = vtanh.pop %v6998
      %v7790 = vtanh.pop %v7000
      %v7791 = vtanh.pop %v7427
      %v7792 = vtanh.pop %v6106
      %v7793 = vtanh.pop %v6108
      %v7794 = vtanh.pop %v6555
      %v7795 = vtanh.pop %v6557
      %v7796 = vtanh.pop %v7004
      %v7797 = vtanh.pop %v7006
      %v7798 = vtanh.pop %v7432
      %v7799 = vtanh.pop %v6112
      %v7800 = vtanh.pop %v6114
      %v7801 = vtanh.pop %v6561
      %v7802 = vtanh.pop %v6563
      %v7803 = vtanh.pop %v7010
      %v7804 = vtanh.pop %v7012
      %v7805 = vtanh.pop %v7437
      %v7806 = vtanh.pop %v6118
      %v7807 = vtanh.pop %v6120
      %v7808 = vtanh.pop %v6567
      %v7809 = vtanh.pop %v6569
      %v7810 = vtanh.pop %v7016
      %v7811 = vtanh.pop %v7018
      %v7812 = vtanh.pop %v7442
      %v7813 = vtanh.pop %v6124
      %v7814 = vtanh.pop %v6126
      %v7815 = vtanh.pop %v6573
      %v7816 = vtanh.pop %v6575
      %v7817 = vtanh.pop %v7022
      %v7818 = vtanh.pop %v7024
      %v7819 = vtanh.pop %v7447
      %v7820 = vtanh.pop %v6130
      %v7821 = vtanh.pop %v6132
      %v7822 = vtanh.pop %v6579
      %v7823 = vtanh.pop %v6581
      %v7824 = vtanh.pop %v7028
      %v7825 = vtanh.pop %v7030
      %v7826 = vtanh.pop %v7452
      %v7827 = vtanh.pop %v6136
      %v7828 = vtanh.pop %v6138
      %v7829 = vtanh.pop %v6585
      %v7830 = vtanh.pop %v6587
      %v7831 = vtanh.pop %v7034
      %v7832 = vtanh.pop %v7036
      %v7833 = vtanh.pop %v7457
      %v7834 = vtanh.pop %v6142
      %v7835 = vtanh.pop %v6144
      %v7836 = vtanh.pop %v6591
      %v7837 = vtanh.pop %v6593
      %v7838 = vtanh.pop %v7040
      %v7839 = vtanh.pop %v7042
      %v7840 = vtanh.pop %v7462
      %v7841 = vtanh.pop %v6148
      %v7842 = vtanh.pop %v6150
      %v7843 = vtanh.pop %v6597
      %v7844 = vtanh.pop %v6599
      %v7845 = vtanh.pop %v7046
      %v7846 = vtanh.pop %v7048
      %v7847 = vtanh.pop %v7467
      %v7848 = vtanh.pop %v6154
      %v7849 = vtanh.pop %v6156
      %v7850 = vtanh.pop %v6603
      %v7851 = vtanh.pop %v6605
      %v7852 = vtanh.pop %v7052
      %v7853 = vtanh.pop %v7054
      %v7854 = vtanh.pop %v7472
      %v7855 = vtanh.pop %v6160
      %v7856 = vtanh.pop %v6162
      %v7857 = vtanh.pop %v6609
      %v7858 = vtanh.pop %v6611
      %v7859 = vtanh.pop %v7058
      %v7860 = vtanh.pop %v7060
      %v7861 = vtanh.pop %v7477
      %v7862 = vtanh.pop %v6166
      %v7863 = vtanh.pop %v6168
      %v7864 = vtanh.pop %v6615
      %v7865 = vtanh.pop %v6617
      %v7866 = vtanh.pop %v7064
      %v7867 = vtanh.pop %v7066
      %v7868 = vtanh.pop %v7482
      %v7869 = vtanh.pop %v6172
      %v7870 = vtanh.pop %v6174
      %v7871 = vtanh.pop %v6621
      %v7872 = vtanh.pop %v6623
      %v7873 = vtanh.pop %v7070
      %v7874 = vtanh.pop %v7072
      %v7875 = vtanh.pop %v7487
      %v7876 = vtanh.pop %v6178
      %v7877 = vtanh.pop %v6180
      %v7878 = vtanh.pop %v6627
      %v7879 = vtanh.pop %v6629
      %v7880 = vtanh.pop %v7076
      %v7881 = vtanh.pop %v7078
      %v7882 = vtanh.pop %v7492
      %v7883 = vtanh.pop %v6184
      %v7884 = vtanh.pop %v6186
      %v7885 = vtanh.pop %v6633
      %v7886 = vtanh.pop %v6635
      %v7887 = vtanh.pop %v7082
      %v7888 = vtanh.pop %v7084
      %v7889 = vtanh.pop %v7497
      %v7890 = vtanh.pop %v6190
      %v7891 = vtanh.pop %v6192
      %v7892 = vtanh.pop %v6639
      %v7893 = vtanh.pop %v6641
      %v7894 = vtanh.pop %v7088
      %v7895 = vtanh.pop %v7090
      %v7896 = vtanh.pop %v7502
      %v7897 = vtanh.pop %v6196
      %v7898 = vtanh.pop %v6198
      %v7899 = vtanh.pop %v6645
      %v7900 = vtanh.pop %v6647
      %v7901 = vtanh.pop %v7094
      %v7902 = vtanh.pop %v7096
      %v7903 = vtanh.pop %v7507
      %v7904 = vtanh.pop %v6202
      %v7905 = vtanh.pop %v6204
      %v7906 = vtanh.pop %v6651
      %v7907 = vtanh.pop %v6653
      %v7908 = vtanh.pop %v7100
      %v7909 = vtanh.pop %v7102
      %v7910 = vtanh.pop %v7512
      %v7911 = vtanh.pop %v6208
      %v7912 = vtanh.pop %v6210
      %v7913 = vtanh.pop %v6657
      %v7914 = vtanh.pop %v6659
      %v7915 = vtanh.pop %v7106
      %v7916 = vtanh.pop %v7108
      %v7917 = vtanh.pop %v7517
      %v7918 = vtanh.pop %v6214
      %v7919 = vtanh.pop %v6216
      %v7920 = vtanh.pop %v6663
      %v7921 = vtanh.pop %v6665
      %v7922 = vtanh.pop %v7112
      %v7923 = vtanh.pop %v7114
      %v7924 = vtanh.pop %v7522
      %v7925 = vtanh.pop %v6220
      %v7926 = vtanh.pop %v6222
      %v7927 = vtanh.pop %v6669
      %v7928 = vtanh.pop %v6671
      %v7929 = vtanh.pop %v7118
      %v7930 = vtanh.pop %v7120
      %v7931 = vtanh.pop %v7527
      %v7932 = vtanh.pop %v6226
      %v7933 = vtanh.pop %v6228
      %v7934 = vtanh.pop %v6675
      %v7935 = vtanh.pop %v6677
      %v7936 = vtanh.pop %v7124
      %v7937 = vtanh.pop %v7126
      %v7938 = vtanh.pop %v7532
      %v7939 = vtanh.pop %v6232
      %v7940 = vtanh.pop %v6234
      %v7941 = vtanh.pop %v6681
      %v7942 = vtanh.pop %v6683
      %v7943 = vtanh.pop %v7130
      %v7944 = vtanh.pop %v7132
      %v7945 = vtanh.pop %v7537
      %v7946 = vtanh.pop %v6238
      %v7947 = vtanh.pop %v6240
      %v7948 = vtanh.pop %v6687
      %v7949 = vtanh.pop %v6689
      %v7950 = vtanh.pop %v7136
      %v7951 = vtanh.pop %v7138
      %v7952 = vtanh.pop %v7542
      %v7953 = vtanh.pop %v6244
      %v7954 = vtanh.pop %v6246
      %v7955 = vtanh.pop %v6693
      %v7956 = vtanh.pop %v6695
      %v7957 = vtanh.pop %v7142
      %v7958 = vtanh.pop %v7144
      %v7959 = vtanh.pop %v7547
      %v7960 = vtanh.pop %v6250
      %v7961 = vtanh.pop %v6252
      %v7962 = vtanh.pop %v6699
      %v7963 = vtanh.pop %v6701
      %v7964 = vtanh.pop %v7148
      %v7965 = vtanh.pop %v7150
      %v7966 = vtanh.pop %v7552
      %v7967 = vtanh.pop %v6256
      %v7968 = vtanh.pop %v6258
      %v7969 = vtanh.pop %v6705
      %v7970 = vtanh.pop %v6707
      %v7971 = vtanh.pop %v7154
      %v7972 = vtanh.pop %v7156
      %v7973 = vtanh.pop %v7557
      %v7974 = vtanh.pop %v6262
      %v7975 = vtanh.pop %v6264
      %v7976 = vtanh.pop %v6711
      %v7977 = vtanh.pop %v6713
      %v7978 = vtanh.pop %v7160
      %v7979 = vtanh.pop %v7162
      %v7980 = vtanh.pop %v7562
      %v7981 = vtanh.pop %v6268
      %v7982 = vtanh.pop %v6270
      %v7983 = vtanh.pop %v6717
      %v7984 = vtanh.pop %v6719
      %v7985 = vtanh.pop %v7166
      %v7986 = vtanh.pop %v7168
      %v7987 = vtanh.pop %v7567
      %v7988 = vtanh.pop %v6274
      %v7989 = vtanh.pop %v6276
      %v7990 = vtanh.pop %v6723
      %v7991 = vtanh.pop %v6725
      %v7992 = vtanh.pop %v7172
      %v7993 = vtanh.pop %v7174
      %v7994 = vtanh.pop %v7572
      %v7995 = vtanh.pop %v6280
      %v7996 = vtanh.pop %v6282
      %v7997 = vtanh.pop %v6729
      %v7998 = vtanh.pop %v6731
      %v7999 = vtanh.pop %v7178
      %v8000 = vtanh.pop %v7180
      %v8001 = vtanh.pop %v7577
      %v8002 = vtanh.pop %v6286
      %v8003 = vtanh.pop %v6288
      %v8004 = vtanh.pop %v6735
      %v8005 = vtanh.pop %v6737
      %v8006 = vtanh.pop %v7184
      %v8007 = vtanh.pop %v7186
      %v8008 = vtanh.pop %v7582
      %v8009 = vtanh.pop %v6292
      %v8010 = vtanh.pop %v6294
      %v8011 = vtanh.pop %v6741
      %v8012 = vtanh.pop %v6743
      %v8013 = vtanh.pop %v7190
      %v8014 = vtanh.pop %v7192
      %v8015 = vtanh.pop %v7587
      %v8016 = vtanh.pop %v6298
      %v8017 = vtanh.pop %v6300
      %v8018 = vtanh.pop %v6747
      %v8019 = vtanh.pop %v6749
      %v8020 = vtanh.pop %v7196
      %v8021 = vtanh.pop %v7198
      %v8022 = vtanh.pop %v7592
      %v8023 = vtanh.pop %v6304
      %v8024 = vtanh.pop %v6306
      %v8025 = vtanh.pop %v6753
      %v8026 = vtanh.pop %v6755
      %v8027 = vtanh.pop %v7202
      %v8028 = vtanh.pop %v7204
      %v8029 = vtanh.pop %v7597
      %v8030 = vtanh.pop %v6310
      %v8031 = vtanh.pop %v6312
      %v8032 = vtanh.pop %v6759
      %v8033 = vtanh.pop %v6761
      %v8034 = vtanh.pop %v7208
      %v8035 = vtanh.pop %v7210
      %v8036 = vtanh.pop %v7602
      %v8037 = vtanh.pop %v6316
      %v8038 = vtanh.pop %v6318
      %v8039 = vtanh.pop %v6765
      %v8040 = vtanh.pop %v6767
      %v8041 = vtanh.pop %v7214
      %v8042 = vtanh.pop %v7216
      %v8043 = vtanh.pop %v7607
      %v8044 = vtanh.pop %v6322
      %v8045 = vtanh.pop %v6324
      %v8046 = vtanh.pop %v6771
      %v8047 = vtanh.pop %v6773
      %v8048 = vtanh.pop %v7220
      %v8049 = vtanh.pop %v7222
      %v8050 = vtanh.pop %v7612
      %v8051 = vtanh.pop %v6328
      %v8052 = vtanh.pop %v6330
      %v8053 = vtanh.pop %v6777
      %v8054 = vtanh.pop %v6779
      %v8055 = vtanh.pop %v7226
      %v8056 = vtanh.pop %v7228
      %v8057 = vtanh.pop %v7617
      %v8058 = vtanh.pop %v6334
      %v8059 = vtanh.pop %v6336
      %v8060 = vtanh.pop %v6783
      %v8061 = vtanh.pop %v6785
      %v8062 = vtanh.pop %v7232
      %v8063 = vtanh.pop %v7234
      %v8064 = vtanh.pop %v7622
      %v8065 = vtanh.pop %v6340
      %v8066 = vtanh.pop %v6342
      %v8067 = vtanh.pop %v6789
      %v8068 = vtanh.pop %v6791
      %v8069 = vtanh.pop %v7238
      %v8070 = vtanh.pop %v7240
      %v8071 = vtanh.pop %v7627
      %v8072 = vtanh.pop %v6346
      %v8073 = vtanh.pop %v6348
      %v8074 = vtanh.pop %v6795
      %v8075 = vtanh.pop %v6797
      %v8076 = vtanh.pop %v7244
      %v8077 = vtanh.pop %v7246
      %v8078 = vtanh.pop %v7632
      %v8079 = vtanh.pop %v6352
      %v8080 = vtanh.pop %v6354
      %v8081 = vtanh.pop %v6801
      %v8082 = vtanh.pop %v6803
      %v8083 = vtanh.pop %v7250
      %v8084 = vtanh.pop %v7252
      %v8085 = vtanh.pop %v7637
      %v8086 = vtanh.pop %v6358
      %v8087 = vtanh.pop %v6360
      %v8088 = vtanh.pop %v6807
      %v8089 = vtanh.pop %v6809
      %v8090 = vtanh.pop %v7256
      %v8091 = vtanh.pop %v7258
      %v8092 = vtanh.pop %v7642
      %8093 = vst [vmem:[%s501] sm:$0xff] %v7645
      %8094 = vst [vmem:[%s501 + $0x8] sm:$0xff] %v7646
      %8095 = vst [vmem:[%s501 + $0x10] sm:$0xff] %v7647
      %8096 = vst [vmem:[%s501 + $0x18] sm:$0xff] %v7648
      %8097 = vst [vmem:[%s501 + $0x20] sm:$0xff] %v7649
      %8098 = vst [vmem:[%s501 + $0x28] sm:$0xff] %v7650
      %8099 = vst [vmem:[%s501 + $0x30] sm:$0xff] %v7651
      %8100 = vst [vmem:[%s501 + $0x38] sm:$0xff] %v7652
      %8101 = vst [vmem:[%s501 + $0x40] sm:$0xff] %v7653
      %8102 = vst [vmem:[%s501 + $0x48] sm:$0xff] %v7654
      %8103 = vst [vmem:[%s501 + $0x50] sm:$0xff] %v7655
      %8104 = vst [vmem:[%s501 + $0x58] sm:$0xff] %v7656
      %8105 = vst [vmem:[%s501 + $0x60] sm:$0xff] %v7657
      %8106 = vst [vmem:[%s501 + $0x68] sm:$0xff] %v7658
      %8107 = vst [vmem:[%s501 + $0x70] sm:$0xff] %v7659
      %8108 = vst [vmem:[%s501 + $0x78] sm:$0xff] %v7660
      %8109 = vst [vmem:[%s501 + $0x80] sm:$0xff] %v7661
      %8110 = vst [vmem:[%s501 + $0x88] sm:$0xff] %v7662
      %8111 = vst [vmem:[%s501 + $0x90] sm:$0xff] %v7663
      %8112 = vst [vmem:[%s501 + $0x98] sm:$0xff] %v7664
      %8113 = vst [vmem:[%s501 + $0xa0] sm:$0xff] %v7665
      %8114 = vst [vmem:[%s501 + $0xa8] sm:$0xff] %v7666
      %8115 = vst [vmem:[%s501 + $0xb0] sm:$0xff] %v7667
      %8116 = vst [vmem:[%s501 + $0xb8] sm:$0xff] %v7668
      %8117 = vst [vmem:[%s501 + $0xc0] sm:$0xff] %v7669
      %8118 = vst [vmem:[%s501 + $0xc8] sm:$0xff] %v7670
      %8119 = vst [vmem:[%s501 + $0xd0] sm:$0xff] %v7671
      %8120 = vst [vmem:[%s501 + $0xd8] sm:$0xff] %v7672
      %8121 = vst [vmem:[%s501 + $0xe0] sm:$0xff] %v7673
      %8122 = vst [vmem:[%s501 + $0xe8] sm:$0xff] %v7674
      %8123 = vst [vmem:[%s501 + $0xf0] sm:$0xff] %v7675
      %8124 = vst [vmem:[%s501 + $0xf8] sm:$0xff] %v7676
      %8125 = vst [vmem:[%s501 + $0x100] sm:$0xff] %v7677
      %8126 = vst [vmem:[%s501 + $0x108] sm:$0xff] %v7678
      %8127 = vst [vmem:[%s501 + $0x110] sm:$0xff] %v7679
      %8128 = vst [vmem:[%s501 + $0x118] sm:$0xff] %v7680
      %8129 = vst [vmem:[%s501 + $0x120] sm:$0xff] %v7681
      %8130 = vst [vmem:[%s501 + $0x128] sm:$0xff] %v7682
      %8131 = vst [vmem:[%s501 + $0x130] sm:$0xff] %v7683
      %8132 = vst [vmem:[%s501 + $0x138] sm:$0xff] %v7684
      %8133 = vst [vmem:[%s501 + $0x140] sm:$0xff] %v7685
      %8134 = vst [vmem:[%s501 + $0x148] sm:$0xff] %v7686
      %8135 = vst [vmem:[%s501 + $0x150] sm:$0xff] %v7687
      %8136 = vst [vmem:[%s501 + $0x158] sm:$0xff] %v7688
      %8137 = vst [vmem:[%s501 + $0x160] sm:$0xff] %v7689
      %8138 = vst [vmem:[%s501 + $0x168] sm:$0xff] %v7690
      %8139 = vst [vmem:[%s501 + $0x170] sm:$0xff] %v7691
      %8140 = vst [vmem:[%s501 + $0x178] sm:$0xff] %v7692
      %8141 = vst [vmem:[%s501 + $0x180] sm:$0xff] %v7693
      %8142 = vst [vmem:[%s501 + $0x188] sm:$0xff] %v7694
      %8143 = vst [vmem:[%s501 + $0x190] sm:$0xff] %v7695
      %8144 = vst [vmem:[%s501 + $0x198] sm:$0xff] %v7696
      %8145 = vst [vmem:[%s501 + $0x1a0] sm:$0xff] %v7697
      %8146 = vst [vmem:[%s501 + $0x1a8] sm:$0xff] %v7698
      %8147 = vst [vmem:[%s501 + $0x1b0] sm:$0xff] %v7699
      %8148 = vst [vmem:[%s501 + $0x1b8] sm:$0xff] %v7700
      %8149 = vst [vmem:[%s501 + $0x1c0] sm:$0xff] %v7701
      %8150 = vst [vmem:[%s501 + $0x1c8] sm:$0xff] %v7702
      %8151 = vst [vmem:[%s501 + $0x1d0] sm:$0xff] %v7703
      %8152 = vst [vmem:[%s501 + $0x1d8] sm:$0xff] %v7704
      %8153 = vst [vmem:[%s501 + $0x1e0] sm:$0xff] %v7705
      %8154 = vst [vmem:[%s501 + $0x1e8] sm:$0xff] %v7706
      %8155 = vst [vmem:[%s501 + $0x1f0] sm:$0xff] %v7707
      %8156 = vst [vmem:[%s501 + $0x1f8] sm:$0xff] %v7708
      %8157 = vst [vmem:[%s501 + $0x200] sm:$0xff] %v7709
      %8158 = vst [vmem:[%s501 + $0x208] sm:$0xff] %v7710
      %8159 = vst [vmem:[%s501 + $0x210] sm:$0xff] %v7711
      %8160 = vst [vmem:[%s501 + $0x218] sm:$0xff] %v7712
      %8161 = vst [vmem:[%s501 + $0x220] sm:$0xff] %v7713
      %8162 = vst [vmem:[%s501 + $0x228] sm:$0xff] %v7714
      %8163 = vst [vmem:[%s501 + $0x230] sm:$0xff] %v7715
      %8164 = vst [vmem:[%s501 + $0x238] sm:$0xff] %v7716
      %8165 = vst [vmem:[%s501 + $0x240] sm:$0xff] %v7717
      %8166 = vst [vmem:[%s501 + $0x248] sm:$0xff] %v7718
      %8167 = vst [vmem:[%s501 + $0x250] sm:$0xff] %v7719
      %8168 = vst [vmem:[%s501 + $0x258] sm:$0xff] %v7720
      %8169 = vst [vmem:[%s501 + $0x260] sm:$0xff] %v7721
      %8170 = vst [vmem:[%s501 + $0x268] sm:$0xff] %v7722
      %8171 = vst [vmem:[%s501 + $0x270] sm:$0xff] %v7723
      %8172 = vst [vmem:[%s501 + $0x278] sm:$0xff] %v7724
      %8173 = vst [vmem:[%s501 + $0x280] sm:$0xff] %v7725
      %8174 = vst [vmem:[%s501 + $0x288] sm:$0xff] %v7726
      %8175 = vst [vmem:[%s501 + $0x290] sm:$0xff] %v7727
      %8176 = vst [vmem:[%s501 + $0x298] sm:$0xff] %v7728
      %8177 = vst [vmem:[%s501 + $0x2a0] sm:$0xff] %v7729
      %8178 = vst [vmem:[%s501 + $0x2a8] sm:$0xff] %v7730
      %8179 = vst [vmem:[%s501 + $0x2b0] sm:$0xff] %v7731
      %8180 = vst [vmem:[%s501 + $0x2b8] sm:$0xff] %v7732
      %8181 = vst [vmem:[%s501 + $0x2c0] sm:$0xff] %v7733
      %8182 = vst [vmem:[%s501 + $0x2c8] sm:$0xff] %v7734
      %8183 = vst [vmem:[%s501 + $0x2d0] sm:$0xff] %v7735
      %8184 = vst [vmem:[%s501 + $0x2d8] sm:$0xff] %v7736
      %8185 = vst [vmem:[%s501 + $0x2e0] sm:$0xff] %v7737
      %8186 = vst [vmem:[%s501 + $0x2e8] sm:$0xff] %v7738
      %8187 = vst [vmem:[%s501 + $0x2f0] sm:$0xff] %v7739
      %8188 = vst [vmem:[%s501 + $0x2f8] sm:$0xff] %v7740
      %8189 = vst [vmem:[%s501 + $0x300] sm:$0xff] %v7741
      %8190 = vst [vmem:[%s501 + $0x308] sm:$0xff] %v7742
      %8191 = vst [vmem:[%s501 + $0x310] sm:$0xff] %v7743
      %8192 = vst [vmem:[%s501 + $0x318] sm:$0xff] %v7744
      %8193 = vst [vmem:[%s501 + $0x320] sm:$0xff] %v7745
      %8194 = vst [vmem:[%s501 + $0x328] sm:$0xff] %v7746
      %8195 = vst [vmem:[%s501 + $0x330] sm:$0xff] %v7747
      %8196 = vst [vmem:[%s501 + $0x338] sm:$0xff] %v7748
      %8197 = vst [vmem:[%s501 + $0x340] sm:$0xff] %v7749
      %8198 = vst [vmem:[%s501 + $0x348] sm:$0xff] %v7750
      %8199 = vst [vmem:[%s501 + $0x350] sm:$0xff] %v7751
      %8200 = vst [vmem:[%s501 + $0x358] sm:$0xff] %v7752
      %8201 = vst [vmem:[%s501 + $0x360] sm:$0xff] %v7753
      %8202 = vst [vmem:[%s501 + $0x368] sm:$0xff] %v7754
      %8203 = vst [vmem:[%s501 + $0x370] sm:$0xff] %v7755
      %8204 = vst [vmem:[%s501 + $0x378] sm:$0xff] %v7756
      %8205 = vst [vmem:[%s501 + $0x380] sm:$0xff] %v7757
      %8206 = vst [vmem:[%s501 + $0x388] sm:$0xff] %v7758
      %8207 = vst [vmem:[%s501 + $0x390] sm:$0xff] %v7759
      %8208 = vst [vmem:[%s501 + $0x398] sm:$0xff] %v7760
      %8209 = vst [vmem:[%s501 + $0x3a0] sm:$0xff] %v7761
      %8210 = vst [vmem:[%s501 + $0x3a8] sm:$0xff] %v7762
      %8211 = vst [vmem:[%s501 + $0x3b0] sm:$0xff] %v7763
      %8212 = vst [vmem:[%s501 + $0x3b8] sm:$0xff] %v7764
      %8213 = vst [vmem:[%s501 + $0x3c0] sm:$0xff] %v7765
      %8214 = vst [vmem:[%s501 + $0x3c8] sm:$0xff] %v7766
      %8215 = vst [vmem:[%s501 + $0x3d0] sm:$0xff] %v7767
      %8216 = vst [vmem:[%s501 + $0x3d8] sm:$0xff] %v7768
      %8217 = vst [vmem:[%s501 + $0x3e0] sm:$0xff] %v7769
      %8218 = vst [vmem:[%s501 + $0x3e8] sm:$0xff] %v7770
      %8219 = vst [vmem:[%s501 + $0x3f0] sm:$0xff] %v7771
      %8220 = vst [vmem:[%s501 + $0x3f8] sm:$0xff] %v7772
      %8221 = vst [vmem:[%s501 + $0x400] sm:$0xff] %v7773
      %8222 = vst [vmem:[%s501 + $0x408] sm:$0xff] %v7774
      %8223 = vst [vmem:[%s501 + $0x410] sm:$0xff] %v7775
      %8224 = vst [vmem:[%s501 + $0x418] sm:$0xff] %v7776
      %8225 = vst [vmem:[%s501 + $0x420] sm:$0xff] %v7777
      %8226 = vst [vmem:[%s501 + $0x428] sm:$0xff] %v7778
      %8227 = vst [vmem:[%s501 + $0x430] sm:$0xff] %v7779
      %8228 = vst [vmem:[%s501 + $0x438] sm:$0xff] %v7780
      %8229 = vst [vmem:[%s501 + $0x440] sm:$0xff] %v7781
      %8230 = vst [vmem:[%s501 + $0x448] sm:$0xff] %v7782
      %8231 = vst [vmem:[%s501 + $0x450] sm:$0xff] %v7783
      %8232 = vst [vmem:[%s501 + $0x458] sm:$0xff] %v7784
      %8233 = vst [vmem:[%s501 + $0x460] sm:$0xff] %v7785
      %8234 = vst [vmem:[%s501 + $0x468] sm:$0xff] %v7786
      %8235 = vst [vmem:[%s501 + $0x470] sm:$0xff] %v7787
      %8236 = vst [vmem:[%s501 + $0x478] sm:$0xff] %v7788
      %8237 = vst [vmem:[%s501 + $0x480] sm:$0xff] %v7789
      %8238 = vst [vmem:[%s501 + $0x488] sm:$0xff] %v7790
      %8239 = vst [vmem:[%s501 + $0x490] sm:$0xff] %v7791
      %8240 = vst [vmem:[%s501 + $0x498] sm:$0xff] %v7792
      %8241 = vst [vmem:[%s501 + $0x4a0] sm:$0xff] %v7793
      %8242 = vst [vmem:[%s501 + $0x4a8] sm:$0xff] %v7794
      %8243 = vst [vmem:[%s501 + $0x4b0] sm:$0xff] %v7795
      %8244 = vst [vmem:[%s501 + $0x4b8] sm:$0xff] %v7796
      %8245 = vst [vmem:[%s501 + $0x4c0] sm:$0xff] %v7797
      %8246 = vst [vmem:[%s501 + $0x4c8] sm:$0xff] %v7798
      %8247 = vst [vmem:[%s501 + $0x4d0] sm:$0xff] %v7799
      %8248 = vst [vmem:[%s501 + $0x4d8] sm:$0xff] %v7800
      %8249 = vst [vmem:[%s501 + $0x4e0] sm:$0xff] %v7801
      %8250 = vst [vmem:[%s501 + $0x4e8] sm:$0xff] %v7802
      %8251 = vst [vmem:[%s501 + $0x4f0] sm:$0xff] %v7803
      %8252 = vst [vmem:[%s501 + $0x4f8] sm:$0xff] %v7804
      %8253 = vst [vmem:[%s501 + $0x500] sm:$0xff] %v7805
      %8254 = vst [vmem:[%s501 + $0x508] sm:$0xff] %v7806
      %8255 = vst [vmem:[%s501 + $0x510] sm:$0xff] %v7807
      %8256 = vst [vmem:[%s501 + $0x518] sm:$0xff] %v7808
      %8257 = vst [vmem:[%s501 + $0x520] sm:$0xff] %v7809
      %8258 = vst [vmem:[%s501 + $0x528] sm:$0xff] %v7810
      %8259 = vst [vmem:[%s501 + $0x530] sm:$0xff] %v7811
      %8260 = vst [vmem:[%s501 + $0x538] sm:$0xff] %v7812
      %8261 = vst [vmem:[%s501 + $0x540] sm:$0xff] %v7813
      %8262 = vst [vmem:[%s501 + $0x548] sm:$0xff] %v7814
      %8263 = vst [vmem:[%s501 + $0x550] sm:$0xff] %v7815
      %8264 = vst [vmem:[%s501 + $0x558] sm:$0xff] %v7816
      %8265 = vst [vmem:[%s501 + $0x560] sm:$0xff] %v7817
      %8266 = vst [vmem:[%s501 + $0x568] sm:$0xff] %v7818
      %8267 = vst [vmem:[%s501 + $0x570] sm:$0xff] %v7819
      %8268 = vst [vmem:[%s501 + $0x578] sm:$0xff] %v7820
      %8269 = vst [vmem:[%s501 + $0x580] sm:$0xff] %v7821
      %8270 = vst [vmem:[%s501 + $0x588] sm:$0xff] %v7822
      %8271 = vst [vmem:[%s501 + $0x590] sm:$0xff] %v7823
      %8272 = vst [vmem:[%s501 + $0x598] sm:$0xff] %v7824
      %8273 = vst [vmem:[%s501 + $0x5a0] sm:$0xff] %v7825
      %8274 = vst [vmem:[%s501 + $0x5a8] sm:$0xff] %v7826
      %8275 = vst [vmem:[%s501 + $0x5b0] sm:$0xff] %v7827
      %8276 = vst [vmem:[%s501 + $0x5b8] sm:$0xff] %v7828
      %8277 = vst [vmem:[%s501 + $0x5c0] sm:$0xff] %v7829
      %8278 = vst [vmem:[%s501 + $0x5c8] sm:$0xff] %v7830
      %8279 = vst [vmem:[%s501 + $0x5d0] sm:$0xff] %v7831
      %8280 = vst [vmem:[%s501 + $0x5d8] sm:$0xff] %v7832
      %8281 = vst [vmem:[%s501 + $0x5e0] sm:$0xff] %v7833
      %8282 = vst [vmem:[%s501 + $0x5e8] sm:$0xff] %v7834
      %8283 = vst [vmem:[%s501 + $0x5f0] sm:$0xff] %v7835
      %8284 = vst [vmem:[%s501 + $0x5f8] sm:$0xff] %v7836
      %8285 = vst [vmem:[%s501 + $0x600] sm:$0xff] %v7837
      %8286 = vst [vmem:[%s501 + $0x608] sm:$0xff] %v7838
      %8287 = vst [vmem:[%s501 + $0x610] sm:$0xff] %v7839
      %8288 = vst [vmem:[%s501 + $0x618] sm:$0xff] %v7840
      %8289 = vst [vmem:[%s501 + $0x620] sm:$0xff] %v7841
      %8290 = vst [vmem:[%s501 + $0x628] sm:$0xff] %v7842
      %8291 = vst [vmem:[%s501 + $0x630] sm:$0xff] %v7843
      %8292 = vst [vmem:[%s501 + $0x638] sm:$0xff] %v7844
      %8293 = vst [vmem:[%s501 + $0x640] sm:$0xff] %v7845
      %8294 = vst [vmem:[%s501 + $0x648] sm:$0xff] %v7846
      %8295 = vst [vmem:[%s501 + $0x650] sm:$0xff] %v7847
      %8296 = vst [vmem:[%s501 + $0x658] sm:$0xff] %v7848
      %8297 = vst [vmem:[%s501 + $0x660] sm:$0xff] %v7849
      %8298 = vst [vmem:[%s501 + $0x668] sm:$0xff] %v7850
      %8299 = vst [vmem:[%s501 + $0x670] sm:$0xff] %v7851
      %8300 = vst [vmem:[%s501 + $0x678] sm:$0xff] %v7852
      %8301 = vst [vmem:[%s501 + $0x680] sm:$0xff] %v7853
      %8302 = vst [vmem:[%s501 + $0x688] sm:$0xff] %v7854
      %8303 = vst [vmem:[%s501 + $0x690] sm:$0xff] %v7855
      %8304 = vst [vmem:[%s501 + $0x698] sm:$0xff] %v7856
      %8305 = vst [vmem:[%s501 + $0x6a0] sm:$0xff] %v7857
      %8306 = vst [vmem:[%s501 + $0x6a8] sm:$0xff] %v7858
      %8307 = vst [vmem:[%s501 + $0x6b0] sm:$0xff] %v7859
      %8308 = vst [vmem:[%s501 + $0x6b8] sm:$0xff] %v7860
      %8309 = vst [vmem:[%s501 + $0x6c0] sm:$0xff] %v7861
      %8310 = vst [vmem:[%s501 + $0x6c8] sm:$0xff] %v7862
      %8311 = vst [vmem:[%s501 + $0x6d0] sm:$0xff] %v7863
      %8312 = vst [vmem:[%s501 + $0x6d8] sm:$0xff] %v7864
      %8313 = vst [vmem:[%s501 + $0x6e0] sm:$0xff] %v7865
      %8314 = vst [vmem:[%s501 + $0x6e8] sm:$0xff] %v7866
      %8315 = vst [vmem:[%s501 + $0x6f0] sm:$0xff] %v7867
      %8316 = vst [vmem:[%s501 + $0x6f8] sm:$0xff] %v7868
      %8317 = vst [vmem:[%s501 + $0x700] sm:$0xff] %v7869
      %8318 = vst [vmem:[%s501 + $0x708] sm:$0xff] %v7870
      %8319 = vst [vmem:[%s501 + $0x710] sm:$0xff] %v7871
      %8320 = vst [vmem:[%s501 + $0x718] sm:$0xff] %v7872
      %8321 = vst [vmem:[%s501 + $0x720] sm:$0xff] %v7873
      %8322 = vst [vmem:[%s501 + $0x728] sm:$0xff] %v7874
      %8323 = vst [vmem:[%s501 + $0x730] sm:$0xff] %v7875
      %8324 = vst [vmem:[%s501 + $0x738] sm:$0xff] %v7876
      %8325 = vst [vmem:[%s501 + $0x740] sm:$0xff] %v7877
      %8326 = vst [vmem:[%s501 + $0x748] sm:$0xff] %v7878
      %8327 = vst [vmem:[%s501 + $0x750] sm:$0xff] %v7879
      %8328 = vst [vmem:[%s501 + $0x758] sm:$0xff] %v7880
      %8329 = vst [vmem:[%s501 + $0x760] sm:$0xff] %v7881
      %8330 = vst [vmem:[%s501 + $0x768] sm:$0xff] %v7882
      %8331 = vst [vmem:[%s501 + $0x770] sm:$0xff] %v7883
      %8332 = vst [vmem:[%s501 + $0x778] sm:$0xff] %v7884
      %8333 = vst [vmem:[%s501 + $0x780] sm:$0xff] %v7885
      %8334 = vst [vmem:[%s501 + $0x788] sm:$0xff] %v7886
      %8335 = vst [vmem:[%s501 + $0x790] sm:$0xff] %v7887
      %8336 = vst [vmem:[%s501 + $0x798] sm:$0xff] %v7888
      %8337 = vst [vmem:[%s501 + $0x7a0] sm:$0xff] %v7889
      %8338 = vst [vmem:[%s501 + $0x7a8] sm:$0xff] %v7890
      %8339 = vst [vmem:[%s501 + $0x7b0] sm:$0xff] %v7891
      %8340 = vst [vmem:[%s501 + $0x7b8] sm:$0xff] %v7892
      %8341 = vst [vmem:[%s501 + $0x7c0] sm:$0xff] %v7893
      %8342 = vst [vmem:[%s501 + $0x7c8] sm:$0xff] %v7894
      %8343 = vst [vmem:[%s501 + $0x7d0] sm:$0xff] %v7895
      %8344 = vst [vmem:[%s501 + $0x7d8] sm:$0xff] %v7896
      %8345 = vst [vmem:[%s501 + $0x7e0] sm:$0xff] %v7897
      %8346 = vst [vmem:[%s501 + $0x7e8] sm:$0xff] %v7898
      %8347 = vst [vmem:[%s501 + $0x7f0] sm:$0xff] %v7899
      %8348 = vst [vmem:[%s501 + $0x7f8] sm:$0xff] %v7900
      %8349 = vst [vmem:[%s501 + $0x800] sm:$0xff] %v7901
      %8350 = vst [vmem:[%s501 + $0x808] sm:$0xff] %v7902
      %8351 = vst [vmem:[%s501 + $0x810] sm:$0xff] %v7903
      %8352 = vst [vmem:[%s501 + $0x818] sm:$0xff] %v7904
      %8353 = vst [vmem:[%s501 + $0x820] sm:$0xff] %v7905
      %8354 = vst [vmem:[%s501 + $0x828] sm:$0xff] %v7906
      %8355 = vst [vmem:[%s501 + $0x830] sm:$0xff] %v7907
      %8356 = vst [vmem:[%s501 + $0x838] sm:$0xff] %v7908
      %8357 = vst [vmem:[%s501 + $0x840] sm:$0xff] %v7909
      %8358 = vst [vmem:[%s501 + $0x848] sm:$0xff] %v7910
      %8359 = vst [vmem:[%s501 + $0x850] sm:$0xff] %v7911
      %8360 = vst [vmem:[%s501 + $0x858] sm:$0xff] %v7912
      %8361 = vst [vmem:[%s501 + $0x860] sm:$0xff] %v7913
      %8362 = vst [vmem:[%s501 + $0x868] sm:$0xff] %v7914
      %8363 = vst [vmem:[%s501 + $0x870] sm:$0xff] %v7915
      %8364 = vst [vmem:[%s501 + $0x878] sm:$0xff] %v7916
      %8365 = vst [vmem:[%s501 + $0x880] sm:$0xff] %v7917
      %8366 = vst [vmem:[%s501 + $0x888] sm:$0xff] %v7918
      %8367 = vst [vmem:[%s501 + $0x890] sm:$0xff] %v7919
      %8368 = vst [vmem:[%s501 + $0x898] sm:$0xff] %v7920
      %8369 = vst [vmem:[%s501 + $0x8a0] sm:$0xff] %v7921
      %8370 = vst [vmem:[%s501 + $0x8a8] sm:$0xff] %v7922
      %8371 = vst [vmem:[%s501 + $0x8b0] sm:$0xff] %v7923
      %8372 = vst [vmem:[%s501 + $0x8b8] sm:$0xff] %v7924
      %8373 = vst [vmem:[%s501 + $0x8c0] sm:$0xff] %v7925
      %8374 = vst [vmem:[%s501 + $0x8c8] sm:$0xff] %v7926
      %8375 = vst [vmem:[%s501 + $0x8d0] sm:$0xff] %v7927
      %8376 = vst [vmem:[%s501 + $0x8d8] sm:$0xff] %v7928
      %8377 = vst [vmem:[%s501 + $0x8e0] sm:$0xff] %v7929
      %8378 = vst [vmem:[%s501 + $0x8e8] sm:$0xff] %v7930
      %8379 = vst [vmem:[%s501 + $0x8f0] sm:$0xff] %v7931
      %8380 = vst [vmem:[%s501 + $0x8f8] sm:$0xff] %v7932
      %8381 = vst [vmem:[%s501 + $0x900] sm:$0xff] %v7933
      %8382 = vst [vmem:[%s501 + $0x908] sm:$0xff] %v7934
      %8383 = vst [vmem:[%s501 + $0x910] sm:$0xff] %v7935
      %8384 = vst [vmem:[%s501 + $0x918] sm:$0xff] %v7936
      %8385 = vst [vmem:[%s501 + $0x920] sm:$0xff] %v7937
      %8386 = vst [vmem:[%s501 + $0x928] sm:$0xff] %v7938
      %8387 = vst [vmem:[%s501 + $0x930] sm:$0xff] %v7939
      %8388 = vst [vmem:[%s501 + $0x938] sm:$0xff] %v7940
      %8389 = vst [vmem:[%s501 + $0x940] sm:$0xff] %v7941
      %8390 = vst [vmem:[%s501 + $0x948] sm:$0xff] %v7942
      %8391 = vst [vmem:[%s501 + $0x950] sm:$0xff] %v7943
      %8392 = vst [vmem:[%s501 + $0x958] sm:$0xff] %v7944
      %8393 = vst [vmem:[%s501 + $0x960] sm:$0xff] %v7945
      %8394 = vst [vmem:[%s501 + $0x968] sm:$0xff] %v7946
      %8395 = vst [vmem:[%s501 + $0x970] sm:$0xff] %v7947
      %8396 = vst [vmem:[%s501 + $0x978] sm:$0xff] %v7948
      %8397 = vst [vmem:[%s501 + $0x980] sm:$0xff] %v7949
      %8398 = vst [vmem:[%s501 + $0x988] sm:$0xff] %v7950
      %8399 = vst [vmem:[%s501 + $0x990] sm:$0xff] %v7951
      %8400 = vst [vmem:[%s501 + $0x998] sm:$0xff] %v7952
      %8401 = vst [vmem:[%s501 + $0x9a0] sm:$0xff] %v7953
      %8402 = vst [vmem:[%s501 + $0x9a8] sm:$0xff] %v7954
      %8403 = vst [vmem:[%s501 + $0x9b0] sm:$0xff] %v7955
      %8404 = vst [vmem:[%s501 + $0x9b8] sm:$0xff] %v7956
      %8405 = vst [vmem:[%s501 + $0x9c0] sm:$0xff] %v7957
      %8406 = vst [vmem:[%s501 + $0x9c8] sm:$0xff] %v7958
      %8407 = vst [vmem:[%s501 + $0x9d0] sm:$0xff] %v7959
      %8408 = vst [vmem:[%s501 + $0x9d8] sm:$0xff] %v7960
      %8409 = vst [vmem:[%s501 + $0x9e0] sm:$0xff] %v7961
      %8410 = vst [vmem:[%s501 + $0x9e8] sm:$0xff] %v7962
      %8411 = vst [vmem:[%s501 + $0x9f0] sm:$0xff] %v7963
      %8412 = vst [vmem:[%s501 + $0x9f8] sm:$0xff] %v7964
      %8413 = vst [vmem:[%s501 + $0xa00] sm:$0xff] %v7965
      %8414 = vst [vmem:[%s501 + $0xa08] sm:$0xff] %v7966
      %8415 = vst [vmem:[%s501 + $0xa10] sm:$0xff] %v7967
      %8416 = vst [vmem:[%s501 + $0xa18] sm:$0xff] %v7968
      %8417 = vst [vmem:[%s501 + $0xa20] sm:$0xff] %v7969
      %8418 = vst [vmem:[%s501 + $0xa28] sm:$0xff] %v7970
      %8419 = vst [vmem:[%s501 + $0xa30] sm:$0xff] %v7971
      %8420 = vst [vmem:[%s501 + $0xa38] sm:$0xff] %v7972
      %8421 = vst [vmem:[%s501 + $0xa40] sm:$0xff] %v7973
      %8422 = vst [vmem:[%s501 + $0xa48] sm:$0xff] %v7974
      %8423 = vst [vmem:[%s501 + $0xa50] sm:$0xff] %v7975
      %8424 = vst [vmem:[%s501 + $0xa58] sm:$0xff] %v7976
      %8425 = vst [vmem:[%s501 + $0xa60] sm:$0xff] %v7977
      %8426 = vst [vmem:[%s501 + $0xa68] sm:$0xff] %v7978
      %8427 = vst [vmem:[%s501 + $0xa70] sm:$0xff] %v7979
      %8428 = vst [vmem:[%s501 + $0xa78] sm:$0xff] %v7980
      %8429 = vst [vmem:[%s501 + $0xa80] sm:$0xff] %v7981
      %8430 = vst [vmem:[%s501 + $0xa88] sm:$0xff] %v7982
      %8431 = vst [vmem:[%s501 + $0xa90] sm:$0xff] %v7983
      %8432 = vst [vmem:[%s501 + $0xa98] sm:$0xff] %v7984
      %8433 = vst [vmem:[%s501 + $0xaa0] sm:$0xff] %v7985
      %8434 = vst [vmem:[%s501 + $0xaa8] sm:$0xff] %v7986
      %8435 = vst [vmem:[%s501 + $0xab0] sm:$0xff] %v7987
      %8436 = vst [vmem:[%s501 + $0xab8] sm:$0xff] %v7988
      %8437 = vst [vmem:[%s501 + $0xac0] sm:$0xff] %v7989
      %8438 = vst [vmem:[%s501 + $0xac8] sm:$0xff] %v7990
      %8439 = vst [vmem:[%s501 + $0xad0] sm:$0xff] %v7991
      %8440 = vst [vmem:[%s501 + $0xad8] sm:$0xff] %v7992
      %8441 = vst [vmem:[%s501 + $0xae0] sm:$0xff] %v7993
      %8442 = vst [vmem:[%s501 + $0xae8] sm:$0xff] %v7994
      %8443 = vst [vmem:[%s501 + $0xaf0] sm:$0xff] %v7995
      %8444 = vst [vmem:[%s501 + $0xaf8] sm:$0xff] %v7996
      %8445 = vst [vmem:[%s501 + $0xb00] sm:$0xff] %v7997
      %8446 = vst [vmem:[%s501 + $0xb08] sm:$0xff] %v7998
      %8447 = vst [vmem:[%s501 + $0xb10] sm:$0xff] %v7999
      %8448 = vst [vmem:[%s501 + $0xb18] sm:$0xff] %v8000
      %8449 = vst [vmem:[%s501 + $0xb20] sm:$0xff] %v8001
      %8450 = vst [vmem:[%s501 + $0xb28] sm:$0xff] %v8002
      %8451 = vst [vmem:[%s501 + $0xb30] sm:$0xff] %v8003
      %8452 = vst [vmem:[%s501 + $0xb38] sm:$0xff] %v8004
      %8453 = vst [vmem:[%s501 + $0xb40] sm:$0xff] %v8005
      %8454 = vst [vmem:[%s501 + $0xb48] sm:$0xff] %v8006
      %8455 = vst [vmem:[%s501 + $0xb50] sm:$0xff] %v8007
      %8456 = vst [vmem:[%s501 + $0xb58] sm:$0xff] %v8008
      %8457 = vst [vmem:[%s501 + $0xb60] sm:$0xff] %v8009
      %8458 = vst [vmem:[%s501 + $0xb68] sm:$0xff] %v8010
      %8459 = vst [vmem:[%s501 + $0xb70] sm:$0xff] %v8011
      %8460 = vst [vmem:[%s501 + $0xb78] sm:$0xff] %v8012
      %8461 = vst [vmem:[%s501 + $0xb80] sm:$0xff] %v8013
      %8462 = vst [vmem:[%s501 + $0xb88] sm:$0xff] %v8014
      %8463 = vst [vmem:[%s501 + $0xb90] sm:$0xff] %v8015
      %8464 = vst [vmem:[%s501 + $0xb98] sm:$0xff] %v8016
      %8465 = vst [vmem:[%s501 + $0xba0] sm:$0xff] %v8017
      %8466 = vst [vmem:[%s501 + $0xba8] sm:$0xff] %v8018
      %8467 = vst [vmem:[%s501 + $0xbb0] sm:$0xff] %v8019
      %8468 = vst [vmem:[%s501 + $0xbb8] sm:$0xff] %v8020
      %8469 = vst [vmem:[%s501 + $0xbc0] sm:$0xff] %v8021
      %8470 = vst [vmem:[%s501 + $0xbc8] sm:$0xff] %v8022
      %8471 = vst [vmem:[%s501 + $0xbd0] sm:$0xff] %v8023
      %8472 = vst [vmem:[%s501 + $0xbd8] sm:$0xff] %v8024
      %8473 = vst [vmem:[%s501 + $0xbe0] sm:$0xff] %v8025
      %8474 = vst [vmem:[%s501 + $0xbe8] sm:$0xff] %v8026
      %8475 = vst [vmem:[%s501 + $0xbf0] sm:$0xff] %v8027
      %8476 = vst [vmem:[%s501 + $0xbf8] sm:$0xff] %v8028
      %8477 = vst [vmem:[%s501 + $0xc00] sm:$0xff] %v8029
      %8478 = vst [vmem:[%s501 + $0xc08] sm:$0xff] %v8030
      %8479 = vst [vmem:[%s501 + $0xc10] sm:$0xff] %v8031
      %8480 = vst [vmem:[%s501 + $0xc18] sm:$0xff] %v8032
      %8481 = vst [vmem:[%s501 + $0xc20] sm:$0xff] %v8033
      %8482 = vst [vmem:[%s501 + $0xc28] sm:$0xff] %v8034
      %8483 = vst [vmem:[%s501 + $0xc30] sm:$0xff] %v8035
      %8484 = vst [vmem:[%s501 + $0xc38] sm:$0xff] %v8036
      %8485 = vst [vmem:[%s501 + $0xc40] sm:$0xff] %v8037
      %8486 = vst [vmem:[%s501 + $0xc48] sm:$0xff] %v8038
      %8487 = vst [vmem:[%s501 + $0xc50] sm:$0xff] %v8039
      %8488 = vst [vmem:[%s501 + $0xc58] sm:$0xff] %v8040
      %8489 = vst [vmem:[%s501 + $0xc60] sm:$0xff] %v8041
      %8490 = vst [vmem:[%s501 + $0xc68] sm:$0xff] %v8042
      %8491 = vst [vmem:[%s501 + $0xc70] sm:$0xff] %v8043
      %8492 = vst [vmem:[%s501 + $0xc78] sm:$0xff] %v8044
      %8493 = vst [vmem:[%s501 + $0xc80] sm:$0xff] %v8045
      %8494 = vst [vmem:[%s501 + $0xc88] sm:$0xff] %v8046
      %8495 = vst [vmem:[%s501 + $0xc90] sm:$0xff] %v8047
      %8496 = vst [vmem:[%s501 + $0xc98] sm:$0xff] %v8048
      %8497 = vst [vmem:[%s501 + $0xca0] sm:$0xff] %v8049
      %8498 = vst [vmem:[%s501 + $0xca8] sm:$0xff] %v8050
      %8499 = vst [vmem:[%s501 + $0xcb0] sm:$0xff] %v8051
      %8500 = vst [vmem:[%s501 + $0xcb8] sm:$0xff] %v8052
      %8501 = vst [vmem:[%s501 + $0xcc0] sm:$0xff] %v8053
      %8502 = vst [vmem:[%s501 + $0xcc8] sm:$0xff] %v8054
      %8503 = vst [vmem:[%s501 + $0xcd0] sm:$0xff] %v8055
      %8504 = vst [vmem:[%s501 + $0xcd8] sm:$0xff] %v8056
      %8505 = vst [vmem:[%s501 + $0xce0] sm:$0xff] %v8057
      %8506 = vst [vmem:[%s501 + $0xce8] sm:$0xff] %v8058
      %8507 = vst [vmem:[%s501 + $0xcf0] sm:$0xff] %v8059
      %8508 = vst [vmem:[%s501 + $0xcf8] sm:$0xff] %v8060
      %8509 = vst [vmem:[%s501 + $0xd00] sm:$0xff] %v8061
      %8510 = vst [vmem:[%s501 + $0xd08] sm:$0xff] %v8062
      %8511 = vst [vmem:[%s501 + $0xd10] sm:$0xff] %v8063
      %8512 = vst [vmem:[%s501 + $0xd18] sm:$0xff] %v8064
      %8513 = vst [vmem:[%s501 + $0xd20] sm:$0xff] %v8065
      %8514 = vst [vmem:[%s501 + $0xd28] sm:$0xff] %v8066
      %8515 = vst [vmem:[%s501 + $0xd30] sm:$0xff] %v8067
      %8516 = vst [vmem:[%s501 + $0xd38] sm:$0xff] %v8068
      %8517 = vst [vmem:[%s501 + $0xd40] sm:$0xff] %v8069
      %8518 = vst [vmem:[%s501 + $0xd48] sm:$0xff] %v8070
      %8519 = vst [vmem:[%s501 + $0xd50] sm:$0xff] %v8071
      %8520 = vst [vmem:[%s501 + $0xd58] sm:$0xff] %v8072
      %8521 = vst [vmem:[%s501 + $0xd60] sm:$0xff] %v8073
      %8522 = vst [vmem:[%s501 + $0xd68] sm:$0xff] %v8074
      %8523 = vst [vmem:[%s501 + $0xd70] sm:$0xff] %v8075
      %8524 = vst [vmem:[%s501 + $0xd78] sm:$0xff] %v8076
      %8525 = vst [vmem:[%s501 + $0xd80] sm:$0xff] %v8077
      %8526 = vst [vmem:[%s501 + $0xd88] sm:$0xff] %v8078
      %8527 = vst [vmem:[%s501 + $0xd90] sm:$0xff] %v8079
      %8528 = vst [vmem:[%s501 + $0xd98] sm:$0xff] %v8080
      %8529 = vst [vmem:[%s501 + $0xda0] sm:$0xff] %v8081
      %8530 = vst [vmem:[%s501 + $0xda8] sm:$0xff] %v8082
      %8531 = vst [vmem:[%s501 + $0xdb0] sm:$0xff] %v8083
      %8532 = vst [vmem:[%s501 + $0xdb8] sm:$0xff] %v8084
      %8533 = vst [vmem:[%s501 + $0xdc0] sm:$0xff] %v8085
      %8534 = vst [vmem:[%s501 + $0xdc8] sm:$0xff] %v8086
      %8535 = vst [vmem:[%s501 + $0xdd0] sm:$0xff] %v8087
      %8536 = vst [vmem:[%s501 + $0xdd8] sm:$0xff] %v8088
      %8537 = vst [vmem:[%s501 + $0xde0] sm:$0xff] %v8089
      %8538 = vst [vmem:[%s501 + $0xde8] sm:$0xff] %v8090
      %8539 = vst [vmem:[%s501 + $0xdf0] sm:$0xff] %v8091
      %8540 = vst [vmem:[%s501 + $0xdf8] sm:$0xff] %v8092
      %s8541 = smul.u32 64, %s26
      %p8542 = scmp.lt.s32.totalorder %s8541, 127
      %s8543 = scalar_select %p8542, %s8541, 127
      %s8544 = smul.addr %s8543, 7
      %s8545 = smul.addr %s8544, 8
      %s8546 = scalar_lea.vmem %s15, %s8545
      // Predicated region
      $region81: #{autoencoder_forward.1} parent=79 // pred_check
        %p8547 = pneg %p364
      $region82: #{autoencoder_forward.1} parent=79 // pred_check_branch
        %8549 = sbr.rel (%p8547) target = $region84
      $region83: #{autoencoder_forward.1} parent=79 // pred_region
        %s8550 = smul.u32 64, %s26
      $region84: #{autoencoder_forward.1} parent=79 // pred_fallthru
        _
    $region80: #{autoencoder_forward.1} parent=5 // pred_fallthru
      _
    %p8551 = scmp.le.s32.totalorder 2, %s21
    // Predicated region
    $region85: #{autoencoder_forward.1} parent=5 // pred_check
      %p8552 = pneg %p8551
    $region86: #{autoencoder_forward.1} parent=5 // pred_check_branch
      %8554 = sbr.rel (%p8552) target = $region88
    $region87: #{autoencoder_forward.1} parent=5 // pred_region
      %s8555 = ssub.s32 %s21, 2
      // Predicated region
      $region89: #{autoencoder_forward.1} parent=87 // pred_check
        %p8556 = pneg %p370
      $region90: #{autoencoder_forward.1} parent=87 // pred_check_branch
        %8558 = sbr.rel (%p8556) target = $region92
      $region91: #{autoencoder_forward.1} parent=87 // pred_region
        %s8559 = smul.u32 64, %s27
        %p8560 = scmp.lt.s32.totalorder %s8559, 127
        %s8561 = scalar_select %p8560, %s8559, 127
        %s8562 = smul.addr %s8561, 7
        %s8563 = smul.addr %s8562, 8
        %s8564 = scalar_lea.vmem %s15, %s8563
      $region92: #{autoencoder_forward.1} parent=87 // pred_fallthru
        _
    $region88: #{autoencoder_forward.1} parent=5 // pred_fallthru
      _
  $region6: #{autoencoder_forward.1} parent=0 // loop_footer
    %s25 = sadd.s32 1, %s21
  $region7: #{autoencoder_forward.1} parent=0 // loop_footer_branch
    %20 = sbr.rel target = $region3
  $region8: #{autoencoder_forward.1} parent=0 // loop_exit
    _

</llo_original>
